<compile_context>
chip_gen: v7x
topology: tpu7x:2x2x1
jax: 0.10.0
libtpu: 0.0.40
codegen_flags: <defaults>
</compile_context>

<pallas_src>
import functools
import math

import jax
import jax.numpy as jnp
from jax.experimental import pallas as pl
from jax.experimental.pallas import tpu as pltpu

LN_EPS = 1e-5  # nn.LayerNorm default


def _round_up(x, m):
    return ((x + m - 1) // m) * m


def _ln(x, w, b):
    mu = jnp.mean(x, axis=-1, keepdims=True)
    var = jnp.mean(jnp.square(x - mu), axis=-1, keepdims=True)
    return (x - mu) * jax.lax.rsqrt(var + LN_EPS) * w + b


# --------------------------------------------------------------------------
# Fused ViT kernel.  grid = (num_layers,).  The (B*S_pad, D) activation is
# carried across layers in VMEM scratch; per-layer weights (stacked on a
# leading L axis, bf16) are streamed via BlockSpec (double-buffered DMA).
# --------------------------------------------------------------------------
def _vit_kernel(B, S_pad, num_heads, head_dim,
                patches_ref, wc_ref, add_ref, bias_ref, rowmask_ref,
                ln1w_ref, ln1b_ref,
                wq_ref, bq_ref, wk_ref, bk_ref, wv_ref, bv_ref,
                wo_ref, bo_ref,
                ln2w_ref, ln2b_ref, w1_ref, b1_ref, w2_ref, b2_ref,
                hlnw_ref, hlnb_ref, hw_ref, hb_ref,
                logits_ref, x_scr):
    layer = pl.program_id(0)
    M, D = x_scr.shape                       # M = B * S_pad
    scale = 1.0 / math.sqrt(head_dim)

    # ---- fused patch embedding (conv-as-matmul + bias/CLS/pos add) ----
    @pl.when(layer == 0)
    def _():
        x_scr[...] = (
            jnp.dot(patches_ref[...], wc_ref[...],
                    preferred_element_type=jnp.float32)
            + add_ref[...])

    x = x_scr[...]                           # (M, D), padded rows are zero

    # ---- pre-LN 1 + multi-head self-attention ----
    xn = _ln(x, ln1w_ref[0], ln1b_ref[0])
    xn_b = xn.astype(jnp.bfloat16)
    # additive key-padding bias, hoisted once per layer
    bias = jnp.broadcast_to(bias_ref[...], (B, S_pad, S_pad))

    attn = bo_ref[0]                         # (1, D), broadcasts on first add
    for h in range(num_heads):               # no lane slicing / no concat
        q = jnp.dot(xn_b, wq_ref[0, h],
                    preferred_element_type=jnp.float32) + bq_ref[0, h]
        k = jnp.dot(xn_b, wk_ref[0, h],
                    preferred_element_type=jnp.float32) + bk_ref[0, h]
        v = jnp.dot(xn_b, wv_ref[0, h],
                    preferred_element_type=jnp.float32) + bv_ref[0, h]
        qb = q.reshape(B, S_pad, head_dim)
        kb = k.reshape(B, S_pad, head_dim)
        vb = v.reshape(B, S_pad, head_dim)
        s = jnp.einsum('bqd,bkd->bqk', qb, kb,
                       preferred_element_type=jnp.float32) * scale + bias
        s = s - jnp.max(s, axis=-1, keepdims=True)
        p = jnp.exp(s)
        # approx reciprocal (EUP): small relative error vs exact softmax
        p = p * pl.reciprocal(jnp.sum(p, axis=-1, keepdims=True), approx=True)
        o = jnp.einsum('bqk,bkd->bqd', p, vb,
                       preferred_element_type=jnp.float32)
        attn = attn + jnp.dot(
            o.reshape(M, head_dim).astype(jnp.bfloat16), wo_ref[0, h],
            preferred_element_type=jnp.float32)

    x = x + attn                             # dropout(p=0.0) == identity

    # ---- pre-LN 2 + feed-forward ----
    xn2 = _ln(x, ln2w_ref[0], ln2b_ref[0])
    h1 = jnp.dot(xn2.astype(jnp.bfloat16), w1_ref[0],
                 preferred_element_type=jnp.float32) + b1_ref[0]
    h1 = jnp.maximum(h1, 0.0)                # activation = "relu"
    ff = jnp.dot(h1.astype(jnp.bfloat16), w2_ref[0],
                 preferred_element_type=jnp.float32) + b2_ref[0]

    y = (x + ff) * rowmask_ref[...]          # re-zero padded rows every layer
    x_scr[...] = y                           # carry to next layer

    # ---- classification head on CLS tokens (fused, last layer only) ----
    @pl.when(layer == pl.num_programs(0) - 1)
    def _():
        # CLS row of each sample sits at a sublane-aligned offset b * S_pad.
        cls = jnp.concatenate(
            [y[b * S_pad:b * S_pad + 1, :] for b in range(B)], axis=0)
        xh = _ln(cls, hlnw_ref[...], hlnb_ref[...])
        logits_ref[...] = (
            jnp.dot(xh, hw_ref[...], preferred_element_type=jnp.float32)
            + hb_ref[...])


def vit_pallas(patches_flat, wc, add_full, attn_bias, row_mask, layers,
               head_ln_w, head_ln_b, head_w, head_b,
               *, batch, s_pad, num_heads, head_dim, num_classes):
    M, D = add_full.shape
    L = layers["wq"].shape[0]

    def _full(a):
        nd = a.ndim
        return pl.BlockSpec(a.shape, lambda l, n=nd: (0,) * n)

    def _per_layer(a):
        nd = a.ndim
        return pl.BlockSpec((1,) + a.shape[1:],
                            lambda l, n=nd: (l,) + (0,) * (n - 1))

    kernel = functools.partial(_vit_kernel, batch, s_pad, num_heads, head_dim)

    return pl.pallas_call(
        kernel,
        out_shape=jax.ShapeDtypeStruct((batch, num_classes), jnp.float32),
        grid=(L,),
        in_specs=[
            _full(patches_flat), _full(wc), _full(add_full),
            _full(attn_bias), _full(row_mask),
            _per_layer(layers["ln1w"]), _per_layer(layers["ln1b"]),
            _per_layer(layers["wq"]), _per_layer(layers["bq"]),
            _per_layer(layers["wk"]), _per_layer(layers["bk"]),
            _per_layer(layers["wv"]), _per_layer(layers["bv"]),
            _per_layer(layers["wo"]), _per_layer(layers["bo"]),
            _per_layer(layers["ln2w"]), _per_layer(layers["ln2b"]),
            _per_layer(layers["w1"]), _per_layer(layers["b1"]),
            _per_layer(layers["w2"]), _per_layer(layers["b2"]),
            _full(head_ln_w), _full(head_ln_b), _full(head_w), _full(head_b),
        ],
        out_specs=pl.BlockSpec((batch, num_classes), lambda l: (0, 0)),
        scratch_shapes=[pltpu.VMEM((M, D), jnp.float32)],
        compiler_params=pltpu.CompilerParams(
            dimension_semantics=("arbitrary",)),
    )(patches_flat, wc, add_full, attn_bias, row_mask,
      layers["ln1w"], layers["ln1b"],
      layers["wq"], layers["bq"], layers["wk"], layers["bk"],
      layers["wv"], layers["bv"], layers["wo"], layers["bo"],
      layers["ln2w"], layers["ln2b"],
      layers["w1"], layers["b1"], layers["w2"], layers["b2"],
      head_ln_w, head_ln_b, head_w, head_b)


# --------------------------------------------------------------------------
# Parameter construction (mirrors the PyTorch module shapes, converted to
# kernel-friendly stacked / per-head layouts; matmul weights cast to bf16).
# --------------------------------------------------------------------------
def init_params(key, in_channels, patch_size, embed_dim, num_patches,
                num_heads, num_encoders, num_classes, dim_feedforward):
    D = embed_dim
    hd = D // num_heads
    n_keys = 6 + 8 * num_encoders
    keys = iter(jax.random.split(key, n_keys))

    def nrm(shape, scale=0.02):
        return scale * jax.random.normal(next(keys), shape, dtype=jnp.float32)

    params = {}
    params["conv_w"] = nrm((D, in_channels, patch_size, patch_size))
    params["conv_b"] = nrm((D,))
    params["cls_token"] = jax.random.normal(next(keys), (1, 1, D), jnp.float32)
    params["pos_emb"] = jax.random.normal(next(keys), (1, num_patches + 1, D),
                                          jnp.float32)

    names = ["ln1w", "ln1b", "wq", "bq", "wk", "bk", "wv", "bv",
             "wo", "bo", "ln2w", "ln2b", "w1", "b1", "w2", "b2"]
    per = {k: [] for k in names}
    for _ in range(num_encoders):
        in_proj_w = nrm((3 * D, D))          # torch MHA in_proj_weight
        in_proj_b = nrm((3 * D,))
        out_proj_w = nrm((D, D))
        out_proj_b = nrm((D,))
        lin1_w = nrm((dim_feedforward, D))
        lin1_b = nrm((dim_feedforward,))
        lin2_w = nrm((D, dim_feedforward))
        lin2_b = nrm((D,))

        wq_t, wk_t, wv_t = in_proj_w[:D], in_proj_w[D:2 * D], in_proj_w[2 * D:]
        bq_t, bk_t, bv_t = in_proj_b[:D], in_proj_b[D:2 * D], in_proj_b[2 * D:]
        # per-head slabs, stored so the kernel computes x @ W  (W = Wt_h.T)
        per["wq"].append(wq_t.reshape(num_heads, hd, D).transpose(0, 2, 1))
        per["wk"].append(wk_t.reshape(num_heads, hd, D).transpose(0, 2, 1))
        per["wv"].append(wv_t.reshape(num_heads, hd, D).transpose(0, 2, 1))
        per["bq"].append(bq_t.reshape(num_heads, 1, hd))
        per["bk"].append(bk_t.reshape(num_heads, 1, hd))
        per["bv"].append(bv_t.reshape(num_heads, 1, hd))
        # concat_heads @ out_proj_w.T == sum_h o_h @ wo_h
        per["wo"].append(out_proj_w.T.reshape(num_heads, hd, D))
        per["bo"].append(out_proj_b.reshape(1, D))
        per["w1"].append(lin1_w.T)                      # (D, FF)
        per["b1"].append(lin1_b.reshape(1, dim_feedforward))
        per["w2"].append(lin2_w.T)                      # (FF, D)
        per["b2"].append(lin2_b.reshape(1, D))
        per["ln1w"].append(jnp.ones((1, D), jnp.float32))
        per["ln1b"].append(jnp.zeros((1, D), jnp.float32))
        per["ln2w"].append(jnp.ones((1, D), jnp.float32))
        per["ln2b"].append(jnp.zeros((1, D), jnp.float32))

    layers = {k: jnp.stack(v) for k, v in per.items()}
    for k in ["wq", "wk", "wv", "wo", "w1", "w2"]:      # streamed weights
        layers[k] = layers[k].astype(jnp.bfloat16)
    params["layers"] = layers

    params["head_ln_w"] = jnp.ones((1, D), jnp.float32)
    params["head_ln_b"] = jnp.zeros((1, D), jnp.float32)
    params["head_w"] = nrm((num_classes, D)).T           # (D, num_classes)
    params["head_b"] = nrm((num_classes,)).reshape(1, num_classes)
    return params


# --------------------------------------------------------------------------
# Full forward pass (host-side layout glue + single fused pallas_call)
# --------------------------------------------------------------------------
def vit_forward(x_nchw, params, patch_size, num_heads):
    B, C, Himg, Wimg = x_nchw.shape
    p = patch_size
    nH, nW = Himg // p, Wimg // p
    N = nH * nW
    D = params["conv_w"].shape[0]
    hd = D // num_heads
    S = N + 1                       # CLS + patches
    S_pad = _round_up(S, 8)         # sublane-aligned sequence length
    M = B * S_pad
    Cpp = C * p * p
    num_classes = params["head_w"].shape[1]

    # unfold into patches (exact equivalent of the stride-p conv)
    xp = x_nchw.reshape(B, C, nH, p, nW, p)
    xp = xp.transpose(0, 2, 4, 1, 3, 5).reshape(B, N, Cpp)
    patches = jnp.zeros((B, S_pad, Cpp), jnp.float32)
    patches = patches.at[:, 1:N + 1, :].set(xp)          # row 0 = CLS slot
    patches_flat = patches.reshape(M, Cpp)

    wc = params["conv_w"].reshape(D, Cpp).T              # (Cpp, D)
    bc = params["conv_b"].reshape(1, D)
    pos = params["pos_emb"][0]                           # (S, D)
    cls = params["cls_token"][0]                         # (1, D)

    # additive term folds conv-bias + CLS token + positional embedding;
    # padded rows stay exactly zero.
    add = jnp.zeros((S_pad, D), jnp.float32)
    add = add.at[0:1].set(cls + pos[0:1])
    add = add.at[1:S].set(bc + pos[1:S])
    add_full = jnp.tile(add, (B, 1))                     # (M, D)

    # precomputed key-padding additive bias and padded-row zeroing mask
    attn_bias = jnp.zeros((S_pad, S_pad), jnp.float32).at[:, S:].set(-1e30)
    row_mask = (jnp.arange(M) % S_pad < S).astype(jnp.float32).reshape(M, 1)

    return vit_pallas(
        patches_flat, wc, add_full, attn_bias, row_mask,
        params["layers"],
        params["head_ln_w"], params["head_ln_b"],
        params["head_w"], params["head_b"],
        batch=B, s_pad=S_pad, num_heads=num_heads, head_dim=hd,
        num_classes=num_classes)


if __name__ == "__main__":
    B = 2
    IN_CHANNELS = 3
    IMG = 16
    PATCH = 4
    NUM_PATCHES = (IMG // PATCH) ** 2      # 16
    EMBED_DIM = 32
    NUM_HEADS = 4
    NUM_ENCODERS = 2
    NUM_CLASSES = 10
    DIM_FF = 2048                          # nn.TransformerEncoderLayer default

    key = jax.random.PRNGKey(0)
    kx, kp = jax.random.split(key)
    x = jax.random.normal(kx, (B, IN_CHANNELS, IMG, IMG), dtype=jnp.float32)

    params = init_params(kp, IN_CHANNELS, PATCH, EMBED_DIM, NUM_PATCHES,
                         NUM_HEADS, NUM_ENCODERS, NUM_CLASSES, DIM_FF)

    logits = vit_forward(x, params, PATCH, NUM_HEADS)
    logits = jax.block_until_ready(logits)

    assert logits.shape == (B, NUM_CLASSES)
    assert bool(jnp.all(jnp.isfinite(logits)))
    print("KERNEL_OK")
</pallas_src>

<mosaic_0001>
module attributes {stable_mosaic.version = 11 : i64} {
  func.func @_vit_kernel(%arg0: i32, %arg1: memref<48x48xf32, #tpu.memory_space<vmem>>, %arg2: memref<48x32xf32, #tpu.memory_space<vmem>>, %arg3: memref<48x32xf32, #tpu.memory_space<vmem>>, %arg4: memref<24x24xf32, #tpu.memory_space<vmem>>, %arg5: memref<48x1xf32, #tpu.memory_space<vmem>>, %arg6: memref<1x1x32xf32, #tpu.memory_space<vmem>>, %arg7: memref<1x1x32xf32, #tpu.memory_space<vmem>>, %arg8: memref<1x4x32x8xbf16, #tpu.memory_space<vmem>>, %arg9: memref<1x4x1x8xf32, #tpu.memory_space<vmem>>, %arg10: memref<1x4x32x8xbf16, #tpu.memory_space<vmem>>, %arg11: memref<1x4x1x8xf32, #tpu.memory_space<vmem>>, %arg12: memref<1x4x32x8xbf16, #tpu.memory_space<vmem>>, %arg13: memref<1x4x1x8xf32, #tpu.memory_space<vmem>>, %arg14: memref<1x4x8x32xbf16, #tpu.memory_space<vmem>>, %arg15: memref<1x1x32xf32, #tpu.memory_space<vmem>>, %arg16: memref<1x1x32xf32, #tpu.memory_space<vmem>>, %arg17: memref<1x1x32xf32, #tpu.memory_space<vmem>>, %arg18: memref<1x32x2048xbf16, #tpu.memory_space<vmem>>, %arg19: memref<1x1x2048xf32, #tpu.memory_space<vmem>>, %arg20: memref<1x2048x32xbf16, #tpu.memory_space<vmem>>, %arg21: memref<1x1x32xf32, #tpu.memory_space<vmem>>, %arg22: memref<1x32xf32, #tpu.memory_space<vmem>>, %arg23: memref<1x32xf32, #tpu.memory_space<vmem>>, %arg24: memref<32x10xf32, #tpu.memory_space<vmem>>, %arg25: memref<1x10xf32, #tpu.memory_space<vmem>>, %arg26: memref<2x10xf32, #tpu.memory_space<vmem>>, %arg27: memref<48x32xf32, #tpu.memory_space<vmem>>) attributes {dimension_semantics = [#tpu.dimension_semantics<arbitrary>], iteration_bounds = array<i64: 2>, scalar_prefetch = 0 : i64, scratch_operands = 1 : i64, tpu.core_type = #tpu.core_type<tc>, window_params = [{pipeline_mode = #tpu.pipeline_mode<synchronous>, transform_indices = @transform_0, window_bounds = array<i64: 48, 48>}, {pipeline_mode = #tpu.pipeline_mode<synchronous>, transform_indices = @transform_1, window_bounds = array<i64: 48, 32>}, {pipeline_mode = #tpu.pipeline_mode<synchronous>, transform_indices = @transform_2, window_bounds = array<i64: 48, 32>}, {pipeline_mode = #tpu.pipeline_mode<synchronous>, transform_indices = @transform_3, window_bounds = array<i64: 24, 24>}, {pipeline_mode = #tpu.pipeline_mode<synchronous>, transform_indices = @transform_4, window_bounds = array<i64: 48, 1>}, {transform_indices = @transform_5, window_bounds = array<i64: 1, 1, 32>}, {transform_indices = @transform_6, window_bounds = array<i64: 1, 1, 32>}, {transform_indices = @transform_7, window_bounds = array<i64: 1, 4, 32, 8>}, {transform_indices = @transform_8, window_bounds = array<i64: 1, 4, 1, 8>}, {transform_indices = @transform_9, window_bounds = array<i64: 1, 4, 32, 8>}, {transform_indices = @transform_10, window_bounds = array<i64: 1, 4, 1, 8>}, {transform_indices = @transform_11, window_bounds = array<i64: 1, 4, 32, 8>}, {transform_indices = @transform_12, window_bounds = array<i64: 1, 4, 1, 8>}, {transform_indices = @transform_13, window_bounds = array<i64: 1, 4, 8, 32>}, {transform_indices = @transform_14, window_bounds = array<i64: 1, 1, 32>}, {transform_indices = @transform_15, window_bounds = array<i64: 1, 1, 32>}, {transform_indices = @transform_16, window_bounds = array<i64: 1, 1, 32>}, {transform_indices = @transform_17, window_bounds = array<i64: 1, 32, 2048>}, {transform_indices = @transform_18, window_bounds = array<i64: 1, 1, 2048>}, {transform_indices = @transform_19, window_bounds = array<i64: 1, 2048, 32>}, {transform_indices = @transform_20, window_bounds = array<i64: 1, 1, 32>}, {pipeline_mode = #tpu.pipeline_mode<synchronous>, transform_indices = @transform_21, window_bounds = array<i64: 1, 32>}, {pipeline_mode = #tpu.pipeline_mode<synchronous>, transform_indices = @transform_22, window_bounds = array<i64: 1, 32>}, {pipeline_mode = #tpu.pipeline_mode<synchronous>, transform_indices = @transform_23, window_bounds = array<i64: 32, 10>}, {pipeline_mode = #tpu.pipeline_mode<synchronous>, transform_indices = @transform_24, window_bounds = array<i64: 1, 10>}, {pipeline_mode = #tpu.pipeline_mode<synchronous>, transform_indices = @transform_25, window_bounds = array<i64: 2, 10>}]} {
    %c0_i32 = arith.constant 0 : i32
    %0 = arith.cmpi eq, %arg0, %c0_i32 : i32
    %1 = arith.extui %0 : i1 to i32
    %c0_i32_0 = arith.constant 0 : i32
    %2 = arith.cmpi ne, %1, %c0_i32_0 : i32
    scf.if %2 {
      %c0_193 = arith.constant 0 : index
      %c0_194 = arith.constant 0 : index
      %270 = vector.load %arg1[%c0_193, %c0_194] : memref<48x48xf32, #tpu.memory_space<vmem>>, vector<48x48xf32>
      %c0_195 = arith.constant 0 : index
      %c0_196 = arith.constant 0 : index
      %271 = vector.load %arg2[%c0_195, %c0_196] : memref<48x32xf32, #tpu.memory_space<vmem>>, vector<48x32xf32>
      %cst_197 = arith.constant dense<0.000000e+00> : vector<48x32xf32>
      %272 = tpu.matmul %270, %271, %cst_197 {dimension_numbers = #tpu.dot_dimension_numbers<[1], [0], [0], [1], [0, 0, 1, 1], [], []>} : vector<48x48xf32>, vector<48x32xf32>, vector<48x32xf32> -> vector<48x32xf32>
      %c0_198 = arith.constant 0 : index
      %c0_199 = arith.constant 0 : index
      %273 = vector.load %arg3[%c0_198, %c0_199] : memref<48x32xf32, #tpu.memory_space<vmem>>, vector<48x32xf32>
      %274 = arith.addf %272, %273 : vector<48x32xf32>
      %c0_200 = arith.constant 0 : index
      %c0_201 = arith.constant 0 : index
      %275 = vector.load %arg27[%c0_200, %c0_201] : memref<48x32xf32, #tpu.memory_space<vmem>>, vector<48x32xf32>
      tpu.vector_store %arg27[%c0_200, %c0_201], %274 {strides = array<i32>} : memref<48x32xf32, #tpu.memory_space<vmem>>, vector<48x32xf32>,
    } else {
    }
    %c0 = arith.constant 0 : index
    %c0_1 = arith.constant 0 : index
    %3 = vector.load %arg27[%c0, %c0_1] : memref<48x32xf32, #tpu.memory_space<vmem>>, vector<48x32xf32>
    %c0_2 = arith.constant 0 : index
    %c0_3 = arith.constant 0 : index
    %c0_4 = arith.constant 0 : index
    %4 = vector.load %arg6[%c0_2, %c0_3, %c0_4] : memref<1x1x32xf32, #tpu.memory_space<vmem>>, vector<1x1x32xf32>
    %5 = vector.shape_cast %4 : vector<1x1x32xf32> to vector<1x32xf32>
    %c0_5 = arith.constant 0 : index
    %c0_6 = arith.constant 0 : index
    %c0_7 = arith.constant 0 : index
    %6 = vector.load %arg7[%c0_5, %c0_6, %c0_7] : memref<1x1x32xf32, #tpu.memory_space<vmem>>, vector<1x1x32xf32>
    %7 = vector.shape_cast %6 : vector<1x1x32xf32> to vector<1x32xf32>
    %cst = arith.constant dense<0.000000e+00> : vector<48xf32>
    %8 = vector.multi_reduction <add>, %3, %cst [1] : vector<48x32xf32> to vector<48xf32>
    %9 = vector.shape_cast %8 : vector<48xf32> to vector<48x1xf32>
    %cst_8 = arith.constant 3.200000e+01 : f32
    %10 = vector.broadcast %cst_8 : f32 to vector<48x1xf32>
    %11 = arith.divf %9, %10 : vector<48x1xf32>
    %12 = vector.broadcast %11 : vector<48x1xf32> to vector<48x32xf32>
    %13 = arith.subf %3, %12 : vector<48x32xf32>
    %14 = arith.mulf %13, %13 : vector<48x32xf32>
    %cst_9 = arith.constant dense<0.000000e+00> : vector<48xf32>
    %15 = vector.multi_reduction <add>, %14, %cst_9 [1] : vector<48x32xf32> to vector<48xf32>
    %16 = vector.shape_cast %15 : vector<48xf32> to vector<48x1xf32>
    %cst_10 = arith.constant 3.200000e+01 : f32
    %17 = vector.broadcast %cst_10 : f32 to vector<48x1xf32>
    %18 = arith.divf %16, %17 : vector<48x1xf32>
    %19 = vector.broadcast %11 : vector<48x1xf32> to vector<48x32xf32>
    %20 = arith.subf %3, %19 : vector<48x32xf32>
    %cst_11 = arith.constant 9.99999974E-6 : f32
    %21 = vector.broadcast %cst_11 : f32 to vector<48x1xf32>
    %22 = arith.addf %18, %21 : vector<48x1xf32>
    %23 = math.rsqrt %22 : vector<48x1xf32>
    %24 = vector.broadcast %23 : vector<48x1xf32> to vector<48x32xf32>
    %25 = arith.mulf %20, %24 : vector<48x32xf32>
    %26 = vector.broadcast %5 : vector<1x32xf32> to vector<48x32xf32>
    %27 = arith.mulf %25, %26 : vector<48x32xf32>
    %28 = vector.broadcast %7 : vector<1x32xf32> to vector<48x32xf32>
    %29 = arith.addf %27, %28 : vector<48x32xf32>
    %30 = arith.truncf %29 : vector<48x32xf32> to vector<48x32xbf16>
    %c0_12 = arith.constant 0 : index
    %c0_13 = arith.constant 0 : index
    %31 = vector.load %arg4[%c0_12, %c0_13] : memref<24x24xf32, #tpu.memory_space<vmem>>, vector<24x24xf32>
    %32 = vector.shape_cast %31 : vector<24x24xf32> to vector<1x24x24xf32>
    %33 = vector.broadcast %32 : vector<1x24x24xf32> to vector<2x24x24xf32>
    %c0_14 = arith.constant 0 : index
    %c0_15 = arith.constant 0 : index
    %c0_16 = arith.constant 0 : index
    %34 = vector.load %arg15[%c0_14, %c0_15, %c0_16] : memref<1x1x32xf32, #tpu.memory_space<vmem>>, vector<1x1x32xf32>
    %35 = vector.shape_cast %34 : vector<1x1x32xf32> to vector<1x32xf32>
    %c0_17 = arith.constant 0 : index
    %c0_18 = arith.constant 0 : index
    %c0_19 = arith.constant 0 : index
    %c0_20 = arith.constant 0 : index
    %36 = vector.load %arg8[%c0_17, %c0_18, %c0_19, %c0_20] : memref<1x4x32x8xbf16, #tpu.memory_space<vmem>>, vector<1x1x32x8xbf16>
    %37 = vector.shape_cast %36 : vector<1x1x32x8xbf16> to vector<32x8xbf16>
    %cst_21 = arith.constant dense<0.000000e+00> : vector<48x8xf32>
    %38 = tpu.matmul %30, %37, %cst_21 {dimension_numbers = #tpu.dot_dimension_numbers<[1], [0], [0], [1], [0, 0, 1, 1], [], []>} : vector<48x32xbf16>, vector<32x8xbf16>, vector<48x8xf32> -> vector<48x8xf32>
    %c0_22 = arith.constant 0 : index
    %c0_23 = arith.constant 0 : index
    %c0_24 = arith.constant 0 : index
    %c0_25 = arith.constant 0 : index
    %39 = vector.load %arg9[%c0_22, %c0_23, %c0_24, %c0_25] : memref<1x4x1x8xf32, #tpu.memory_space<vmem>>, vector<1x1x1x8xf32>
    %40 = vector.shape_cast %39 : vector<1x1x1x8xf32> to vector<1x8xf32>
    %41 = vector.broadcast %40 : vector<1x8xf32> to vector<48x8xf32>
    %42 = arith.addf %38, %41 : vector<48x8xf32>
    %c0_26 = arith.constant 0 : index
    %c0_27 = arith.constant 0 : index
    %c0_28 = arith.constant 0 : index
    %c0_29 = arith.constant 0 : index
    %43 = vector.load %arg10[%c0_26, %c0_27, %c0_28, %c0_29] : memref<1x4x32x8xbf16, #tpu.memory_space<vmem>>, vector<1x1x32x8xbf16>
    %44 = vector.shape_cast %43 : vector<1x1x32x8xbf16> to vector<32x8xbf16>
    %cst_30 = arith.constant dense<0.000000e+00> : vector<48x8xf32>
    %45 = tpu.matmul %30, %44, %cst_30 {dimension_numbers = #tpu.dot_dimension_numbers<[1], [0], [0], [1], [0, 0, 1, 1], [], []>} : vector<48x32xbf16>, vector<32x8xbf16>, vector<48x8xf32> -> vector<48x8xf32>
    %c0_31 = arith.constant 0 : index
    %c0_32 = arith.constant 0 : index
    %c0_33 = arith.constant 0 : index
    %c0_34 = arith.constant 0 : index
    %46 = vector.load %arg11[%c0_31, %c0_32, %c0_33, %c0_34] : memref<1x4x1x8xf32, #tpu.memory_space<vmem>>, vector<1x1x1x8xf32>
    %47 = vector.shape_cast %46 : vector<1x1x1x8xf32> to vector<1x8xf32>
    %48 = vector.broadcast %47 : vector<1x8xf32> to vector<48x8xf32>
    %49 = arith.addf %45, %48 : vector<48x8xf32>
    %c0_35 = arith.constant 0 : index
    %c0_36 = arith.constant 0 : index
    %c0_37 = arith.constant 0 : index
    %c0_38 = arith.constant 0 : index
    %50 = vector.load %arg12[%c0_35, %c0_36, %c0_37, %c0_38] : memref<1x4x32x8xbf16, #tpu.memory_space<vmem>>, vector<1x1x32x8xbf16>
    %51 = vector.shape_cast %50 : vector<1x1x32x8xbf16> to vector<32x8xbf16>
    %cst_39 = arith.constant dense<0.000000e+00> : vector<48x8xf32>
    %52 = tpu.matmul %30, %51, %cst_39 {dimension_numbers = #tpu.dot_dimension_numbers<[1], [0], [0], [1], [0, 0, 1, 1], [], []>} : vector<48x32xbf16>, vector<32x8xbf16>, vector<48x8xf32> -> vector<48x8xf32>
    %c0_40 = arith.constant 0 : index
    %c0_41 = arith.constant 0 : index
    %c0_42 = arith.constant 0 : index
    %c0_43 = arith.constant 0 : index
    %53 = vector.load %arg13[%c0_40, %c0_41, %c0_42, %c0_43] : memref<1x4x1x8xf32, #tpu.memory_space<vmem>>, vector<1x1x1x8xf32>
    %54 = vector.shape_cast %53 : vector<1x1x1x8xf32> to vector<1x8xf32>
    %55 = vector.broadcast %54 : vector<1x8xf32> to vector<48x8xf32>
    %56 = arith.addf %52, %55 : vector<48x8xf32>
    %57 = vector.shape_cast %42 : vector<48x8xf32> to vector<2x24x8xf32>
    %58 = vector.shape_cast %49 : vector<48x8xf32> to vector<2x24x8xf32>
    %59 = vector.shape_cast %56 : vector<48x8xf32> to vector<2x24x8xf32>
    "tpu.trace_start"() <{level = 10 : i32, message = "bqd,bkd->bqk"}> : () -> ()
    %cst_44 = arith.constant dense<0.000000e+00> : vector<2x24x24xf32>
    %60 = tpu.matmul %57, %58, %cst_44 {dimension_numbers = #tpu.dot_dimension_numbers<[2], [2], [1], [1], [0, 0, 0, 1, 1, 1], [0], [0]>} : vector<2x24x8xf32>, vector<2x24x8xf32>, vector<2x24x24xf32> -> vector<2x24x24xf32>
    "tpu.trace_stop"() : () -> ()
    %cst_45 = arith.constant 0.353553385 : f32
    %61 = vector.broadcast %cst_45 : f32 to vector<2x24x24xf32>
    %62 = arith.mulf %60, %61 : vector<2x24x24xf32>
    %63 = arith.addf %62, %33 : vector<2x24x24xf32>
    %cst_46 = arith.constant dense<0xFF800000> : vector<2x24xf32>
    %64 = vector.multi_reduction <maximumf>, %63, %cst_46 [2] : vector<2x24x24xf32> to vector<2x24xf32>
    %65 = vector.shape_cast %64 : vector<2x24xf32> to vector<2x24x1xf32>
    %66 = vector.broadcast %65 : vector<2x24x1xf32> to vector<2x24x24xf32>
    %67 = arith.subf %63, %66 : vector<2x24x24xf32>
    %68 = math.exp %67 : vector<2x24x24xf32>
    %cst_47 = arith.constant dense<0.000000e+00> : vector<2x24xf32>
    %69 = vector.multi_reduction <add>, %68, %cst_47 [2] : vector<2x24x24xf32> to vector<2x24xf32>
    %70 = vector.shape_cast %69 : vector<2x24xf32> to vector<2x24x1xf32>
    %71 = tpu.reciprocal %70 {approx = true} : vector<2x24x1xf32> -> vector<2x24x1xf32>
    %72 = vector.broadcast %71 : vector<2x24x1xf32> to vector<2x24x24xf32>
    %73 = arith.mulf %68, %72 : vector<2x24x24xf32>
    "tpu.trace_start"() <{level = 10 : i32, message = "bqk,bkd->bqd"}> : () -> ()
    %cst_48 = arith.constant dense<0.000000e+00> : vector<2x24x8xf32>
    %74 = tpu.matmul %73, %59, %cst_48 {dimension_numbers = #tpu.dot_dimension_numbers<[2], [1], [1], [2], [0, 0, 0, 1, 1, 2], [0], [0]>} : vector<2x24x24xf32>, vector<2x24x8xf32>, vector<2x24x8xf32> -> vector<2x24x8xf32>
    "tpu.trace_stop"() : () -> ()
    %75 = vector.shape_cast %74 : vector<2x24x8xf32> to vector<48x8xf32>
    %76 = arith.truncf %75 : vector<48x8xf32> to vector<48x8xbf16>
    %c0_49 = arith.constant 0 : index
    %c0_50 = arith.constant 0 : index
    %c0_51 = arith.constant 0 : index
    %c0_52 = arith.constant 0 : index
    %77 = vector.load %arg14[%c0_49, %c0_50, %c0_51, %c0_52] : memref<1x4x8x32xbf16, #tpu.memory_space<vmem>>, vector<1x1x8x32xbf16>
    %78 = vector.shape_cast %77 : vector<1x1x8x32xbf16> to vector<8x32xbf16>
    %cst_53 = arith.constant dense<0.000000e+00> : vector<48x32xf32>
    %79 = tpu.matmul %76, %78, %cst_53 {dimension_numbers = #tpu.dot_dimension_numbers<[1], [0], [0], [1], [0, 0, 1, 1], [], []>} : vector<48x8xbf16>, vector<8x32xbf16>, vector<48x32xf32> -> vector<48x32xf32>
    %80 = vector.broadcast %35 : vector<1x32xf32> to vector<48x32xf32>
    %81 = arith.addf %80, %79 : vector<48x32xf32>
    %c0_54 = arith.constant 0 : index
    %c1 = arith.constant 1 : index
    %c0_55 = arith.constant 0 : index
    %c0_56 = arith.constant 0 : index
    %82 = vector.load %arg8[%c0_54, %c1, %c0_55, %c0_56] : memref<1x4x32x8xbf16, #tpu.memory_space<vmem>>, vector<1x1x32x8xbf16>
    %83 = vector.shape_cast %82 : vector<1x1x32x8xbf16> to vector<32x8xbf16>
    %cst_57 = arith.constant dense<0.000000e+00> : vector<48x8xf32>
    %84 = tpu.matmul %30, %83, %cst_57 {dimension_numbers = #tpu.dot_dimension_numbers<[1], [0], [0], [1], [0, 0, 1, 1], [], []>} : vector<48x32xbf16>, vector<32x8xbf16>, vector<48x8xf32> -> vector<48x8xf32>
    %c0_58 = arith.constant 0 : index
    %c1_59 = arith.constant 1 : index
    %c0_60 = arith.constant 0 : index
    %c0_61 = arith.constant 0 : index
    %85 = vector.load %arg9[%c0_58, %c1_59, %c0_60, %c0_61] : memref<1x4x1x8xf32, #tpu.memory_space<vmem>>, vector<1x1x1x8xf32>
    %86 = vector.shape_cast %85 : vector<1x1x1x8xf32> to vector<1x8xf32>
    %87 = vector.broadcast %86 : vector<1x8xf32> to vector<48x8xf32>
    %88 = arith.addf %84, %87 : vector<48x8xf32>
    %c0_62 = arith.constant 0 : index
    %c1_63 = arith.constant 1 : index
    %c0_64 = arith.constant 0 : index
    %c0_65 = arith.constant 0 : index
    %89 = vector.load %arg10[%c0_62, %c1_63, %c0_64, %c0_65] : memref<1x4x32x8xbf16, #tpu.memory_space<vmem>>, vector<1x1x32x8xbf16>
    %90 = vector.shape_cast %89 : vector<1x1x32x8xbf16> to vector<32x8xbf16>
    %cst_66 = arith.constant dense<0.000000e+00> : vector<48x8xf32>
    %91 = tpu.matmul %30, %90, %cst_66 {dimension_numbers = #tpu.dot_dimension_numbers<[1], [0], [0], [1], [0, 0, 1, 1], [], []>} : vector<48x32xbf16>, vector<32x8xbf16>, vector<48x8xf32> -> vector<48x8xf32>
    %c0_67 = arith.constant 0 : index
    %c1_68 = arith.constant 1 : index
    %c0_69 = arith.constant 0 : index
    %c0_70 = arith.constant 0 : index
    %92 = vector.load %arg11[%c0_67, %c1_68, %c0_69, %c0_70] : memref<1x4x1x8xf32, #tpu.memory_space<vmem>>, vector<1x1x1x8xf32>
    %93 = vector.shape_cast %92 : vector<1x1x1x8xf32> to vector<1x8xf32>
    %94 = vector.broadcast %93 : vector<1x8xf32> to vector<48x8xf32>
    %95 = arith.addf %91, %94 : vector<48x8xf32>
    %c0_71 = arith.constant 0 : index
    %c1_72 = arith.constant 1 : index
    %c0_73 = arith.constant 0 : index
    %c0_74 = arith.constant 0 : index
    %96 = vector.load %arg12[%c0_71, %c1_72, %c0_73, %c0_74] : memref<1x4x32x8xbf16, #tpu.memory_space<vmem>>, vector<1x1x32x8xbf16>
    %97 = vector.shape_cast %96 : vector<1x1x32x8xbf16> to vector<32x8xbf16>
    %cst_75 = arith.constant dense<0.000000e+00> : vector<48x8xf32>
    %98 = tpu.matmul %30, %97, %cst_75 {dimension_numbers = #tpu.dot_dimension_numbers<[1], [0], [0], [1], [0, 0, 1, 1], [], []>} : vector<48x32xbf16>, vector<32x8xbf16>, vector<48x8xf32> -> vector<48x8xf32>
    %c0_76 = arith.constant 0 : index
    %c1_77 = arith.constant 1 : index
    %c0_78 = arith.constant 0 : index
    %c0_79 = arith.constant 0 : index
    %99 = vector.load %arg13[%c0_76, %c1_77, %c0_78, %c0_79] : memref<1x4x1x8xf32, #tpu.memory_space<vmem>>, vector<1x1x1x8xf32>
    %100 = vector.shape_cast %99 : vector<1x1x1x8xf32> to vector<1x8xf32>
    %101 = vector.broadcast %100 : vector<1x8xf32> to vector<48x8xf32>
    %102 = arith.addf %98, %101 : vector<48x8xf32>
    %103 = vector.shape_cast %88 : vector<48x8xf32> to vector<2x24x8xf32>
    %104 = vector.shape_cast %95 : vector<48x8xf32> to vector<2x24x8xf32>
    %105 = vector.shape_cast %102 : vector<48x8xf32> to vector<2x24x8xf32>
    "tpu.trace_start"() <{level = 10 : i32, message = "bqd,bkd->bqk"}> : () -> ()
    %cst_80 = arith.constant dense<0.000000e+00> : vector<2x24x24xf32>
    %106 = tpu.matmul %103, %104, %cst_80 {dimension_numbers = #tpu.dot_dimension_numbers<[2], [2], [1], [1], [0, 0, 0, 1, 1, 1], [0], [0]>} : vector<2x24x8xf32>, vector<2x24x8xf32>, vector<2x24x24xf32> -> vector<2x24x24xf32>
    "tpu.trace_stop"() : () -> ()
    %cst_81 = arith.constant 0.353553385 : f32
    %107 = vector.broadcast %cst_81 : f32 to vector<2x24x24xf32>
    %108 = arith.mulf %106, %107 : vector<2x24x24xf32>
    %109 = arith.addf %108, %33 : vector<2x24x24xf32>
    %cst_82 = arith.constant dense<0xFF800000> : vector<2x24xf32>
    %110 = vector.multi_reduction <maximumf>, %109, %cst_82 [2] : vector<2x24x24xf32> to vector<2x24xf32>
    %111 = vector.shape_cast %110 : vector<2x24xf32> to vector<2x24x1xf32>
    %112 = vector.broadcast %111 : vector<2x24x1xf32> to vector<2x24x24xf32>
    %113 = arith.subf %109, %112 : vector<2x24x24xf32>
    %114 = math.exp %113 : vector<2x24x24xf32>
    %cst_83 = arith.constant dense<0.000000e+00> : vector<2x24xf32>
    %115 = vector.multi_reduction <add>, %114, %cst_83 [2] : vector<2x24x24xf32> to vector<2x24xf32>
    %116 = vector.shape_cast %115 : vector<2x24xf32> to vector<2x24x1xf32>
    %117 = tpu.reciprocal %116 {approx = true} : vector<2x24x1xf32> -> vector<2x24x1xf32>
    %118 = vector.broadcast %117 : vector<2x24x1xf32> to vector<2x24x24xf32>
    %119 = arith.mulf %114, %118 : vector<2x24x24xf32>
    "tpu.trace_start"() <{level = 10 : i32, message = "bqk,bkd->bqd"}> : () -> ()
    %cst_84 = arith.constant dense<0.000000e+00> : vector<2x24x8xf32>
    %120 = tpu.matmul %119, %105, %cst_84 {dimension_numbers = #tpu.dot_dimension_numbers<[2], [1], [1], [2], [0, 0, 0, 1, 1, 2], [0], [0]>} : vector<2x24x24xf32>, vector<2x24x8xf32>, vector<2x24x8xf32> -> vector<2x24x8xf32>
    "tpu.trace_stop"() : () -> ()
    %121 = vector.shape_cast %120 : vector<2x24x8xf32> to vector<48x8xf32>
    %122 = arith.truncf %121 : vector<48x8xf32> to vector<48x8xbf16>
    %c0_85 = arith.constant 0 : index
    %c1_86 = arith.constant 1 : index
    %c0_87 = arith.constant 0 : index
    %c0_88 = arith.constant 0 : index
    %123 = vector.load %arg14[%c0_85, %c1_86, %c0_87, %c0_88] : memref<1x4x8x32xbf16, #tpu.memory_space<vmem>>, vector<1x1x8x32xbf16>
    %124 = vector.shape_cast %123 : vector<1x1x8x32xbf16> to vector<8x32xbf16>
    %cst_89 = arith.constant dense<0.000000e+00> : vector<48x32xf32>
    %125 = tpu.matmul %122, %124, %cst_89 {dimension_numbers = #tpu.dot_dimension_numbers<[1], [0], [0], [1], [0, 0, 1, 1], [], []>} : vector<48x8xbf16>, vector<8x32xbf16>, vector<48x32xf32> -> vector<48x32xf32>
    %126 = arith.addf %81, %125 : vector<48x32xf32>
    %c0_90 = arith.constant 0 : index
    %c2 = arith.constant 2 : index
    %c0_91 = arith.constant 0 : index
    %c0_92 = arith.constant 0 : index
    %127 = vector.load %arg8[%c0_90, %c2, %c0_91, %c0_92] : memref<1x4x32x8xbf16, #tpu.memory_space<vmem>>, vector<1x1x32x8xbf16>
    %128 = vector.shape_cast %127 : vector<1x1x32x8xbf16> to vector<32x8xbf16>
    %cst_93 = arith.constant dense<0.000000e+00> : vector<48x8xf32>
    %129 = tpu.matmul %30, %128, %cst_93 {dimension_numbers = #tpu.dot_dimension_numbers<[1], [0], [0], [1], [0, 0, 1, 1], [], []>} : vector<48x32xbf16>, vector<32x8xbf16>, vector<48x8xf32> -> vector<48x8xf32>
    %c0_94 = arith.constant 0 : index
    %c2_95 = arith.constant 2 : index
    %c0_96 = arith.constant 0 : index
    %c0_97 = arith.constant 0 : index
    %130 = vector.load %arg9[%c0_94, %c2_95, %c0_96, %c0_97] : memref<1x4x1x8xf32, #tpu.memory_space<vmem>>, vector<1x1x1x8xf32>
    %131 = vector.shape_cast %130 : vector<1x1x1x8xf32> to vector<1x8xf32>
    %132 = vector.broadcast %131 : vector<1x8xf32> to vector<48x8xf32>
    %133 = arith.addf %129, %132 : vector<48x8xf32>
    %c0_98 = arith.constant 0 : index
    %c2_99 = arith.constant 2 : index
    %c0_100 = arith.constant 0 : index
    %c0_101 = arith.constant 0 : index
    %134 = vector.load %arg10[%c0_98, %c2_99, %c0_100, %c0_101] : memref<1x4x32x8xbf16, #tpu.memory_space<vmem>>, vector<1x1x32x8xbf16>
    %135 = vector.shape_cast %134 : vector<1x1x32x8xbf16> to vector<32x8xbf16>
    %cst_102 = arith.constant dense<0.000000e+00> : vector<48x8xf32>
    %136 = tpu.matmul %30, %135, %cst_102 {dimension_numbers = #tpu.dot_dimension_numbers<[1], [0], [0], [1], [0, 0, 1, 1], [], []>} : vector<48x32xbf16>, vector<32x8xbf16>, vector<48x8xf32> -> vector<48x8xf32>
    %c0_103 = arith.constant 0 : index
    %c2_104 = arith.constant 2 : index
    %c0_105 = arith.constant 0 : index
    %c0_106 = arith.constant 0 : index
    %137 = vector.load %arg11[%c0_103, %c2_104, %c0_105, %c0_106] : memref<1x4x1x8xf32, #tpu.memory_space<vmem>>, vector<1x1x1x8xf32>
    %138 = vector.shape_cast %137 : vector<1x1x1x8xf32> to vector<1x8xf32>
    %139 = vector.broadcast %138 : vector<1x8xf32> to vector<48x8xf32>
    %140 = arith.addf %136, %139 : vector<48x8xf32>
    %c0_107 = arith.constant 0 : index
    %c2_108 = arith.constant 2 : index
    %c0_109 = arith.constant 0 : index
    %c0_110 = arith.constant 0 : index
    %141 = vector.load %arg12[%c0_107, %c2_108, %c0_109, %c0_110] : memref<1x4x32x8xbf16, #tpu.memory_space<vmem>>, vector<1x1x32x8xbf16>
    %142 = vector.shape_cast %141 : vector<1x1x32x8xbf16> to vector<32x8xbf16>
    %cst_111 = arith.constant dense<0.000000e+00> : vector<48x8xf32>
    %143 = tpu.matmul %30, %142, %cst_111 {dimension_numbers = #tpu.dot_dimension_numbers<[1], [0], [0], [1], [0, 0, 1, 1], [], []>} : vector<48x32xbf16>, vector<32x8xbf16>, vector<48x8xf32> -> vector<48x8xf32>
    %c0_112 = arith.constant 0 : index
    %c2_113 = arith.constant 2 : index
    %c0_114 = arith.constant 0 : index
    %c0_115 = arith.constant 0 : index
    %144 = vector.load %arg13[%c0_112, %c2_113, %c0_114, %c0_115] : memref<1x4x1x8xf32, #tpu.memory_space<vmem>>, vector<1x1x1x8xf32>
    %145 = vector.shape_cast %144 : vector<1x1x1x8xf32> to vector<1x8xf32>
    %146 = vector.broadcast %145 : vector<1x8xf32> to vector<48x8xf32>
    %147 = arith.addf %143, %146 : vector<48x8xf32>
    %148 = vector.shape_cast %133 : vector<48x8xf32> to vector<2x24x8xf32>
    %149 = vector.shape_cast %140 : vector<48x8xf32> to vector<2x24x8xf32>
    %150 = vector.shape_cast %147 : vector<48x8xf32> to vector<2x24x8xf32>
    "tpu.trace_start"() <{level = 10 : i32, message = "bqd,bkd->bqk"}> : () -> ()
    %cst_116 = arith.constant dense<0.000000e+00> : vector<2x24x24xf32>
    %151 = tpu.matmul %148, %149, %cst_116 {dimension_numbers = #tpu.dot_dimension_numbers<[2], [2], [1], [1], [0, 0, 0, 1, 1, 1], [0], [0]>} : vector<2x24x8xf32>, vector<2x24x8xf32>, vector<2x24x24xf32> -> vector<2x24x24xf32>
    "tpu.trace_stop"() : () -> ()
    %cst_117 = arith.constant 0.353553385 : f32
    %152 = vector.broadcast %cst_117 : f32 to vector<2x24x24xf32>
    %153 = arith.mulf %151, %152 : vector<2x24x24xf32>
    %154 = arith.addf %153, %33 : vector<2x24x24xf32>
    %cst_118 = arith.constant dense<0xFF800000> : vector<2x24xf32>
    %155 = vector.multi_reduction <maximumf>, %154, %cst_118 [2] : vector<2x24x24xf32> to vector<2x24xf32>
    %156 = vector.shape_cast %155 : vector<2x24xf32> to vector<2x24x1xf32>
    %157 = vector.broadcast %156 : vector<2x24x1xf32> to vector<2x24x24xf32>
    %158 = arith.subf %154, %157 : vector<2x24x24xf32>
    %159 = math.exp %158 : vector<2x24x24xf32>
    %cst_119 = arith.constant dense<0.000000e+00> : vector<2x24xf32>
    %160 = vector.multi_reduction <add>, %159, %cst_119 [2] : vector<2x24x24xf32> to vector<2x24xf32>
    %161 = vector.shape_cast %160 : vector<2x24xf32> to vector<2x24x1xf32>
    %162 = tpu.reciprocal %161 {approx = true} : vector<2x24x1xf32> -> vector<2x24x1xf32>
    %163 = vector.broadcast %162 : vector<2x24x1xf32> to vector<2x24x24xf32>
    %164 = arith.mulf %159, %163 : vector<2x24x24xf32>
    "tpu.trace_start"() <{level = 10 : i32, message = "bqk,bkd->bqd"}> : () -> ()
    %cst_120 = arith.constant dense<0.000000e+00> : vector<2x24x8xf32>
    %165 = tpu.matmul %164, %150, %cst_120 {dimension_numbers = #tpu.dot_dimension_numbers<[2], [1], [1], [2], [0, 0, 0, 1, 1, 2], [0], [0]>} : vector<2x24x24xf32>, vector<2x24x8xf32>, vector<2x24x8xf32> -> vector<2x24x8xf32>
    "tpu.trace_stop"() : () -> ()
    %166 = vector.shape_cast %165 : vector<2x24x8xf32> to vector<48x8xf32>
    %167 = arith.truncf %166 : vector<48x8xf32> to vector<48x8xbf16>
    %c0_121 = arith.constant 0 : index
    %c2_122 = arith.constant 2 : index
    %c0_123 = arith.constant 0 : index
    %c0_124 = arith.constant 0 : index
    %168 = vector.load %arg14[%c0_121, %c2_122, %c0_123, %c0_124] : memref<1x4x8x32xbf16, #tpu.memory_space<vmem>>, vector<1x1x8x32xbf16>
    %169 = vector.shape_cast %168 : vector<1x1x8x32xbf16> to vector<8x32xbf16>
    %cst_125 = arith.constant dense<0.000000e+00> : vector<48x32xf32>
    %170 = tpu.matmul %167, %169, %cst_125 {dimension_numbers = #tpu.dot_dimension_numbers<[1], [0], [0], [1], [0, 0, 1, 1], [], []>} : vector<48x8xbf16>, vector<8x32xbf16>, vector<48x32xf32> -> vector<48x32xf32>
    %171 = arith.addf %126, %170 : vector<48x32xf32>
    %c0_126 = arith.constant 0 : index
    %c3 = arith.constant 3 : index
    %c0_127 = arith.constant 0 : index
    %c0_128 = arith.constant 0 : index
    %172 = vector.load %arg8[%c0_126, %c3, %c0_127, %c0_128] : memref<1x4x32x8xbf16, #tpu.memory_space<vmem>>, vector<1x1x32x8xbf16>
    %173 = vector.shape_cast %172 : vector<1x1x32x8xbf16> to vector<32x8xbf16>
    %cst_129 = arith.constant dense<0.000000e+00> : vector<48x8xf32>
    %174 = tpu.matmul %30, %173, %cst_129 {dimension_numbers = #tpu.dot_dimension_numbers<[1], [0], [0], [1], [0, 0, 1, 1], [], []>} : vector<48x32xbf16>, vector<32x8xbf16>, vector<48x8xf32> -> vector<48x8xf32>
    %c0_130 = arith.constant 0 : index
    %c3_131 = arith.constant 3 : index
    %c0_132 = arith.constant 0 : index
    %c0_133 = arith.constant 0 : index
    %175 = vector.load %arg9[%c0_130, %c3_131, %c0_132, %c0_133] : memref<1x4x1x8xf32, #tpu.memory_space<vmem>>, vector<1x1x1x8xf32>
    %176 = vector.shape_cast %175 : vector<1x1x1x8xf32> to vector<1x8xf32>
    %177 = vector.broadcast %176 : vector<1x8xf32> to vector<48x8xf32>
    %178 = arith.addf %174, %177 : vector<48x8xf32>
    %c0_134 = arith.constant 0 : index
    %c3_135 = arith.constant 3 : index
    %c0_136 = arith.constant 0 : index
    %c0_137 = arith.constant 0 : index
    %179 = vector.load %arg10[%c0_134, %c3_135, %c0_136, %c0_137] : memref<1x4x32x8xbf16, #tpu.memory_space<vmem>>, vector<1x1x32x8xbf16>
    %180 = vector.shape_cast %179 : vector<1x1x32x8xbf16> to vector<32x8xbf16>
    %cst_138 = arith.constant dense<0.000000e+00> : vector<48x8xf32>
    %181 = tpu.matmul %30, %180, %cst_138 {dimension_numbers = #tpu.dot_dimension_numbers<[1], [0], [0], [1], [0, 0, 1, 1], [], []>} : vector<48x32xbf16>, vector<32x8xbf16>, vector<48x8xf32> -> vector<48x8xf32>
    %c0_139 = arith.constant 0 : index
    %c3_140 = arith.constant 3 : index
    %c0_141 = arith.constant 0 : index
    %c0_142 = arith.constant 0 : index
    %182 = vector.load %arg11[%c0_139, %c3_140, %c0_141, %c0_142] : memref<1x4x1x8xf32, #tpu.memory_space<vmem>>, vector<1x1x1x8xf32>
    %183 = vector.shape_cast %182 : vector<1x1x1x8xf32> to vector<1x8xf32>
    %184 = vector.broadcast %183 : vector<1x8xf32> to vector<48x8xf32>
    %185 = arith.addf %181, %184 : vector<48x8xf32>
    %c0_143 = arith.constant 0 : index
    %c3_144 = arith.constant 3 : index
    %c0_145 = arith.constant 0 : index
    %c0_146 = arith.constant 0 : index
    %186 = vector.load %arg12[%c0_143, %c3_144, %c0_145, %c0_146] : memref<1x4x32x8xbf16, #tpu.memory_space<vmem>>, vector<1x1x32x8xbf16>
    %187 = vector.shape_cast %186 : vector<1x1x32x8xbf16> to vector<32x8xbf16>
    %cst_147 = arith.constant dense<0.000000e+00> : vector<48x8xf32>
    %188 = tpu.matmul %30, %187, %cst_147 {dimension_numbers = #tpu.dot_dimension_numbers<[1], [0], [0], [1], [0, 0, 1, 1], [], []>} : vector<48x32xbf16>, vector<32x8xbf16>, vector<48x8xf32> -> vector<48x8xf32>
    %c0_148 = arith.constant 0 : index
    %c3_149 = arith.constant 3 : index
    %c0_150 = arith.constant 0 : index
    %c0_151 = arith.constant 0 : index
    %189 = vector.load %arg13[%c0_148, %c3_149, %c0_150, %c0_151] : memref<1x4x1x8xf32, #tpu.memory_space<vmem>>, vector<1x1x1x8xf32>
    %190 = vector.shape_cast %189 : vector<1x1x1x8xf32> to vector<1x8xf32>
    %191 = vector.broadcast %190 : vector<1x8xf32> to vector<48x8xf32>
    %192 = arith.addf %188, %191 : vector<48x8xf32>
    %193 = vector.shape_cast %178 : vector<48x8xf32> to vector<2x24x8xf32>
    %194 = vector.shape_cast %185 : vector<48x8xf32> to vector<2x24x8xf32>
    %195 = vector.shape_cast %192 : vector<48x8xf32> to vector<2x24x8xf32>
    "tpu.trace_start"() <{level = 10 : i32, message = "bqd,bkd->bqk"}> : () -> ()
    %cst_152 = arith.constant dense<0.000000e+00> : vector<2x24x24xf32>
    %196 = tpu.matmul %193, %194, %cst_152 {dimension_numbers = #tpu.dot_dimension_numbers<[2], [2], [1], [1], [0, 0, 0, 1, 1, 1], [0], [0]>} : vector<2x24x8xf32>, vector<2x24x8xf32>, vector<2x24x24xf32> -> vector<2x24x24xf32>
    "tpu.trace_stop"() : () -> ()
    %cst_153 = arith.constant 0.353553385 : f32
    %197 = vector.broadcast %cst_153 : f32 to vector<2x24x24xf32>
    %198 = arith.mulf %196, %197 : vector<2x24x24xf32>
    %199 = arith.addf %198, %33 : vector<2x24x24xf32>
    %cst_154 = arith.constant dense<0xFF800000> : vector<2x24xf32>
    %200 = vector.multi_reduction <maximumf>, %199, %cst_154 [2] : vector<2x24x24xf32> to vector<2x24xf32>
    %201 = vector.shape_cast %200 : vector<2x24xf32> to vector<2x24x1xf32>
    %202 = vector.broadcast %201 : vector<2x24x1xf32> to vector<2x24x24xf32>
    %203 = arith.subf %199, %202 : vector<2x24x24xf32>
    %204 = math.exp %203 : vector<2x24x24xf32>
    %cst_155 = arith.constant dense<0.000000e+00> : vector<2x24xf32>
    %205 = vector.multi_reduction <add>, %204, %cst_155 [2] : vector<2x24x24xf32> to vector<2x24xf32>
    %206 = vector.shape_cast %205 : vector<2x24xf32> to vector<2x24x1xf32>
    %207 = tpu.reciprocal %206 {approx = true} : vector<2x24x1xf32> -> vector<2x24x1xf32>
    %208 = vector.broadcast %207 : vector<2x24x1xf32> to vector<2x24x24xf32>
    %209 = arith.mulf %204, %208 : vector<2x24x24xf32>
    "tpu.trace_start"() <{level = 10 : i32, message = "bqk,bkd->bqd"}> : () -> ()
    %cst_156 = arith.constant dense<0.000000e+00> : vector<2x24x8xf32>
    %210 = tpu.matmul %209, %195, %cst_156 {dimension_numbers = #tpu.dot_dimension_numbers<[2], [1], [1], [2], [0, 0, 0, 1, 1, 2], [0], [0]>} : vector<2x24x24xf32>, vector<2x24x8xf32>, vector<2x24x8xf32> -> vector<2x24x8xf32>
    "tpu.trace_stop"() : () -> ()
    %211 = vector.shape_cast %210 : vector<2x24x8xf32> to vector<48x8xf32>
    %212 = arith.truncf %211 : vector<48x8xf32> to vector<48x8xbf16>
    %c0_157 = arith.constant 0 : index
    %c3_158 = arith.constant 3 : index
    %c0_159 = arith.constant 0 : index
    %c0_160 = arith.constant 0 : index
    %213 = vector.load %arg14[%c0_157, %c3_158, %c0_159, %c0_160] : memref<1x4x8x32xbf16, #tpu.memory_space<vmem>>, vector<1x1x8x32xbf16>
    %214 = vector.shape_cast %213 : vector<1x1x8x32xbf16> to vector<8x32xbf16>
    %cst_161 = arith.constant dense<0.000000e+00> : vector<48x32xf32>
    %215 = tpu.matmul %212, %214, %cst_161 {dimension_numbers = #tpu.dot_dimension_numbers<[1], [0], [0], [1], [0, 0, 1, 1], [], []>} : vector<48x8xbf16>, vector<8x32xbf16>, vector<48x32xf32> -> vector<48x32xf32>
    %216 = arith.addf %171, %215 : vector<48x32xf32>
    %217 = arith.addf %3, %216 : vector<48x32xf32>
    %c0_162 = arith.constant 0 : index
    %c0_163 = arith.constant 0 : index
    %c0_164 = arith.constant 0 : index
    %218 = vector.load %arg16[%c0_162, %c0_163, %c0_164] : memref<1x1x32xf32, #tpu.memory_space<vmem>>, vector<1x1x32xf32>
    %219 = vector.shape_cast %218 : vector<1x1x32xf32> to vector<1x32xf32>
    %c0_165 = arith.constant 0 : index
    %c0_166 = arith.constant 0 : index
    %c0_167 = arith.constant 0 : index
    %220 = vector.load %arg17[%c0_165, %c0_166, %c0_167] : memref<1x1x32xf32, #tpu.memory_space<vmem>>, vector<1x1x32xf32>
    %221 = vector.shape_cast %220 : vector<1x1x32xf32> to vector<1x32xf32>
    %cst_168 = arith.constant dense<0.000000e+00> : vector<48xf32>
    %222 = vector.multi_reduction <add>, %217, %cst_168 [1] : vector<48x32xf32> to vector<48xf32>
    %223 = vector.shape_cast %222 : vector<48xf32> to vector<48x1xf32>
    %cst_169 = arith.constant 3.200000e+01 : f32
    %224 = vector.broadcast %cst_169 : f32 to vector<48x1xf32>
    %225 = arith.divf %223, %224 : vector<48x1xf32>
    %226 = vector.broadcast %225 : vector<48x1xf32> to vector<48x32xf32>
    %227 = arith.subf %217, %226 : vector<48x32xf32>
    %228 = arith.mulf %227, %227 : vector<48x32xf32>
    %cst_170 = arith.constant dense<0.000000e+00> : vector<48xf32>
    %229 = vector.multi_reduction <add>, %228, %cst_170 [1] : vector<48x32xf32> to vector<48xf32>
    %230 = vector.shape_cast %229 : vector<48xf32> to vector<48x1xf32>
    %cst_171 = arith.constant 3.200000e+01 : f32
    %231 = vector.broadcast %cst_171 : f32 to vector<48x1xf32>
    %232 = arith.divf %230, %231 : vector<48x1xf32>
    %233 = vector.broadcast %225 : vector<48x1xf32> to vector<48x32xf32>
    %234 = arith.subf %217, %233 : vector<48x32xf32>
    %cst_172 = arith.constant 9.99999974E-6 : f32
    %235 = vector.broadcast %cst_172 : f32 to vector<48x1xf32>
    %236 = arith.addf %232, %235 : vector<48x1xf32>
    %237 = math.rsqrt %236 : vector<48x1xf32>
    %238 = vector.broadcast %237 : vector<48x1xf32> to vector<48x32xf32>
    %239 = arith.mulf %234, %238 : vector<48x32xf32>
    %240 = vector.broadcast %219 : vector<1x32xf32> to vector<48x32xf32>
    %241 = arith.mulf %239, %240 : vector<48x32xf32>
    %242 = vector.broadcast %221 : vector<1x32xf32> to vector<48x32xf32>
    %243 = arith.addf %241, %242 : vector<48x32xf32>
    %244 = arith.truncf %243 : vector<48x32xf32> to vector<48x32xbf16>
    %c0_173 = arith.constant 0 : index
    %c0_174 = arith.constant 0 : index
    %c0_175 = arith.constant 0 : index
    %245 = vector.load %arg18[%c0_173, %c0_174, %c0_175] : memref<1x32x2048xbf16, #tpu.memory_space<vmem>>, vector<1x32x2048xbf16>
    %246 = vector.shape_cast %245 : vector<1x32x2048xbf16> to vector<32x2048xbf16>
    %cst_176 = arith.constant dense<0.000000e+00> : vector<48x2048xf32>
    %247 = tpu.matmul %244, %246, %cst_176 {dimension_numbers = #tpu.dot_dimension_numbers<[1], [0], [0], [1], [0, 0, 1, 1], [], []>} : vector<48x32xbf16>, vector<32x2048xbf16>, vector<48x2048xf32> -> vector<48x2048xf32>
    %c0_177 = arith.constant 0 : index
    %c0_178 = arith.constant 0 : index
    %c0_179 = arith.constant 0 : index
    %248 = vector.load %arg19[%c0_177, %c0_178, %c0_179] : memref<1x1x2048xf32, #tpu.memory_space<vmem>>, vector<1x1x2048xf32>
    %249 = vector.shape_cast %248 : vector<1x1x2048xf32> to vector<1x2048xf32>
    %250 = vector.broadcast %249 : vector<1x2048xf32> to vector<48x2048xf32>
    %251 = arith.addf %247, %250 : vector<48x2048xf32>
    %cst_180 = arith.constant 0.000000e+00 : f32
    %252 = vector.broadcast %cst_180 : f32 to vector<48x2048xf32>
    %253 = arith.maximumf %251, %252 : vector<48x2048xf32>
    %254 = arith.truncf %253 : vector<48x2048xf32> to vector<48x2048xbf16>
    %c0_181 = arith.constant 0 : index
    %c0_182 = arith.constant 0 : index
    %c0_183 = arith.constant 0 : index
    %255 = vector.load %arg20[%c0_181, %c0_182, %c0_183] : memref<1x2048x32xbf16, #tpu.memory_space<vmem>>, vector<1x2048x32xbf16>
    %256 = vector.shape_cast %255 : vector<1x2048x32xbf16> to vector<2048x32xbf16>
    %cst_184 = arith.constant dense<0.000000e+00> : vector<48x32xf32>
    %257 = tpu.matmul %254, %256, %cst_184 {dimension_numbers = #tpu.dot_dimension_numbers<[1], [0], [0], [1], [0, 0, 1, 1], [], []>} : vector<48x2048xbf16>, vector<2048x32xbf16>, vector<48x32xf32> -> vector<48x32xf32>
    %c0_185 = arith.constant 0 : index
    %c0_186 = arith.constant 0 : index
    %c0_187 = arith.constant 0 : index
    %258 = vector.load %arg21[%c0_185, %c0_186, %c0_187] : memref<1x1x32xf32, #tpu.memory_space<vmem>>, vector<1x1x32xf32>
    %259 = vector.shape_cast %258 : vector<1x1x32xf32> to vector<1x32xf32>
    %260 = vector.broadcast %259 : vector<1x32xf32> to vector<48x32xf32>
    %261 = arith.addf %257, %260 : vector<48x32xf32>
    %262 = arith.addf %217, %261 : vector<48x32xf32>
    %c0_188 = arith.constant 0 : index
    %c0_189 = arith.constant 0 : index
    %263 = vector.load %arg5[%c0_188, %c0_189] : memref<48x1xf32, #tpu.memory_space<vmem>>, vector<48x1xf32>
    %264 = vector.broadcast %263 : vector<48x1xf32> to vector<48x32xf32>
    %265 = arith.mulf %262, %264 : vector<48x32xf32>
    %c0_190 = arith.constant 0 : index
    %c0_191 = arith.constant 0 : index
    %266 = vector.load %arg27[%c0_190, %c0_191] : memref<48x32xf32, #tpu.memory_space<vmem>>, vector<48x32xf32>
    tpu.vector_store %arg27[%c0_190, %c0_191], %265 {strides = array<i32>} : memref<48x32xf32, #tpu.memory_space<vmem>>, vector<48x32xf32>,
    %c1_i32 = arith.constant 1 : i32
    %267 = arith.cmpi eq, %arg0, %c1_i32 : i32
    %268 = arith.extui %267 : i1 to i32
    %c0_i32_192 = arith.constant 0 : i32
    %269 = arith.cmpi ne, %268, %c0_i32_192 : i32
    scf.if %269 {
      %270 = vector.extract_strided_slice %265 {offsets = [0, 0], sizes = [1, 32], strides = [1, 1]} : vector<48x32xf32> to vector<1x32xf32>
      %271 = vector.extract_strided_slice %265 {offsets = [24, 0], sizes = [1, 32], strides = [1, 1]} : vector<48x32xf32> to vector<1x32xf32>
      %272 = tpu.concatenate %270, %271 in 0 : vector<1x32xf32>, vector<1x32xf32> -> vector<2x32xf32>
      %c0_193 = arith.constant 0 : index
      %c0_194 = arith.constant 0 : index
      %273 = vector.load %arg22[%c0_193, %c0_194] : memref<1x32xf32, #tpu.memory_space<vmem>>, vector<1x32xf32>
      %c0_195 = arith.constant 0 : index
      %c0_196 = arith.constant 0 : index
      %274 = vector.load %arg23[%c0_195, %c0_196] : memref<1x32xf32, #tpu.memory_space<vmem>>, vector<1x32xf32>
      %cst_197 = arith.constant dense<0.000000e+00> : vector<2xf32>
      %275 = vector.multi_reduction <add>, %272, %cst_197 [1] : vector<2x32xf32> to vector<2xf32>
      %276 = vector.shape_cast %275 : vector<2xf32> to vector<2x1xf32>
      %cst_198 = arith.constant 3.200000e+01 : f32
      %277 = vector.broadcast %cst_198 : f32 to vector<2x1xf32>
      %278 = arith.divf %276, %277 : vector<2x1xf32>
      %279 = vector.broadcast %278 : vector<2x1xf32> to vector<2x32xf32>
      %280 = arith.subf %272, %279 : vector<2x32xf32>
      %281 = arith.mulf %280, %280 : vector<2x32xf32>
      %cst_199 = arith.constant dense<0.000000e+00> : vector<2xf32>
      %282 = vector.multi_reduction <add>, %281, %cst_199 [1] : vector<2x32xf32> to vector<2xf32>
      %283 = vector.shape_cast %282 : vector<2xf32> to vector<2x1xf32>
      %cst_200 = arith.constant 3.200000e+01 : f32
      %284 = vector.broadcast %cst_200 : f32 to vector<2x1xf32>
      %285 = arith.divf %283, %284 : vector<2x1xf32>
      %286 = vector.broadcast %278 : vector<2x1xf32> to vector<2x32xf32>
      %287 = arith.subf %272, %286 : vector<2x32xf32>
      %cst_201 = arith.constant 9.99999974E-6 : f32
      %288 = vector.broadcast %cst_201 : f32 to vector<2x1xf32>
      %289 = arith.addf %285, %288 : vector<2x1xf32>
      %290 = math.rsqrt %289 : vector<2x1xf32>
      %291 = vector.broadcast %290 : vector<2x1xf32> to vector<2x32xf32>
      %292 = arith.mulf %287, %291 : vector<2x32xf32>
      %293 = vector.broadcast %273 : vector<1x32xf32> to vector<2x32xf32>
      %294 = arith.mulf %292, %293 : vector<2x32xf32>
      %295 = vector.broadcast %274 : vector<1x32xf32> to vector<2x32xf32>
      %296 = arith.addf %294, %295 : vector<2x32xf32>
      %c0_202 = arith.constant 0 : index
      %c0_203 = arith.constant 0 : index
      %297 = vector.load %arg24[%c0_202, %c0_203] : memref<32x10xf32, #tpu.memory_space<vmem>>, vector<32x10xf32>
      %cst_204 = arith.constant dense<0.000000e+00> : vector<2x10xf32>
      %298 = tpu.matmul %296, %297, %cst_204 {dimension_numbers = #tpu.dot_dimension_numbers<[1], [0], [0], [1], [0, 0, 1, 1], [], []>} : vector<2x32xf32>, vector<32x10xf32>, vector<2x10xf32> -> vector<2x10xf32>
      %c0_205 = arith.constant 0 : index
      %c0_206 = arith.constant 0 : index
      %299 = vector.load %arg25[%c0_205, %c0_206] : memref<1x10xf32, #tpu.memory_space<vmem>>, vector<1x10xf32>
      %300 = vector.broadcast %299 : vector<1x10xf32> to vector<2x10xf32>
      %301 = arith.addf %298, %300 : vector<2x10xf32>
      %c0_207 = arith.constant 0 : index
      %c0_208 = arith.constant 0 : index
      %302 = vector.load %arg26[%c0_207, %c0_208] : memref<2x10xf32, #tpu.memory_space<vmem>>, vector<2x10xf32>
      tpu.vector_store %arg26[%c0_207, %c0_208], %301 {strides = array<i32>} : memref<2x10xf32, #tpu.memory_space<vmem>>, vector<2x10xf32>,
    } else {
    }
    return
  }
  func.func @transform_0(%arg0: i32) -> (i32, i32) {
    %c0_i32 = arith.constant 0 : i32
    %c0_i32_0 = arith.constant 0 : i32
    %c0_i32_1 = arith.constant 0 : i32
    return %c0_i32, %c0_i32_0 : i32, i32
  }
  func.func @transform_1(%arg0: i32) -> (i32, i32) {
    %c0_i32 = arith.constant 0 : i32
    %c0_i32_0 = arith.constant 0 : i32
    %c0_i32_1 = arith.constant 0 : i32
    return %c0_i32, %c0_i32_0 : i32, i32
  }
  func.func @transform_2(%arg0: i32) -> (i32, i32) {
    %c0_i32 = arith.constant 0 : i32
    %c0_i32_0 = arith.constant 0 : i32
    %c0_i32_1 = arith.constant 0 : i32
    return %c0_i32, %c0_i32_0 : i32, i32
  }
  func.func @transform_3(%arg0: i32) -> (i32, i32) {
    %c0_i32 = arith.constant 0 : i32
    %c0_i32_0 = arith.constant 0 : i32
    %c0_i32_1 = arith.constant 0 : i32
    return %c0_i32, %c0_i32_0 : i32, i32
  }
  func.func @transform_4(%arg0: i32) -> (i32, i32) {
    %c0_i32 = arith.constant 0 : i32
    %c0_i32_0 = arith.constant 0 : i32
    %c0_i32_1 = arith.constant 0 : i32
    return %c0_i32, %c0_i32_0 : i32, i32
  }
  func.func @transform_5(%arg0: i32) -> (i32, i32, i32) {
    %c0_i32 = arith.constant 0 : i32
    %c0_i32_0 = arith.constant 0 : i32
    %c0_i32_1 = arith.constant 0 : i32
    return %arg0, %c0_i32, %c0_i32_0 : i32, i32, i32
  }
  func.func @transform_6(%arg0: i32) -> (i32, i32, i32) {
    %c0_i32 = arith.constant 0 : i32
    %c0_i32_0 = arith.constant 0 : i32
    %c0_i32_1 = arith.constant 0 : i32
    return %arg0, %c0_i32, %c0_i32_0 : i32, i32, i32
  }
  func.func @transform_7(%arg0: i32) -> (i32, i32, i32, i32) {
    %c0_i32 = arith.constant 0 : i32
    %c0_i32_0 = arith.constant 0 : i32
    %c0_i32_1 = arith.constant 0 : i32
    %c0_i32_2 = arith.constant 0 : i32
    return %arg0, %c0_i32, %c0_i32_0, %c0_i32_1 : i32, i32, i32, i32
  }
  func.func @transform_8(%arg0: i32) -> (i32, i32, i32, i32) {
    %c0_i32 = arith.constant 0 : i32
    %c0_i32_0 = arith.constant 0 : i32
    %c0_i32_1 = arith.constant 0 : i32
    %c0_i32_2 = arith.constant 0 : i32
    return %arg0, %c0_i32, %c0_i32_0, %c0_i32_1 : i32, i32, i32, i32
  }
  func.func @transform_9(%arg0: i32) -> (i32, i32, i32, i32) {
    %c0_i32 = arith.constant 0 : i32
    %c0_i32_0 = arith.constant 0 : i32
    %c0_i32_1 = arith.constant 0 : i32
    %c0_i32_2 = arith.constant 0 : i32
    return %arg0, %c0_i32, %c0_i32_0, %c0_i32_1 : i32, i32, i32, i32
  }
  func.func @transform_10(%arg0: i32) -> (i32, i32, i32, i32) {
    %c0_i32 = arith.constant 0 : i32
    %c0_i32_0 = arith.constant 0 : i32
    %c0_i32_1 = arith.constant 0 : i32
    %c0_i32_2 = arith.constant 0 : i32
    return %arg0, %c0_i32, %c0_i32_0, %c0_i32_1 : i32, i32, i32, i32
  }
  func.func @transform_11(%arg0: i32) -> (i32, i32, i32, i32) {
    %c0_i32 = arith.constant 0 : i32
    %c0_i32_0 = arith.constant 0 : i32
    %c0_i32_1 = arith.constant 0 : i32
    %c0_i32_2 = arith.constant 0 : i32
    return %arg0, %c0_i32, %c0_i32_0, %c0_i32_1 : i32, i32, i32, i32
  }
  func.func @transform_12(%arg0: i32) -> (i32, i32, i32, i32) {
    %c0_i32 = arith.constant 0 : i32
    %c0_i32_0 = arith.constant 0 : i32
    %c0_i32_1 = arith.constant 0 : i32
    %c0_i32_2 = arith.constant 0 : i32
    return %arg0, %c0_i32, %c0_i32_0, %c0_i32_1 : i32, i32, i32, i32
  }
  func.func @transform_13(%arg0: i32) -> (i32, i32, i32, i32) {
    %c0_i32 = arith.constant 0 : i32
    %c0_i32_0 = arith.constant 0 : i32
    %c0_i32_1 = arith.constant 0 : i32
    %c0_i32_2 = arith.constant 0 : i32
    return %arg0, %c0_i32, %c0_i32_0, %c0_i32_1 : i32, i32, i32, i32
  }
  func.func @transform_14(%arg0: i32) -> (i32, i32, i32) {
    %c0_i32 = arith.constant 0 : i32
    %c0_i32_0 = arith.constant 0 : i32
    %c0_i32_1 = arith.constant 0 : i32
    return %arg0, %c0_i32, %c0_i32_0 : i32, i32, i32
  }
  func.func @transform_15(%arg0: i32) -> (i32, i32, i32) {
    %c0_i32 = arith.constant 0 : i32
    %c0_i32_0 = arith.constant 0 : i32
    %c0_i32_1 = arith.constant 0 : i32
    return %arg0, %c0_i32, %c0_i32_0 : i32, i32, i32
  }
  func.func @transform_16(%arg0: i32) -> (i32, i32, i32) {
    %c0_i32 = arith.constant 0 : i32
    %c0_i32_0 = arith.constant 0 : i32
    %c0_i32_1 = arith.constant 0 : i32
    return %arg0, %c0_i32, %c0_i32_0 : i32, i32, i32
  }
  func.func @transform_17(%arg0: i32) -> (i32, i32, i32) {
    %c0_i32 = arith.constant 0 : i32
    %c0_i32_0 = arith.constant 0 : i32
    %c0_i32_1 = arith.constant 0 : i32
    return %arg0, %c0_i32, %c0_i32_0 : i32, i32, i32
  }
  func.func @transform_18(%arg0: i32) -> (i32, i32, i32) {
    %c0_i32 = arith.constant 0 : i32
    %c0_i32_0 = arith.constant 0 : i32
    %c0_i32_1 = arith.constant 0 : i32
    return %arg0, %c0_i32, %c0_i32_0 : i32, i32, i32
  }
  func.func @transform_19(%arg0: i32) -> (i32, i32, i32) {
    %c0_i32 = arith.constant 0 : i32
    %c0_i32_0 = arith.constant 0 : i32
    %c0_i32_1 = arith.constant 0 : i32
    return %arg0, %c0_i32, %c0_i32_0 : i32, i32, i32
  }
  func.func @transform_20(%arg0: i32) -> (i32, i32, i32) {
    %c0_i32 = arith.constant 0 : i32
    %c0_i32_0 = arith.constant 0 : i32
    %c0_i32_1 = arith.constant 0 : i32
    return %arg0, %c0_i32, %c0_i32_0 : i32, i32, i32
  }
  func.func @transform_21(%arg0: i32) -> (i32, i32) {
    %c0_i32 = arith.constant 0 : i32
    %c0_i32_0 = arith.constant 0 : i32
    %c0_i32_1 = arith.constant 0 : i32
    return %c0_i32, %c0_i32_0 : i32, i32
  }
  func.func @transform_22(%arg0: i32) -> (i32, i32) {
    %c0_i32 = arith.constant 0 : i32
    %c0_i32_0 = arith.constant 0 : i32
    %c0_i32_1 = arith.constant 0 : i32
    return %c0_i32, %c0_i32_0 : i32, i32
  }
  func.func @transform_23(%arg0: i32) -> (i32, i32) {
    %c0_i32 = arith.constant 0 : i32
    %c0_i32_0 = arith.constant 0 : i32
    %c0_i32_1 = arith.constant 0 : i32
    return %c0_i32, %c0_i32_0 : i32, i32
  }
  func.func @transform_24(%arg0: i32) -> (i32, i32) {
    %c0_i32 = arith.constant 0 : i32
    %c0_i32_0 = arith.constant 0 : i32
    %c0_i32_1 = arith.constant 0 : i32
    return %c0_i32, %c0_i32_0 : i32, i32
  }
  func.func @transform_25(%arg0: i32) -> (i32, i32) {
    %c0_i32 = arith.constant 0 : i32
    %c0_i32_0 = arith.constant 0 : i32
    %c0_i32_1 = arith.constant 0 : i32
    return %c0_i32, %c0_i32_0 : i32, i32
  }
}

</mosaic_0001>

<llo_original>
// kernel: tpu_custom_call.1
$region0: #{tpu_custom_call.1}
  #allocation0 [shape = 'u32[]', space=smem, size = 0x4, offset = 0x4, fixed_abs, tag = 'smem constant byte address 0x4 - core index']
  #allocation1 [shape = 'u32[144,128]{1,0:T(1,128)}', space=vmem, size = 0x12000, scoped, tag = 'internal scratch']
  #allocation2 [shape = 'f32[48,32]{1,0:T(8,128)}', space=vmem, size = 0x6000, scoped, tag = 'scratch operand']
  %s0 = inlined_call_operand.vmem [shape: f32[48,48], index: 0, kind: input, shape index: {}]
  %s1 = inlined_call_operand.vmem [shape: f32[48,32], index: 1, kind: input, shape index: {}]
  %s2 = inlined_call_operand.vmem [shape: f32[48,32], index: 2, kind: input, shape index: {}]
  %s3 = inlined_call_operand.vmem [shape: f32[24,24], index: 3, kind: input, shape index: {}]
  %s4 = inlined_call_operand.vmem [shape: f32[48,1], index: 4, kind: input, shape index: {}]
  %s5 = inlined_call_operand.vmem [shape: f32[2,1,32], index: 5, kind: input, shape index: {}]
  %s6 = inlined_call_operand.vmem [shape: f32[2,1,32], index: 6, kind: input, shape index: {}]
  %s7 = inlined_call_operand.vmem [shape: bf16[2,4,32,8], index: 7, kind: input, shape index: {}]
  %s8 = inlined_call_operand.vmem [shape: f32[2,4,1,8], index: 8, kind: input, shape index: {}]
  %s9 = inlined_call_operand.vmem [shape: bf16[2,4,32,8], index: 9, kind: input, shape index: {}]
  %s10 = inlined_call_operand.vmem [shape: f32[2,4,1,8], index: 10, kind: input, shape index: {}]
  %s11 = inlined_call_operand.vmem [shape: bf16[2,4,32,8], index: 11, kind: input, shape index: {}]
  %s12 = inlined_call_operand.vmem [shape: f32[2,4,1,8], index: 12, kind: input, shape index: {}]
  %s13 = inlined_call_operand.vmem [shape: bf16[2,4,8,32], index: 13, kind: input, shape index: {}]
  %s14 = inlined_call_operand.vmem [shape: f32[2,1,32], index: 14, kind: input, shape index: {}]
  %s15 = inlined_call_operand.vmem [shape: f32[2,1,32], index: 15, kind: input, shape index: {}]
  %s16 = inlined_call_operand.vmem [shape: f32[2,1,32], index: 16, kind: input, shape index: {}]
  %s17 = inlined_call_operand.vmem [shape: bf16[2,32,2048], index: 17, kind: input, shape index: {}]
  %s18 = inlined_call_operand.vmem [shape: f32[2,1,2048], index: 18, kind: input, shape index: {}]
  %s19 = inlined_call_operand.vmem [shape: bf16[2,2048,32], index: 19, kind: input, shape index: {}]
  %s20 = inlined_call_operand.vmem [shape: f32[2,1,32], index: 20, kind: input, shape index: {}]
  %s21 = inlined_call_operand.vmem [shape: f32[1,32], index: 21, kind: input, shape index: {}]
  %s22 = inlined_call_operand.vmem [shape: f32[1,32], index: 22, kind: input, shape index: {}]
  %s23 = inlined_call_operand.vmem [shape: f32[32,10], index: 23, kind: input, shape index: {}]
  %s24 = inlined_call_operand.vmem [shape: f32[1,10], index: 24, kind: input, shape index: {}]
  %s25 = inlined_call_operand.hbm [shape: f32[2,10], index: 25, kind: output, shape index: {}]
  %s26 = sld [smem:[#allocation0]]
  $region141: #{tpu_custom_call.1} parent=0
    _
  %s28 = ssub.s32 1, %s26
  %s29 = scalar_select 0, %s28, %s26
  $region1: #{tpu_custom_call.1} parent=0
    #allocation3 [shape = 'u8[1024]{0}', space=vmem, size = 0x400, scoped, tag = 'output window, operand 0, single buffered']
    #allocation4 [shape = 's32[2]{0}', space=sflag, size = 0x8, scoped, tag = 'scoped memory for tpu_custom_call.1']
    %30 = vsyncpa [#allocation4], 0
    loop: start=0, step=1, limit=4
    $region2: #{tpu_custom_call.1} parent=1 // loop_pre_header
      _
    $region3: #{tpu_custom_call.1} parent=1 // loop_header
      %s32 = sphi 0, %s36
      %p33 = scmp.ge.s32.totalorder %s32, 4
      %s40 = sphi 0, %s40
      %s42 = sphi 0, %s40
      %s43 = sphi 0, %s42
      %s57 = sphi 0, %s43
      %s61 = sphi 0, %s61
      %s63 = sphi 0, %s61
      %s64 = sphi 0, %s63
      %s78 = sphi 0, %s64
      %s82 = sphi 0, %s82
      %s84 = sphi 0, %s82
      %s85 = sphi 0, %s84
      %s99 = sphi 0, %s85
      %s103 = sphi 0, %s103
      %s105 = sphi 0, %s103
      %s106 = sphi 0, %s105
      %s120 = sphi 0, %s106
      %s124 = sphi 0, %s124
      %s126 = sphi 0, %s124
      %s127 = sphi 0, %s126
      %s141 = sphi 0, %s127
      %s147 = sphi 0, %s149
      %s150 = sphi 0, %s147
      %s151 = sphi 0, %s150
      %s167 = sphi 0, %s151
      %s173 = sphi 0, %s175
      %s176 = sphi 0, %s173
      %s177 = sphi 0, %s176
      %s193 = sphi 0, %s177
      %s199 = sphi 0, %s201
      %s202 = sphi 0, %s199
      %s203 = sphi 0, %s202
      %s219 = sphi 0, %s203
      %s225 = sphi 0, %s227
      %s228 = sphi 0, %s225
      %s229 = sphi 0, %s228
      %s245 = sphi 0, %s229
      %s251 = sphi 0, %s253
      %s254 = sphi 0, %s251
      %s255 = sphi 0, %s254
      %s271 = sphi 0, %s255
      %s277 = sphi 0, %s279
      %s280 = sphi 0, %s277
      %s281 = sphi 0, %s280
      %s297 = sphi 0, %s281
      %s303 = sphi 0, %s305
      %s306 = sphi 0, %s303
      %s307 = sphi 0, %s306
      %s323 = sphi 0, %s307
      %s329 = sphi 0, %s331
      %s332 = sphi 0, %s329
      %s333 = sphi 0, %s332
      %s349 = sphi 0, %s333
      %s355 = sphi 0, %s357
      %s358 = sphi 0, %s355
      %s359 = sphi 0, %s358
      %s375 = sphi 0, %s359
      %s381 = sphi 0, %s383
      %s384 = sphi 0, %s381
      %s385 = sphi 0, %s384
      %s401 = sphi 0, %s385
      %s407 = sphi 0, %s409
      %s410 = sphi 0, %s407
      %s411 = sphi 0, %s410
      %s427 = sphi 0, %s411
      %s433 = sphi 0, %s435
      %s436 = sphi 0, %s433
      %s437 = sphi 0, %s436
      %s453 = sphi 0, %s437
      %s459 = sphi 0, %s461
      %s462 = sphi 0, %s459
      %s463 = sphi 0, %s462
      %s479 = sphi 0, %s463
      %s485 = sphi 0, %s487
      %s488 = sphi 0, %s485
      %s489 = sphi 0, %s488
      %s505 = sphi 0, %s489
      %s511 = sphi 0, %s513
      %s514 = sphi 0, %s511
      %s515 = sphi 0, %s514
      %s531 = sphi 0, %s515
      %s537 = sphi 0, %s539
      %s540 = sphi 0, %s537
      %s541 = sphi 0, %s540
      %s557 = sphi 0, %s541
      %s561 = sphi 0, %s561
      %s563 = sphi 0, %s561
      %s564 = sphi 0, %s563
      %s578 = sphi 0, %s564
      %s582 = sphi 0, %s582
      %s584 = sphi 0, %s582
      %s585 = sphi 0, %s584
      %s599 = sphi 0, %s585
      %s603 = sphi 0, %s603
      %s605 = sphi 0, %s603
      %s606 = sphi 0, %s605
      %s620 = sphi 0, %s606
      %s624 = sphi 0, %s624
      %s626 = sphi 0, %s624
      %s627 = sphi 0, %s626
      %s641 = sphi 0, %s627
      %s645 = sphi 0, %s645
      %s647 = sphi 0, %s645
      %s648 = sphi 0, %s647
      %s662 = sphi 0, %s648
    $region4: #{tpu_custom_call.1} parent=1 // loop_header_branch
      %35 = sbr.rel (%p33) target = $region8
    $region5: #{tpu_custom_call.1} parent=1 // loop_body
      %s37 = ssub.s32 %s32, 1
      %s38 = ssub.s32 %s32, 2
      %s39 = sadd.s32 %s32, 1
      %s41 = sadd.s32 %s40, 1
      %p44 = scmp.eq.s32.totalorder %s32, 1
      %p45 = scmp.ne.s32.totalorder %s40, %s42
      %p46 = scmp.eq.s32.totalorder %s32, 0
      %p47 = por %p45, %p46
      %p48 = scmp.ne.s32.totalorder %s40, %s42
      %p49 = scmp.eq.s32.totalorder %s37, 1
      %p50 = por %p48, %p49
      %p51 = scmp.ne.s32.totalorder %s42, %s43
      %p52 = scmp.eq.s32.totalorder %s37, 0
      %p53 = por %p51, %p52
      %p54 = scmp.ne.s32.totalorder %s42, %s43
      %p55 = scmp.eq.s32.totalorder %s38, 1
      %p56 = por %p54, %p55
      %p58 = scmp.ne.s32.totalorder %s43, %s57
      %p59 = scmp.eq.s32.totalorder %s38, 0
      %p60 = por %p58, %p59
      %s62 = sadd.s32 %s61, 1
      %p65 = scmp.eq.s32.totalorder %s32, 1
      %p66 = scmp.ne.s32.totalorder %s61, %s63
      %p67 = scmp.eq.s32.totalorder %s32, 0
      %p68 = por %p66, %p67
      %p69 = scmp.ne.s32.totalorder %s61, %s63
      %p70 = scmp.eq.s32.totalorder %s37, 1
      %p71 = por %p69, %p70
      %p72 = scmp.ne.s32.totalorder %s63, %s64
      %p73 = scmp.eq.s32.totalorder %s37, 0
      %p74 = por %p72, %p73
      %p75 = scmp.ne.s32.totalorder %s63, %s64
      %p76 = scmp.eq.s32.totalorder %s38, 1
      %p77 = por %p75, %p76
      %p79 = scmp.ne.s32.totalorder %s64, %s78
      %p80 = scmp.eq.s32.totalorder %s38, 0
      %p81 = por %p79, %p80
      %s83 = sadd.s32 %s82, 1
      %p86 = scmp.eq.s32.totalorder %s32, 1
      %p87 = scmp.ne.s32.totalorder %s82, %s84
      %p88 = scmp.eq.s32.totalorder %s32, 0
      %p89 = por %p87, %p88
      %p90 = scmp.ne.s32.totalorder %s82, %s84
      %p91 = scmp.eq.s32.totalorder %s37, 1
      %p92 = por %p90, %p91
      %p93 = scmp.ne.s32.totalorder %s84, %s85
      %p94 = scmp.eq.s32.totalorder %s37, 0
      %p95 = por %p93, %p94
      %p96 = scmp.ne.s32.totalorder %s84, %s85
      %p97 = scmp.eq.s32.totalorder %s38, 1
      %p98 = por %p96, %p97
      %p100 = scmp.ne.s32.totalorder %s85, %s99
      %p101 = scmp.eq.s32.totalorder %s38, 0
      %p102 = por %p100, %p101
      %s104 = sadd.s32 %s103, 1
      %p107 = scmp.eq.s32.totalorder %s32, 1
      %p108 = scmp.ne.s32.totalorder %s103, %s105
      %p109 = scmp.eq.s32.totalorder %s32, 0
      %p110 = por %p108, %p109
      %p111 = scmp.ne.s32.totalorder %s103, %s105
      %p112 = scmp.eq.s32.totalorder %s37, 1
      %p113 = por %p111, %p112
      %p114 = scmp.ne.s32.totalorder %s105, %s106
      %p115 = scmp.eq.s32.totalorder %s37, 0
      %p116 = por %p114, %p115
      %p117 = scmp.ne.s32.totalorder %s105, %s106
      %p118 = scmp.eq.s32.totalorder %s38, 1
      %p119 = por %p117, %p118
      %p121 = scmp.ne.s32.totalorder %s106, %s120
      %p122 = scmp.eq.s32.totalorder %s38, 0
      %p123 = por %p121, %p122
      %s125 = sadd.s32 %s124, 1
      %p128 = scmp.eq.s32.totalorder %s32, 1
      %p129 = scmp.ne.s32.totalorder %s124, %s126
      %p130 = scmp.eq.s32.totalorder %s32, 0
      %p131 = por %p129, %p130
      %p132 = scmp.ne.s32.totalorder %s124, %s126
      %p133 = scmp.eq.s32.totalorder %s37, 1
      %p134 = por %p132, %p133
      %p135 = scmp.ne.s32.totalorder %s126, %s127
      %p136 = scmp.eq.s32.totalorder %s37, 0
      %p137 = por %p135, %p136
      %p138 = scmp.ne.s32.totalorder %s126, %s127
      %p139 = scmp.eq.s32.totalorder %s38, 1
      %p140 = por %p138, %p139
      %p142 = scmp.ne.s32.totalorder %s127, %s141
      %p143 = scmp.eq.s32.totalorder %s38, 0
      %p144 = por %p142, %p143
      %s145 = ssub.s32 %s32, %s39
      %p146 = scmp.eq.s32.totalorder %s145, 0
      %s148 = sadd.s32 %s147, 1
      %s149 = scalar_select %p146, %s147, %s148
      %p152 = pneg %p146
      %p153 = scmp.eq.s32.totalorder %s32, 1
      %p154 = por %p152, %p153
      %p155 = scmp.ne.s32.totalorder %s147, %s150
      %p156 = scmp.eq.s32.totalorder %s32, 0
      %p157 = por %p155, %p156
      %p158 = scmp.ne.s32.totalorder %s147, %s150
      %p159 = scmp.eq.s32.totalorder %s37, 1
      %p160 = por %p158, %p159
      %p161 = scmp.ne.s32.totalorder %s150, %s151
      %p162 = scmp.eq.s32.totalorder %s37, 0
      %p163 = por %p161, %p162
      %p164 = scmp.ne.s32.totalorder %s150, %s151
      %p165 = scmp.eq.s32.totalorder %s38, 1
      %p166 = por %p164, %p165
      %p168 = scmp.ne.s32.totalorder %s151, %s167
      %p169 = scmp.eq.s32.totalorder %s38, 0
      %p170 = por %p168, %p169
      %s171 = ssub.s32 %s32, %s39
      %p172 = scmp.eq.s32.totalorder %s171, 0
      %s174 = sadd.s32 %s173, 1
      %s175 = scalar_select %p172, %s173, %s174
      %p178 = pneg %p172
      %p179 = scmp.eq.s32.totalorder %s32, 1
      %p180 = por %p178, %p179
      %p181 = scmp.ne.s32.totalorder %s173, %s176
      %p182 = scmp.eq.s32.totalorder %s32, 0
      %p183 = por %p181, %p182
      %p184 = scmp.ne.s32.totalorder %s173, %s176
      %p185 = scmp.eq.s32.totalorder %s37, 1
      %p186 = por %p184, %p185
      %p187 = scmp.ne.s32.totalorder %s176, %s177
      %p188 = scmp.eq.s32.totalorder %s37, 0
      %p189 = por %p187, %p188
      %p190 = scmp.ne.s32.totalorder %s176, %s177
      %p191 = scmp.eq.s32.totalorder %s38, 1
      %p192 = por %p190, %p191
      %p194 = scmp.ne.s32.totalorder %s177, %s193
      %p195 = scmp.eq.s32.totalorder %s38, 0
      %p196 = por %p194, %p195
      %s197 = ssub.s32 %s32, %s39
      %p198 = scmp.eq.s32.totalorder %s197, 0
      %s200 = sadd.s32 %s199, 1
      %s201 = scalar_select %p198, %s199, %s200
      %p204 = pneg %p198
      %p205 = scmp.eq.s32.totalorder %s32, 1
      %p206 = por %p204, %p205
      %p207 = scmp.ne.s32.totalorder %s199, %s202
      %p208 = scmp.eq.s32.totalorder %s32, 0
      %p209 = por %p207, %p208
      %p210 = scmp.ne.s32.totalorder %s199, %s202
      %p211 = scmp.eq.s32.totalorder %s37, 1
      %p212 = por %p210, %p211
      %p213 = scmp.ne.s32.totalorder %s202, %s203
      %p214 = scmp.eq.s32.totalorder %s37, 0
      %p215 = por %p213, %p214
      %p216 = scmp.ne.s32.totalorder %s202, %s203
      %p217 = scmp.eq.s32.totalorder %s38, 1
      %p218 = por %p216, %p217
      %p220 = scmp.ne.s32.totalorder %s203, %s219
      %p221 = scmp.eq.s32.totalorder %s38, 0
      %p222 = por %p220, %p221
      %s223 = ssub.s32 %s32, %s39
      %p224 = scmp.eq.s32.totalorder %s223, 0
      %s226 = sadd.s32 %s225, 1
      %s227 = scalar_select %p224, %s225, %s226
      %p230 = pneg %p224
      %p231 = scmp.eq.s32.totalorder %s32, 1
      %p232 = por %p230, %p231
      %p233 = scmp.ne.s32.totalorder %s225, %s228
      %p234 = scmp.eq.s32.totalorder %s32, 0
      %p235 = por %p233, %p234
      %p236 = scmp.ne.s32.totalorder %s225, %s228
      %p237 = scmp.eq.s32.totalorder %s37, 1
      %p238 = por %p236, %p237
      %p239 = scmp.ne.s32.totalorder %s228, %s229
      %p240 = scmp.eq.s32.totalorder %s37, 0
      %p241 = por %p239, %p240
      %p242 = scmp.ne.s32.totalorder %s228, %s229
      %p243 = scmp.eq.s32.totalorder %s38, 1
      %p244 = por %p242, %p243
      %p246 = scmp.ne.s32.totalorder %s229, %s245
      %p247 = scmp.eq.s32.totalorder %s38, 0
      %p248 = por %p246, %p247
      %s249 = ssub.s32 %s32, %s39
      %p250 = scmp.eq.s32.totalorder %s249, 0
      %s252 = sadd.s32 %s251, 1
      %s253 = scalar_select %p250, %s251, %s252
      %p256 = pneg %p250
      %p257 = scmp.eq.s32.totalorder %s32, 1
      %p258 = por %p256, %p257
      %p259 = scmp.ne.s32.totalorder %s251, %s254
      %p260 = scmp.eq.s32.totalorder %s32, 0
      %p261 = por %p259, %p260
      %p262 = scmp.ne.s32.totalorder %s251, %s254
      %p263 = scmp.eq.s32.totalorder %s37, 1
      %p264 = por %p262, %p263
      %p265 = scmp.ne.s32.totalorder %s254, %s255
      %p266 = scmp.eq.s32.totalorder %s37, 0
      %p267 = por %p265, %p266
      %p268 = scmp.ne.s32.totalorder %s254, %s255
      %p269 = scmp.eq.s32.totalorder %s38, 1
      %p270 = por %p268, %p269
      %p272 = scmp.ne.s32.totalorder %s255, %s271
      %p273 = scmp.eq.s32.totalorder %s38, 0
      %p274 = por %p272, %p273
      %s275 = ssub.s32 %s32, %s39
      %p276 = scmp.eq.s32.totalorder %s275, 0
      %s278 = sadd.s32 %s277, 1
      %s279 = scalar_select %p276, %s277, %s278
      %p282 = pneg %p276
      %p283 = scmp.eq.s32.totalorder %s32, 1
      %p284 = por %p282, %p283
      %p285 = scmp.ne.s32.totalorder %s277, %s280
      %p286 = scmp.eq.s32.totalorder %s32, 0
      %p287 = por %p285, %p286
      %p288 = scmp.ne.s32.totalorder %s277, %s280
      %p289 = scmp.eq.s32.totalorder %s37, 1
      %p290 = por %p288, %p289
      %p291 = scmp.ne.s32.totalorder %s280, %s281
      %p292 = scmp.eq.s32.totalorder %s37, 0
      %p293 = por %p291, %p292
      %p294 = scmp.ne.s32.totalorder %s280, %s281
      %p295 = scmp.eq.s32.totalorder %s38, 1
      %p296 = por %p294, %p295
      %p298 = scmp.ne.s32.totalorder %s281, %s297
      %p299 = scmp.eq.s32.totalorder %s38, 0
      %p300 = por %p298, %p299
      %s301 = ssub.s32 %s32, %s39
      %p302 = scmp.eq.s32.totalorder %s301, 0
      %s304 = sadd.s32 %s303, 1
      %s305 = scalar_select %p302, %s303, %s304
      %p308 = pneg %p302
      %p309 = scmp.eq.s32.totalorder %s32, 1
      %p310 = por %p308, %p309
      %p311 = scmp.ne.s32.totalorder %s303, %s306
      %p312 = scmp.eq.s32.totalorder %s32, 0
      %p313 = por %p311, %p312
      %p314 = scmp.ne.s32.totalorder %s303, %s306
      %p315 = scmp.eq.s32.totalorder %s37, 1
      %p316 = por %p314, %p315
      %p317 = scmp.ne.s32.totalorder %s306, %s307
      %p318 = scmp.eq.s32.totalorder %s37, 0
      %p319 = por %p317, %p318
      %p320 = scmp.ne.s32.totalorder %s306, %s307
      %p321 = scmp.eq.s32.totalorder %s38, 1
      %p322 = por %p320, %p321
      %p324 = scmp.ne.s32.totalorder %s307, %s323
      %p325 = scmp.eq.s32.totalorder %s38, 0
      %p326 = por %p324, %p325
      %s327 = ssub.s32 %s32, %s39
      %p328 = scmp.eq.s32.totalorder %s327, 0
      %s330 = sadd.s32 %s329, 1
      %s331 = scalar_select %p328, %s329, %s330
      %p334 = pneg %p328
      %p335 = scmp.eq.s32.totalorder %s32, 1
      %p336 = por %p334, %p335
      %p337 = scmp.ne.s32.totalorder %s329, %s332
      %p338 = scmp.eq.s32.totalorder %s32, 0
      %p339 = por %p337, %p338
      %p340 = scmp.ne.s32.totalorder %s329, %s332
      %p341 = scmp.eq.s32.totalorder %s37, 1
      %p342 = por %p340, %p341
      %p343 = scmp.ne.s32.totalorder %s332, %s333
      %p344 = scmp.eq.s32.totalorder %s37, 0
      %p345 = por %p343, %p344
      %p346 = scmp.ne.s32.totalorder %s332, %s333
      %p347 = scmp.eq.s32.totalorder %s38, 1
      %p348 = por %p346, %p347
      %p350 = scmp.ne.s32.totalorder %s333, %s349
      %p351 = scmp.eq.s32.totalorder %s38, 0
      %p352 = por %p350, %p351
      %s353 = ssub.s32 %s32, %s39
      %p354 = scmp.eq.s32.totalorder %s353, 0
      %s356 = sadd.s32 %s355, 1
      %s357 = scalar_select %p354, %s355, %s356
      %p360 = pneg %p354
      %p361 = scmp.eq.s32.totalorder %s32, 1
      %p362 = por %p360, %p361
      %p363 = scmp.ne.s32.totalorder %s355, %s358
      %p364 = scmp.eq.s32.totalorder %s32, 0
      %p365 = por %p363, %p364
      %p366 = scmp.ne.s32.totalorder %s355, %s358
      %p367 = scmp.eq.s32.totalorder %s37, 1
      %p368 = por %p366, %p367
      %p369 = scmp.ne.s32.totalorder %s358, %s359
      %p370 = scmp.eq.s32.totalorder %s37, 0
      %p371 = por %p369, %p370
      %p372 = scmp.ne.s32.totalorder %s358, %s359
      %p373 = scmp.eq.s32.totalorder %s38, 1
      %p374 = por %p372, %p373
      %p376 = scmp.ne.s32.totalorder %s359, %s375
      %p377 = scmp.eq.s32.totalorder %s38, 0
      %p378 = por %p376, %p377
      %s379 = ssub.s32 %s32, %s39
      %p380 = scmp.eq.s32.totalorder %s379, 0
      %s382 = sadd.s32 %s381, 1
      %s383 = scalar_select %p380, %s381, %s382
      %p386 = pneg %p380
      %p387 = scmp.eq.s32.totalorder %s32, 1
      %p388 = por %p386, %p387
      %p389 = scmp.ne.s32.totalorder %s381, %s384
      %p390 = scmp.eq.s32.totalorder %s32, 0
      %p391 = por %p389, %p390
      %p392 = scmp.ne.s32.totalorder %s381, %s384
      %p393 = scmp.eq.s32.totalorder %s37, 1
      %p394 = por %p392, %p393
      %p395 = scmp.ne.s32.totalorder %s384, %s385
      %p396 = scmp.eq.s32.totalorder %s37, 0
      %p397 = por %p395, %p396
      %p398 = scmp.ne.s32.totalorder %s384, %s385
      %p399 = scmp.eq.s32.totalorder %s38, 1
      %p400 = por %p398, %p399
      %p402 = scmp.ne.s32.totalorder %s385, %s401
      %p403 = scmp.eq.s32.totalorder %s38, 0
      %p404 = por %p402, %p403
      %s405 = ssub.s32 %s32, %s39
      %p406 = scmp.eq.s32.totalorder %s405, 0
      %s408 = sadd.s32 %s407, 1
      %s409 = scalar_select %p406, %s407, %s408
      %p412 = pneg %p406
      %p413 = scmp.eq.s32.totalorder %s32, 1
      %p414 = por %p412, %p413
      %p415 = scmp.ne.s32.totalorder %s407, %s410
      %p416 = scmp.eq.s32.totalorder %s32, 0
      %p417 = por %p415, %p416
      %p418 = scmp.ne.s32.totalorder %s407, %s410
      %p419 = scmp.eq.s32.totalorder %s37, 1
      %p420 = por %p418, %p419
      %p421 = scmp.ne.s32.totalorder %s410, %s411
      %p422 = scmp.eq.s32.totalorder %s37, 0
      %p423 = por %p421, %p422
      %p424 = scmp.ne.s32.totalorder %s410, %s411
      %p425 = scmp.eq.s32.totalorder %s38, 1
      %p426 = por %p424, %p425
      %p428 = scmp.ne.s32.totalorder %s411, %s427
      %p429 = scmp.eq.s32.totalorder %s38, 0
      %p430 = por %p428, %p429
      %s431 = ssub.s32 %s32, %s39
      %p432 = scmp.eq.s32.totalorder %s431, 0
      %s434 = sadd.s32 %s433, 1
      %s435 = scalar_select %p432, %s433, %s434
      %p438 = pneg %p432
      %p439 = scmp.eq.s32.totalorder %s32, 1
      %p440 = por %p438, %p439
      %p441 = scmp.ne.s32.totalorder %s433, %s436
      %p442 = scmp.eq.s32.totalorder %s32, 0
      %p443 = por %p441, %p442
      %p444 = scmp.ne.s32.totalorder %s433, %s436
      %p445 = scmp.eq.s32.totalorder %s37, 1
      %p446 = por %p444, %p445
      %p447 = scmp.ne.s32.totalorder %s436, %s437
      %p448 = scmp.eq.s32.totalorder %s37, 0
      %p449 = por %p447, %p448
      %p450 = scmp.ne.s32.totalorder %s436, %s437
      %p451 = scmp.eq.s32.totalorder %s38, 1
      %p452 = por %p450, %p451
      %p454 = scmp.ne.s32.totalorder %s437, %s453
      %p455 = scmp.eq.s32.totalorder %s38, 0
      %p456 = por %p454, %p455
      %s457 = ssub.s32 %s32, %s39
      %p458 = scmp.eq.s32.totalorder %s457, 0
      %s460 = sadd.s32 %s459, 1
      %s461 = scalar_select %p458, %s459, %s460
      %p464 = pneg %p458
      %p465 = scmp.eq.s32.totalorder %s32, 1
      %p466 = por %p464, %p465
      %p467 = scmp.ne.s32.totalorder %s459, %s462
      %p468 = scmp.eq.s32.totalorder %s32, 0
      %p469 = por %p467, %p468
      %p470 = scmp.ne.s32.totalorder %s459, %s462
      %p471 = scmp.eq.s32.totalorder %s37, 1
      %p472 = por %p470, %p471
      %p473 = scmp.ne.s32.totalorder %s462, %s463
      %p474 = scmp.eq.s32.totalorder %s37, 0
      %p475 = por %p473, %p474
      %p476 = scmp.ne.s32.totalorder %s462, %s463
      %p477 = scmp.eq.s32.totalorder %s38, 1
      %p478 = por %p476, %p477
      %p480 = scmp.ne.s32.totalorder %s463, %s479
      %p481 = scmp.eq.s32.totalorder %s38, 0
      %p482 = por %p480, %p481
      %s483 = ssub.s32 %s32, %s39
      %p484 = scmp.eq.s32.totalorder %s483, 0
      %s486 = sadd.s32 %s485, 1
      %s487 = scalar_select %p484, %s485, %s486
      %p490 = pneg %p484
      %p491 = scmp.eq.s32.totalorder %s32, 1
      %p492 = por %p490, %p491
      %p493 = scmp.ne.s32.totalorder %s485, %s488
      %p494 = scmp.eq.s32.totalorder %s32, 0
      %p495 = por %p493, %p494
      %p496 = scmp.ne.s32.totalorder %s485, %s488
      %p497 = scmp.eq.s32.totalorder %s37, 1
      %p498 = por %p496, %p497
      %p499 = scmp.ne.s32.totalorder %s488, %s489
      %p500 = scmp.eq.s32.totalorder %s37, 0
      %p501 = por %p499, %p500
      %p502 = scmp.ne.s32.totalorder %s488, %s489
      %p503 = scmp.eq.s32.totalorder %s38, 1
      %p504 = por %p502, %p503
      %p506 = scmp.ne.s32.totalorder %s489, %s505
      %p507 = scmp.eq.s32.totalorder %s38, 0
      %p508 = por %p506, %p507
      %s509 = ssub.s32 %s32, %s39
      %p510 = scmp.eq.s32.totalorder %s509, 0
      %s512 = sadd.s32 %s511, 1
      %s513 = scalar_select %p510, %s511, %s512
      %p516 = pneg %p510
      %p517 = scmp.eq.s32.totalorder %s32, 1
      %p518 = por %p516, %p517
      %p519 = scmp.ne.s32.totalorder %s511, %s514
      %p520 = scmp.eq.s32.totalorder %s32, 0
      %p521 = por %p519, %p520
      %p522 = scmp.ne.s32.totalorder %s511, %s514
      %p523 = scmp.eq.s32.totalorder %s37, 1
      %p524 = por %p522, %p523
      %p525 = scmp.ne.s32.totalorder %s514, %s515
      %p526 = scmp.eq.s32.totalorder %s37, 0
      %p527 = por %p525, %p526
      %p528 = scmp.ne.s32.totalorder %s514, %s515
      %p529 = scmp.eq.s32.totalorder %s38, 1
      %p530 = por %p528, %p529
      %p532 = scmp.ne.s32.totalorder %s515, %s531
      %p533 = scmp.eq.s32.totalorder %s38, 0
      %p534 = por %p532, %p533
      %s535 = ssub.s32 %s32, %s39
      %p536 = scmp.eq.s32.totalorder %s535, 0
      %s538 = sadd.s32 %s537, 1
      %s539 = scalar_select %p536, %s537, %s538
      %p542 = pneg %p536
      %p543 = scmp.eq.s32.totalorder %s32, 1
      %p544 = por %p542, %p543
      %p545 = scmp.ne.s32.totalorder %s537, %s540
      %p546 = scmp.eq.s32.totalorder %s32, 0
      %p547 = por %p545, %p546
      %p548 = scmp.ne.s32.totalorder %s537, %s540
      %p549 = scmp.eq.s32.totalorder %s37, 1
      %p550 = por %p548, %p549
      %p551 = scmp.ne.s32.totalorder %s540, %s541
      %p552 = scmp.eq.s32.totalorder %s37, 0
      %p553 = por %p551, %p552
      %p554 = scmp.ne.s32.totalorder %s540, %s541
      %p555 = scmp.eq.s32.totalorder %s38, 1
      %p556 = por %p554, %p555
      %p558 = scmp.ne.s32.totalorder %s541, %s557
      %p559 = scmp.eq.s32.totalorder %s38, 0
      %p560 = por %p558, %p559
      %s562 = sadd.s32 %s561, 1
      %p565 = scmp.eq.s32.totalorder %s32, 1
      %p566 = scmp.ne.s32.totalorder %s561, %s563
      %p567 = scmp.eq.s32.totalorder %s32, 0
      %p568 = por %p566, %p567
      %p569 = scmp.ne.s32.totalorder %s561, %s563
      %p570 = scmp.eq.s32.totalorder %s37, 1
      %p571 = por %p569, %p570
      %p572 = scmp.ne.s32.totalorder %s563, %s564
      %p573 = scmp.eq.s32.totalorder %s37, 0
      %p574 = por %p572, %p573
      %p575 = scmp.ne.s32.totalorder %s563, %s564
      %p576 = scmp.eq.s32.totalorder %s38, 1
      %p577 = por %p575, %p576
      %p579 = scmp.ne.s32.totalorder %s564, %s578
      %p580 = scmp.eq.s32.totalorder %s38, 0
      %p581 = por %p579, %p580
      %s583 = sadd.s32 %s582, 1
      %p586 = scmp.eq.s32.totalorder %s32, 1
      %p587 = scmp.ne.s32.totalorder %s582, %s584
      %p588 = scmp.eq.s32.totalorder %s32, 0
      %p589 = por %p587, %p588
      %p590 = scmp.ne.s32.totalorder %s582, %s584
      %p591 = scmp.eq.s32.totalorder %s37, 1
      %p592 = por %p590, %p591
      %p593 = scmp.ne.s32.totalorder %s584, %s585
      %p594 = scmp.eq.s32.totalorder %s37, 0
      %p595 = por %p593, %p594
      %p596 = scmp.ne.s32.totalorder %s584, %s585
      %p597 = scmp.eq.s32.totalorder %s38, 1
      %p598 = por %p596, %p597
      %p600 = scmp.ne.s32.totalorder %s585, %s599
      %p601 = scmp.eq.s32.totalorder %s38, 0
      %p602 = por %p600, %p601
      %s604 = sadd.s32 %s603, 1
      %p607 = scmp.eq.s32.totalorder %s32, 1
      %p608 = scmp.ne.s32.totalorder %s603, %s605
      %p609 = scmp.eq.s32.totalorder %s32, 0
      %p610 = por %p608, %p609
      %p611 = scmp.ne.s32.totalorder %s603, %s605
      %p612 = scmp.eq.s32.totalorder %s37, 1
      %p613 = por %p611, %p612
      %p614 = scmp.ne.s32.totalorder %s605, %s606
      %p615 = scmp.eq.s32.totalorder %s37, 0
      %p616 = por %p614, %p615
      %p617 = scmp.ne.s32.totalorder %s605, %s606
      %p618 = scmp.eq.s32.totalorder %s38, 1
      %p619 = por %p617, %p618
      %p621 = scmp.ne.s32.totalorder %s606, %s620
      %p622 = scmp.eq.s32.totalorder %s38, 0
      %p623 = por %p621, %p622
      %s625 = sadd.s32 %s624, 1
      %p628 = scmp.eq.s32.totalorder %s32, 1
      %p629 = scmp.ne.s32.totalorder %s624, %s626
      %p630 = scmp.eq.s32.totalorder %s32, 0
      %p631 = por %p629, %p630
      %p632 = scmp.ne.s32.totalorder %s624, %s626
      %p633 = scmp.eq.s32.totalorder %s37, 1
      %p634 = por %p632, %p633
      %p635 = scmp.ne.s32.totalorder %s626, %s627
      %p636 = scmp.eq.s32.totalorder %s37, 0
      %p637 = por %p635, %p636
      %p638 = scmp.ne.s32.totalorder %s626, %s627
      %p639 = scmp.eq.s32.totalorder %s38, 1
      %p640 = por %p638, %p639
      %p642 = scmp.ne.s32.totalorder %s627, %s641
      %p643 = scmp.eq.s32.totalorder %s38, 0
      %p644 = por %p642, %p643
      %s646 = sadd.s32 %s645, 1
      %p649 = scmp.eq.s32.totalorder %s32, 1
      %p650 = scmp.ne.s32.totalorder %s645, %s647
      %p651 = scmp.eq.s32.totalorder %s32, 0
      %p652 = por %p650, %p651
      %p653 = scmp.ne.s32.totalorder %s645, %s647
      %p654 = scmp.eq.s32.totalorder %s37, 1
      %p655 = por %p653, %p654
      %p656 = scmp.ne.s32.totalorder %s647, %s648
      %p657 = scmp.eq.s32.totalorder %s37, 0
      %p658 = por %p656, %p657
      %p659 = scmp.ne.s32.totalorder %s647, %s648
      %p660 = scmp.eq.s32.totalorder %s38, 1
      %p661 = por %p659, %p660
      %p663 = scmp.ne.s32.totalorder %s648, %s662
      %p664 = scmp.eq.s32.totalorder %s38, 0
      %p665 = por %p663, %p664
      %p666 = scmp.le.s32.totalorder 1, %s32
      %p667 = scmp.lt.s32.totalorder %s32, 3
      %p668 = pnand %p666, %p667
      %p669 = pneg %p668
      // Predicated region
      $region9: #{tpu_custom_call.1} parent=5 // pred_check
        _
      $region10: #{tpu_custom_call.1} parent=5 // pred_check_branch
        %671 = sbr.rel (%p668) target = $region12
      $region11: #{tpu_custom_call.1} parent=5 // pred_region
        %s672 = ssub.s32 %s32, 1
        // Predicated region
        $region13: #{tpu_custom_call.1} parent=11 // pred_check
          %p673 = pneg %p53
        $region14: #{tpu_custom_call.1} parent=11 // pred_check_branch
          %675 = sbr.rel (%p673) target = $region16
        $region15: #{tpu_custom_call.1} parent=11 // pred_region
          _
        $region16: #{tpu_custom_call.1} parent=11 // pred_fallthru
          _
        // Predicated region
        $region17: #{tpu_custom_call.1} parent=11 // pred_check
          %p676 = pneg %p74
        $region18: #{tpu_custom_call.1} parent=11 // pred_check_branch
          %678 = sbr.rel (%p676) target = $region20
        $region19: #{tpu_custom_call.1} parent=11 // pred_region
          _
        $region20: #{tpu_custom_call.1} parent=11 // pred_fallthru
          _
        // Predicated region
        $region21: #{tpu_custom_call.1} parent=11 // pred_check
          %p679 = pneg %p95
        $region22: #{tpu_custom_call.1} parent=11 // pred_check_branch
          %681 = sbr.rel (%p679) target = $region24
        $region23: #{tpu_custom_call.1} parent=11 // pred_region
          _
        $region24: #{tpu_custom_call.1} parent=11 // pred_fallthru
          _
        // Predicated region
        $region25: #{tpu_custom_call.1} parent=11 // pred_check
          %p682 = pneg %p116
        $region26: #{tpu_custom_call.1} parent=11 // pred_check_branch
          %684 = sbr.rel (%p682) target = $region28
        $region27: #{tpu_custom_call.1} parent=11 // pred_region
          _
        $region28: #{tpu_custom_call.1} parent=11 // pred_fallthru
          _
        // Predicated region
        $region29: #{tpu_custom_call.1} parent=11 // pred_check
          %p685 = pneg %p137
        $region30: #{tpu_custom_call.1} parent=11 // pred_check_branch
          %687 = sbr.rel (%p685) target = $region32
        $region31: #{tpu_custom_call.1} parent=11 // pred_region
          _
        $region32: #{tpu_custom_call.1} parent=11 // pred_fallthru
          _
        // Predicated region
        $region33: #{tpu_custom_call.1} parent=11 // pred_check
          %p688 = pneg %p574
        $region34: #{tpu_custom_call.1} parent=11 // pred_check_branch
          %690 = sbr.rel (%p688) target = $region36
        $region35: #{tpu_custom_call.1} parent=11 // pred_region
          _
        $region36: #{tpu_custom_call.1} parent=11 // pred_fallthru
          _
        // Predicated region
        $region37: #{tpu_custom_call.1} parent=11 // pred_check
          %p691 = pneg %p595
        $region38: #{tpu_custom_call.1} parent=11 // pred_check_branch
          %693 = sbr.rel (%p691) target = $region40
        $region39: #{tpu_custom_call.1} parent=11 // pred_region
          _
        $region40: #{tpu_custom_call.1} parent=11 // pred_fallthru
          _
        // Predicated region
        $region41: #{tpu_custom_call.1} parent=11 // pred_check
          %p694 = pneg %p616
        $region42: #{tpu_custom_call.1} parent=11 // pred_check_branch
          %696 = sbr.rel (%p694) target = $region44
        $region43: #{tpu_custom_call.1} parent=11 // pred_region
          _
        $region44: #{tpu_custom_call.1} parent=11 // pred_fallthru
          _
        // Predicated region
        $region45: #{tpu_custom_call.1} parent=11 // pred_check
          %p697 = pneg %p637
        $region46: #{tpu_custom_call.1} parent=11 // pred_check_branch
          %699 = sbr.rel (%p697) target = $region48
        $region47: #{tpu_custom_call.1} parent=11 // pred_region
          _
        $region48: #{tpu_custom_call.1} parent=11 // pred_fallthru
          _
      $region12: #{tpu_custom_call.1} parent=5 // pred_fallthru
        _
      %p700 = scmp.lt.s32.totalorder %s32, 2
      // Predicated region
      $region49: #{tpu_custom_call.1} parent=5 // pred_check
        %p701 = pneg %p700
      $region50: #{tpu_custom_call.1} parent=5 // pred_check_branch
        %703 = sbr.rel (%p701) target = $region52
      $region51: #{tpu_custom_call.1} parent=5 // pred_region
        // Predicated region
        $region53: #{tpu_custom_call.1} parent=51 // pred_check
          %p704 = pneg %p157
        $region54: #{tpu_custom_call.1} parent=51 // pred_check_branch
          %706 = sbr.rel (%p704) target = $region56
        $region55: #{tpu_custom_call.1} parent=51 // pred_region
          %p707 = scmp.lt.s32.totalorder %s32, 1
          %s708 = scalar_select %p707, %s32, 1
          %s709 = scalar_lea.vmem %s5, %s708
        $region56: #{tpu_custom_call.1} parent=51 // pred_fallthru
          _
        // Predicated region
        $region57: #{tpu_custom_call.1} parent=51 // pred_check
          %p710 = pneg %p183
        $region58: #{tpu_custom_call.1} parent=51 // pred_check_branch
          %712 = sbr.rel (%p710) target = $region60
        $region59: #{tpu_custom_call.1} parent=51 // pred_region
          %p713 = scmp.lt.s32.totalorder %s32, 1
          %s714 = scalar_select %p713, %s32, 1
          %s715 = scalar_lea.vmem %s6, %s714
        $region60: #{tpu_custom_call.1} parent=51 // pred_fallthru
          _
        // Predicated region
        $region61: #{tpu_custom_call.1} parent=51 // pred_check
          %p716 = pneg %p209
        $region62: #{tpu_custom_call.1} parent=51 // pred_check_branch
          %718 = sbr.rel (%p716) target = $region64
        $region63: #{tpu_custom_call.1} parent=51 // pred_region
          %p719 = scmp.lt.s32.totalorder %s32, 1
          %s720 = scalar_select %p719, %s32, 1
          %s721 = smul.addr %s720, 16
          %s722 = smul.addr %s721, 4
          %s723 = scalar_lea.vmem %s7, %s722
        $region64: #{tpu_custom_call.1} parent=51 // pred_fallthru
          _
        // Predicated region
        $region65: #{tpu_custom_call.1} parent=51 // pred_check
          %p724 = pneg %p235
        $region66: #{tpu_custom_call.1} parent=51 // pred_check_branch
          %726 = sbr.rel (%p724) target = $region68
        $region67: #{tpu_custom_call.1} parent=51 // pred_region
          %p727 = scmp.lt.s32.totalorder %s32, 1
          %s728 = scalar_select %p727, %s32, 1
          %s729 = smul.addr %s728, 4
          %s730 = scalar_lea.vmem %s8, %s729
        $region68: #{tpu_custom_call.1} parent=51 // pred_fallthru
          _
        // Predicated region
        $region69: #{tpu_custom_call.1} parent=51 // pred_check
          %p731 = pneg %p261
        $region70: #{tpu_custom_call.1} parent=51 // pred_check_branch
          %733 = sbr.rel (%p731) target = $region72
        $region71: #{tpu_custom_call.1} parent=51 // pred_region
          %p734 = scmp.lt.s32.totalorder %s32, 1
          %s735 = scalar_select %p734, %s32, 1
          %s736 = smul.addr %s735, 16
          %s737 = smul.addr %s736, 4
          %s738 = scalar_lea.vmem %s9, %s737
        $region72: #{tpu_custom_call.1} parent=51 // pred_fallthru
          _
        // Predicated region
        $region73: #{tpu_custom_call.1} parent=51 // pred_check
          %p739 = pneg %p287
        $region74: #{tpu_custom_call.1} parent=51 // pred_check_branch
          %741 = sbr.rel (%p739) target = $region76
        $region75: #{tpu_custom_call.1} parent=51 // pred_region
          %p742 = scmp.lt.s32.totalorder %s32, 1
          %s743 = scalar_select %p742, %s32, 1
          %s744 = smul.addr %s743, 4
          %s745 = scalar_lea.vmem %s10, %s744
        $region76: #{tpu_custom_call.1} parent=51 // pred_fallthru
          _
        // Predicated region
        $region77: #{tpu_custom_call.1} parent=51 // pred_check
          %p746 = pneg %p313
        $region78: #{tpu_custom_call.1} parent=51 // pred_check_branch
          %748 = sbr.rel (%p746) target = $region80
        $region79: #{tpu_custom_call.1} parent=51 // pred_region
          %p749 = scmp.lt.s32.totalorder %s32, 1
          %s750 = scalar_select %p749, %s32, 1
          %s751 = smul.addr %s750, 16
          %s752 = smul.addr %s751, 4
          %s753 = scalar_lea.vmem %s11, %s752
        $region80: #{tpu_custom_call.1} parent=51 // pred_fallthru
          _
        // Predicated region
        $region81: #{tpu_custom_call.1} parent=51 // pred_check
          %p754 = pneg %p339
        $region82: #{tpu_custom_call.1} parent=51 // pred_check_branch
          %756 = sbr.rel (%p754) target = $region84
        $region83: #{tpu_custom_call.1} parent=51 // pred_region
          %p757 = scmp.lt.s32.totalorder %s32, 1
          %s758 = scalar_select %p757, %s32, 1
          %s759 = smul.addr %s758, 4
          %s760 = scalar_lea.vmem %s12, %s759
        $region84: #{tpu_custom_call.1} parent=51 // pred_fallthru
          _
        // Predicated region
        $region85: #{tpu_custom_call.1} parent=51 // pred_check
          %p761 = pneg %p365
        $region86: #{tpu_custom_call.1} parent=51 // pred_check_branch
          %763 = sbr.rel (%p761) target = $region88
        $region87: #{tpu_custom_call.1} parent=51 // pred_region
          %p764 = scmp.lt.s32.totalorder %s32, 1
          %s765 = scalar_select %p764, %s32, 1
          %s766 = smul.addr %s765, 4
          %s767 = smul.addr %s766, 4
          %s768 = scalar_lea.vmem %s13, %s767
        $region88: #{tpu_custom_call.1} parent=51 // pred_fallthru
          _
        // Predicated region
        $region89: #{tpu_custom_call.1} parent=51 // pred_check
          %p769 = pneg %p391
        $region90: #{tpu_custom_call.1} parent=51 // pred_check_branch
          %771 = sbr.rel (%p769) target = $region92
        $region91: #{tpu_custom_call.1} parent=51 // pred_region
          %p772 = scmp.lt.s32.totalorder %s32, 1
          %s773 = scalar_select %p772, %s32, 1
          %s774 = scalar_lea.vmem %s14, %s773
        $region92: #{tpu_custom_call.1} parent=51 // pred_fallthru
          _
        // Predicated region
        $region93: #{tpu_custom_call.1} parent=51 // pred_check
          %p775 = pneg %p417
        $region94: #{tpu_custom_call.1} parent=51 // pred_check_branch
          %777 = sbr.rel (%p775) target = $region96
        $region95: #{tpu_custom_call.1} parent=51 // pred_region
          %p778 = scmp.lt.s32.totalorder %s32, 1
          %s779 = scalar_select %p778, %s32, 1
          %s780 = scalar_lea.vmem %s15, %s779
        $region96: #{tpu_custom_call.1} parent=51 // pred_fallthru
          _
        // Predicated region
        $region97: #{tpu_custom_call.1} parent=51 // pred_check
          %p781 = pneg %p443
        $region98: #{tpu_custom_call.1} parent=51 // pred_check_branch
          %783 = sbr.rel (%p781) target = $region100
        $region99: #{tpu_custom_call.1} parent=51 // pred_region
          %p784 = scmp.lt.s32.totalorder %s32, 1
          %s785 = scalar_select %p784, %s32, 1
          %s786 = scalar_lea.vmem %s16, %s785
        $region100: #{tpu_custom_call.1} parent=51 // pred_fallthru
          _
        // Predicated region
        $region101: #{tpu_custom_call.1} parent=51 // pred_check
          %p787 = pneg %p469
        $region102: #{tpu_custom_call.1} parent=51 // pred_check_branch
          %789 = sbr.rel (%p787) target = $region104
        $region103: #{tpu_custom_call.1} parent=51 // pred_region
          %p790 = scmp.lt.s32.totalorder %s32, 1
          %s791 = scalar_select %p790, %s32, 1
          %s792 = smul.addr %s791, 64
          %s793 = smul.addr %s792, 4
          %s794 = scalar_lea.vmem %s17, %s793
        $region104: #{tpu_custom_call.1} parent=51 // pred_fallthru
          _
        // Predicated region
        $region105: #{tpu_custom_call.1} parent=51 // pred_check
          %p795 = pneg %p495
        $region106: #{tpu_custom_call.1} parent=51 // pred_check_branch
          %797 = sbr.rel (%p795) target = $region108
        $region107: #{tpu_custom_call.1} parent=51 // pred_region
          %p798 = scmp.lt.s32.totalorder %s32, 1
          %s799 = scalar_select %p798, %s32, 1
          %s800 = smul.addr %s799, 16
          %s801 = scalar_lea.vmem %s18, %s800
        $region108: #{tpu_custom_call.1} parent=51 // pred_fallthru
          _
        // Predicated region
        $region109: #{tpu_custom_call.1} parent=51 // pred_check
          %p802 = pneg %p521
        $region110: #{tpu_custom_call.1} parent=51 // pred_check_branch
          %804 = sbr.rel (%p802) target = $region112
        $region111: #{tpu_custom_call.1} parent=51 // pred_region
          %p805 = scmp.lt.s32.totalorder %s32, 1
          %s806 = scalar_select %p805, %s32, 1
          %s807 = smul.addr %s806, 256
          %s808 = smul.addr %s807, 4
          %s809 = scalar_lea.vmem %s19, %s808
        $region112: #{tpu_custom_call.1} parent=51 // pred_fallthru
          _
        // Predicated region
        $region113: #{tpu_custom_call.1} parent=51 // pred_check
          %p810 = pneg %p547
        $region114: #{tpu_custom_call.1} parent=51 // pred_check_branch
          %812 = sbr.rel (%p810) target = $region116
        $region115: #{tpu_custom_call.1} parent=51 // pred_region
          %p813 = scmp.lt.s32.totalorder %s32, 1
          %s814 = scalar_select %p813, %s32, 1
          %s815 = scalar_lea.vmem %s20, %s814
        $region116: #{tpu_custom_call.1} parent=51 // pred_fallthru
          _
      $region52: #{tpu_custom_call.1} parent=5 // pred_fallthru
        _
      %p816 = scmp.le.s32.totalorder 1, %s32
      %p817 = scmp.lt.s32.totalorder %s32, 3
      %p818 = pnand %p816, %p817
      %p819 = pneg %p818
      // Predicated region
      $region117: #{tpu_custom_call.1} parent=5 // pred_check
        _
      $region118: #{tpu_custom_call.1} parent=5 // pred_check_branch
        %821 = sbr.rel (%p818) target = $region120
      $region119: #{tpu_custom_call.1} parent=5 // pred_region
        %s822 = ssub.s32 %s32, 1
        %p823 = pneg %p53
        %p824 = pneg %p50
        %p825 = pneg %p74
        %p826 = pneg %p71
        %p827 = pneg %p95
        %p828 = pneg %p92
        %p829 = pneg %p116
        %p830 = pneg %p113
        %p831 = pneg %p137
        %p832 = pneg %p134
        %p833 = scmp.lt.s32.totalorder %s37, 1
        %s834 = scalar_select %p833, %s37, 1
        %s835 = scalar_lea.vmem %s5, %s834
        %p836 = pneg %p163
        %p837 = pneg %p160
        %p838 = scmp.lt.s32.totalorder %s37, 1
        %s839 = scalar_select %p838, %s37, 1
        %s840 = scalar_lea.vmem %s6, %s839
        %p841 = pneg %p189
        %p842 = pneg %p186
        %p843 = scmp.lt.s32.totalorder %s37, 1
        %s844 = scalar_select %p843, %s37, 1
        %s845 = smul.addr %s844, 16
        %s846 = smul.addr %s845, 4
        %s847 = scalar_lea.vmem %s7, %s846
        %p848 = pneg %p215
        %p849 = pneg %p212
        %p850 = scmp.lt.s32.totalorder %s37, 1
        %s851 = scalar_select %p850, %s37, 1
        %s852 = smul.addr %s851, 4
        %s853 = scalar_lea.vmem %s8, %s852
        %p854 = pneg %p241
        %p855 = pneg %p238
        %p856 = scmp.lt.s32.totalorder %s37, 1
        %s857 = scalar_select %p856, %s37, 1
        %s858 = smul.addr %s857, 16
        %s859 = smul.addr %s858, 4
        %s860 = scalar_lea.vmem %s9, %s859
        %p861 = pneg %p267
        %p862 = pneg %p264
        %p863 = scmp.lt.s32.totalorder %s37, 1
        %s864 = scalar_select %p863, %s37, 1
        %s865 = smul.addr %s864, 4
        %s866 = scalar_lea.vmem %s10, %s865
        %p867 = pneg %p293
        %p868 = pneg %p290
        %p869 = scmp.lt.s32.totalorder %s37, 1
        %s870 = scalar_select %p869, %s37, 1
        %s871 = smul.addr %s870, 16
        %s872 = smul.addr %s871, 4
        %s873 = scalar_lea.vmem %s11, %s872
        %p874 = pneg %p319
        %p875 = pneg %p316
        %p876 = scmp.lt.s32.totalorder %s37, 1
        %s877 = scalar_select %p876, %s37, 1
        %s878 = smul.addr %s877, 4
        %s879 = scalar_lea.vmem %s12, %s878
        %p880 = pneg %p345
        %p881 = pneg %p342
        %p882 = scmp.lt.s32.totalorder %s37, 1
        %s883 = scalar_select %p882, %s37, 1
        %s884 = smul.addr %s883, 4
        %s885 = smul.addr %s884, 4
        %s886 = scalar_lea.vmem %s13, %s885
        %p887 = pneg %p371
        %p888 = pneg %p368
        %p889 = scmp.lt.s32.totalorder %s37, 1
        %s890 = scalar_select %p889, %s37, 1
        %s891 = scalar_lea.vmem %s14, %s890
        %p892 = pneg %p397
        %p893 = pneg %p394
        %p894 = scmp.lt.s32.totalorder %s37, 1
        %s895 = scalar_select %p894, %s37, 1
        %s896 = scalar_lea.vmem %s15, %s895
        %p897 = pneg %p423
        %p898 = pneg %p420
        %p899 = scmp.lt.s32.totalorder %s37, 1
        %s900 = scalar_select %p899, %s37, 1
        %s901 = scalar_lea.vmem %s16, %s900
        %p902 = pneg %p449
        %p903 = pneg %p446
        %p904 = scmp.lt.s32.totalorder %s37, 1
        %s905 = scalar_select %p904, %s37, 1
        %s906 = smul.addr %s905, 64
        %s907 = smul.addr %s906, 4
        %s908 = scalar_lea.vmem %s17, %s907
        %p909 = pneg %p475
        %p910 = pneg %p472
        %p911 = scmp.lt.s32.totalorder %s37, 1
        %s912 = scalar_select %p911, %s37, 1
        %s913 = smul.addr %s912, 16
        %s914 = scalar_lea.vmem %s18, %s913
        %p915 = pneg %p501
        %p916 = pneg %p498
        %p917 = scmp.lt.s32.totalorder %s37, 1
        %s918 = scalar_select %p917, %s37, 1
        %s919 = smul.addr %s918, 256
        %s920 = smul.addr %s919, 4
        %s921 = scalar_lea.vmem %s19, %s920
        %p922 = pneg %p527
        %p923 = pneg %p524
        %p924 = scmp.lt.s32.totalorder %s37, 1
        %s925 = scalar_select %p924, %s37, 1
        %s926 = scalar_lea.vmem %s20, %s925
        %p927 = pneg %p553
        %p928 = pneg %p550
        %p929 = pneg %p574
        %p930 = pneg %p571
        %p931 = pneg %p595
        %p932 = pneg %p592
        %p933 = pneg %p616
        %p934 = pneg %p613
        %p935 = pneg %p637
        %p936 = pneg %p634
        %p937 = pneg %p658
        %p938 = pneg %p655
        %p939 = scmp.lt.s32.totalorder %s37, 1
        %s940 = scalar_select %p939, %s37, 1
        %s941 = scalar_lea.vmem %s5, %s940
        %p942 = scmp.lt.s32.totalorder %s37, 1
        %s943 = scalar_select %p942, %s37, 1
        %s944 = scalar_lea.vmem %s6, %s943
        %p945 = scmp.lt.s32.totalorder %s37, 1
        %s946 = scalar_select %p945, %s37, 1
        %s947 = smul.addr %s946, 16
        %s948 = smul.addr %s947, 4
        %s949 = scalar_lea.vmem %s7, %s948
        %p950 = scmp.lt.s32.totalorder %s37, 1
        %s951 = scalar_select %p950, %s37, 1
        %s952 = smul.addr %s951, 4
        %s953 = scalar_lea.vmem %s8, %s952
        %p954 = scmp.lt.s32.totalorder %s37, 1
        %s955 = scalar_select %p954, %s37, 1
        %s956 = smul.addr %s955, 16
        %s957 = smul.addr %s956, 4
        %s958 = scalar_lea.vmem %s9, %s957
        %p959 = scmp.lt.s32.totalorder %s37, 1
        %s960 = scalar_select %p959, %s37, 1
        %s961 = smul.addr %s960, 4
        %s962 = scalar_lea.vmem %s10, %s961
        %p963 = scmp.lt.s32.totalorder %s37, 1
        %s964 = scalar_select %p963, %s37, 1
        %s965 = smul.addr %s964, 16
        %s966 = smul.addr %s965, 4
        %s967 = scalar_lea.vmem %s11, %s966
        %p968 = scmp.lt.s32.totalorder %s37, 1
        %s969 = scalar_select %p968, %s37, 1
        %s970 = smul.addr %s969, 4
        %s971 = scalar_lea.vmem %s12, %s970
        %p972 = scmp.lt.s32.totalorder %s37, 1
        %s973 = scalar_select %p972, %s37, 1
        %s974 = smul.addr %s973, 4
        %s975 = smul.addr %s974, 4
        %s976 = scalar_lea.vmem %s13, %s975
        %p977 = scmp.lt.s32.totalorder %s37, 1
        %s978 = scalar_select %p977, %s37, 1
        %s979 = scalar_lea.vmem %s14, %s978
        %p980 = scmp.lt.s32.totalorder %s37, 1
        %s981 = scalar_select %p980, %s37, 1
        %s982 = scalar_lea.vmem %s15, %s981
        %p983 = scmp.lt.s32.totalorder %s37, 1
        %s984 = scalar_select %p983, %s37, 1
        %s985 = scalar_lea.vmem %s16, %s984
        %p986 = scmp.lt.s32.totalorder %s37, 1
        %s987 = scalar_select %p986, %s37, 1
        %s988 = smul.addr %s987, 64
        %s989 = smul.addr %s988, 4
        %s990 = scalar_lea.vmem %s17, %s989
        %p991 = scmp.lt.s32.totalorder %s37, 1
        %s992 = scalar_select %p991, %s37, 1
        %s993 = smul.addr %s992, 16
        %s994 = scalar_lea.vmem %s18, %s993
        %p995 = scmp.lt.s32.totalorder %s37, 1
        %s996 = scalar_select %p995, %s37, 1
        %s997 = smul.addr %s996, 256
        %s998 = smul.addr %s997, 4
        %s999 = scalar_lea.vmem %s19, %s998
        %p1000 = scmp.lt.s32.totalorder %s37, 1
        %s1001 = scalar_select %p1000, %s37, 1
        %s1002 = scalar_lea.vmem %s20, %s1001
        %p1004 = scmp.eq.s32.totalorder %s37, 0
        // Predicated region
        $region121: #{tpu_custom_call.1} parent=119 // pred_check
          %p1005 = pneg %p1004
        $region122: #{tpu_custom_call.1} parent=119 // pred_check_branch
          %1007 = sbr.rel (%p1005) target = $region124
        $region123: #{tpu_custom_call.1} parent=119 // pred_region
          %v1008 = vld [vmem:[%s0] sm:$0xff]
          %v1009 = vld [vmem:[%s0 + $0x8] sm:$0xff]
          %v1010 = vld [vmem:[%s0 + $0x10] sm:$0xff]
          %v1011 = vld [vmem:[%s0 + $0x18] sm:$0xff]
          %v1012 = vld [vmem:[%s0 + $0x20] sm:$0xff]
          %v1013 = vld [vmem:[%s0 + $0x28] sm:$0xff]
          %v1014 = vld [vmem:[%s1] sm:$0xff]
          %v1015 = vld [vmem:[%s1 + $0x8] sm:$0xff]
          %v1016 = vld [vmem:[%s1 + $0x10] sm:$0xff]
          %v1017 = vld [vmem:[%s1 + $0x18] sm:$0xff]
          %v1018 = vld [vmem:[%s1 + $0x20] sm:$0xff]
          %v1019 = vld [vmem:[%s1 + $0x28] sm:$0xff]
          %v1020 = vld [vmem:[%s2] sm:$0xff]
          %v1021 = vld [vmem:[%s2 + $0x8] sm:$0xff]
          %v1022 = vld [vmem:[%s2 + $0x10] sm:$0xff]
          %v1023 = vld [vmem:[%s2 + $0x18] sm:$0xff]
          %v1024 = vld [vmem:[%s2 + $0x20] sm:$0xff]
          %v1025 = vld [vmem:[%s2 + $0x28] sm:$0xff]
          %vm1026 = vcmask 392192
          %v1028 = vsel %vm1026, %v1008, 0
          %v1031 = vsel %vm1026, %v1009, 0
          %v1034 = vsel %vm1026, %v1010, 0
          %v1037 = vsel %vm1026, %v1011, 0
          %v1040 = vsel %vm1026, %v1012, 0
          %v1043 = vsel %vm1026, %v1013, 0
          %1045 = vmatprep.subr.mxu0 0.0
          %1046 = vmatpush1.msra.mxu0 %v1014
          %1047 = vmatprep.subr.mxu0 0.0
          %1048 = vmatpush1.msra.mxu0 %v1015
          %1049 = vmatprep.subr.mxu0 0.0
          %1050 = vmatpush1.msra.mxu0 %v1016
          %1051 = vmatprep.subr.mxu0 0.0
          %1052 = vmatpush1.msra.mxu0 %v1017
          %1053 = vmatprep.subr.mxu0 0.0
          %1054 = vmatpush1.msra.mxu0 %v1018
          %1055 = vmatprep.subr.mxu0 0.0
          %1056 = vmatpush1.msra.mxu0 %v1019
          %1057 = vmatprep.subr.mxu0 0.0
          %1058 = vmatpush1.msra.mxu0 0.0
          %1059 = vmatprep.subr.mxu0 0.0
          %1060 = vmatpush1.msra.mxu0 0.0
          %1061 = vmatprep.subr.mxu0 0.0
          %1062 = vmatpush1.msra.mxu0 0.0
          %1063 = vmatprep.subr.mxu0 0.0
          %1064 = vmatpush1.msra.mxu0 0.0
          %1065 = vmatprep.subr.mxu0 0.0
          %1066 = vmatpush1.msra.mxu0 0.0
          %1067 = vmatprep.subr.mxu0 0.0
          %1068 = vmatpush1.msra.mxu0 0.0
          %1069 = vmatprep.subr.mxu0 0.0
          %1070 = vmatpush1.msra.mxu0 0.0
          %1071 = vmatprep.subr.mxu0 0.0
          %1072 = vmatpush1.msra.mxu0 0.0
          %1073 = vmatprep.subr.mxu0 0.0
          %1074 = vmatpush1.msra.mxu0 0.0
          %1075 = vmatprep.subr.mxu0 0.0
          %1076 = vmatpush1.msra.mxu0 0.0
          %1077 = vmatprep.subr.mxu0 0.0
          %1078 = vmatpush1.msra.mxu0 0.0
          %1079 = vmatprep.subr.mxu0 0.0
          %1080 = vmatpush1.msra.mxu0 0.0
          %1081 = vmatprep.subr.mxu0 0.0
          %1082 = vmatpush1.msra.mxu0 0.0
          %1083 = vmatprep.subr.mxu0 0.0
          %1084 = vmatpush1.msra.mxu0 0.0
          %1085 = vmatprep.subr.mxu0 0.0
          %1086 = vmatpush1.msra.mxu0 0.0
          %1087 = vmatprep.subr.mxu0 0.0
          %1088 = vmatpush1.msra.mxu0 0.0
          %1089 = vmatprep.subr.mxu0 0.0
          %1090 = vmatpush1.msra.mxu0 0.0
          %1091 = vmatprep.subr.mxu0 0.0
          %1092 = vmatpush1.msra.mxu0 0.0
          %1093 = vmatprep.subr.mxu0 0.0
          %1094 = vmatpush1.msra.mxu0 0.0
          %1095 = vmatprep.subr.mxu0 0.0
          %1096 = vmatpush1.msra.mxu0 0.0
          %1097 = vmatprep.subr.mxu0 0.0
          %1098 = vmatpush1.msra.mxu0 0.0
          %1099 = vmatprep.subr.mxu0 0.0
          %1100 = vmatpush1.msra.mxu0 0.0
          %1101 = vmatprep.subr.mxu0 0.0
          %1102 = vmatpush1.msra.mxu0 0.0
          %1103 = vmatprep.subr.mxu0 0.0
          %1104 = vmatpush1.msra.mxu0 0.0
          %1105 = vmatprep.subr.mxu0 0.0
          %1106 = vmatpush1.msra.mxu0 0.0
          %1107 = vmatprep.subr.mxu0 0.0
          %1108 = vmatpush1.msra.mxu0 0.0
          %1109 = vmatprep.mubr.f32.mxu0 0.0
          %1110 = vmatmul.mubr.f32.gmra.mrb[0].mxu0 %v1028
          %v1111 = vpop.f32.mrb[0].mxu0
          %v1112 = vadd.f32 %v1020, %v1111
          %v1113 = vpop.f32.mrb[0].mxu0
          %1114 = vmatprep.mubr.f32.mxu0 0.0
          %1115 = vmatmul.mubr.f32.gmra.mrb[0].mxu0 %v1031
          %v1116 = vpop.f32.mrb[0].mxu0
          %v1117 = vadd.f32 %v1021, %v1116
          %v1118 = vpop.f32.mrb[0].mxu0
          %1119 = vmatprep.mubr.f32.mxu0 0.0
          %1120 = vmatmul.mubr.f32.gmra.mrb[0].mxu0 %v1034
          %v1121 = vpop.f32.mrb[0].mxu0
          %v1122 = vadd.f32 %v1022, %v1121
          %v1123 = vpop.f32.mrb[0].mxu0
          %1124 = vmatprep.mubr.f32.mxu0 0.0
          %1125 = vmatmul.mubr.f32.gmra.mrb[0].mxu0 %v1037
          %v1126 = vpop.f32.mrb[0].mxu0
          %v1127 = vadd.f32 %v1023, %v1126
          %v1128 = vpop.f32.mrb[0].mxu0
          %1129 = vmatprep.mubr.f32.mxu0 0.0
          %1130 = vmatmul.mubr.f32.gmra.mrb[0].mxu0 %v1040
          %v1131 = vpop.f32.mrb[0].mxu0
          %v1132 = vadd.f32 %v1024, %v1131
          %v1133 = vpop.f32.mrb[0].mxu0
          %1134 = vmatprep.mubr.f32.mxu0 0.0
          %1135 = vmatmul.mubr.f32.gmra.mrb[0].mxu0 %v1043
          %v1136 = vpop.f32.mrb[0].mxu0
          %v1137 = vadd.f32 %v1025, %v1136
          %v1138 = vpop.f32.mrb[0].mxu0
          %1139 = vdwg.mxu0
          %vm1140 = vcmask 261120
          %1141 = vst.msk [vmem:[#allocation2] sm:$0xff] %vm1140, %v1112
          %1142 = vst.msk [vmem:[#allocation2 + $0x8] sm:$0xff] %vm1140, %v1117
          %1143 = vst.msk [vmem:[#allocation2 + $0x10] sm:$0xff] %vm1140, %v1122
          %1144 = vst.msk [vmem:[#allocation2 + $0x18] sm:$0xff] %vm1140, %v1127
          %1145 = vst.msk [vmem:[#allocation2 + $0x20] sm:$0xff] %vm1140, %v1132
          %1146 = vst.msk [vmem:[#allocation2 + $0x28] sm:$0xff] %vm1140, %v1137
        $region124: #{tpu_custom_call.1} parent=119 // pred_fallthru
          _
        %v1147 = vld [vmem:[#allocation2] sm:$0xff]
        %v1148 = vld [vmem:[#allocation2 + $0x8] sm:$0xff]
        %v1149 = vld [vmem:[#allocation2 + $0x10] sm:$0xff]
        %v1150 = vld [vmem:[#allocation2 + $0x18] sm:$0xff]
        %v1151 = vld [vmem:[#allocation2 + $0x20] sm:$0xff]
        %v1152 = vld [vmem:[#allocation2 + $0x28] sm:$0xff]
        %v1153 = vld [vmem:[%s941] sm:$0x1]
        %v1154 = vld [vmem:[%s944] sm:$0x1]
        %vm1155 = vcmask 261120
        %v1156 = vsel %vm1155, %v1147, 0.0
        %1157 = vadd.xlane.f32.xlu0 %v1156
        %v1158 = vpop.xlane.xlu0 %1157
        %v1159 = vsel %vm1155, %v1148, 0.0
        %1160 = vadd.xlane.f32.xlu0 %v1159
        %v1161 = vpop.xlane.xlu0 %1160
        %v1162 = vsel %vm1155, %v1149, 0.0
        %1163 = vadd.xlane.f32.xlu0 %v1162
        %v1164 = vpop.xlane.xlu0 %1163
        %v1165 = vsel %vm1155, %v1150, 0.0
        %1166 = vadd.xlane.f32.xlu0 %v1165
        %v1167 = vpop.xlane.xlu0 %1166
        %v1168 = vsel %vm1155, %v1151, 0.0
        %1169 = vadd.xlane.f32.xlu0 %v1168
        %v1170 = vpop.xlane.xlu0 %1169
        %v1171 = vsel %vm1155, %v1152, 0.0
        %1172 = vadd.xlane.f32.xlu0 %v1171
        %v1173 = vpop.xlane.xlu0 %1172
        %v1174 = vrcp.pop 32.0
        %v1175 = vmul.f32 %v1158, %v1174
        %v1176 = vmul.f32 %v1161, %v1174
        %v1177 = vmul.f32 %v1164, %v1174
        %v1178 = vmul.f32 %v1167, %v1174
        %v1179 = vmul.f32 %v1170, %v1174
        %v1180 = vmul.f32 %v1173, %v1174
        %v1181 = vsub.f32 %v1147, %v1175
        %v1182 = vsub.f32 %v1148, %v1176
        %v1183 = vsub.f32 %v1149, %v1177
        %v1184 = vsub.f32 %v1150, %v1178
        %v1185 = vsub.f32 %v1151, %v1179
        %v1186 = vsub.f32 %v1152, %v1180
        %v1187 = vmul.f32 %v1181, %v1181
        %v1188 = vmul.f32 %v1182, %v1182
        %v1189 = vmul.f32 %v1183, %v1183
        %v1190 = vmul.f32 %v1184, %v1184
        %v1191 = vmul.f32 %v1185, %v1185
        %v1192 = vmul.f32 %v1186, %v1186
        %v1193 = vsel %vm1155, %v1187, 0.0
        %1194 = vadd.xlane.f32.xlu0 %v1193
        %v1195 = vpop.xlane.xlu0 %1194
        %v1196 = vsel %vm1155, %v1188, 0.0
        %1197 = vadd.xlane.f32.xlu0 %v1196
        %v1198 = vpop.xlane.xlu0 %1197
        %v1199 = vsel %vm1155, %v1189, 0.0
        %1200 = vadd.xlane.f32.xlu0 %v1199
        %v1201 = vpop.xlane.xlu0 %1200
        %v1202 = vsel %vm1155, %v1190, 0.0
        %1203 = vadd.xlane.f32.xlu0 %v1202
        %v1204 = vpop.xlane.xlu0 %1203
        %v1205 = vsel %vm1155, %v1191, 0.0
        %1206 = vadd.xlane.f32.xlu0 %v1205
        %v1207 = vpop.xlane.xlu0 %1206
        %v1208 = vsel %vm1155, %v1192, 0.0
        %1209 = vadd.xlane.f32.xlu0 %v1208
        %v1210 = vpop.xlane.xlu0 %1209
        %v1211 = vmul.f32 %v1195, %v1174
        %v1212 = vmul.f32 %v1198, %v1174
        %v1213 = vmul.f32 %v1201, %v1174
        %v1214 = vmul.f32 %v1204, %v1174
        %v1215 = vmul.f32 %v1207, %v1174
        %v1216 = vmul.f32 %v1210, %v1174
        %v1217 = vadd.f32 %v1211, 1e-05
        %v1218 = vadd.f32 %v1212, 1e-05
        %v1219 = vadd.f32 %v1213, 1e-05
        %v1220 = vadd.f32 %v1214, 1e-05
        %v1221 = vadd.f32 %v1215, 1e-05
        %v1222 = vadd.f32 %v1216, 1e-05
        %v1223 = vrsqrt.pop %v1217
        %v1224 = vrsqrt.pop %v1218
        %v1225 = vrsqrt.pop %v1219
        %v1226 = vrsqrt.pop %v1220
        %v1227 = vrsqrt.pop %v1221
        %v1228 = vrsqrt.pop %v1222
        %v1229 = vmul.f32 %v1181, %v1223
        %v1230 = vmul.f32 %v1182, %v1224
        %v1231 = vmul.f32 %v1183, %v1225
        %v1232 = vmul.f32 %v1184, %v1226
        %v1233 = vmul.f32 %v1185, %v1227
        %v1234 = vmul.f32 %v1186, %v1228
        %v1236 = vlaneseq
        %v1237 = vshrl.u32 %v1236, 7
        %v1238 = vsub.s32 0, %v1237
        %v1239 = vrot.slane %v1153, %v1238
        %v1241 = vmul.f32 %v1229, %v1239
        %v1242 = vmul.f32 %v1230, %v1239
        %v1243 = vmul.f32 %v1231, %v1239
        %v1244 = vmul.f32 %v1232, %v1239
        %v1245 = vmul.f32 %v1233, %v1239
        %v1246 = vmul.f32 %v1234, %v1239
        %v1248 = vlaneseq
        %v1249 = vshrl.u32 %v1248, 7
        %v1250 = vsub.s32 0, %v1249
        %v1251 = vrot.slane %v1154, %v1250
        %v1253 = vadd.f32 %v1241, %v1251
        %v1254 = vadd.f32 %v1242, %v1251
        %v1255 = vadd.f32 %v1243, %v1251
        %v1256 = vadd.f32 %v1244, %v1251
        %v1257 = vadd.f32 %v1245, %v1251
        %v1258 = vadd.f32 %v1246, %v1251
        %v1259 = vpack.c.bf16 %v1254, %v1253
        %v1260 = vpack.c.bf16 %v1256, %v1255
        %v1261 = vpack.c.bf16 %v1258, %v1257
        %v1262 = vld [vmem:[%s3] sm:$0xff]
        %v1263 = vld [vmem:[%s3 + $0x8] sm:$0xff]
        %v1264 = vld [vmem:[%s3 + $0x10] sm:$0xff]
        %v1265 = vld [vmem:[%s979] sm:$0x1]
        %v1266 = vld [vmem:[%s949] sm:$0xf]
        %v1267 = vld [vmem:[%s949 + $0x4] sm:$0xf]
        %v1268 = vld [vmem:[%s949 + $0x8] sm:$0xf]
        %v1269 = vld [vmem:[%s949 + $0xc] sm:$0xf]
        %v1270 = vld [vmem:[%s953] sm:$0x1]
        %v1272 = vlaneseq
        %v1273 = vshrl.u32 %v1272, 7
        %v1274 = vsub.s32 0, %v1273
        %v1275 = vrot.slane %v1270, %v1274
        %v1281 = vunpack.c.l.b16 %v1266
        %v1282 = vunpack.c.l.b16 %v1267
        %v1283 = vunpack.c.l.b16 %v1268
        %v1284 = vunpack.c.l.b16 %v1269
        %v1285 = vpack.c.b16 %v1282, %v1281
        %v1286 = vpack.c.b16 %v1284, %v1283
        %v1290 = vsel %vm1155, %v1259, 0
        %v1293 = vsel %vm1155, %v1260, 0
        %v1296 = vsel %vm1155, %v1261, 0
        %1298 = vmatprep.subr.bf16.mxu0 0
        %1299 = vmatpush1.bf16.msra.mxu0 %v1285
        %1300 = vmatprep.subr.bf16.mxu0 0
        %1301 = vmatpush1.bf16.msra.mxu0 %v1286
        %1302 = vmatprep.subr.bf16.mxu0 0
        %1303 = vmatpush1.bf16.msra.mxu0 0
        %1304 = vmatprep.subr.bf16.mxu0 0
        %1305 = vmatpush1.bf16.msra.mxu0 0
        %1306 = vmatprep.subr.bf16.mxu0 0
        %1307 = vmatpush1.bf16.msra.mxu0 0
        %1308 = vmatprep.subr.bf16.mxu0 0
        %1309 = vmatpush1.bf16.msra.mxu0 0
        %1310 = vmatprep.subr.bf16.mxu0 0
        %1311 = vmatpush1.bf16.msra.mxu0 0
        %1312 = vmatprep.subr.bf16.mxu0 0
        %1313 = vmatpush1.bf16.msra.mxu0 0
        %1314 = vmatprep.subr.bf16.mxu0 0
        %1315 = vmatpush1.bf16.msra.mxu0 0
        %1316 = vmatprep.subr.bf16.mxu0 0
        %1317 = vmatpush1.bf16.msra.mxu0 0
        %1318 = vmatprep.subr.bf16.mxu0 0
        %1319 = vmatpush1.bf16.msra.mxu0 0
        %1320 = vmatprep.subr.bf16.mxu0 0
        %1321 = vmatpush1.bf16.msra.mxu0 0
        %1322 = vmatprep.subr.bf16.mxu0 0
        %1323 = vmatpush1.bf16.msra.mxu0 0
        %1324 = vmatprep.subr.bf16.mxu0 0
        %1325 = vmatpush1.bf16.msra.mxu0 0
        %1326 = vmatprep.subr.bf16.mxu0 0
        %1327 = vmatpush1.bf16.msra.mxu0 0
        %1328 = vmatprep.subr.bf16.mxu0 0
        %1329 = vmatpush1.bf16.msra.mxu0 0
        %1330 = vmatprep.mubr.bf16.mxu0 0
        %1331 = vmatmul.mubr.bf16.gmra.mrb[0].mxu0 %v1290
        %v1332 = vpop.f32.mrb[0].mxu0
        %v1333 = vadd.f32 %v1275, %v1332
        %v1334 = vpop.f32.mrb[0].mxu0
        %v1335 = vpop.f32.mrb[0].mxu0
        %v1336 = vadd.f32 %v1275, %v1335
        %v1337 = vpop.f32.mrb[0].mxu0
        %1338 = vmatprep.mubr.bf16.mxu0 0
        %1339 = vmatmul.mubr.bf16.gmra.mrb[0].mxu0 %v1293
        %v1340 = vpop.f32.mrb[0].mxu0
        %v1341 = vadd.f32 %v1275, %v1340
        %v1342 = vpop.f32.mrb[0].mxu0
        %v1343 = vpop.f32.mrb[0].mxu0
        %v1344 = vadd.f32 %v1275, %v1343
        %v1345 = vpop.f32.mrb[0].mxu0
        %1346 = vmatprep.mubr.bf16.mxu0 0
        %1347 = vmatmul.mubr.bf16.gmra.mrb[0].mxu0 %v1296
        %v1348 = vpop.f32.mrb[0].mxu0
        %v1349 = vadd.f32 %v1275, %v1348
        %v1350 = vpop.f32.mrb[0].mxu0
        %v1351 = vpop.f32.mrb[0].mxu0
        %v1352 = vadd.f32 %v1275, %v1351
        %v1353 = vpop.f32.mrb[0].mxu0
        %1354 = vdwg.mxu0
        %v1355 = vld [vmem:[%s958] sm:$0xf]
        %v1356 = vld [vmem:[%s958 + $0x4] sm:$0xf]
        %v1357 = vld [vmem:[%s958 + $0x8] sm:$0xf]
        %v1358 = vld [vmem:[%s958 + $0xc] sm:$0xf]
        %v1359 = vld [vmem:[%s962] sm:$0x1]
        %v1361 = vlaneseq
        %v1362 = vshrl.u32 %v1361, 7
        %v1363 = vsub.s32 0, %v1362
        %v1364 = vrot.slane %v1359, %v1363
        %v1370 = vunpack.c.l.b16 %v1355
        %v1371 = vunpack.c.l.b16 %v1356
        %v1372 = vunpack.c.l.b16 %v1357
        %v1373 = vunpack.c.l.b16 %v1358
        %v1374 = vpack.c.b16 %v1371, %v1370
        %v1375 = vpack.c.b16 %v1373, %v1372
        %1378 = vmatprep.subr.bf16.mxu0 0
        %1379 = vmatpush1.bf16.msra.mxu0 %v1374
        %1380 = vmatprep.subr.bf16.mxu0 0
        %1381 = vmatpush1.bf16.msra.mxu0 %v1375
        %1382 = vmatprep.subr.bf16.mxu0 0
        %1383 = vmatpush1.bf16.msra.mxu0 0
        %1384 = vmatprep.subr.bf16.mxu0 0
        %1385 = vmatpush1.bf16.msra.mxu0 0
        %1386 = vmatprep.subr.bf16.mxu0 0
        %1387 = vmatpush1.bf16.msra.mxu0 0
        %1388 = vmatprep.subr.bf16.mxu0 0
        %1389 = vmatpush1.bf16.msra.mxu0 0
        %1390 = vmatprep.subr.bf16.mxu0 0
        %1391 = vmatpush1.bf16.msra.mxu0 0
        %1392 = vmatprep.subr.bf16.mxu0 0
        %1393 = vmatpush1.bf16.msra.mxu0 0
        %1394 = vmatprep.subr.bf16.mxu0 0
        %1395 = vmatpush1.bf16.msra.mxu0 0
        %1396 = vmatprep.subr.bf16.mxu0 0
        %1397 = vmatpush1.bf16.msra.mxu0 0
        %1398 = vmatprep.subr.bf16.mxu0 0
        %1399 = vmatpush1.bf16.msra.mxu0 0
        %1400 = vmatprep.subr.bf16.mxu0 0
        %1401 = vmatpush1.bf16.msra.mxu0 0
        %1402 = vmatprep.subr.bf16.mxu0 0
        %1403 = vmatpush1.bf16.msra.mxu0 0
        %1404 = vmatprep.subr.bf16.mxu0 0
        %1405 = vmatpush1.bf16.msra.mxu0 0
        %1406 = vmatprep.subr.bf16.mxu0 0
        %1407 = vmatpush1.bf16.msra.mxu0 0
        %1408 = vmatprep.subr.bf16.mxu0 0
        %1409 = vmatpush1.bf16.msra.mxu0 0
        %1410 = vmatprep.mubr.bf16.mxu0 0
        %1411 = vmatmul.mubr.bf16.gmra.mrb[0].mxu0 %v1290
        %v1412 = vpop.f32.mrb[0].mxu0
        %v1413 = vadd.f32 %v1364, %v1412
        %v1414 = vpop.f32.mrb[0].mxu0
        %v1415 = vpop.f32.mrb[0].mxu0
        %v1416 = vadd.f32 %v1364, %v1415
        %v1417 = vpop.f32.mrb[0].mxu0
        %1418 = vmatprep.mubr.bf16.mxu0 0
        %1419 = vmatmul.mubr.bf16.gmra.mrb[0].mxu0 %v1293
        %v1420 = vpop.f32.mrb[0].mxu0
        %v1421 = vadd.f32 %v1364, %v1420
        %v1422 = vpop.f32.mrb[0].mxu0
        %v1423 = vpop.f32.mrb[0].mxu0
        %v1424 = vadd.f32 %v1364, %v1423
        %v1425 = vpop.f32.mrb[0].mxu0
        %1426 = vmatprep.mubr.bf16.mxu0 0
        %1427 = vmatmul.mubr.bf16.gmra.mrb[0].mxu0 %v1296
        %v1428 = vpop.f32.mrb[0].mxu0
        %v1429 = vadd.f32 %v1364, %v1428
        %v1430 = vpop.f32.mrb[0].mxu0
        %v1431 = vpop.f32.mrb[0].mxu0
        %v1432 = vadd.f32 %v1364, %v1431
        %v1433 = vpop.f32.mrb[0].mxu0
        %1434 = vdwg.mxu0
        %v1435 = vld [vmem:[%s967] sm:$0xf]
        %v1436 = vld [vmem:[%s967 + $0x4] sm:$0xf]
        %v1437 = vld [vmem:[%s967 + $0x8] sm:$0xf]
        %v1438 = vld [vmem:[%s967 + $0xc] sm:$0xf]
        %v1439 = vld [vmem:[%s971] sm:$0x1]
        %v1441 = vlaneseq
        %v1442 = vshrl.u32 %v1441, 7
        %v1443 = vsub.s32 0, %v1442
        %v1444 = vrot.slane %v1439, %v1443
        %v1450 = vunpack.c.l.b16 %v1435
        %v1451 = vunpack.c.l.b16 %v1436
        %v1452 = vunpack.c.l.b16 %v1437
        %v1453 = vunpack.c.l.b16 %v1438
        %v1454 = vpack.c.b16 %v1451, %v1450
        %v1455 = vpack.c.b16 %v1453, %v1452
        %1458 = vmatprep.subr.bf16.mxu0 0
        %1459 = vmatpush1.bf16.msra.mxu0 %v1454
        %1460 = vmatprep.subr.bf16.mxu0 0
        %1461 = vmatpush1.bf16.msra.mxu0 %v1455
        %1462 = vmatprep.subr.bf16.mxu0 0
        %1463 = vmatpush1.bf16.msra.mxu0 0
        %1464 = vmatprep.subr.bf16.mxu0 0
        %1465 = vmatpush1.bf16.msra.mxu0 0
        %1466 = vmatprep.subr.bf16.mxu0 0
        %1467 = vmatpush1.bf16.msra.mxu0 0
        %1468 = vmatprep.subr.bf16.mxu0 0
        %1469 = vmatpush1.bf16.msra.mxu0 0
        %1470 = vmatprep.subr.bf16.mxu0 0
        %1471 = vmatpush1.bf16.msra.mxu0 0
        %1472 = vmatprep.subr.bf16.mxu0 0
        %1473 = vmatpush1.bf16.msra.mxu0 0
        %1474 = vmatprep.subr.bf16.mxu0 0
        %1475 = vmatpush1.bf16.msra.mxu0 0
        %1476 = vmatprep.subr.bf16.mxu0 0
        %1477 = vmatpush1.bf16.msra.mxu0 0
        %1478 = vmatprep.subr.bf16.mxu0 0
        %1479 = vmatpush1.bf16.msra.mxu0 0
        %1480 = vmatprep.subr.bf16.mxu0 0
        %1481 = vmatpush1.bf16.msra.mxu0 0
        %1482 = vmatprep.subr.bf16.mxu0 0
        %1483 = vmatpush1.bf16.msra.mxu0 0
        %1484 = vmatprep.subr.bf16.mxu0 0
        %1485 = vmatpush1.bf16.msra.mxu0 0
        %1486 = vmatprep.subr.bf16.mxu0 0
        %1487 = vmatpush1.bf16.msra.mxu0 0
        %1488 = vmatprep.subr.bf16.mxu0 0
        %1489 = vmatpush1.bf16.msra.mxu0 0
        %1490 = vmatprep.mubr.bf16.mxu0 0
        %1491 = vmatmul.mubr.bf16.gmra.mrb[0].mxu0 %v1290
        %v1492 = vpop.f32.mrb[0].mxu0
        %v1493 = vadd.f32 %v1444, %v1492
        %v1494 = vpop.f32.mrb[0].mxu0
        %v1495 = vpop.f32.mrb[0].mxu0
        %v1496 = vadd.f32 %v1444, %v1495
        %v1497 = vpop.f32.mrb[0].mxu0
        %1498 = vmatprep.mubr.bf16.mxu0 0
        %1499 = vmatmul.mubr.bf16.gmra.mrb[0].mxu0 %v1293
        %v1500 = vpop.f32.mrb[0].mxu0
        %v1501 = vadd.f32 %v1444, %v1500
        %v1502 = vpop.f32.mrb[0].mxu0
        %v1503 = vpop.f32.mrb[0].mxu0
        %v1504 = vadd.f32 %v1444, %v1503
        %v1505 = vpop.f32.mrb[0].mxu0
        %1506 = vmatprep.mubr.bf16.mxu0 0
        %1507 = vmatmul.mubr.bf16.gmra.mrb[0].mxu0 %v1296
        %v1508 = vpop.f32.mrb[0].mxu0
        %v1509 = vadd.f32 %v1444, %v1508
        %v1510 = vpop.f32.mrb[0].mxu0
        %v1511 = vpop.f32.mrb[0].mxu0
        %v1512 = vadd.f32 %v1444, %v1511
        %v1513 = vpop.f32.mrb[0].mxu0
        %1514 = vdwg.mxu0
        %vm1515 = vcmask 64512
        %v1517 = vsel %vm1515, %v1333, 0
        %v1520 = vsel %vm1515, %v1336, 0
        %v1523 = vsel %vm1515, %v1341, 0
        %v1526 = vsel %vm1515, %v1413, 0
        %v1529 = vsel %vm1515, %v1416, 0
        %v1532 = vsel %vm1515, %v1421, 0
        %1534 = vmatprep.subr.mxu0 0.0
        %1535 = vmatpush1.xpose.msra.mxu0 %v1526
        %1536 = vmatprep.subr.mxu0 0.0
        %1537 = vmatpush1.xpose.msra.mxu0 %v1529
        %1538 = vmatprep.subr.mxu0 0.0
        %1539 = vmatpush1.xpose.msra.mxu0 %v1532
        %1540 = vmatprep.subr.mxu0 0.0
        %1541 = vmatpush1.xpose.msra.mxu0 0.0
        %1542 = vmatprep.subr.mxu0 0.0
        %1543 = vmatpush1.xpose.msra.mxu0 0.0
        %1544 = vmatprep.subr.mxu0 0.0
        %1545 = vmatpush1.xpose.msra.mxu0 0.0
        %1546 = vmatprep.subr.mxu0 0.0
        %1547 = vmatpush1.xpose.msra.mxu0 0.0
        %1548 = vmatprep.subr.mxu0 0.0
        %1549 = vmatpush1.xpose.msra.mxu0 0.0
        %1550 = vmatprep.subr.mxu0 0.0
        %1551 = vmatpush1.xpose.msra.mxu0 0.0
        %1552 = vmatprep.subr.mxu0 0.0
        %1553 = vmatpush1.xpose.msra.mxu0 0.0
        %1554 = vmatprep.subr.mxu0 0.0
        %1555 = vmatpush1.xpose.msra.mxu0 0.0
        %1556 = vmatprep.subr.mxu0 0.0
        %1557 = vmatpush1.xpose.msra.mxu0 0.0
        %1558 = vmatprep.subr.mxu0 0.0
        %1559 = vmatpush1.xpose.msra.mxu0 0.0
        %1560 = vmatprep.subr.mxu0 0.0
        %1561 = vmatpush1.xpose.msra.mxu0 0.0
        %1562 = vmatprep.subr.mxu0 0.0
        %1563 = vmatpush1.xpose.msra.mxu0 0.0
        %1564 = vmatprep.subr.mxu0 0.0
        %1565 = vmatpush1.xpose.msra.mxu0 0.0
        %1566 = vmatprep.subr.mxu0 0.0
        %1567 = vmatpush1.xpose.msra.mxu0 0.0
        %1568 = vmatprep.subr.mxu0 0.0
        %1569 = vmatpush1.xpose.msra.mxu0 0.0
        %1570 = vmatprep.subr.mxu0 0.0
        %1571 = vmatpush1.xpose.msra.mxu0 0.0
        %1572 = vmatprep.subr.mxu0 0.0
        %1573 = vmatpush1.xpose.msra.mxu0 0.0
        %1574 = vmatprep.subr.mxu0 0.0
        %1575 = vmatpush1.xpose.msra.mxu0 0.0
        %1576 = vmatprep.subr.mxu0 0.0
        %1577 = vmatpush1.xpose.msra.mxu0 0.0
        %1578 = vmatprep.subr.mxu0 0.0
        %1579 = vmatpush1.xpose.msra.mxu0 0.0
        %1580 = vmatprep.subr.mxu0 0.0
        %1581 = vmatpush1.xpose.msra.mxu0 0.0
        %1582 = vmatprep.subr.mxu0 0.0
        %1583 = vmatpush1.xpose.msra.mxu0 0.0
        %1584 = vmatprep.subr.mxu0 0.0
        %1585 = vmatpush1.xpose.msra.mxu0 0.0
        %1586 = vmatprep.subr.mxu0 0.0
        %1587 = vmatpush1.xpose.msra.mxu0 0.0
        %1588 = vmatprep.subr.mxu0 0.0
        %1589 = vmatpush1.xpose.msra.mxu0 0.0
        %1590 = vmatprep.subr.mxu0 0.0
        %1591 = vmatpush1.xpose.msra.mxu0 0.0
        %1592 = vmatprep.subr.mxu0 0.0
        %1593 = vmatpush1.xpose.msra.mxu0 0.0
        %1594 = vmatprep.subr.mxu0 0.0
        %1595 = vmatpush1.xpose.msra.mxu0 0.0
        %1596 = vmatprep.subr.mxu0 0.0
        %1597 = vmatpush1.xpose.msra.mxu0 0.0
        %1598 = vmatprep.mubr.f32.mxu0 0.0
        %1599 = vmatmul.mubr.f32.gmra.mrb[0].mxu0 %v1517
        %v1600 = vpop.f32.mrb[0].mxu0
        %v1601 = vadd.f32 0.0, %v1600
        %v1602 = vpop.f32.mrb[0].mxu0
        %1603 = vmatprep.mubr.f32.mxu0 0.0
        %1604 = vmatmul.mubr.f32.gmra.mrb[0].mxu0 %v1520
        %v1605 = vpop.f32.mrb[0].mxu0
        %v1606 = vadd.f32 0.0, %v1605
        %v1607 = vpop.f32.mrb[0].mxu0
        %1608 = vmatprep.mubr.f32.mxu0 0.0
        %1609 = vmatmul.mubr.f32.gmra.mrb[0].mxu0 %v1523
        %v1610 = vpop.f32.mrb[0].mxu0
        %v1611 = vadd.f32 0.0, %v1610
        %v1612 = vpop.f32.mrb[0].mxu0
        %1613 = vdwg.mxu0
        %v1615 = vsel %vm1515, %v1344, 0
        %v1618 = vsel %vm1515, %v1349, 0
        %v1621 = vsel %vm1515, %v1352, 0
        %v1624 = vsel %vm1515, %v1424, 0
        %v1627 = vsel %vm1515, %v1429, 0
        %v1630 = vsel %vm1515, %v1432, 0
        %1632 = vmatprep.subr.mxu0 0.0
        %1633 = vmatpush1.xpose.msra.mxu0 %v1624
        %1634 = vmatprep.subr.mxu0 0.0
        %1635 = vmatpush1.xpose.msra.mxu0 %v1627
        %1636 = vmatprep.subr.mxu0 0.0
        %1637 = vmatpush1.xpose.msra.mxu0 %v1630
        %1638 = vmatprep.subr.mxu0 0.0
        %1639 = vmatpush1.xpose.msra.mxu0 0.0
        %1640 = vmatprep.subr.mxu0 0.0
        %1641 = vmatpush1.xpose.msra.mxu0 0.0
        %1642 = vmatprep.subr.mxu0 0.0
        %1643 = vmatpush1.xpose.msra.mxu0 0.0
        %1644 = vmatprep.subr.mxu0 0.0
        %1645 = vmatpush1.xpose.msra.mxu0 0.0
        %1646 = vmatprep.subr.mxu0 0.0
        %1647 = vmatpush1.xpose.msra.mxu0 0.0
        %1648 = vmatprep.subr.mxu0 0.0
        %1649 = vmatpush1.xpose.msra.mxu0 0.0
        %1650 = vmatprep.subr.mxu0 0.0
        %1651 = vmatpush1.xpose.msra.mxu0 0.0
        %1652 = vmatprep.subr.mxu0 0.0
        %1653 = vmatpush1.xpose.msra.mxu0 0.0
        %1654 = vmatprep.subr.mxu0 0.0
        %1655 = vmatpush1.xpose.msra.mxu0 0.0
        %1656 = vmatprep.subr.mxu0 0.0
        %1657 = vmatpush1.xpose.msra.mxu0 0.0
        %1658 = vmatprep.subr.mxu0 0.0
        %1659 = vmatpush1.xpose.msra.mxu0 0.0
        %1660 = vmatprep.subr.mxu0 0.0
        %1661 = vmatpush1.xpose.msra.mxu0 0.0
        %1662 = vmatprep.subr.mxu0 0.0
        %1663 = vmatpush1.xpose.msra.mxu0 0.0
        %1664 = vmatprep.subr.mxu0 0.0
        %1665 = vmatpush1.xpose.msra.mxu0 0.0
        %1666 = vmatprep.subr.mxu0 0.0
        %1667 = vmatpush1.xpose.msra.mxu0 0.0
        %1668 = vmatprep.subr.mxu0 0.0
        %1669 = vmatpush1.xpose.msra.mxu0 0.0
        %1670 = vmatprep.subr.mxu0 0.0
        %1671 = vmatpush1.xpose.msra.mxu0 0.0
        %1672 = vmatprep.subr.mxu0 0.0
        %1673 = vmatpush1.xpose.msra.mxu0 0.0
        %1674 = vmatprep.subr.mxu0 0.0
        %1675 = vmatpush1.xpose.msra.mxu0 0.0
        %1676 = vmatprep.subr.mxu0 0.0
        %1677 = vmatpush1.xpose.msra.mxu0 0.0
        %1678 = vmatprep.subr.mxu0 0.0
        %1679 = vmatpush1.xpose.msra.mxu0 0.0
        %1680 = vmatprep.subr.mxu0 0.0
        %1681 = vmatpush1.xpose.msra.mxu0 0.0
        %1682 = vmatprep.subr.mxu0 0.0
        %1683 = vmatpush1.xpose.msra.mxu0 0.0
        %1684 = vmatprep.subr.mxu0 0.0
        %1685 = vmatpush1.xpose.msra.mxu0 0.0
        %1686 = vmatprep.subr.mxu0 0.0
        %1687 = vmatpush1.xpose.msra.mxu0 0.0
        %1688 = vmatprep.subr.mxu0 0.0
        %1689 = vmatpush1.xpose.msra.mxu0 0.0
        %1690 = vmatprep.subr.mxu0 0.0
        %1691 = vmatpush1.xpose.msra.mxu0 0.0
        %1692 = vmatprep.subr.mxu0 0.0
        %1693 = vmatpush1.xpose.msra.mxu0 0.0
        %1694 = vmatprep.subr.mxu0 0.0
        %1695 = vmatpush1.xpose.msra.mxu0 0.0
        %1696 = vmatprep.mubr.f32.mxu0 0.0
        %1697 = vmatmul.mubr.f32.gmra.mrb[0].mxu0 %v1615
        %v1698 = vpop.f32.mrb[0].mxu0
        %v1699 = vadd.f32 0.0, %v1698
        %v1700 = vpop.f32.mrb[0].mxu0
        %1701 = vmatprep.mubr.f32.mxu0 0.0
        %1702 = vmatmul.mubr.f32.gmra.mrb[0].mxu0 %v1618
        %v1703 = vpop.f32.mrb[0].mxu0
        %v1704 = vadd.f32 0.0, %v1703
        %v1705 = vpop.f32.mrb[0].mxu0
        %1706 = vmatprep.mubr.f32.mxu0 0.0
        %1707 = vmatmul.mubr.f32.gmra.mrb[0].mxu0 %v1621
        %v1708 = vpop.f32.mrb[0].mxu0
        %v1709 = vadd.f32 0.0, %v1708
        %v1710 = vpop.f32.mrb[0].mxu0
        %1711 = vdwg.mxu0
        %v1712 = vmul.f32 %v1601, 0.35355338
        %v1713 = vmul.f32 %v1606, 0.35355338
        %v1714 = vmul.f32 %v1611, 0.35355338
        %v1715 = vmul.f32 %v1699, 0.35355338
        %v1716 = vmul.f32 %v1704, 0.35355338
        %v1717 = vmul.f32 %v1709, 0.35355338
        %v1718 = vadd.f32 %v1712, %v1262
        %v1719 = vadd.f32 %v1713, %v1263
        %v1720 = vadd.f32 %v1714, %v1264
        %v1721 = vadd.f32 %v1715, %v1262
        %v1722 = vadd.f32 %v1716, %v1263
        %v1723 = vadd.f32 %v1717, %v1264
        %vm1724 = vcmask 195584
        %v1725 = vsel %vm1724, %v1718, -inf
        %1726 = vmax.xlane.f32.xlu0 %v1725
        %v1727 = vpop.xlane.xlu0 %1726
        %v1728 = vsel %vm1724, %v1719, -inf
        %1729 = vmax.xlane.f32.xlu0 %v1728
        %v1730 = vpop.xlane.xlu0 %1729
        %v1731 = vsel %vm1724, %v1720, -inf
        %1732 = vmax.xlane.f32.xlu0 %v1731
        %v1733 = vpop.xlane.xlu0 %1732
        %v1734 = vsel %vm1724, %v1721, -inf
        %1735 = vmax.xlane.f32.xlu0 %v1734
        %v1736 = vpop.xlane.xlu0 %1735
        %v1737 = vsel %vm1724, %v1722, -inf
        %1738 = vmax.xlane.f32.xlu0 %v1737
        %v1739 = vpop.xlane.xlu0 %1738
        %v1740 = vsel %vm1724, %v1723, -inf
        %1741 = vmax.xlane.f32.xlu0 %v1740
        %v1742 = vpop.xlane.xlu0 %1741
        %v1743 = vsub.f32 %v1718, %v1727
        %v1744 = vsub.f32 %v1719, %v1730
        %v1745 = vsub.f32 %v1720, %v1733
        %v1746 = vsub.f32 %v1721, %v1736
        %v1747 = vsub.f32 %v1722, %v1739
        %v1748 = vsub.f32 %v1723, %v1742
        %v1749 = vmul.f32 %v1743, 1.442695
        %v1750 = vpow.pop %v1749
        %v1751 = vmul.f32 %v1744, 1.442695
        %v1752 = vpow.pop %v1751
        %v1753 = vmul.f32 %v1745, 1.442695
        %v1754 = vpow.pop %v1753
        %v1755 = vmul.f32 %v1746, 1.442695
        %v1756 = vpow.pop %v1755
        %v1757 = vmul.f32 %v1747, 1.442695
        %v1758 = vpow.pop %v1757
        %v1759 = vmul.f32 %v1748, 1.442695
        %v1760 = vpow.pop %v1759
        %v1761 = vsel %vm1724, %v1750, 0.0
        %1762 = vadd.xlane.f32.xlu0 %v1761
        %v1763 = vpop.xlane.xlu0 %1762
        %v1764 = vsel %vm1724, %v1752, 0.0
        %1765 = vadd.xlane.f32.xlu0 %v1764
        %v1766 = vpop.xlane.xlu0 %1765
        %v1767 = vsel %vm1724, %v1754, 0.0
        %1768 = vadd.xlane.f32.xlu0 %v1767
        %v1769 = vpop.xlane.xlu0 %1768
        %v1770 = vsel %vm1724, %v1756, 0.0
        %1771 = vadd.xlane.f32.xlu0 %v1770
        %v1772 = vpop.xlane.xlu0 %1771
        %v1773 = vsel %vm1724, %v1758, 0.0
        %1774 = vadd.xlane.f32.xlu0 %v1773
        %v1775 = vpop.xlane.xlu0 %1774
        %v1776 = vsel %vm1724, %v1760, 0.0
        %1777 = vadd.xlane.f32.xlu0 %v1776
        %v1778 = vpop.xlane.xlu0 %1777
        %v1779 = vrcp.pop %v1763
        %v1780 = vrcp.pop %v1766
        %v1781 = vrcp.pop %v1769
        %v1782 = vrcp.pop %v1772
        %v1783 = vrcp.pop %v1775
        %v1784 = vrcp.pop %v1778
        %v1785 = vmul.f32 %v1750, %v1779
        %v1786 = vmul.f32 %v1752, %v1780
        %v1787 = vmul.f32 %v1754, %v1781
        %v1788 = vmul.f32 %v1756, %v1782
        %v1789 = vmul.f32 %v1758, %v1783
        %v1790 = vmul.f32 %v1760, %v1784
        %v1792 = vsel %vm1724, %v1785, 0
        %v1795 = vsel %vm1724, %v1786, 0
        %v1798 = vsel %vm1724, %v1787, 0
        %1800 = vmatprep.subr.mxu0 0.0
        %1801 = vmatpush1.msra.mxu0 %v1493
        %1802 = vmatprep.subr.mxu0 0.0
        %1803 = vmatpush1.msra.mxu0 %v1496
        %1804 = vmatprep.subr.mxu0 0.0
        %1805 = vmatpush1.msra.mxu0 %v1501
        %1806 = vmatprep.subr.mxu0 0.0
        %1807 = vmatpush1.msra.mxu0 0.0
        %1808 = vmatprep.subr.mxu0 0.0
        %1809 = vmatpush1.msra.mxu0 0.0
        %1810 = vmatprep.subr.mxu0 0.0
        %1811 = vmatpush1.msra.mxu0 0.0
        %1812 = vmatprep.subr.mxu0 0.0
        %1813 = vmatpush1.msra.mxu0 0.0
        %1814 = vmatprep.subr.mxu0 0.0
        %1815 = vmatpush1.msra.mxu0 0.0
        %1816 = vmatprep.subr.mxu0 0.0
        %1817 = vmatpush1.msra.mxu0 0.0
        %1818 = vmatprep.subr.mxu0 0.0
        %1819 = vmatpush1.msra.mxu0 0.0
        %1820 = vmatprep.subr.mxu0 0.0
        %1821 = vmatpush1.msra.mxu0 0.0
        %1822 = vmatprep.subr.mxu0 0.0
        %1823 = vmatpush1.msra.mxu0 0.0
        %1824 = vmatprep.subr.mxu0 0.0
        %1825 = vmatpush1.msra.mxu0 0.0
        %1826 = vmatprep.subr.mxu0 0.0
        %1827 = vmatpush1.msra.mxu0 0.0
        %1828 = vmatprep.subr.mxu0 0.0
        %1829 = vmatpush1.msra.mxu0 0.0
        %1830 = vmatprep.subr.mxu0 0.0
        %1831 = vmatpush1.msra.mxu0 0.0
        %1832 = vmatprep.subr.mxu0 0.0
        %1833 = vmatpush1.msra.mxu0 0.0
        %1834 = vmatprep.subr.mxu0 0.0
        %1835 = vmatpush1.msra.mxu0 0.0
        %1836 = vmatprep.subr.mxu0 0.0
        %1837 = vmatpush1.msra.mxu0 0.0
        %1838 = vmatprep.subr.mxu0 0.0
        %1839 = vmatpush1.msra.mxu0 0.0
        %1840 = vmatprep.subr.mxu0 0.0
        %1841 = vmatpush1.msra.mxu0 0.0
        %1842 = vmatprep.subr.mxu0 0.0
        %1843 = vmatpush1.msra.mxu0 0.0
        %1844 = vmatprep.subr.mxu0 0.0
        %1845 = vmatpush1.msra.mxu0 0.0
        %1846 = vmatprep.subr.mxu0 0.0
        %1847 = vmatpush1.msra.mxu0 0.0
        %1848 = vmatprep.subr.mxu0 0.0
        %1849 = vmatpush1.msra.mxu0 0.0
        %1850 = vmatprep.subr.mxu0 0.0
        %1851 = vmatpush1.msra.mxu0 0.0
        %1852 = vmatprep.subr.mxu0 0.0
        %1853 = vmatpush1.msra.mxu0 0.0
        %1854 = vmatprep.subr.mxu0 0.0
        %1855 = vmatpush1.msra.mxu0 0.0
        %1856 = vmatprep.subr.mxu0 0.0
        %1857 = vmatpush1.msra.mxu0 0.0
        %1858 = vmatprep.subr.mxu0 0.0
        %1859 = vmatpush1.msra.mxu0 0.0
        %1860 = vmatprep.subr.mxu0 0.0
        %1861 = vmatpush1.msra.mxu0 0.0
        %1862 = vmatprep.subr.mxu0 0.0
        %1863 = vmatpush1.msra.mxu0 0.0
        %1864 = vmatprep.mubr.f32.mxu0 0.0
        %1865 = vmatmul.mubr.f32.gmra.mrb[0].mxu0 %v1792
        %v1866 = vpop.f32.mrb[0].mxu0
        %v1867 = vadd.f32 0.0, %v1866
        %v1868 = vpop.f32.mrb[0].mxu0
        %1869 = vmatprep.mubr.f32.mxu0 0.0
        %1870 = vmatmul.mubr.f32.gmra.mrb[0].mxu0 %v1795
        %v1871 = vpop.f32.mrb[0].mxu0
        %v1872 = vadd.f32 0.0, %v1871
        %v1873 = vpop.f32.mrb[0].mxu0
        %1874 = vmatprep.mubr.f32.mxu0 0.0
        %1875 = vmatmul.mubr.f32.gmra.mrb[0].mxu0 %v1798
        %v1876 = vpop.f32.mrb[0].mxu0
        %v1877 = vadd.f32 0.0, %v1876
        %v1878 = vpop.f32.mrb[0].mxu0
        %1879 = vdwg.mxu0
        %v1881 = vsel %vm1724, %v1788, 0
        %v1884 = vsel %vm1724, %v1789, 0
        %v1887 = vsel %vm1724, %v1790, 0
        %1889 = vmatprep.subr.mxu0 0.0
        %1890 = vmatpush1.msra.mxu0 %v1504
        %1891 = vmatprep.subr.mxu0 0.0
        %1892 = vmatpush1.msra.mxu0 %v1509
        %1893 = vmatprep.subr.mxu0 0.0
        %1894 = vmatpush1.msra.mxu0 %v1512
        %1895 = vmatprep.subr.mxu0 0.0
        %1896 = vmatpush1.msra.mxu0 0.0
        %1897 = vmatprep.subr.mxu0 0.0
        %1898 = vmatpush1.msra.mxu0 0.0
        %1899 = vmatprep.subr.mxu0 0.0
        %1900 = vmatpush1.msra.mxu0 0.0
        %1901 = vmatprep.subr.mxu0 0.0
        %1902 = vmatpush1.msra.mxu0 0.0
        %1903 = vmatprep.subr.mxu0 0.0
        %1904 = vmatpush1.msra.mxu0 0.0
        %1905 = vmatprep.subr.mxu0 0.0
        %1906 = vmatpush1.msra.mxu0 0.0
        %1907 = vmatprep.subr.mxu0 0.0
        %1908 = vmatpush1.msra.mxu0 0.0
        %1909 = vmatprep.subr.mxu0 0.0
        %1910 = vmatpush1.msra.mxu0 0.0
        %1911 = vmatprep.subr.mxu0 0.0
        %1912 = vmatpush1.msra.mxu0 0.0
        %1913 = vmatprep.subr.mxu0 0.0
        %1914 = vmatpush1.msra.mxu0 0.0
        %1915 = vmatprep.subr.mxu0 0.0
        %1916 = vmatpush1.msra.mxu0 0.0
        %1917 = vmatprep.subr.mxu0 0.0
        %1918 = vmatpush1.msra.mxu0 0.0
        %1919 = vmatprep.subr.mxu0 0.0
        %1920 = vmatpush1.msra.mxu0 0.0
        %1921 = vmatprep.subr.mxu0 0.0
        %1922 = vmatpush1.msra.mxu0 0.0
        %1923 = vmatprep.subr.mxu0 0.0
        %1924 = vmatpush1.msra.mxu0 0.0
        %1925 = vmatprep.subr.mxu0 0.0
        %1926 = vmatpush1.msra.mxu0 0.0
        %1927 = vmatprep.subr.mxu0 0.0
        %1928 = vmatpush1.msra.mxu0 0.0
        %1929 = vmatprep.subr.mxu0 0.0
        %1930 = vmatpush1.msra.mxu0 0.0
        %1931 = vmatprep.subr.mxu0 0.0
        %1932 = vmatpush1.msra.mxu0 0.0
        %1933 = vmatprep.subr.mxu0 0.0
        %1934 = vmatpush1.msra.mxu0 0.0
        %1935 = vmatprep.subr.mxu0 0.0
        %1936 = vmatpush1.msra.mxu0 0.0
        %1937 = vmatprep.subr.mxu0 0.0
        %1938 = vmatpush1.msra.mxu0 0.0
        %1939 = vmatprep.subr.mxu0 0.0
        %1940 = vmatpush1.msra.mxu0 0.0
        %1941 = vmatprep.subr.mxu0 0.0
        %1942 = vmatpush1.msra.mxu0 0.0
        %1943 = vmatprep.subr.mxu0 0.0
        %1944 = vmatpush1.msra.mxu0 0.0
        %1945 = vmatprep.subr.mxu0 0.0
        %1946 = vmatpush1.msra.mxu0 0.0
        %1947 = vmatprep.subr.mxu0 0.0
        %1948 = vmatpush1.msra.mxu0 0.0
        %1949 = vmatprep.subr.mxu0 0.0
        %1950 = vmatpush1.msra.mxu0 0.0
        %1951 = vmatprep.subr.mxu0 0.0
        %1952 = vmatpush1.msra.mxu0 0.0
        %1953 = vmatprep.mubr.f32.mxu0 0.0
        %1954 = vmatmul.mubr.f32.gmra.mrb[0].mxu0 %v1881
        %v1955 = vpop.f32.mrb[0].mxu0
        %v1956 = vadd.f32 0.0, %v1955
        %v1957 = vpop.f32.mrb[0].mxu0
        %1958 = vmatprep.mubr.f32.mxu0 0.0
        %1959 = vmatmul.mubr.f32.gmra.mrb[0].mxu0 %v1884
        %v1960 = vpop.f32.mrb[0].mxu0
        %v1961 = vadd.f32 0.0, %v1960
        %v1962 = vpop.f32.mrb[0].mxu0
        %1963 = vmatprep.mubr.f32.mxu0 0.0
        %1964 = vmatmul.mubr.f32.gmra.mrb[0].mxu0 %v1887
        %v1965 = vpop.f32.mrb[0].mxu0
        %v1966 = vadd.f32 0.0, %v1965
        %v1967 = vpop.f32.mrb[0].mxu0
        %1968 = vdwg.mxu0
        %v1969 = vpack.c.bf16 %v1872, %v1867
        %v1970 = vpack.c.bf16 %v1956, %v1877
        %v1971 = vpack.c.bf16 %v1966, %v1961
        %v1972 = vld [vmem:[%s976] sm:$0xf]
        %v1974 = vsel %vm1515, %v1969, 0
        %v1977 = vsel %vm1515, %v1970, 0
        %v1980 = vsel %vm1515, %v1971, 0
        %vm1982 = vcmask 1043456
        %v1984 = vsel %vm1982, %v1972, 0
        %1986 = vmatprep.subr.bf16.mxu0 0
        %1987 = vmatpush1.bf16.msra.mxu0 %v1984
        %1988 = vmatprep.subr.bf16.mxu0 0
        %1989 = vmatpush1.bf16.msra.mxu0 0
        %1990 = vmatprep.subr.bf16.mxu0 0
        %1991 = vmatpush1.bf16.msra.mxu0 0
        %1992 = vmatprep.subr.bf16.mxu0 0
        %1993 = vmatpush1.bf16.msra.mxu0 0
        %1994 = vmatprep.subr.bf16.mxu0 0
        %1995 = vmatpush1.bf16.msra.mxu0 0
        %1996 = vmatprep.subr.bf16.mxu0 0
        %1997 = vmatpush1.bf16.msra.mxu0 0
        %1998 = vmatprep.subr.bf16.mxu0 0
        %1999 = vmatpush1.bf16.msra.mxu0 0
        %2000 = vmatprep.subr.bf16.mxu0 0
        %2001 = vmatpush1.bf16.msra.mxu0 0
        %2002 = vmatprep.subr.bf16.mxu0 0
        %2003 = vmatpush1.bf16.msra.mxu0 0
        %2004 = vmatprep.subr.bf16.mxu0 0
        %2005 = vmatpush1.bf16.msra.mxu0 0
        %2006 = vmatprep.subr.bf16.mxu0 0
        %2007 = vmatpush1.bf16.msra.mxu0 0
        %2008 = vmatprep.subr.bf16.mxu0 0
        %2009 = vmatpush1.bf16.msra.mxu0 0
        %2010 = vmatprep.subr.bf16.mxu0 0
        %2011 = vmatpush1.bf16.msra.mxu0 0
        %2012 = vmatprep.subr.bf16.mxu0 0
        %2013 = vmatpush1.bf16.msra.mxu0 0
        %2014 = vmatprep.subr.bf16.mxu0 0
        %2015 = vmatpush1.bf16.msra.mxu0 0
        %2016 = vmatprep.subr.bf16.mxu0 0
        %2017 = vmatpush1.bf16.msra.mxu0 0
        %2018 = vmatprep.mubr.bf16.mxu0 0
        %2019 = vmatmul.mubr.bf16.gmra.mrb[0].mxu0 %v1974
        %v2020 = vpop.f32.mrb[0].mxu0
        %v2021 = vadd.f32 0.0, %v2020
        %v2022 = vpop.f32.mrb[0].mxu0
        %v2023 = vpop.f32.mrb[0].mxu0
        %v2024 = vadd.f32 0.0, %v2023
        %v2025 = vpop.f32.mrb[0].mxu0
        %2026 = vmatprep.mubr.bf16.mxu0 0
        %2027 = vmatmul.mubr.bf16.gmra.mrb[0].mxu0 %v1977
        %v2028 = vpop.f32.mrb[0].mxu0
        %v2029 = vadd.f32 0.0, %v2028
        %v2030 = vpop.f32.mrb[0].mxu0
        %v2031 = vpop.f32.mrb[0].mxu0
        %v2032 = vadd.f32 0.0, %v2031
        %v2033 = vpop.f32.mrb[0].mxu0
        %2034 = vmatprep.mubr.bf16.mxu0 0
        %2035 = vmatmul.mubr.bf16.gmra.mrb[0].mxu0 %v1980
        %v2036 = vpop.f32.mrb[0].mxu0
        %v2037 = vadd.f32 0.0, %v2036
        %v2038 = vpop.f32.mrb[0].mxu0
        %v2039 = vpop.f32.mrb[0].mxu0
        %v2040 = vadd.f32 0.0, %v2039
        %v2041 = vpop.f32.mrb[0].mxu0
        %2042 = vdwg.mxu0
        %v2044 = vlaneseq
        %v2045 = vshrl.u32 %v2044, 7
        %v2046 = vsub.s32 0, %v2045
        %v2047 = vrot.slane %v1265, %v2046
        %v2049 = vadd.f32 %v2047, %v2021
        %v2050 = vadd.f32 %v2047, %v2024
        %v2051 = vadd.f32 %v2047, %v2029
        %v2052 = vadd.f32 %v2047, %v2032
        %v2053 = vadd.f32 %v2047, %v2037
        %v2054 = vadd.f32 %v2047, %v2040
        %s2055 = scalar_lea.vmem %s949, 16
        %v2056 = vld [vmem:[%s2055] sm:$0xf]
        %v2057 = vld [vmem:[%s2055 + $0x4] sm:$0xf]
        %v2058 = vld [vmem:[%s2055 + $0x8] sm:$0xf]
        %v2059 = vld [vmem:[%s2055 + $0xc] sm:$0xf]
        %s2060 = scalar_lea.vmem %s953, 1
        %v2061 = vld [vmem:[%s2060] sm:$0x1]
        %v2063 = vlaneseq
        %v2064 = vshrl.u32 %v2063, 7
        %v2065 = vsub.s32 0, %v2064
        %v2066 = vrot.slane %v2061, %v2065
        %v2072 = vunpack.c.l.b16 %v2056
        %v2073 = vunpack.c.l.b16 %v2057
        %v2074 = vunpack.c.l.b16 %v2058
        %v2075 = vunpack.c.l.b16 %v2059
        %v2076 = vpack.c.b16 %v2073, %v2072
        %v2077 = vpack.c.b16 %v2075, %v2074
        %2080 = vmatprep.subr.bf16.mxu0 0
        %2081 = vmatpush1.bf16.msra.mxu0 %v2076
        %2082 = vmatprep.subr.bf16.mxu0 0
        %2083 = vmatpush1.bf16.msra.mxu0 %v2077
        %2084 = vmatprep.subr.bf16.mxu0 0
        %2085 = vmatpush1.bf16.msra.mxu0 0
        %2086 = vmatprep.subr.bf16.mxu0 0
        %2087 = vmatpush1.bf16.msra.mxu0 0
        %2088 = vmatprep.subr.bf16.mxu0 0
        %2089 = vmatpush1.bf16.msra.mxu0 0
        %2090 = vmatprep.subr.bf16.mxu0 0
        %2091 = vmatpush1.bf16.msra.mxu0 0
        %2092 = vmatprep.subr.bf16.mxu0 0
        %2093 = vmatpush1.bf16.msra.mxu0 0
        %2094 = vmatprep.subr.bf16.mxu0 0
        %2095 = vmatpush1.bf16.msra.mxu0 0
        %2096 = vmatprep.subr.bf16.mxu0 0
        %2097 = vmatpush1.bf16.msra.mxu0 0
        %2098 = vmatprep.subr.bf16.mxu0 0
        %2099 = vmatpush1.bf16.msra.mxu0 0
        %2100 = vmatprep.subr.bf16.mxu0 0
        %2101 = vmatpush1.bf16.msra.mxu0 0
        %2102 = vmatprep.subr.bf16.mxu0 0
        %2103 = vmatpush1.bf16.msra.mxu0 0
        %2104 = vmatprep.subr.bf16.mxu0 0
        %2105 = vmatpush1.bf16.msra.mxu0 0
        %2106 = vmatprep.subr.bf16.mxu0 0
        %2107 = vmatpush1.bf16.msra.mxu0 0
        %2108 = vmatprep.subr.bf16.mxu0 0
        %2109 = vmatpush1.bf16.msra.mxu0 0
        %2110 = vmatprep.subr.bf16.mxu0 0
        %2111 = vmatpush1.bf16.msra.mxu0 0
        %2112 = vmatprep.mubr.bf16.mxu0 0
        %2113 = vmatmul.mubr.bf16.gmra.mrb[0].mxu0 %v1290
        %v2114 = vpop.f32.mrb[0].mxu0
        %v2115 = vadd.f32 %v2066, %v2114
        %v2116 = vpop.f32.mrb[0].mxu0
        %v2117 = vpop.f32.mrb[0].mxu0
        %v2118 = vadd.f32 %v2066, %v2117
        %v2119 = vpop.f32.mrb[0].mxu0
        %2120 = vmatprep.mubr.bf16.mxu0 0
        %2121 = vmatmul.mubr.bf16.gmra.mrb[0].mxu0 %v1293
        %v2122 = vpop.f32.mrb[0].mxu0
        %v2123 = vadd.f32 %v2066, %v2122
        %v2124 = vpop.f32.mrb[0].mxu0
        %v2125 = vpop.f32.mrb[0].mxu0
        %v2126 = vadd.f32 %v2066, %v2125
        %v2127 = vpop.f32.mrb[0].mxu0
        %2128 = vmatprep.mubr.bf16.mxu0 0
        %2129 = vmatmul.mubr.bf16.gmra.mrb[0].mxu0 %v1296
        %v2130 = vpop.f32.mrb[0].mxu0
        %v2131 = vadd.f32 %v2066, %v2130
        %v2132 = vpop.f32.mrb[0].mxu0
        %v2133 = vpop.f32.mrb[0].mxu0
        %v2134 = vadd.f32 %v2066, %v2133
        %v2135 = vpop.f32.mrb[0].mxu0
        %2136 = vdwg.mxu0
        %s2137 = scalar_lea.vmem %s958, 16
        %v2138 = vld [vmem:[%s2137] sm:$0xf]
        %v2139 = vld [vmem:[%s2137 + $0x4] sm:$0xf]
        %v2140 = vld [vmem:[%s2137 + $0x8] sm:$0xf]
        %v2141 = vld [vmem:[%s2137 + $0xc] sm:$0xf]
        %s2142 = scalar_lea.vmem %s962, 1
        %v2143 = vld [vmem:[%s2142] sm:$0x1]
        %v2145 = vlaneseq
        %v2146 = vshrl.u32 %v2145, 7
        %v2147 = vsub.s32 0, %v2146
        %v2148 = vrot.slane %v2143, %v2147
        %v2154 = vunpack.c.l.b16 %v2138
        %v2155 = vunpack.c.l.b16 %v2139
        %v2156 = vunpack.c.l.b16 %v2140
        %v2157 = vunpack.c.l.b16 %v2141
        %v2158 = vpack.c.b16 %v2155, %v2154
        %v2159 = vpack.c.b16 %v2157, %v2156
        %2162 = vmatprep.subr.bf16.mxu0 0
        %2163 = vmatpush1.bf16.msra.mxu0 %v2158
        %2164 = vmatprep.subr.bf16.mxu0 0
        %2165 = vmatpush1.bf16.msra.mxu0 %v2159
        %2166 = vmatprep.subr.bf16.mxu0 0
        %2167 = vmatpush1.bf16.msra.mxu0 0
        %2168 = vmatprep.subr.bf16.mxu0 0
        %2169 = vmatpush1.bf16.msra.mxu0 0
        %2170 = vmatprep.subr.bf16.mxu0 0
        %2171 = vmatpush1.bf16.msra.mxu0 0
        %2172 = vmatprep.subr.bf16.mxu0 0
        %2173 = vmatpush1.bf16.msra.mxu0 0
        %2174 = vmatprep.subr.bf16.mxu0 0
        %2175 = vmatpush1.bf16.msra.mxu0 0
        %2176 = vmatprep.subr.bf16.mxu0 0
        %2177 = vmatpush1.bf16.msra.mxu0 0
        %2178 = vmatprep.subr.bf16.mxu0 0
        %2179 = vmatpush1.bf16.msra.mxu0 0
        %2180 = vmatprep.subr.bf16.mxu0 0
        %2181 = vmatpush1.bf16.msra.mxu0 0
        %2182 = vmatprep.subr.bf16.mxu0 0
        %2183 = vmatpush1.bf16.msra.mxu0 0
        %2184 = vmatprep.subr.bf16.mxu0 0
        %2185 = vmatpush1.bf16.msra.mxu0 0
        %2186 = vmatprep.subr.bf16.mxu0 0
        %2187 = vmatpush1.bf16.msra.mxu0 0
        %2188 = vmatprep.subr.bf16.mxu0 0
        %2189 = vmatpush1.bf16.msra.mxu0 0
        %2190 = vmatprep.subr.bf16.mxu0 0
        %2191 = vmatpush1.bf16.msra.mxu0 0
        %2192 = vmatprep.subr.bf16.mxu0 0
        %2193 = vmatpush1.bf16.msra.mxu0 0
        %2194 = vmatprep.mubr.bf16.mxu0 0
        %2195 = vmatmul.mubr.bf16.gmra.mrb[0].mxu0 %v1290
        %v2196 = vpop.f32.mrb[0].mxu0
        %v2197 = vadd.f32 %v2148, %v2196
        %v2198 = vpop.f32.mrb[0].mxu0
        %v2199 = vpop.f32.mrb[0].mxu0
        %v2200 = vadd.f32 %v2148, %v2199
        %v2201 = vpop.f32.mrb[0].mxu0
        %2202 = vmatprep.mubr.bf16.mxu0 0
        %2203 = vmatmul.mubr.bf16.gmra.mrb[0].mxu0 %v1293
        %v2204 = vpop.f32.mrb[0].mxu0
        %v2205 = vadd.f32 %v2148, %v2204
        %v2206 = vpop.f32.mrb[0].mxu0
        %v2207 = vpop.f32.mrb[0].mxu0
        %v2208 = vadd.f32 %v2148, %v2207
        %v2209 = vpop.f32.mrb[0].mxu0
        %2210 = vmatprep.mubr.bf16.mxu0 0
        %2211 = vmatmul.mubr.bf16.gmra.mrb[0].mxu0 %v1296
        %v2212 = vpop.f32.mrb[0].mxu0
        %v2213 = vadd.f32 %v2148, %v2212
        %v2214 = vpop.f32.mrb[0].mxu0
        %v2215 = vpop.f32.mrb[0].mxu0
        %v2216 = vadd.f32 %v2148, %v2215
        %v2217 = vpop.f32.mrb[0].mxu0
        %2218 = vdwg.mxu0
        %s2219 = scalar_lea.vmem %s967, 16
        %v2220 = vld [vmem:[%s2219] sm:$0xf]
        %v2221 = vld [vmem:[%s2219 + $0x4] sm:$0xf]
        %v2222 = vld [vmem:[%s2219 + $0x8] sm:$0xf]
        %v2223 = vld [vmem:[%s2219 + $0xc] sm:$0xf]
        %s2224 = scalar_lea.vmem %s971, 1
        %v2225 = vld [vmem:[%s2224] sm:$0x1]
        %v2227 = vlaneseq
        %v2228 = vshrl.u32 %v2227, 7
        %v2229 = vsub.s32 0, %v2228
        %v2230 = vrot.slane %v2225, %v2229
        %v2236 = vunpack.c.l.b16 %v2220
        %v2237 = vunpack.c.l.b16 %v2221
        %v2238 = vunpack.c.l.b16 %v2222
        %v2239 = vunpack.c.l.b16 %v2223
        %v2240 = vpack.c.b16 %v2237, %v2236
        %v2241 = vpack.c.b16 %v2239, %v2238
        %2244 = vmatprep.subr.bf16.mxu0 0
        %2245 = vmatpush1.bf16.msra.mxu0 %v2240
        %2246 = vmatprep.subr.bf16.mxu0 0
        %2247 = vmatpush1.bf16.msra.mxu0 %v2241
        %2248 = vmatprep.subr.bf16.mxu0 0
        %2249 = vmatpush1.bf16.msra.mxu0 0
        %2250 = vmatprep.subr.bf16.mxu0 0
        %2251 = vmatpush1.bf16.msra.mxu0 0
        %2252 = vmatprep.subr.bf16.mxu0 0
        %2253 = vmatpush1.bf16.msra.mxu0 0
        %2254 = vmatprep.subr.bf16.mxu0 0
        %2255 = vmatpush1.bf16.msra.mxu0 0
        %2256 = vmatprep.subr.bf16.mxu0 0
        %2257 = vmatpush1.bf16.msra.mxu0 0
        %2258 = vmatprep.subr.bf16.mxu0 0
        %2259 = vmatpush1.bf16.msra.mxu0 0
        %2260 = vmatprep.subr.bf16.mxu0 0
        %2261 = vmatpush1.bf16.msra.mxu0 0
        %2262 = vmatprep.subr.bf16.mxu0 0
        %2263 = vmatpush1.bf16.msra.mxu0 0
        %2264 = vmatprep.subr.bf16.mxu0 0
        %2265 = vmatpush1.bf16.msra.mxu0 0
        %2266 = vmatprep.subr.bf16.mxu0 0
        %2267 = vmatpush1.bf16.msra.mxu0 0
        %2268 = vmatprep.subr.bf16.mxu0 0
        %2269 = vmatpush1.bf16.msra.mxu0 0
        %2270 = vmatprep.subr.bf16.mxu0 0
        %2271 = vmatpush1.bf16.msra.mxu0 0
        %2272 = vmatprep.subr.bf16.mxu0 0
        %2273 = vmatpush1.bf16.msra.mxu0 0
        %2274 = vmatprep.subr.bf16.mxu0 0
        %2275 = vmatpush1.bf16.msra.mxu0 0
        %2276 = vmatprep.mubr.bf16.mxu0 0
        %2277 = vmatmul.mubr.bf16.gmra.mrb[0].mxu0 %v1290
        %v2278 = vpop.f32.mrb[0].mxu0
        %v2279 = vadd.f32 %v2230, %v2278
        %v2280 = vpop.f32.mrb[0].mxu0
        %v2281 = vpop.f32.mrb[0].mxu0
        %v2282 = vadd.f32 %v2230, %v2281
        %v2283 = vpop.f32.mrb[0].mxu0
        %2284 = vmatprep.mubr.bf16.mxu0 0
        %2285 = vmatmul.mubr.bf16.gmra.mrb[0].mxu0 %v1293
        %v2286 = vpop.f32.mrb[0].mxu0
        %v2287 = vadd.f32 %v2230, %v2286
        %v2288 = vpop.f32.mrb[0].mxu0
        %v2289 = vpop.f32.mrb[0].mxu0
        %v2290 = vadd.f32 %v2230, %v2289
        %v2291 = vpop.f32.mrb[0].mxu0
        %2292 = vmatprep.mubr.bf16.mxu0 0
        %2293 = vmatmul.mubr.bf16.gmra.mrb[0].mxu0 %v1296
        %v2294 = vpop.f32.mrb[0].mxu0
        %v2295 = vadd.f32 %v2230, %v2294
        %v2296 = vpop.f32.mrb[0].mxu0
        %v2297 = vpop.f32.mrb[0].mxu0
        %v2298 = vadd.f32 %v2230, %v2297
        %v2299 = vpop.f32.mrb[0].mxu0
        %2300 = vdwg.mxu0
        %v2302 = vsel %vm1515, %v2115, 0
        %v2305 = vsel %vm1515, %v2118, 0
        %v2308 = vsel %vm1515, %v2123, 0
        %v2311 = vsel %vm1515, %v2197, 0
        %v2314 = vsel %vm1515, %v2200, 0
        %v2317 = vsel %vm1515, %v2205, 0
        %2319 = vmatprep.subr.mxu0 0.0
        %2320 = vmatpush1.xpose.msra.mxu0 %v2311
        %2321 = vmatprep.subr.mxu0 0.0
        %2322 = vmatpush1.xpose.msra.mxu0 %v2314
        %2323 = vmatprep.subr.mxu0 0.0
        %2324 = vmatpush1.xpose.msra.mxu0 %v2317
        %2325 = vmatprep.subr.mxu0 0.0
        %2326 = vmatpush1.xpose.msra.mxu0 0.0
        %2327 = vmatprep.subr.mxu0 0.0
        %2328 = vmatpush1.xpose.msra.mxu0 0.0
        %2329 = vmatprep.subr.mxu0 0.0
        %2330 = vmatpush1.xpose.msra.mxu0 0.0
        %2331 = vmatprep.subr.mxu0 0.0
        %2332 = vmatpush1.xpose.msra.mxu0 0.0
        %2333 = vmatprep.subr.mxu0 0.0
        %2334 = vmatpush1.xpose.msra.mxu0 0.0
        %2335 = vmatprep.subr.mxu0 0.0
        %2336 = vmatpush1.xpose.msra.mxu0 0.0
        %2337 = vmatprep.subr.mxu0 0.0
        %2338 = vmatpush1.xpose.msra.mxu0 0.0
        %2339 = vmatprep.subr.mxu0 0.0
        %2340 = vmatpush1.xpose.msra.mxu0 0.0
        %2341 = vmatprep.subr.mxu0 0.0
        %2342 = vmatpush1.xpose.msra.mxu0 0.0
        %2343 = vmatprep.subr.mxu0 0.0
        %2344 = vmatpush1.xpose.msra.mxu0 0.0
        %2345 = vmatprep.subr.mxu0 0.0
        %2346 = vmatpush1.xpose.msra.mxu0 0.0
        %2347 = vmatprep.subr.mxu0 0.0
        %2348 = vmatpush1.xpose.msra.mxu0 0.0
        %2349 = vmatprep.subr.mxu0 0.0
        %2350 = vmatpush1.xpose.msra.mxu0 0.0
        %2351 = vmatprep.subr.mxu0 0.0
        %2352 = vmatpush1.xpose.msra.mxu0 0.0
        %2353 = vmatprep.subr.mxu0 0.0
        %2354 = vmatpush1.xpose.msra.mxu0 0.0
        %2355 = vmatprep.subr.mxu0 0.0
        %2356 = vmatpush1.xpose.msra.mxu0 0.0
        %2357 = vmatprep.subr.mxu0 0.0
        %2358 = vmatpush1.xpose.msra.mxu0 0.0
        %2359 = vmatprep.subr.mxu0 0.0
        %2360 = vmatpush1.xpose.msra.mxu0 0.0
        %2361 = vmatprep.subr.mxu0 0.0
        %2362 = vmatpush1.xpose.msra.mxu0 0.0
        %2363 = vmatprep.subr.mxu0 0.0
        %2364 = vmatpush1.xpose.msra.mxu0 0.0
        %2365 = vmatprep.subr.mxu0 0.0
        %2366 = vmatpush1.xpose.msra.mxu0 0.0
        %2367 = vmatprep.subr.mxu0 0.0
        %2368 = vmatpush1.xpose.msra.mxu0 0.0
        %2369 = vmatprep.subr.mxu0 0.0
        %2370 = vmatpush1.xpose.msra.mxu0 0.0
        %2371 = vmatprep.subr.mxu0 0.0
        %2372 = vmatpush1.xpose.msra.mxu0 0.0
        %2373 = vmatprep.subr.mxu0 0.0
        %2374 = vmatpush1.xpose.msra.mxu0 0.0
        %2375 = vmatprep.subr.mxu0 0.0
        %2376 = vmatpush1.xpose.msra.mxu0 0.0
        %2377 = vmatprep.subr.mxu0 0.0
        %2378 = vmatpush1.xpose.msra.mxu0 0.0
        %2379 = vmatprep.subr.mxu0 0.0
        %2380 = vmatpush1.xpose.msra.mxu0 0.0
        %2381 = vmatprep.subr.mxu0 0.0
        %2382 = vmatpush1.xpose.msra.mxu0 0.0
        %2383 = vmatprep.mubr.f32.mxu0 0.0
        %2384 = vmatmul.mubr.f32.gmra.mrb[0].mxu0 %v2302
        %v2385 = vpop.f32.mrb[0].mxu0
        %v2386 = vadd.f32 0.0, %v2385
        %v2387 = vpop.f32.mrb[0].mxu0
        %2388 = vmatprep.mubr.f32.mxu0 0.0
        %2389 = vmatmul.mubr.f32.gmra.mrb[0].mxu0 %v2305
        %v2390 = vpop.f32.mrb[0].mxu0
        %v2391 = vadd.f32 0.0, %v2390
        %v2392 = vpop.f32.mrb[0].mxu0
        %2393 = vmatprep.mubr.f32.mxu0 0.0
        %2394 = vmatmul.mubr.f32.gmra.mrb[0].mxu0 %v2308
        %v2395 = vpop.f32.mrb[0].mxu0
        %v2396 = vadd.f32 0.0, %v2395
        %v2397 = vpop.f32.mrb[0].mxu0
        %2398 = vdwg.mxu0
        %v2400 = vsel %vm1515, %v2126, 0
        %v2403 = vsel %vm1515, %v2131, 0
        %v2406 = vsel %vm1515, %v2134, 0
        %v2409 = vsel %vm1515, %v2208, 0
        %v2412 = vsel %vm1515, %v2213, 0
        %v2415 = vsel %vm1515, %v2216, 0
        %2417 = vmatprep.subr.mxu0 0.0
        %2418 = vmatpush1.xpose.msra.mxu0 %v2409
        %2419 = vmatprep.subr.mxu0 0.0
        %2420 = vmatpush1.xpose.msra.mxu0 %v2412
        %2421 = vmatprep.subr.mxu0 0.0
        %2422 = vmatpush1.xpose.msra.mxu0 %v2415
        %2423 = vmatprep.subr.mxu0 0.0
        %2424 = vmatpush1.xpose.msra.mxu0 0.0
        %2425 = vmatprep.subr.mxu0 0.0
        %2426 = vmatpush1.xpose.msra.mxu0 0.0
        %2427 = vmatprep.subr.mxu0 0.0
        %2428 = vmatpush1.xpose.msra.mxu0 0.0
        %2429 = vmatprep.subr.mxu0 0.0
        %2430 = vmatpush1.xpose.msra.mxu0 0.0
        %2431 = vmatprep.subr.mxu0 0.0
        %2432 = vmatpush1.xpose.msra.mxu0 0.0
        %2433 = vmatprep.subr.mxu0 0.0
        %2434 = vmatpush1.xpose.msra.mxu0 0.0
        %2435 = vmatprep.subr.mxu0 0.0
        %2436 = vmatpush1.xpose.msra.mxu0 0.0
        %2437 = vmatprep.subr.mxu0 0.0
        %2438 = vmatpush1.xpose.msra.mxu0 0.0
        %2439 = vmatprep.subr.mxu0 0.0
        %2440 = vmatpush1.xpose.msra.mxu0 0.0
        %2441 = vmatprep.subr.mxu0 0.0
        %2442 = vmatpush1.xpose.msra.mxu0 0.0
        %2443 = vmatprep.subr.mxu0 0.0
        %2444 = vmatpush1.xpose.msra.mxu0 0.0
        %2445 = vmatprep.subr.mxu0 0.0
        %2446 = vmatpush1.xpose.msra.mxu0 0.0
        %2447 = vmatprep.subr.mxu0 0.0
        %2448 = vmatpush1.xpose.msra.mxu0 0.0
        %2449 = vmatprep.subr.mxu0 0.0
        %2450 = vmatpush1.xpose.msra.mxu0 0.0
        %2451 = vmatprep.subr.mxu0 0.0
        %2452 = vmatpush1.xpose.msra.mxu0 0.0
        %2453 = vmatprep.subr.mxu0 0.0
        %2454 = vmatpush1.xpose.msra.mxu0 0.0
        %2455 = vmatprep.subr.mxu0 0.0
        %2456 = vmatpush1.xpose.msra.mxu0 0.0
        %2457 = vmatprep.subr.mxu0 0.0
        %2458 = vmatpush1.xpose.msra.mxu0 0.0
        %2459 = vmatprep.subr.mxu0 0.0
        %2460 = vmatpush1.xpose.msra.mxu0 0.0
        %2461 = vmatprep.subr.mxu0 0.0
        %2462 = vmatpush1.xpose.msra.mxu0 0.0
        %2463 = vmatprep.subr.mxu0 0.0
        %2464 = vmatpush1.xpose.msra.mxu0 0.0
        %2465 = vmatprep.subr.mxu0 0.0
        %2466 = vmatpush1.xpose.msra.mxu0 0.0
        %2467 = vmatprep.subr.mxu0 0.0
        %2468 = vmatpush1.xpose.msra.mxu0 0.0
        %2469 = vmatprep.subr.mxu0 0.0
        %2470 = vmatpush1.xpose.msra.mxu0 0.0
        %2471 = vmatprep.subr.mxu0 0.0
        %2472 = vmatpush1.xpose.msra.mxu0 0.0
        %2473 = vmatprep.subr.mxu0 0.0
        %2474 = vmatpush1.xpose.msra.mxu0 0.0
        %2475 = vmatprep.subr.mxu0 0.0
        %2476 = vmatpush1.xpose.msra.mxu0 0.0
        %2477 = vmatprep.subr.mxu0 0.0
        %2478 = vmatpush1.xpose.msra.mxu0 0.0
        %2479 = vmatprep.subr.mxu0 0.0
        %2480 = vmatpush1.xpose.msra.mxu0 0.0
        %2481 = vmatprep.mubr.f32.mxu0 0.0
        %2482 = vmatmul.mubr.f32.gmra.mrb[0].mxu0 %v2400
        %v2483 = vpop.f32.mrb[0].mxu0
        %v2484 = vadd.f32 0.0, %v2483
        %v2485 = vpop.f32.mrb[0].mxu0
        %2486 = vmatprep.mubr.f32.mxu0 0.0
        %2487 = vmatmul.mubr.f32.gmra.mrb[0].mxu0 %v2403
        %v2488 = vpop.f32.mrb[0].mxu0
        %v2489 = vadd.f32 0.0, %v2488
        %v2490 = vpop.f32.mrb[0].mxu0
        %2491 = vmatprep.mubr.f32.mxu0 0.0
        %2492 = vmatmul.mubr.f32.gmra.mrb[0].mxu0 %v2406
        %v2493 = vpop.f32.mrb[0].mxu0
        %v2494 = vadd.f32 0.0, %v2493
        %v2495 = vpop.f32.mrb[0].mxu0
        %2496 = vdwg.mxu0
        %v2497 = vmul.f32 %v2386, 0.35355338
        %v2498 = vmul.f32 %v2391, 0.35355338
        %v2499 = vmul.f32 %v2396, 0.35355338
        %v2500 = vmul.f32 %v2484, 0.35355338
        %v2501 = vmul.f32 %v2489, 0.35355338
        %v2502 = vmul.f32 %v2494, 0.35355338
        %v2503 = vadd.f32 %v2497, %v1262
        %v2504 = vadd.f32 %v2498, %v1263
        %v2505 = vadd.f32 %v2499, %v1264
        %v2506 = vadd.f32 %v2500, %v1262
        %v2507 = vadd.f32 %v2501, %v1263
        %v2508 = vadd.f32 %v2502, %v1264
        %v2509 = vsel %vm1724, %v2503, -inf
        %2510 = vmax.xlane.f32.xlu0 %v2509
        %v2511 = vpop.xlane.xlu0 %2510
        %v2512 = vsel %vm1724, %v2504, -inf
        %2513 = vmax.xlane.f32.xlu0 %v2512
        %v2514 = vpop.xlane.xlu0 %2513
        %v2515 = vsel %vm1724, %v2505, -inf
        %2516 = vmax.xlane.f32.xlu0 %v2515
        %v2517 = vpop.xlane.xlu0 %2516
        %v2518 = vsel %vm1724, %v2506, -inf
        %2519 = vmax.xlane.f32.xlu0 %v2518
        %v2520 = vpop.xlane.xlu0 %2519
        %v2521 = vsel %vm1724, %v2507, -inf
        %2522 = vmax.xlane.f32.xlu0 %v2521
        %v2523 = vpop.xlane.xlu0 %2522
        %v2524 = vsel %vm1724, %v2508, -inf
        %2525 = vmax.xlane.f32.xlu0 %v2524
        %v2526 = vpop.xlane.xlu0 %2525
        %v2527 = vsub.f32 %v2503, %v2511
        %v2528 = vsub.f32 %v2504, %v2514
        %v2529 = vsub.f32 %v2505, %v2517
        %v2530 = vsub.f32 %v2506, %v2520
        %v2531 = vsub.f32 %v2507, %v2523
        %v2532 = vsub.f32 %v2508, %v2526
        %v2533 = vmul.f32 %v2527, 1.442695
        %v2534 = vpow.pop %v2533
        %v2535 = vmul.f32 %v2528, 1.442695
        %v2536 = vpow.pop %v2535
        %v2537 = vmul.f32 %v2529, 1.442695
        %v2538 = vpow.pop %v2537
        %v2539 = vmul.f32 %v2530, 1.442695
        %v2540 = vpow.pop %v2539
        %v2541 = vmul.f32 %v2531, 1.442695
        %v2542 = vpow.pop %v2541
        %v2543 = vmul.f32 %v2532, 1.442695
        %v2544 = vpow.pop %v2543
        %v2545 = vsel %vm1724, %v2534, 0.0
        %2546 = vadd.xlane.f32.xlu0 %v2545
        %v2547 = vpop.xlane.xlu0 %2546
        %v2548 = vsel %vm1724, %v2536, 0.0
        %2549 = vadd.xlane.f32.xlu0 %v2548
        %v2550 = vpop.xlane.xlu0 %2549
        %v2551 = vsel %vm1724, %v2538, 0.0
        %2552 = vadd.xlane.f32.xlu0 %v2551
        %v2553 = vpop.xlane.xlu0 %2552
        %v2554 = vsel %vm1724, %v2540, 0.0
        %2555 = vadd.xlane.f32.xlu0 %v2554
        %v2556 = vpop.xlane.xlu0 %2555
        %v2557 = vsel %vm1724, %v2542, 0.0
        %2558 = vadd.xlane.f32.xlu0 %v2557
        %v2559 = vpop.xlane.xlu0 %2558
        %v2560 = vsel %vm1724, %v2544, 0.0
        %2561 = vadd.xlane.f32.xlu0 %v2560
        %v2562 = vpop.xlane.xlu0 %2561
        %v2563 = vrcp.pop %v2547
        %v2564 = vrcp.pop %v2550
        %v2565 = vrcp.pop %v2553
        %v2566 = vrcp.pop %v2556
        %v2567 = vrcp.pop %v2559
        %v2568 = vrcp.pop %v2562
        %v2569 = vmul.f32 %v2534, %v2563
        %v2570 = vmul.f32 %v2536, %v2564
        %v2571 = vmul.f32 %v2538, %v2565
        %v2572 = vmul.f32 %v2540, %v2566
        %v2573 = vmul.f32 %v2542, %v2567
        %v2574 = vmul.f32 %v2544, %v2568
        %v2576 = vsel %vm1724, %v2569, 0
        %v2579 = vsel %vm1724, %v2570, 0
        %v2582 = vsel %vm1724, %v2571, 0
        %2584 = vmatprep.subr.mxu0 0.0
        %2585 = vmatpush1.msra.mxu0 %v2279
        %2586 = vmatprep.subr.mxu0 0.0
        %2587 = vmatpush1.msra.mxu0 %v2282
        %2588 = vmatprep.subr.mxu0 0.0
        %2589 = vmatpush1.msra.mxu0 %v2287
        %2590 = vmatprep.subr.mxu0 0.0
        %2591 = vmatpush1.msra.mxu0 0.0
        %2592 = vmatprep.subr.mxu0 0.0
        %2593 = vmatpush1.msra.mxu0 0.0
        %2594 = vmatprep.subr.mxu0 0.0
        %2595 = vmatpush1.msra.mxu0 0.0
        %2596 = vmatprep.subr.mxu0 0.0
        %2597 = vmatpush1.msra.mxu0 0.0
        %2598 = vmatprep.subr.mxu0 0.0
        %2599 = vmatpush1.msra.mxu0 0.0
        %2600 = vmatprep.subr.mxu0 0.0
        %2601 = vmatpush1.msra.mxu0 0.0
        %2602 = vmatprep.subr.mxu0 0.0
        %2603 = vmatpush1.msra.mxu0 0.0
        %2604 = vmatprep.subr.mxu0 0.0
        %2605 = vmatpush1.msra.mxu0 0.0
        %2606 = vmatprep.subr.mxu0 0.0
        %2607 = vmatpush1.msra.mxu0 0.0
        %2608 = vmatprep.subr.mxu0 0.0
        %2609 = vmatpush1.msra.mxu0 0.0
        %2610 = vmatprep.subr.mxu0 0.0
        %2611 = vmatpush1.msra.mxu0 0.0
        %2612 = vmatprep.subr.mxu0 0.0
        %2613 = vmatpush1.msra.mxu0 0.0
        %2614 = vmatprep.subr.mxu0 0.0
        %2615 = vmatpush1.msra.mxu0 0.0
        %2616 = vmatprep.subr.mxu0 0.0
        %2617 = vmatpush1.msra.mxu0 0.0
        %2618 = vmatprep.subr.mxu0 0.0
        %2619 = vmatpush1.msra.mxu0 0.0
        %2620 = vmatprep.subr.mxu0 0.0
        %2621 = vmatpush1.msra.mxu0 0.0
        %2622 = vmatprep.subr.mxu0 0.0
        %2623 = vmatpush1.msra.mxu0 0.0
        %2624 = vmatprep.subr.mxu0 0.0
        %2625 = vmatpush1.msra.mxu0 0.0
        %2626 = vmatprep.subr.mxu0 0.0
        %2627 = vmatpush1.msra.mxu0 0.0
        %2628 = vmatprep.subr.mxu0 0.0
        %2629 = vmatpush1.msra.mxu0 0.0
        %2630 = vmatprep.subr.mxu0 0.0
        %2631 = vmatpush1.msra.mxu0 0.0
        %2632 = vmatprep.subr.mxu0 0.0
        %2633 = vmatpush1.msra.mxu0 0.0
        %2634 = vmatprep.subr.mxu0 0.0
        %2635 = vmatpush1.msra.mxu0 0.0
        %2636 = vmatprep.subr.mxu0 0.0
        %2637 = vmatpush1.msra.mxu0 0.0
        %2638 = vmatprep.subr.mxu0 0.0
        %2639 = vmatpush1.msra.mxu0 0.0
        %2640 = vmatprep.subr.mxu0 0.0
        %2641 = vmatpush1.msra.mxu0 0.0
        %2642 = vmatprep.subr.mxu0 0.0
        %2643 = vmatpush1.msra.mxu0 0.0
        %2644 = vmatprep.subr.mxu0 0.0
        %2645 = vmatpush1.msra.mxu0 0.0
        %2646 = vmatprep.subr.mxu0 0.0
        %2647 = vmatpush1.msra.mxu0 0.0
        %2648 = vmatprep.mubr.f32.mxu0 0.0
        %2649 = vmatmul.mubr.f32.gmra.mrb[0].mxu0 %v2576
        %v2650 = vpop.f32.mrb[0].mxu0
        %v2651 = vadd.f32 0.0, %v2650
        %v2652 = vpop.f32.mrb[0].mxu0
        %2653 = vmatprep.mubr.f32.mxu0 0.0
        %2654 = vmatmul.mubr.f32.gmra.mrb[0].mxu0 %v2579
        %v2655 = vpop.f32.mrb[0].mxu0
        %v2656 = vadd.f32 0.0, %v2655
        %v2657 = vpop.f32.mrb[0].mxu0
        %2658 = vmatprep.mubr.f32.mxu0 0.0
        %2659 = vmatmul.mubr.f32.gmra.mrb[0].mxu0 %v2582
        %v2660 = vpop.f32.mrb[0].mxu0
        %v2661 = vadd.f32 0.0, %v2660
        %v2662 = vpop.f32.mrb[0].mxu0
        %2663 = vdwg.mxu0
        %v2665 = vsel %vm1724, %v2572, 0
        %v2668 = vsel %vm1724, %v2573, 0
        %v2671 = vsel %vm1724, %v2574, 0
        %2673 = vmatprep.subr.mxu0 0.0
        %2674 = vmatpush1.msra.mxu0 %v2290
        %2675 = vmatprep.subr.mxu0 0.0
        %2676 = vmatpush1.msra.mxu0 %v2295
        %2677 = vmatprep.subr.mxu0 0.0
        %2678 = vmatpush1.msra.mxu0 %v2298
        %2679 = vmatprep.subr.mxu0 0.0
        %2680 = vmatpush1.msra.mxu0 0.0
        %2681 = vmatprep.subr.mxu0 0.0
        %2682 = vmatpush1.msra.mxu0 0.0
        %2683 = vmatprep.subr.mxu0 0.0
        %2684 = vmatpush1.msra.mxu0 0.0
        %2685 = vmatprep.subr.mxu0 0.0
        %2686 = vmatpush1.msra.mxu0 0.0
        %2687 = vmatprep.subr.mxu0 0.0
        %2688 = vmatpush1.msra.mxu0 0.0
        %2689 = vmatprep.subr.mxu0 0.0
        %2690 = vmatpush1.msra.mxu0 0.0
        %2691 = vmatprep.subr.mxu0 0.0
        %2692 = vmatpush1.msra.mxu0 0.0
        %2693 = vmatprep.subr.mxu0 0.0
        %2694 = vmatpush1.msra.mxu0 0.0
        %2695 = vmatprep.subr.mxu0 0.0
        %2696 = vmatpush1.msra.mxu0 0.0
        %2697 = vmatprep.subr.mxu0 0.0
        %2698 = vmatpush1.msra.mxu0 0.0
        %2699 = vmatprep.subr.mxu0 0.0
        %2700 = vmatpush1.msra.mxu0 0.0
        %2701 = vmatprep.subr.mxu0 0.0
        %2702 = vmatpush1.msra.mxu0 0.0
        %2703 = vmatprep.subr.mxu0 0.0
        %2704 = vmatpush1.msra.mxu0 0.0
        %2705 = vmatprep.subr.mxu0 0.0
        %2706 = vmatpush1.msra.mxu0 0.0
        %2707 = vmatprep.subr.mxu0 0.0
        %2708 = vmatpush1.msra.mxu0 0.0
        %2709 = vmatprep.subr.mxu0 0.0
        %2710 = vmatpush1.msra.mxu0 0.0
        %2711 = vmatprep.subr.mxu0 0.0
        %2712 = vmatpush1.msra.mxu0 0.0
        %2713 = vmatprep.subr.mxu0 0.0
        %2714 = vmatpush1.msra.mxu0 0.0
        %2715 = vmatprep.subr.mxu0 0.0
        %2716 = vmatpush1.msra.mxu0 0.0
        %2717 = vmatprep.subr.mxu0 0.0
        %2718 = vmatpush1.msra.mxu0 0.0
        %2719 = vmatprep.subr.mxu0 0.0
        %2720 = vmatpush1.msra.mxu0 0.0
        %2721 = vmatprep.subr.mxu0 0.0
        %2722 = vmatpush1.msra.mxu0 0.0
        %2723 = vmatprep.subr.mxu0 0.0
        %2724 = vmatpush1.msra.mxu0 0.0
        %2725 = vmatprep.subr.mxu0 0.0
        %2726 = vmatpush1.msra.mxu0 0.0
        %2727 = vmatprep.subr.mxu0 0.0
        %2728 = vmatpush1.msra.mxu0 0.0
        %2729 = vmatprep.subr.mxu0 0.0
        %2730 = vmatpush1.msra.mxu0 0.0
        %2731 = vmatprep.subr.mxu0 0.0
        %2732 = vmatpush1.msra.mxu0 0.0
        %2733 = vmatprep.subr.mxu0 0.0
        %2734 = vmatpush1.msra.mxu0 0.0
        %2735 = vmatprep.subr.mxu0 0.0
        %2736 = vmatpush1.msra.mxu0 0.0
        %2737 = vmatprep.mubr.f32.mxu0 0.0
        %2738 = vmatmul.mubr.f32.gmra.mrb[0].mxu0 %v2665
        %v2739 = vpop.f32.mrb[0].mxu0
        %v2740 = vadd.f32 0.0, %v2739
        %v2741 = vpop.f32.mrb[0].mxu0
        %2742 = vmatprep.mubr.f32.mxu0 0.0
        %2743 = vmatmul.mubr.f32.gmra.mrb[0].mxu0 %v2668
        %v2744 = vpop.f32.mrb[0].mxu0
        %v2745 = vadd.f32 0.0, %v2744
        %v2746 = vpop.f32.mrb[0].mxu0
        %2747 = vmatprep.mubr.f32.mxu0 0.0
        %2748 = vmatmul.mubr.f32.gmra.mrb[0].mxu0 %v2671
        %v2749 = vpop.f32.mrb[0].mxu0
        %v2750 = vadd.f32 0.0, %v2749
        %v2751 = vpop.f32.mrb[0].mxu0
        %2752 = vdwg.mxu0
        %v2753 = vpack.c.bf16 %v2656, %v2651
        %v2754 = vpack.c.bf16 %v2740, %v2661
        %v2755 = vpack.c.bf16 %v2750, %v2745
        %s2756 = scalar_lea.vmem %s976, 4
        %v2757 = vld [vmem:[%s2756] sm:$0xf]
        %v2759 = vsel %vm1515, %v2753, 0
        %v2762 = vsel %vm1515, %v2754, 0
        %v2765 = vsel %vm1515, %v2755, 0
        %v2768 = vsel %vm1982, %v2757, 0
        %2770 = vmatprep.subr.bf16.mxu0 0
        %2771 = vmatpush1.bf16.msra.mxu0 %v2768
        %2772 = vmatprep.subr.bf16.mxu0 0
        %2773 = vmatpush1.bf16.msra.mxu0 0
        %2774 = vmatprep.subr.bf16.mxu0 0
        %2775 = vmatpush1.bf16.msra.mxu0 0
        %2776 = vmatprep.subr.bf16.mxu0 0
        %2777 = vmatpush1.bf16.msra.mxu0 0
        %2778 = vmatprep.subr.bf16.mxu0 0
        %2779 = vmatpush1.bf16.msra.mxu0 0
        %2780 = vmatprep.subr.bf16.mxu0 0
        %2781 = vmatpush1.bf16.msra.mxu0 0
        %2782 = vmatprep.subr.bf16.mxu0 0
        %2783 = vmatpush1.bf16.msra.mxu0 0
        %2784 = vmatprep.subr.bf16.mxu0 0
        %2785 = vmatpush1.bf16.msra.mxu0 0
        %2786 = vmatprep.subr.bf16.mxu0 0
        %2787 = vmatpush1.bf16.msra.mxu0 0
        %2788 = vmatprep.subr.bf16.mxu0 0
        %2789 = vmatpush1.bf16.msra.mxu0 0
        %2790 = vmatprep.subr.bf16.mxu0 0
        %2791 = vmatpush1.bf16.msra.mxu0 0
        %2792 = vmatprep.subr.bf16.mxu0 0
        %2793 = vmatpush1.bf16.msra.mxu0 0
        %2794 = vmatprep.subr.bf16.mxu0 0
        %2795 = vmatpush1.bf16.msra.mxu0 0
        %2796 = vmatprep.subr.bf16.mxu0 0
        %2797 = vmatpush1.bf16.msra.mxu0 0
        %2798 = vmatprep.subr.bf16.mxu0 0
        %2799 = vmatpush1.bf16.msra.mxu0 0
        %2800 = vmatprep.subr.bf16.mxu0 0
        %2801 = vmatpush1.bf16.msra.mxu0 0
        %2802 = vmatprep.mubr.bf16.mxu0 0
        %2803 = vmatmul.mubr.bf16.gmra.mrb[0].mxu0 %v2759
        %v2804 = vpop.f32.mrb[0].mxu0
        %v2805 = vadd.f32 0.0, %v2804
        %v2806 = vpop.f32.mrb[0].mxu0
        %v2807 = vpop.f32.mrb[0].mxu0
        %v2808 = vadd.f32 0.0, %v2807
        %v2809 = vpop.f32.mrb[0].mxu0
        %2810 = vmatprep.mubr.bf16.mxu0 0
        %2811 = vmatmul.mubr.bf16.gmra.mrb[0].mxu0 %v2762
        %v2812 = vpop.f32.mrb[0].mxu0
        %v2813 = vadd.f32 0.0, %v2812
        %v2814 = vpop.f32.mrb[0].mxu0
        %v2815 = vpop.f32.mrb[0].mxu0
        %v2816 = vadd.f32 0.0, %v2815
        %v2817 = vpop.f32.mrb[0].mxu0
        %2818 = vmatprep.mubr.bf16.mxu0 0
        %2819 = vmatmul.mubr.bf16.gmra.mrb[0].mxu0 %v2765
        %v2820 = vpop.f32.mrb[0].mxu0
        %v2821 = vadd.f32 0.0, %v2820
        %v2822 = vpop.f32.mrb[0].mxu0
        %v2823 = vpop.f32.mrb[0].mxu0
        %v2824 = vadd.f32 0.0, %v2823
        %v2825 = vpop.f32.mrb[0].mxu0
        %2826 = vdwg.mxu0
        %v2827 = vadd.f32 %v2049, %v2805
        %v2828 = vadd.f32 %v2050, %v2808
        %v2829 = vadd.f32 %v2051, %v2813
        %v2830 = vadd.f32 %v2052, %v2816
        %v2831 = vadd.f32 %v2053, %v2821
        %v2832 = vadd.f32 %v2054, %v2824
        %s2833 = scalar_lea.vmem %s949, 32
        %v2834 = vld [vmem:[%s2833] sm:$0xf]
        %v2835 = vld [vmem:[%s2833 + $0x4] sm:$0xf]
        %v2836 = vld [vmem:[%s2833 + $0x8] sm:$0xf]
        %v2837 = vld [vmem:[%s2833 + $0xc] sm:$0xf]
        %s2838 = scalar_lea.vmem %s953, 2
        %v2839 = vld [vmem:[%s2838] sm:$0x1]
        %v2841 = vlaneseq
        %v2842 = vshrl.u32 %v2841, 7
        %v2843 = vsub.s32 0, %v2842
        %v2844 = vrot.slane %v2839, %v2843
        %v2850 = vunpack.c.l.b16 %v2834
        %v2851 = vunpack.c.l.b16 %v2835
        %v2852 = vunpack.c.l.b16 %v2836
        %v2853 = vunpack.c.l.b16 %v2837
        %v2854 = vpack.c.b16 %v2851, %v2850
        %v2855 = vpack.c.b16 %v2853, %v2852
        %2858 = vmatprep.subr.bf16.mxu0 0
        %2859 = vmatpush1.bf16.msra.mxu0 %v2854
        %2860 = vmatprep.subr.bf16.mxu0 0
        %2861 = vmatpush1.bf16.msra.mxu0 %v2855
        %2862 = vmatprep.subr.bf16.mxu0 0
        %2863 = vmatpush1.bf16.msra.mxu0 0
        %2864 = vmatprep.subr.bf16.mxu0 0
        %2865 = vmatpush1.bf16.msra.mxu0 0
        %2866 = vmatprep.subr.bf16.mxu0 0
        %2867 = vmatpush1.bf16.msra.mxu0 0
        %2868 = vmatprep.subr.bf16.mxu0 0
        %2869 = vmatpush1.bf16.msra.mxu0 0
        %2870 = vmatprep.subr.bf16.mxu0 0
        %2871 = vmatpush1.bf16.msra.mxu0 0
        %2872 = vmatprep.subr.bf16.mxu0 0
        %2873 = vmatpush1.bf16.msra.mxu0 0
        %2874 = vmatprep.subr.bf16.mxu0 0
        %2875 = vmatpush1.bf16.msra.mxu0 0
        %2876 = vmatprep.subr.bf16.mxu0 0
        %2877 = vmatpush1.bf16.msra.mxu0 0
        %2878 = vmatprep.subr.bf16.mxu0 0
        %2879 = vmatpush1.bf16.msra.mxu0 0
        %2880 = vmatprep.subr.bf16.mxu0 0
        %2881 = vmatpush1.bf16.msra.mxu0 0
        %2882 = vmatprep.subr.bf16.mxu0 0
        %2883 = vmatpush1.bf16.msra.mxu0 0
        %2884 = vmatprep.subr.bf16.mxu0 0
        %2885 = vmatpush1.bf16.msra.mxu0 0
        %2886 = vmatprep.subr.bf16.mxu0 0
        %2887 = vmatpush1.bf16.msra.mxu0 0
        %2888 = vmatprep.subr.bf16.mxu0 0
        %2889 = vmatpush1.bf16.msra.mxu0 0
        %2890 = vmatprep.mubr.bf16.mxu0 0
        %2891 = vmatmul.mubr.bf16.gmra.mrb[0].mxu0 %v1290
        %v2892 = vpop.f32.mrb[0].mxu0
        %v2893 = vadd.f32 %v2844, %v2892
        %v2894 = vpop.f32.mrb[0].mxu0
        %v2895 = vpop.f32.mrb[0].mxu0
        %v2896 = vadd.f32 %v2844, %v2895
        %v2897 = vpop.f32.mrb[0].mxu0
        %2898 = vmatprep.mubr.bf16.mxu0 0
        %2899 = vmatmul.mubr.bf16.gmra.mrb[0].mxu0 %v1293
        %v2900 = vpop.f32.mrb[0].mxu0
        %v2901 = vadd.f32 %v2844, %v2900
        %v2902 = vpop.f32.mrb[0].mxu0
        %v2903 = vpop.f32.mrb[0].mxu0
        %v2904 = vadd.f32 %v2844, %v2903
        %v2905 = vpop.f32.mrb[0].mxu0
        %2906 = vmatprep.mubr.bf16.mxu0 0
        %2907 = vmatmul.mubr.bf16.gmra.mrb[0].mxu0 %v1296
        %v2908 = vpop.f32.mrb[0].mxu0
        %v2909 = vadd.f32 %v2844, %v2908
        %v2910 = vpop.f32.mrb[0].mxu0
        %v2911 = vpop.f32.mrb[0].mxu0
        %v2912 = vadd.f32 %v2844, %v2911
        %v2913 = vpop.f32.mrb[0].mxu0
        %2914 = vdwg.mxu0
        %s2915 = scalar_lea.vmem %s958, 32
        %v2916 = vld [vmem:[%s2915] sm:$0xf]
        %v2917 = vld [vmem:[%s2915 + $0x4] sm:$0xf]
        %v2918 = vld [vmem:[%s2915 + $0x8] sm:$0xf]
        %v2919 = vld [vmem:[%s2915 + $0xc] sm:$0xf]
        %s2920 = scalar_lea.vmem %s962, 2
        %v2921 = vld [vmem:[%s2920] sm:$0x1]
        %v2923 = vlaneseq
        %v2924 = vshrl.u32 %v2923, 7
        %v2925 = vsub.s32 0, %v2924
        %v2926 = vrot.slane %v2921, %v2925
        %v2932 = vunpack.c.l.b16 %v2916
        %v2933 = vunpack.c.l.b16 %v2917
        %v2934 = vunpack.c.l.b16 %v2918
        %v2935 = vunpack.c.l.b16 %v2919
        %v2936 = vpack.c.b16 %v2933, %v2932
        %v2937 = vpack.c.b16 %v2935, %v2934
        %2940 = vmatprep.subr.bf16.mxu0 0
        %2941 = vmatpush1.bf16.msra.mxu0 %v2936
        %2942 = vmatprep.subr.bf16.mxu0 0
        %2943 = vmatpush1.bf16.msra.mxu0 %v2937
        %2944 = vmatprep.subr.bf16.mxu0 0
        %2945 = vmatpush1.bf16.msra.mxu0 0
        %2946 = vmatprep.subr.bf16.mxu0 0
        %2947 = vmatpush1.bf16.msra.mxu0 0
        %2948 = vmatprep.subr.bf16.mxu0 0
        %2949 = vmatpush1.bf16.msra.mxu0 0
        %2950 = vmatprep.subr.bf16.mxu0 0
        %2951 = vmatpush1.bf16.msra.mxu0 0
        %2952 = vmatprep.subr.bf16.mxu0 0
        %2953 = vmatpush1.bf16.msra.mxu0 0
        %2954 = vmatprep.subr.bf16.mxu0 0
        %2955 = vmatpush1.bf16.msra.mxu0 0
        %2956 = vmatprep.subr.bf16.mxu0 0
        %2957 = vmatpush1.bf16.msra.mxu0 0
        %2958 = vmatprep.subr.bf16.mxu0 0
        %2959 = vmatpush1.bf16.msra.mxu0 0
        %2960 = vmatprep.subr.bf16.mxu0 0
        %2961 = vmatpush1.bf16.msra.mxu0 0
        %2962 = vmatprep.subr.bf16.mxu0 0
        %2963 = vmatpush1.bf16.msra.mxu0 0
        %2964 = vmatprep.subr.bf16.mxu0 0
        %2965 = vmatpush1.bf16.msra.mxu0 0
        %2966 = vmatprep.subr.bf16.mxu0 0
        %2967 = vmatpush1.bf16.msra.mxu0 0
        %2968 = vmatprep.subr.bf16.mxu0 0
        %2969 = vmatpush1.bf16.msra.mxu0 0
        %2970 = vmatprep.subr.bf16.mxu0 0
        %2971 = vmatpush1.bf16.msra.mxu0 0
        %2972 = vmatprep.mubr.bf16.mxu0 0
        %2973 = vmatmul.mubr.bf16.gmra.mrb[0].mxu0 %v1290
        %v2974 = vpop.f32.mrb[0].mxu0
        %v2975 = vadd.f32 %v2926, %v2974
        %v2976 = vpop.f32.mrb[0].mxu0
        %v2977 = vpop.f32.mrb[0].mxu0
        %v2978 = vadd.f32 %v2926, %v2977
        %v2979 = vpop.f32.mrb[0].mxu0
        %2980 = vmatprep.mubr.bf16.mxu0 0
        %2981 = vmatmul.mubr.bf16.gmra.mrb[0].mxu0 %v1293
        %v2982 = vpop.f32.mrb[0].mxu0
        %v2983 = vadd.f32 %v2926, %v2982
        %v2984 = vpop.f32.mrb[0].mxu0
        %v2985 = vpop.f32.mrb[0].mxu0
        %v2986 = vadd.f32 %v2926, %v2985
        %v2987 = vpop.f32.mrb[0].mxu0
        %2988 = vmatprep.mubr.bf16.mxu0 0
        %2989 = vmatmul.mubr.bf16.gmra.mrb[0].mxu0 %v1296
        %v2990 = vpop.f32.mrb[0].mxu0
        %v2991 = vadd.f32 %v2926, %v2990
        %v2992 = vpop.f32.mrb[0].mxu0
        %v2993 = vpop.f32.mrb[0].mxu0
        %v2994 = vadd.f32 %v2926, %v2993
        %v2995 = vpop.f32.mrb[0].mxu0
        %2996 = vdwg.mxu0
        %s2997 = scalar_lea.vmem %s967, 32
        %v2998 = vld [vmem:[%s2997] sm:$0xf]
        %v2999 = vld [vmem:[%s2997 + $0x4] sm:$0xf]
        %v3000 = vld [vmem:[%s2997 + $0x8] sm:$0xf]
        %v3001 = vld [vmem:[%s2997 + $0xc] sm:$0xf]
        %s3002 = scalar_lea.vmem %s971, 2
        %v3003 = vld [vmem:[%s3002] sm:$0x1]
        %v3005 = vlaneseq
        %v3006 = vshrl.u32 %v3005, 7
        %v3007 = vsub.s32 0, %v3006
        %v3008 = vrot.slane %v3003, %v3007
        %v3014 = vunpack.c.l.b16 %v2998
        %v3015 = vunpack.c.l.b16 %v2999
        %v3016 = vunpack.c.l.b16 %v3000
        %v3017 = vunpack.c.l.b16 %v3001
        %v3018 = vpack.c.b16 %v3015, %v3014
        %v3019 = vpack.c.b16 %v3017, %v3016
        %3022 = vmatprep.subr.bf16.mxu0 0
        %3023 = vmatpush1.bf16.msra.mxu0 %v3018
        %3024 = vmatprep.subr.bf16.mxu0 0
        %3025 = vmatpush1.bf16.msra.mxu0 %v3019
        %3026 = vmatprep.subr.bf16.mxu0 0
        %3027 = vmatpush1.bf16.msra.mxu0 0
        %3028 = vmatprep.subr.bf16.mxu0 0
        %3029 = vmatpush1.bf16.msra.mxu0 0
        %3030 = vmatprep.subr.bf16.mxu0 0
        %3031 = vmatpush1.bf16.msra.mxu0 0
        %3032 = vmatprep.subr.bf16.mxu0 0
        %3033 = vmatpush1.bf16.msra.mxu0 0
        %3034 = vmatprep.subr.bf16.mxu0 0
        %3035 = vmatpush1.bf16.msra.mxu0 0
        %3036 = vmatprep.subr.bf16.mxu0 0
        %3037 = vmatpush1.bf16.msra.mxu0 0
        %3038 = vmatprep.subr.bf16.mxu0 0
        %3039 = vmatpush1.bf16.msra.mxu0 0
        %3040 = vmatprep.subr.bf16.mxu0 0
        %3041 = vmatpush1.bf16.msra.mxu0 0
        %3042 = vmatprep.subr.bf16.mxu0 0
        %3043 = vmatpush1.bf16.msra.mxu0 0
        %3044 = vmatprep.subr.bf16.mxu0 0
        %3045 = vmatpush1.bf16.msra.mxu0 0
        %3046 = vmatprep.subr.bf16.mxu0 0
        %3047 = vmatpush1.bf16.msra.mxu0 0
        %3048 = vmatprep.subr.bf16.mxu0 0
        %3049 = vmatpush1.bf16.msra.mxu0 0
        %3050 = vmatprep.subr.bf16.mxu0 0
        %3051 = vmatpush1.bf16.msra.mxu0 0
        %3052 = vmatprep.subr.bf16.mxu0 0
        %3053 = vmatpush1.bf16.msra.mxu0 0
        %3054 = vmatprep.mubr.bf16.mxu0 0
        %3055 = vmatmul.mubr.bf16.gmra.mrb[0].mxu0 %v1290
        %v3056 = vpop.f32.mrb[0].mxu0
        %v3057 = vadd.f32 %v3008, %v3056
        %v3058 = vpop.f32.mrb[0].mxu0
        %v3059 = vpop.f32.mrb[0].mxu0
        %v3060 = vadd.f32 %v3008, %v3059
        %v3061 = vpop.f32.mrb[0].mxu0
        %3062 = vmatprep.mubr.bf16.mxu0 0
        %3063 = vmatmul.mubr.bf16.gmra.mrb[0].mxu0 %v1293
        %v3064 = vpop.f32.mrb[0].mxu0
        %v3065 = vadd.f32 %v3008, %v3064
        %v3066 = vpop.f32.mrb[0].mxu0
        %v3067 = vpop.f32.mrb[0].mxu0
        %v3068 = vadd.f32 %v3008, %v3067
        %v3069 = vpop.f32.mrb[0].mxu0
        %3070 = vmatprep.mubr.bf16.mxu0 0
        %3071 = vmatmul.mubr.bf16.gmra.mrb[0].mxu0 %v1296
        %v3072 = vpop.f32.mrb[0].mxu0
        %v3073 = vadd.f32 %v3008, %v3072
        %v3074 = vpop.f32.mrb[0].mxu0
        %v3075 = vpop.f32.mrb[0].mxu0
        %v3076 = vadd.f32 %v3008, %v3075
        %v3077 = vpop.f32.mrb[0].mxu0
        %3078 = vdwg.mxu0
        %v3080 = vsel %vm1515, %v2893, 0
        %v3083 = vsel %vm1515, %v2896, 0
        %v3086 = vsel %vm1515, %v2901, 0
        %v3089 = vsel %vm1515, %v2975, 0
        %v3092 = vsel %vm1515, %v2978, 0
        %v3095 = vsel %vm1515, %v2983, 0
        %3097 = vmatprep.subr.mxu0 0.0
        %3098 = vmatpush1.xpose.msra.mxu0 %v3089
        %3099 = vmatprep.subr.mxu0 0.0
        %3100 = vmatpush1.xpose.msra.mxu0 %v3092
        %3101 = vmatprep.subr.mxu0 0.0
        %3102 = vmatpush1.xpose.msra.mxu0 %v3095
        %3103 = vmatprep.subr.mxu0 0.0
        %3104 = vmatpush1.xpose.msra.mxu0 0.0
        %3105 = vmatprep.subr.mxu0 0.0
        %3106 = vmatpush1.xpose.msra.mxu0 0.0
        %3107 = vmatprep.subr.mxu0 0.0
        %3108 = vmatpush1.xpose.msra.mxu0 0.0
        %3109 = vmatprep.subr.mxu0 0.0
        %3110 = vmatpush1.xpose.msra.mxu0 0.0
        %3111 = vmatprep.subr.mxu0 0.0
        %3112 = vmatpush1.xpose.msra.mxu0 0.0
        %3113 = vmatprep.subr.mxu0 0.0
        %3114 = vmatpush1.xpose.msra.mxu0 0.0
        %3115 = vmatprep.subr.mxu0 0.0
        %3116 = vmatpush1.xpose.msra.mxu0 0.0
        %3117 = vmatprep.subr.mxu0 0.0
        %3118 = vmatpush1.xpose.msra.mxu0 0.0
        %3119 = vmatprep.subr.mxu0 0.0
        %3120 = vmatpush1.xpose.msra.mxu0 0.0
        %3121 = vmatprep.subr.mxu0 0.0
        %3122 = vmatpush1.xpose.msra.mxu0 0.0
        %3123 = vmatprep.subr.mxu0 0.0
        %3124 = vmatpush1.xpose.msra.mxu0 0.0
        %3125 = vmatprep.subr.mxu0 0.0
        %3126 = vmatpush1.xpose.msra.mxu0 0.0
        %3127 = vmatprep.subr.mxu0 0.0
        %3128 = vmatpush1.xpose.msra.mxu0 0.0
        %3129 = vmatprep.subr.mxu0 0.0
        %3130 = vmatpush1.xpose.msra.mxu0 0.0
        %3131 = vmatprep.subr.mxu0 0.0
        %3132 = vmatpush1.xpose.msra.mxu0 0.0
        %3133 = vmatprep.subr.mxu0 0.0
        %3134 = vmatpush1.xpose.msra.mxu0 0.0
        %3135 = vmatprep.subr.mxu0 0.0
        %3136 = vmatpush1.xpose.msra.mxu0 0.0
        %3137 = vmatprep.subr.mxu0 0.0
        %3138 = vmatpush1.xpose.msra.mxu0 0.0
        %3139 = vmatprep.subr.mxu0 0.0
        %3140 = vmatpush1.xpose.msra.mxu0 0.0
        %3141 = vmatprep.subr.mxu0 0.0
        %3142 = vmatpush1.xpose.msra.mxu0 0.0
        %3143 = vmatprep.subr.mxu0 0.0
        %3144 = vmatpush1.xpose.msra.mxu0 0.0
        %3145 = vmatprep.subr.mxu0 0.0
        %3146 = vmatpush1.xpose.msra.mxu0 0.0
        %3147 = vmatprep.subr.mxu0 0.0
        %3148 = vmatpush1.xpose.msra.mxu0 0.0
        %3149 = vmatprep.subr.mxu0 0.0
        %3150 = vmatpush1.xpose.msra.mxu0 0.0
        %3151 = vmatprep.subr.mxu0 0.0
        %3152 = vmatpush1.xpose.msra.mxu0 0.0
        %3153 = vmatprep.subr.mxu0 0.0
        %3154 = vmatpush1.xpose.msra.mxu0 0.0
        %3155 = vmatprep.subr.mxu0 0.0
        %3156 = vmatpush1.xpose.msra.mxu0 0.0
        %3157 = vmatprep.subr.mxu0 0.0
        %3158 = vmatpush1.xpose.msra.mxu0 0.0
        %3159 = vmatprep.subr.mxu0 0.0
        %3160 = vmatpush1.xpose.msra.mxu0 0.0
        %3161 = vmatprep.mubr.f32.mxu0 0.0
        %3162 = vmatmul.mubr.f32.gmra.mrb[0].mxu0 %v3080
        %v3163 = vpop.f32.mrb[0].mxu0
        %v3164 = vadd.f32 0.0, %v3163
        %v3165 = vpop.f32.mrb[0].mxu0
        %3166 = vmatprep.mubr.f32.mxu0 0.0
        %3167 = vmatmul.mubr.f32.gmra.mrb[0].mxu0 %v3083
        %v3168 = vpop.f32.mrb[0].mxu0
        %v3169 = vadd.f32 0.0, %v3168
        %v3170 = vpop.f32.mrb[0].mxu0
        %3171 = vmatprep.mubr.f32.mxu0 0.0
        %3172 = vmatmul.mubr.f32.gmra.mrb[0].mxu0 %v3086
        %v3173 = vpop.f32.mrb[0].mxu0
        %v3174 = vadd.f32 0.0, %v3173
        %v3175 = vpop.f32.mrb[0].mxu0
        %3176 = vdwg.mxu0
        %v3178 = vsel %vm1515, %v2904, 0
        %v3181 = vsel %vm1515, %v2909, 0
        %v3184 = vsel %vm1515, %v2912, 0
        %v3187 = vsel %vm1515, %v2986, 0
        %v3190 = vsel %vm1515, %v2991, 0
        %v3193 = vsel %vm1515, %v2994, 0
        %3195 = vmatprep.subr.mxu0 0.0
        %3196 = vmatpush1.xpose.msra.mxu0 %v3187
        %3197 = vmatprep.subr.mxu0 0.0
        %3198 = vmatpush1.xpose.msra.mxu0 %v3190
        %3199 = vmatprep.subr.mxu0 0.0
        %3200 = vmatpush1.xpose.msra.mxu0 %v3193
        %3201 = vmatprep.subr.mxu0 0.0
        %3202 = vmatpush1.xpose.msra.mxu0 0.0
        %3203 = vmatprep.subr.mxu0 0.0
        %3204 = vmatpush1.xpose.msra.mxu0 0.0
        %3205 = vmatprep.subr.mxu0 0.0
        %3206 = vmatpush1.xpose.msra.mxu0 0.0
        %3207 = vmatprep.subr.mxu0 0.0
        %3208 = vmatpush1.xpose.msra.mxu0 0.0
        %3209 = vmatprep.subr.mxu0 0.0
        %3210 = vmatpush1.xpose.msra.mxu0 0.0
        %3211 = vmatprep.subr.mxu0 0.0
        %3212 = vmatpush1.xpose.msra.mxu0 0.0
        %3213 = vmatprep.subr.mxu0 0.0
        %3214 = vmatpush1.xpose.msra.mxu0 0.0
        %3215 = vmatprep.subr.mxu0 0.0
        %3216 = vmatpush1.xpose.msra.mxu0 0.0
        %3217 = vmatprep.subr.mxu0 0.0
        %3218 = vmatpush1.xpose.msra.mxu0 0.0
        %3219 = vmatprep.subr.mxu0 0.0
        %3220 = vmatpush1.xpose.msra.mxu0 0.0
        %3221 = vmatprep.subr.mxu0 0.0
        %3222 = vmatpush1.xpose.msra.mxu0 0.0
        %3223 = vmatprep.subr.mxu0 0.0
        %3224 = vmatpush1.xpose.msra.mxu0 0.0
        %3225 = vmatprep.subr.mxu0 0.0
        %3226 = vmatpush1.xpose.msra.mxu0 0.0
        %3227 = vmatprep.subr.mxu0 0.0
        %3228 = vmatpush1.xpose.msra.mxu0 0.0
        %3229 = vmatprep.subr.mxu0 0.0
        %3230 = vmatpush1.xpose.msra.mxu0 0.0
        %3231 = vmatprep.subr.mxu0 0.0
        %3232 = vmatpush1.xpose.msra.mxu0 0.0
        %3233 = vmatprep.subr.mxu0 0.0
        %3234 = vmatpush1.xpose.msra.mxu0 0.0
        %3235 = vmatprep.subr.mxu0 0.0
        %3236 = vmatpush1.xpose.msra.mxu0 0.0
        %3237 = vmatprep.subr.mxu0 0.0
        %3238 = vmatpush1.xpose.msra.mxu0 0.0
        %3239 = vmatprep.subr.mxu0 0.0
        %3240 = vmatpush1.xpose.msra.mxu0 0.0
        %3241 = vmatprep.subr.mxu0 0.0
        %3242 = vmatpush1.xpose.msra.mxu0 0.0
        %3243 = vmatprep.subr.mxu0 0.0
        %3244 = vmatpush1.xpose.msra.mxu0 0.0
        %3245 = vmatprep.subr.mxu0 0.0
        %3246 = vmatpush1.xpose.msra.mxu0 0.0
        %3247 = vmatprep.subr.mxu0 0.0
        %3248 = vmatpush1.xpose.msra.mxu0 0.0
        %3249 = vmatprep.subr.mxu0 0.0
        %3250 = vmatpush1.xpose.msra.mxu0 0.0
        %3251 = vmatprep.subr.mxu0 0.0
        %3252 = vmatpush1.xpose.msra.mxu0 0.0
        %3253 = vmatprep.subr.mxu0 0.0
        %3254 = vmatpush1.xpose.msra.mxu0 0.0
        %3255 = vmatprep.subr.mxu0 0.0
        %3256 = vmatpush1.xpose.msra.mxu0 0.0
        %3257 = vmatprep.subr.mxu0 0.0
        %3258 = vmatpush1.xpose.msra.mxu0 0.0
        %3259 = vmatprep.mubr.f32.mxu0 0.0
        %3260 = vmatmul.mubr.f32.gmra.mrb[0].mxu0 %v3178
        %v3261 = vpop.f32.mrb[0].mxu0
        %v3262 = vadd.f32 0.0, %v3261
        %v3263 = vpop.f32.mrb[0].mxu0
        %3264 = vmatprep.mubr.f32.mxu0 0.0
        %3265 = vmatmul.mubr.f32.gmra.mrb[0].mxu0 %v3181
        %v3266 = vpop.f32.mrb[0].mxu0
        %v3267 = vadd.f32 0.0, %v3266
        %v3268 = vpop.f32.mrb[0].mxu0
        %3269 = vmatprep.mubr.f32.mxu0 0.0
        %3270 = vmatmul.mubr.f32.gmra.mrb[0].mxu0 %v3184
        %v3271 = vpop.f32.mrb[0].mxu0
        %v3272 = vadd.f32 0.0, %v3271
        %v3273 = vpop.f32.mrb[0].mxu0
        %3274 = vdwg.mxu0
        %v3275 = vmul.f32 %v3164, 0.35355338
        %v3276 = vmul.f32 %v3169, 0.35355338
        %v3277 = vmul.f32 %v3174, 0.35355338
        %v3278 = vmul.f32 %v3262, 0.35355338
        %v3279 = vmul.f32 %v3267, 0.35355338
        %v3280 = vmul.f32 %v3272, 0.35355338
        %v3281 = vadd.f32 %v3275, %v1262
        %v3282 = vadd.f32 %v3276, %v1263
        %v3283 = vadd.f32 %v3277, %v1264
        %v3284 = vadd.f32 %v3278, %v1262
        %v3285 = vadd.f32 %v3279, %v1263
        %v3286 = vadd.f32 %v3280, %v1264
        %v3287 = vsel %vm1724, %v3281, -inf
        %3288 = vmax.xlane.f32.xlu0 %v3287
        %v3289 = vpop.xlane.xlu0 %3288
        %v3290 = vsel %vm1724, %v3282, -inf
        %3291 = vmax.xlane.f32.xlu0 %v3290
        %v3292 = vpop.xlane.xlu0 %3291
        %v3293 = vsel %vm1724, %v3283, -inf
        %3294 = vmax.xlane.f32.xlu0 %v3293
        %v3295 = vpop.xlane.xlu0 %3294
        %v3296 = vsel %vm1724, %v3284, -inf
        %3297 = vmax.xlane.f32.xlu0 %v3296
        %v3298 = vpop.xlane.xlu0 %3297
        %v3299 = vsel %vm1724, %v3285, -inf
        %3300 = vmax.xlane.f32.xlu0 %v3299
        %v3301 = vpop.xlane.xlu0 %3300
        %v3302 = vsel %vm1724, %v3286, -inf
        %3303 = vmax.xlane.f32.xlu0 %v3302
        %v3304 = vpop.xlane.xlu0 %3303
        %v3305 = vsub.f32 %v3281, %v3289
        %v3306 = vsub.f32 %v3282, %v3292
        %v3307 = vsub.f32 %v3283, %v3295
        %v3308 = vsub.f32 %v3284, %v3298
        %v3309 = vsub.f32 %v3285, %v3301
        %v3310 = vsub.f32 %v3286, %v3304
        %v3311 = vmul.f32 %v3305, 1.442695
        %v3312 = vpow.pop %v3311
        %v3313 = vmul.f32 %v3306, 1.442695
        %v3314 = vpow.pop %v3313
        %v3315 = vmul.f32 %v3307, 1.442695
        %v3316 = vpow.pop %v3315
        %v3317 = vmul.f32 %v3308, 1.442695
        %v3318 = vpow.pop %v3317
        %v3319 = vmul.f32 %v3309, 1.442695
        %v3320 = vpow.pop %v3319
        %v3321 = vmul.f32 %v3310, 1.442695
        %v3322 = vpow.pop %v3321
        %v3323 = vsel %vm1724, %v3312, 0.0
        %3324 = vadd.xlane.f32.xlu0 %v3323
        %v3325 = vpop.xlane.xlu0 %3324
        %v3326 = vsel %vm1724, %v3314, 0.0
        %3327 = vadd.xlane.f32.xlu0 %v3326
        %v3328 = vpop.xlane.xlu0 %3327
        %v3329 = vsel %vm1724, %v3316, 0.0
        %3330 = vadd.xlane.f32.xlu0 %v3329
        %v3331 = vpop.xlane.xlu0 %3330
        %v3332 = vsel %vm1724, %v3318, 0.0
        %3333 = vadd.xlane.f32.xlu0 %v3332
        %v3334 = vpop.xlane.xlu0 %3333
        %v3335 = vsel %vm1724, %v3320, 0.0
        %3336 = vadd.xlane.f32.xlu0 %v3335
        %v3337 = vpop.xlane.xlu0 %3336
        %v3338 = vsel %vm1724, %v3322, 0.0
        %3339 = vadd.xlane.f32.xlu0 %v3338
        %v3340 = vpop.xlane.xlu0 %3339
        %v3341 = vrcp.pop %v3325
        %v3342 = vrcp.pop %v3328
        %v3343 = vrcp.pop %v3331
        %v3344 = vrcp.pop %v3334
        %v3345 = vrcp.pop %v3337
        %v3346 = vrcp.pop %v3340
        %v3347 = vmul.f32 %v3312, %v3341
        %v3348 = vmul.f32 %v3314, %v3342
        %v3349 = vmul.f32 %v3316, %v3343
        %v3350 = vmul.f32 %v3318, %v3344
        %v3351 = vmul.f32 %v3320, %v3345
        %v3352 = vmul.f32 %v3322, %v3346
        %v3354 = vsel %vm1724, %v3347, 0
        %v3357 = vsel %vm1724, %v3348, 0
        %v3360 = vsel %vm1724, %v3349, 0
        %3362 = vmatprep.subr.mxu0 0.0
        %3363 = vmatpush1.msra.mxu0 %v3057
        %3364 = vmatprep.subr.mxu0 0.0
        %3365 = vmatpush1.msra.mxu0 %v3060
        %3366 = vmatprep.subr.mxu0 0.0
        %3367 = vmatpush1.msra.mxu0 %v3065
        %3368 = vmatprep.subr.mxu0 0.0
        %3369 = vmatpush1.msra.mxu0 0.0
        %3370 = vmatprep.subr.mxu0 0.0
        %3371 = vmatpush1.msra.mxu0 0.0
        %3372 = vmatprep.subr.mxu0 0.0
        %3373 = vmatpush1.msra.mxu0 0.0
        %3374 = vmatprep.subr.mxu0 0.0
        %3375 = vmatpush1.msra.mxu0 0.0
        %3376 = vmatprep.subr.mxu0 0.0
        %3377 = vmatpush1.msra.mxu0 0.0
        %3378 = vmatprep.subr.mxu0 0.0
        %3379 = vmatpush1.msra.mxu0 0.0
        %3380 = vmatprep.subr.mxu0 0.0
        %3381 = vmatpush1.msra.mxu0 0.0
        %3382 = vmatprep.subr.mxu0 0.0
        %3383 = vmatpush1.msra.mxu0 0.0
        %3384 = vmatprep.subr.mxu0 0.0
        %3385 = vmatpush1.msra.mxu0 0.0
        %3386 = vmatprep.subr.mxu0 0.0
        %3387 = vmatpush1.msra.mxu0 0.0
        %3388 = vmatprep.subr.mxu0 0.0
        %3389 = vmatpush1.msra.mxu0 0.0
        %3390 = vmatprep.subr.mxu0 0.0
        %3391 = vmatpush1.msra.mxu0 0.0
        %3392 = vmatprep.subr.mxu0 0.0
        %3393 = vmatpush1.msra.mxu0 0.0
        %3394 = vmatprep.subr.mxu0 0.0
        %3395 = vmatpush1.msra.mxu0 0.0
        %3396 = vmatprep.subr.mxu0 0.0
        %3397 = vmatpush1.msra.mxu0 0.0
        %3398 = vmatprep.subr.mxu0 0.0
        %3399 = vmatpush1.msra.mxu0 0.0
        %3400 = vmatprep.subr.mxu0 0.0
        %3401 = vmatpush1.msra.mxu0 0.0
        %3402 = vmatprep.subr.mxu0 0.0
        %3403 = vmatpush1.msra.mxu0 0.0
        %3404 = vmatprep.subr.mxu0 0.0
        %3405 = vmatpush1.msra.mxu0 0.0
        %3406 = vmatprep.subr.mxu0 0.0
        %3407 = vmatpush1.msra.mxu0 0.0
        %3408 = vmatprep.subr.mxu0 0.0
        %3409 = vmatpush1.msra.mxu0 0.0
        %3410 = vmatprep.subr.mxu0 0.0
        %3411 = vmatpush1.msra.mxu0 0.0
        %3412 = vmatprep.subr.mxu0 0.0
        %3413 = vmatpush1.msra.mxu0 0.0
        %3414 = vmatprep.subr.mxu0 0.0
        %3415 = vmatpush1.msra.mxu0 0.0
        %3416 = vmatprep.subr.mxu0 0.0
        %3417 = vmatpush1.msra.mxu0 0.0
        %3418 = vmatprep.subr.mxu0 0.0
        %3419 = vmatpush1.msra.mxu0 0.0
        %3420 = vmatprep.subr.mxu0 0.0
        %3421 = vmatpush1.msra.mxu0 0.0
        %3422 = vmatprep.subr.mxu0 0.0
        %3423 = vmatpush1.msra.mxu0 0.0
        %3424 = vmatprep.subr.mxu0 0.0
        %3425 = vmatpush1.msra.mxu0 0.0
        %3426 = vmatprep.mubr.f32.mxu0 0.0
        %3427 = vmatmul.mubr.f32.gmra.mrb[0].mxu0 %v3354
        %v3428 = vpop.f32.mrb[0].mxu0
        %v3429 = vadd.f32 0.0, %v3428
        %v3430 = vpop.f32.mrb[0].mxu0
        %3431 = vmatprep.mubr.f32.mxu0 0.0
        %3432 = vmatmul.mubr.f32.gmra.mrb[0].mxu0 %v3357
        %v3433 = vpop.f32.mrb[0].mxu0
        %v3434 = vadd.f32 0.0, %v3433
        %v3435 = vpop.f32.mrb[0].mxu0
        %3436 = vmatprep.mubr.f32.mxu0 0.0
        %3437 = vmatmul.mubr.f32.gmra.mrb[0].mxu0 %v3360
        %v3438 = vpop.f32.mrb[0].mxu0
        %v3439 = vadd.f32 0.0, %v3438
        %v3440 = vpop.f32.mrb[0].mxu0
        %3441 = vdwg.mxu0
        %v3443 = vsel %vm1724, %v3350, 0
        %v3446 = vsel %vm1724, %v3351, 0
        %v3449 = vsel %vm1724, %v3352, 0
        %3451 = vmatprep.subr.mxu0 0.0
        %3452 = vmatpush1.msra.mxu0 %v3068
        %3453 = vmatprep.subr.mxu0 0.0
        %3454 = vmatpush1.msra.mxu0 %v3073
        %3455 = vmatprep.subr.mxu0 0.0
        %3456 = vmatpush1.msra.mxu0 %v3076
        %3457 = vmatprep.subr.mxu0 0.0
        %3458 = vmatpush1.msra.mxu0 0.0
        %3459 = vmatprep.subr.mxu0 0.0
        %3460 = vmatpush1.msra.mxu0 0.0
        %3461 = vmatprep.subr.mxu0 0.0
        %3462 = vmatpush1.msra.mxu0 0.0
        %3463 = vmatprep.subr.mxu0 0.0
        %3464 = vmatpush1.msra.mxu0 0.0
        %3465 = vmatprep.subr.mxu0 0.0
        %3466 = vmatpush1.msra.mxu0 0.0
        %3467 = vmatprep.subr.mxu0 0.0
        %3468 = vmatpush1.msra.mxu0 0.0
        %3469 = vmatprep.subr.mxu0 0.0
        %3470 = vmatpush1.msra.mxu0 0.0
        %3471 = vmatprep.subr.mxu0 0.0
        %3472 = vmatpush1.msra.mxu0 0.0
        %3473 = vmatprep.subr.mxu0 0.0
        %3474 = vmatpush1.msra.mxu0 0.0
        %3475 = vmatprep.subr.mxu0 0.0
        %3476 = vmatpush1.msra.mxu0 0.0
        %3477 = vmatprep.subr.mxu0 0.0
        %3478 = vmatpush1.msra.mxu0 0.0
        %3479 = vmatprep.subr.mxu0 0.0
        %3480 = vmatpush1.msra.mxu0 0.0
        %3481 = vmatprep.subr.mxu0 0.0
        %3482 = vmatpush1.msra.mxu0 0.0
        %3483 = vmatprep.subr.mxu0 0.0
        %3484 = vmatpush1.msra.mxu0 0.0
        %3485 = vmatprep.subr.mxu0 0.0
        %3486 = vmatpush1.msra.mxu0 0.0
        %3487 = vmatprep.subr.mxu0 0.0
        %3488 = vmatpush1.msra.mxu0 0.0
        %3489 = vmatprep.subr.mxu0 0.0
        %3490 = vmatpush1.msra.mxu0 0.0
        %3491 = vmatprep.subr.mxu0 0.0
        %3492 = vmatpush1.msra.mxu0 0.0
        %3493 = vmatprep.subr.mxu0 0.0
        %3494 = vmatpush1.msra.mxu0 0.0
        %3495 = vmatprep.subr.mxu0 0.0
        %3496 = vmatpush1.msra.mxu0 0.0
        %3497 = vmatprep.subr.mxu0 0.0
        %3498 = vmatpush1.msra.mxu0 0.0
        %3499 = vmatprep.subr.mxu0 0.0
        %3500 = vmatpush1.msra.mxu0 0.0
        %3501 = vmatprep.subr.mxu0 0.0
        %3502 = vmatpush1.msra.mxu0 0.0
        %3503 = vmatprep.subr.mxu0 0.0
        %3504 = vmatpush1.msra.mxu0 0.0
        %3505 = vmatprep.subr.mxu0 0.0
        %3506 = vmatpush1.msra.mxu0 0.0
        %3507 = vmatprep.subr.mxu0 0.0
        %3508 = vmatpush1.msra.mxu0 0.0
        %3509 = vmatprep.subr.mxu0 0.0
        %3510 = vmatpush1.msra.mxu0 0.0
        %3511 = vmatprep.subr.mxu0 0.0
        %3512 = vmatpush1.msra.mxu0 0.0
        %3513 = vmatprep.subr.mxu0 0.0
        %3514 = vmatpush1.msra.mxu0 0.0
        %3515 = vmatprep.mubr.f32.mxu0 0.0
        %3516 = vmatmul.mubr.f32.gmra.mrb[0].mxu0 %v3443
        %v3517 = vpop.f32.mrb[0].mxu0
        %v3518 = vadd.f32 0.0, %v3517
        %v3519 = vpop.f32.mrb[0].mxu0
        %3520 = vmatprep.mubr.f32.mxu0 0.0
        %3521 = vmatmul.mubr.f32.gmra.mrb[0].mxu0 %v3446
        %v3522 = vpop.f32.mrb[0].mxu0
        %v3523 = vadd.f32 0.0, %v3522
        %v3524 = vpop.f32.mrb[0].mxu0
        %3525 = vmatprep.mubr.f32.mxu0 0.0
        %3526 = vmatmul.mubr.f32.gmra.mrb[0].mxu0 %v3449
        %v3527 = vpop.f32.mrb[0].mxu0
        %v3528 = vadd.f32 0.0, %v3527
        %v3529 = vpop.f32.mrb[0].mxu0
        %3530 = vdwg.mxu0
        %v3531 = vpack.c.bf16 %v3434, %v3429
        %v3532 = vpack.c.bf16 %v3518, %v3439
        %v3533 = vpack.c.bf16 %v3528, %v3523
        %s3534 = scalar_lea.vmem %s976, 8
        %v3535 = vld [vmem:[%s3534] sm:$0xf]
        %v3537 = vsel %vm1515, %v3531, 0
        %v3540 = vsel %vm1515, %v3532, 0
        %v3543 = vsel %vm1515, %v3533, 0
        %v3546 = vsel %vm1982, %v3535, 0
        %3548 = vmatprep.subr.bf16.mxu0 0
        %3549 = vmatpush1.bf16.msra.mxu0 %v3546
        %3550 = vmatprep.subr.bf16.mxu0 0
        %3551 = vmatpush1.bf16.msra.mxu0 0
        %3552 = vmatprep.subr.bf16.mxu0 0
        %3553 = vmatpush1.bf16.msra.mxu0 0
        %3554 = vmatprep.subr.bf16.mxu0 0
        %3555 = vmatpush1.bf16.msra.mxu0 0
        %3556 = vmatprep.subr.bf16.mxu0 0
        %3557 = vmatpush1.bf16.msra.mxu0 0
        %3558 = vmatprep.subr.bf16.mxu0 0
        %3559 = vmatpush1.bf16.msra.mxu0 0
        %3560 = vmatprep.subr.bf16.mxu0 0
        %3561 = vmatpush1.bf16.msra.mxu0 0
        %3562 = vmatprep.subr.bf16.mxu0 0
        %3563 = vmatpush1.bf16.msra.mxu0 0
        %3564 = vmatprep.subr.bf16.mxu0 0
        %3565 = vmatpush1.bf16.msra.mxu0 0
        %3566 = vmatprep.subr.bf16.mxu0 0
        %3567 = vmatpush1.bf16.msra.mxu0 0
        %3568 = vmatprep.subr.bf16.mxu0 0
        %3569 = vmatpush1.bf16.msra.mxu0 0
        %3570 = vmatprep.subr.bf16.mxu0 0
        %3571 = vmatpush1.bf16.msra.mxu0 0
        %3572 = vmatprep.subr.bf16.mxu0 0
        %3573 = vmatpush1.bf16.msra.mxu0 0
        %3574 = vmatprep.subr.bf16.mxu0 0
        %3575 = vmatpush1.bf16.msra.mxu0 0
        %3576 = vmatprep.subr.bf16.mxu0 0
        %3577 = vmatpush1.bf16.msra.mxu0 0
        %3578 = vmatprep.subr.bf16.mxu0 0
        %3579 = vmatpush1.bf16.msra.mxu0 0
        %3580 = vmatprep.mubr.bf16.mxu0 0
        %3581 = vmatmul.mubr.bf16.gmra.mrb[0].mxu0 %v3537
        %v3582 = vpop.f32.mrb[0].mxu0
        %v3583 = vadd.f32 0.0, %v3582
        %v3584 = vpop.f32.mrb[0].mxu0
        %v3585 = vpop.f32.mrb[0].mxu0
        %v3586 = vadd.f32 0.0, %v3585
        %v3587 = vpop.f32.mrb[0].mxu0
        %3588 = vmatprep.mubr.bf16.mxu0 0
        %3589 = vmatmul.mubr.bf16.gmra.mrb[0].mxu0 %v3540
        %v3590 = vpop.f32.mrb[0].mxu0
        %v3591 = vadd.f32 0.0, %v3590
        %v3592 = vpop.f32.mrb[0].mxu0
        %v3593 = vpop.f32.mrb[0].mxu0
        %v3594 = vadd.f32 0.0, %v3593
        %v3595 = vpop.f32.mrb[0].mxu0
        %3596 = vmatprep.mubr.bf16.mxu0 0
        %3597 = vmatmul.mubr.bf16.gmra.mrb[0].mxu0 %v3543
        %v3598 = vpop.f32.mrb[0].mxu0
        %v3599 = vadd.f32 0.0, %v3598
        %v3600 = vpop.f32.mrb[0].mxu0
        %v3601 = vpop.f32.mrb[0].mxu0
        %v3602 = vadd.f32 0.0, %v3601
        %v3603 = vpop.f32.mrb[0].mxu0
        %3604 = vdwg.mxu0
        %v3605 = vadd.f32 %v2827, %v3583
        %v3606 = vadd.f32 %v2828, %v3586
        %v3607 = vadd.f32 %v2829, %v3591
        %v3608 = vadd.f32 %v2830, %v3594
        %v3609 = vadd.f32 %v2831, %v3599
        %v3610 = vadd.f32 %v2832, %v3602
        %s3611 = scalar_lea.vmem %s949, 48
        %v3612 = vld [vmem:[%s3611] sm:$0xf]
        %v3613 = vld [vmem:[%s3611 + $0x4] sm:$0xf]
        %v3614 = vld [vmem:[%s3611 + $0x8] sm:$0xf]
        %v3615 = vld [vmem:[%s3611 + $0xc] sm:$0xf]
        %s3616 = scalar_lea.vmem %s953, 3
        %v3617 = vld [vmem:[%s3616] sm:$0x1]
        %v3619 = vlaneseq
        %v3620 = vshrl.u32 %v3619, 7
        %v3621 = vsub.s32 0, %v3620
        %v3622 = vrot.slane %v3617, %v3621
        %v3628 = vunpack.c.l.b16 %v3612
        %v3629 = vunpack.c.l.b16 %v3613
        %v3630 = vunpack.c.l.b16 %v3614
        %v3631 = vunpack.c.l.b16 %v3615
        %v3632 = vpack.c.b16 %v3629, %v3628
        %v3633 = vpack.c.b16 %v3631, %v3630
        %3636 = vmatprep.subr.bf16.mxu0 0
        %3637 = vmatpush1.bf16.msra.mxu0 %v3632
        %3638 = vmatprep.subr.bf16.mxu0 0
        %3639 = vmatpush1.bf16.msra.mxu0 %v3633
        %3640 = vmatprep.subr.bf16.mxu0 0
        %3641 = vmatpush1.bf16.msra.mxu0 0
        %3642 = vmatprep.subr.bf16.mxu0 0
        %3643 = vmatpush1.bf16.msra.mxu0 0
        %3644 = vmatprep.subr.bf16.mxu0 0
        %3645 = vmatpush1.bf16.msra.mxu0 0
        %3646 = vmatprep.subr.bf16.mxu0 0
        %3647 = vmatpush1.bf16.msra.mxu0 0
        %3648 = vmatprep.subr.bf16.mxu0 0
        %3649 = vmatpush1.bf16.msra.mxu0 0
        %3650 = vmatprep.subr.bf16.mxu0 0
        %3651 = vmatpush1.bf16.msra.mxu0 0
        %3652 = vmatprep.subr.bf16.mxu0 0
        %3653 = vmatpush1.bf16.msra.mxu0 0
        %3654 = vmatprep.subr.bf16.mxu0 0
        %3655 = vmatpush1.bf16.msra.mxu0 0
        %3656 = vmatprep.subr.bf16.mxu0 0
        %3657 = vmatpush1.bf16.msra.mxu0 0
        %3658 = vmatprep.subr.bf16.mxu0 0
        %3659 = vmatpush1.bf16.msra.mxu0 0
        %3660 = vmatprep.subr.bf16.mxu0 0
        %3661 = vmatpush1.bf16.msra.mxu0 0
        %3662 = vmatprep.subr.bf16.mxu0 0
        %3663 = vmatpush1.bf16.msra.mxu0 0
        %3664 = vmatprep.subr.bf16.mxu0 0
        %3665 = vmatpush1.bf16.msra.mxu0 0
        %3666 = vmatprep.subr.bf16.mxu0 0
        %3667 = vmatpush1.bf16.msra.mxu0 0
        %3668 = vmatprep.mubr.bf16.mxu0 0
        %3669 = vmatmul.mubr.bf16.gmra.mrb[0].mxu0 %v1290
        %v3670 = vpop.f32.mrb[0].mxu0
        %v3671 = vadd.f32 %v3622, %v3670
        %v3672 = vpop.f32.mrb[0].mxu0
        %v3673 = vpop.f32.mrb[0].mxu0
        %v3674 = vadd.f32 %v3622, %v3673
        %v3675 = vpop.f32.mrb[0].mxu0
        %3676 = vmatprep.mubr.bf16.mxu0 0
        %3677 = vmatmul.mubr.bf16.gmra.mrb[0].mxu0 %v1293
        %v3678 = vpop.f32.mrb[0].mxu0
        %v3679 = vadd.f32 %v3622, %v3678
        %v3680 = vpop.f32.mrb[0].mxu0
        %v3681 = vpop.f32.mrb[0].mxu0
        %v3682 = vadd.f32 %v3622, %v3681
        %v3683 = vpop.f32.mrb[0].mxu0
        %3684 = vmatprep.mubr.bf16.mxu0 0
        %3685 = vmatmul.mubr.bf16.gmra.mrb[0].mxu0 %v1296
        %v3686 = vpop.f32.mrb[0].mxu0
        %v3687 = vadd.f32 %v3622, %v3686
        %v3688 = vpop.f32.mrb[0].mxu0
        %v3689 = vpop.f32.mrb[0].mxu0
        %v3690 = vadd.f32 %v3622, %v3689
        %v3691 = vpop.f32.mrb[0].mxu0
        %3692 = vdwg.mxu0
        %s3693 = scalar_lea.vmem %s958, 48
        %v3694 = vld [vmem:[%s3693] sm:$0xf]
        %v3695 = vld [vmem:[%s3693 + $0x4] sm:$0xf]
        %v3696 = vld [vmem:[%s3693 + $0x8] sm:$0xf]
        %v3697 = vld [vmem:[%s3693 + $0xc] sm:$0xf]
        %s3698 = scalar_lea.vmem %s962, 3
        %v3699 = vld [vmem:[%s3698] sm:$0x1]
        %v3701 = vlaneseq
        %v3702 = vshrl.u32 %v3701, 7
        %v3703 = vsub.s32 0, %v3702
        %v3704 = vrot.slane %v3699, %v3703
        %v3710 = vunpack.c.l.b16 %v3694
        %v3711 = vunpack.c.l.b16 %v3695
        %v3712 = vunpack.c.l.b16 %v3696
        %v3713 = vunpack.c.l.b16 %v3697
        %v3714 = vpack.c.b16 %v3711, %v3710
        %v3715 = vpack.c.b16 %v3713, %v3712
        %3718 = vmatprep.subr.bf16.mxu0 0
        %3719 = vmatpush1.bf16.msra.mxu0 %v3714
        %3720 = vmatprep.subr.bf16.mxu0 0
        %3721 = vmatpush1.bf16.msra.mxu0 %v3715
        %3722 = vmatprep.subr.bf16.mxu0 0
        %3723 = vmatpush1.bf16.msra.mxu0 0
        %3724 = vmatprep.subr.bf16.mxu0 0
        %3725 = vmatpush1.bf16.msra.mxu0 0
        %3726 = vmatprep.subr.bf16.mxu0 0
        %3727 = vmatpush1.bf16.msra.mxu0 0
        %3728 = vmatprep.subr.bf16.mxu0 0
        %3729 = vmatpush1.bf16.msra.mxu0 0
        %3730 = vmatprep.subr.bf16.mxu0 0
        %3731 = vmatpush1.bf16.msra.mxu0 0
        %3732 = vmatprep.subr.bf16.mxu0 0
        %3733 = vmatpush1.bf16.msra.mxu0 0
        %3734 = vmatprep.subr.bf16.mxu0 0
        %3735 = vmatpush1.bf16.msra.mxu0 0
        %3736 = vmatprep.subr.bf16.mxu0 0
        %3737 = vmatpush1.bf16.msra.mxu0 0
        %3738 = vmatprep.subr.bf16.mxu0 0
        %3739 = vmatpush1.bf16.msra.mxu0 0
        %3740 = vmatprep.subr.bf16.mxu0 0
        %3741 = vmatpush1.bf16.msra.mxu0 0
        %3742 = vmatprep.subr.bf16.mxu0 0
        %3743 = vmatpush1.bf16.msra.mxu0 0
        %3744 = vmatprep.subr.bf16.mxu0 0
        %3745 = vmatpush1.bf16.msra.mxu0 0
        %3746 = vmatprep.subr.bf16.mxu0 0
        %3747 = vmatpush1.bf16.msra.mxu0 0
        %3748 = vmatprep.subr.bf16.mxu0 0
        %3749 = vmatpush1.bf16.msra.mxu0 0
        %3750 = vmatprep.mubr.bf16.mxu0 0
        %3751 = vmatmul.mubr.bf16.gmra.mrb[0].mxu0 %v1290
        %v3752 = vpop.f32.mrb[0].mxu0
        %v3753 = vadd.f32 %v3704, %v3752
        %v3754 = vpop.f32.mrb[0].mxu0
        %v3755 = vpop.f32.mrb[0].mxu0
        %v3756 = vadd.f32 %v3704, %v3755
        %v3757 = vpop.f32.mrb[0].mxu0
        %3758 = vmatprep.mubr.bf16.mxu0 0
        %3759 = vmatmul.mubr.bf16.gmra.mrb[0].mxu0 %v1293
        %v3760 = vpop.f32.mrb[0].mxu0
        %v3761 = vadd.f32 %v3704, %v3760
        %v3762 = vpop.f32.mrb[0].mxu0
        %v3763 = vpop.f32.mrb[0].mxu0
        %v3764 = vadd.f32 %v3704, %v3763
        %v3765 = vpop.f32.mrb[0].mxu0
        %3766 = vmatprep.mubr.bf16.mxu0 0
        %3767 = vmatmul.mubr.bf16.gmra.mrb[0].mxu0 %v1296
        %v3768 = vpop.f32.mrb[0].mxu0
        %v3769 = vadd.f32 %v3704, %v3768
        %v3770 = vpop.f32.mrb[0].mxu0
        %v3771 = vpop.f32.mrb[0].mxu0
        %v3772 = vadd.f32 %v3704, %v3771
        %v3773 = vpop.f32.mrb[0].mxu0
        %3774 = vdwg.mxu0
        %s3775 = scalar_lea.vmem %s967, 48
        %v3776 = vld [vmem:[%s3775] sm:$0xf]
        %v3777 = vld [vmem:[%s3775 + $0x4] sm:$0xf]
        %v3778 = vld [vmem:[%s3775 + $0x8] sm:$0xf]
        %v3779 = vld [vmem:[%s3775 + $0xc] sm:$0xf]
        %s3780 = scalar_lea.vmem %s971, 3
        %v3781 = vld [vmem:[%s3780] sm:$0x1]
        %v3783 = vlaneseq
        %v3784 = vshrl.u32 %v3783, 7
        %v3785 = vsub.s32 0, %v3784
        %v3786 = vrot.slane %v3781, %v3785
        %v3792 = vunpack.c.l.b16 %v3776
        %v3793 = vunpack.c.l.b16 %v3777
        %v3794 = vunpack.c.l.b16 %v3778
        %v3795 = vunpack.c.l.b16 %v3779
        %v3796 = vpack.c.b16 %v3793, %v3792
        %v3797 = vpack.c.b16 %v3795, %v3794
        %3800 = vmatprep.subr.bf16.mxu0 0
        %3801 = vmatpush1.bf16.msra.mxu0 %v3796
        %3802 = vmatprep.subr.bf16.mxu0 0
        %3803 = vmatpush1.bf16.msra.mxu0 %v3797
        %3804 = vmatprep.subr.bf16.mxu0 0
        %3805 = vmatpush1.bf16.msra.mxu0 0
        %3806 = vmatprep.subr.bf16.mxu0 0
        %3807 = vmatpush1.bf16.msra.mxu0 0
        %3808 = vmatprep.subr.bf16.mxu0 0
        %3809 = vmatpush1.bf16.msra.mxu0 0
        %3810 = vmatprep.subr.bf16.mxu0 0
        %3811 = vmatpush1.bf16.msra.mxu0 0
        %3812 = vmatprep.subr.bf16.mxu0 0
        %3813 = vmatpush1.bf16.msra.mxu0 0
        %3814 = vmatprep.subr.bf16.mxu0 0
        %3815 = vmatpush1.bf16.msra.mxu0 0
        %3816 = vmatprep.subr.bf16.mxu0 0
        %3817 = vmatpush1.bf16.msra.mxu0 0
        %3818 = vmatprep.subr.bf16.mxu0 0
        %3819 = vmatpush1.bf16.msra.mxu0 0
        %3820 = vmatprep.subr.bf16.mxu0 0
        %3821 = vmatpush1.bf16.msra.mxu0 0
        %3822 = vmatprep.subr.bf16.mxu0 0
        %3823 = vmatpush1.bf16.msra.mxu0 0
        %3824 = vmatprep.subr.bf16.mxu0 0
        %3825 = vmatpush1.bf16.msra.mxu0 0
        %3826 = vmatprep.subr.bf16.mxu0 0
        %3827 = vmatpush1.bf16.msra.mxu0 0
        %3828 = vmatprep.subr.bf16.mxu0 0
        %3829 = vmatpush1.bf16.msra.mxu0 0
        %3830 = vmatprep.subr.bf16.mxu0 0
        %3831 = vmatpush1.bf16.msra.mxu0 0
        %3832 = vmatprep.mubr.bf16.mxu0 0
        %3833 = vmatmul.mubr.bf16.gmra.mrb[0].mxu0 %v1290
        %v3834 = vpop.f32.mrb[0].mxu0
        %v3835 = vadd.f32 %v3786, %v3834
        %v3836 = vpop.f32.mrb[0].mxu0
        %v3837 = vpop.f32.mrb[0].mxu0
        %v3838 = vadd.f32 %v3786, %v3837
        %v3839 = vpop.f32.mrb[0].mxu0
        %3840 = vmatprep.mubr.bf16.mxu0 0
        %3841 = vmatmul.mubr.bf16.gmra.mrb[0].mxu0 %v1293
        %v3842 = vpop.f32.mrb[0].mxu0
        %v3843 = vadd.f32 %v3786, %v3842
        %v3844 = vpop.f32.mrb[0].mxu0
        %v3845 = vpop.f32.mrb[0].mxu0
        %v3846 = vadd.f32 %v3786, %v3845
        %v3847 = vpop.f32.mrb[0].mxu0
        %3848 = vmatprep.mubr.bf16.mxu0 0
        %3849 = vmatmul.mubr.bf16.gmra.mrb[0].mxu0 %v1296
        %v3850 = vpop.f32.mrb[0].mxu0
        %v3851 = vadd.f32 %v3786, %v3850
        %v3852 = vpop.f32.mrb[0].mxu0
        %v3853 = vpop.f32.mrb[0].mxu0
        %v3854 = vadd.f32 %v3786, %v3853
        %v3855 = vpop.f32.mrb[0].mxu0
        %3856 = vdwg.mxu0
        %v3858 = vsel %vm1515, %v3671, 0
        %v3861 = vsel %vm1515, %v3674, 0
        %v3864 = vsel %vm1515, %v3679, 0
        %v3867 = vsel %vm1515, %v3753, 0
        %v3870 = vsel %vm1515, %v3756, 0
        %v3873 = vsel %vm1515, %v3761, 0
        %3875 = vmatprep.subr.mxu0 0.0
        %3876 = vmatpush1.xpose.msra.mxu0 %v3867
        %3877 = vmatprep.subr.mxu0 0.0
        %3878 = vmatpush1.xpose.msra.mxu0 %v3870
        %3879 = vmatprep.subr.mxu0 0.0
        %3880 = vmatpush1.xpose.msra.mxu0 %v3873
        %3881 = vmatprep.subr.mxu0 0.0
        %3882 = vmatpush1.xpose.msra.mxu0 0.0
        %3883 = vmatprep.subr.mxu0 0.0
        %3884 = vmatpush1.xpose.msra.mxu0 0.0
        %3885 = vmatprep.subr.mxu0 0.0
        %3886 = vmatpush1.xpose.msra.mxu0 0.0
        %3887 = vmatprep.subr.mxu0 0.0
        %3888 = vmatpush1.xpose.msra.mxu0 0.0
        %3889 = vmatprep.subr.mxu0 0.0
        %3890 = vmatpush1.xpose.msra.mxu0 0.0
        %3891 = vmatprep.subr.mxu0 0.0
        %3892 = vmatpush1.xpose.msra.mxu0 0.0
        %3893 = vmatprep.subr.mxu0 0.0
        %3894 = vmatpush1.xpose.msra.mxu0 0.0
        %3895 = vmatprep.subr.mxu0 0.0
        %3896 = vmatpush1.xpose.msra.mxu0 0.0
        %3897 = vmatprep.subr.mxu0 0.0
        %3898 = vmatpush1.xpose.msra.mxu0 0.0
        %3899 = vmatprep.subr.mxu0 0.0
        %3900 = vmatpush1.xpose.msra.mxu0 0.0
        %3901 = vmatprep.subr.mxu0 0.0
        %3902 = vmatpush1.xpose.msra.mxu0 0.0
        %3903 = vmatprep.subr.mxu0 0.0
        %3904 = vmatpush1.xpose.msra.mxu0 0.0
        %3905 = vmatprep.subr.mxu0 0.0
        %3906 = vmatpush1.xpose.msra.mxu0 0.0
        %3907 = vmatprep.subr.mxu0 0.0
        %3908 = vmatpush1.xpose.msra.mxu0 0.0
        %3909 = vmatprep.subr.mxu0 0.0
        %3910 = vmatpush1.xpose.msra.mxu0 0.0
        %3911 = vmatprep.subr.mxu0 0.0
        %3912 = vmatpush1.xpose.msra.mxu0 0.0
        %3913 = vmatprep.subr.mxu0 0.0
        %3914 = vmatpush1.xpose.msra.mxu0 0.0
        %3915 = vmatprep.subr.mxu0 0.0
        %3916 = vmatpush1.xpose.msra.mxu0 0.0
        %3917 = vmatprep.subr.mxu0 0.0
        %3918 = vmatpush1.xpose.msra.mxu0 0.0
        %3919 = vmatprep.subr.mxu0 0.0
        %3920 = vmatpush1.xpose.msra.mxu0 0.0
        %3921 = vmatprep.subr.mxu0 0.0
        %3922 = vmatpush1.xpose.msra.mxu0 0.0
        %3923 = vmatprep.subr.mxu0 0.0
        %3924 = vmatpush1.xpose.msra.mxu0 0.0
        %3925 = vmatprep.subr.mxu0 0.0
        %3926 = vmatpush1.xpose.msra.mxu0 0.0
        %3927 = vmatprep.subr.mxu0 0.0
        %3928 = vmatpush1.xpose.msra.mxu0 0.0
        %3929 = vmatprep.subr.mxu0 0.0
        %3930 = vmatpush1.xpose.msra.mxu0 0.0
        %3931 = vmatprep.subr.mxu0 0.0
        %3932 = vmatpush1.xpose.msra.mxu0 0.0
        %3933 = vmatprep.subr.mxu0 0.0
        %3934 = vmatpush1.xpose.msra.mxu0 0.0
        %3935 = vmatprep.subr.mxu0 0.0
        %3936 = vmatpush1.xpose.msra.mxu0 0.0
        %3937 = vmatprep.subr.mxu0 0.0
        %3938 = vmatpush1.xpose.msra.mxu0 0.0
        %3939 = vmatprep.mubr.f32.mxu0 0.0
        %3940 = vmatmul.mubr.f32.gmra.mrb[0].mxu0 %v3858
        %v3941 = vpop.f32.mrb[0].mxu0
        %v3942 = vadd.f32 0.0, %v3941
        %v3943 = vpop.f32.mrb[0].mxu0
        %3944 = vmatprep.mubr.f32.mxu0 0.0
        %3945 = vmatmul.mubr.f32.gmra.mrb[0].mxu0 %v3861
        %v3946 = vpop.f32.mrb[0].mxu0
        %v3947 = vadd.f32 0.0, %v3946
        %v3948 = vpop.f32.mrb[0].mxu0
        %3949 = vmatprep.mubr.f32.mxu0 0.0
        %3950 = vmatmul.mubr.f32.gmra.mrb[0].mxu0 %v3864
        %v3951 = vpop.f32.mrb[0].mxu0
        %v3952 = vadd.f32 0.0, %v3951
        %v3953 = vpop.f32.mrb[0].mxu0
        %3954 = vdwg.mxu0
        %v3956 = vsel %vm1515, %v3682, 0
        %v3959 = vsel %vm1515, %v3687, 0
        %v3962 = vsel %vm1515, %v3690, 0
        %v3965 = vsel %vm1515, %v3764, 0
        %v3968 = vsel %vm1515, %v3769, 0
        %v3971 = vsel %vm1515, %v3772, 0
        %3973 = vmatprep.subr.mxu0 0.0
        %3974 = vmatpush1.xpose.msra.mxu0 %v3965
        %3975 = vmatprep.subr.mxu0 0.0
        %3976 = vmatpush1.xpose.msra.mxu0 %v3968
        %3977 = vmatprep.subr.mxu0 0.0
        %3978 = vmatpush1.xpose.msra.mxu0 %v3971
        %3979 = vmatprep.subr.mxu0 0.0
        %3980 = vmatpush1.xpose.msra.mxu0 0.0
        %3981 = vmatprep.subr.mxu0 0.0
        %3982 = vmatpush1.xpose.msra.mxu0 0.0
        %3983 = vmatprep.subr.mxu0 0.0
        %3984 = vmatpush1.xpose.msra.mxu0 0.0
        %3985 = vmatprep.subr.mxu0 0.0
        %3986 = vmatpush1.xpose.msra.mxu0 0.0
        %3987 = vmatprep.subr.mxu0 0.0
        %3988 = vmatpush1.xpose.msra.mxu0 0.0
        %3989 = vmatprep.subr.mxu0 0.0
        %3990 = vmatpush1.xpose.msra.mxu0 0.0
        %3991 = vmatprep.subr.mxu0 0.0
        %3992 = vmatpush1.xpose.msra.mxu0 0.0
        %3993 = vmatprep.subr.mxu0 0.0
        %3994 = vmatpush1.xpose.msra.mxu0 0.0
        %3995 = vmatprep.subr.mxu0 0.0
        %3996 = vmatpush1.xpose.msra.mxu0 0.0
        %3997 = vmatprep.subr.mxu0 0.0
        %3998 = vmatpush1.xpose.msra.mxu0 0.0
        %3999 = vmatprep.subr.mxu0 0.0
        %4000 = vmatpush1.xpose.msra.mxu0 0.0
        %4001 = vmatprep.subr.mxu0 0.0
        %4002 = vmatpush1.xpose.msra.mxu0 0.0
        %4003 = vmatprep.subr.mxu0 0.0
        %4004 = vmatpush1.xpose.msra.mxu0 0.0
        %4005 = vmatprep.subr.mxu0 0.0
        %4006 = vmatpush1.xpose.msra.mxu0 0.0
        %4007 = vmatprep.subr.mxu0 0.0
        %4008 = vmatpush1.xpose.msra.mxu0 0.0
        %4009 = vmatprep.subr.mxu0 0.0
        %4010 = vmatpush1.xpose.msra.mxu0 0.0
        %4011 = vmatprep.subr.mxu0 0.0
        %4012 = vmatpush1.xpose.msra.mxu0 0.0
        %4013 = vmatprep.subr.mxu0 0.0
        %4014 = vmatpush1.xpose.msra.mxu0 0.0
        %4015 = vmatprep.subr.mxu0 0.0
        %4016 = vmatpush1.xpose.msra.mxu0 0.0
        %4017 = vmatprep.subr.mxu0 0.0
        %4018 = vmatpush1.xpose.msra.mxu0 0.0
        %4019 = vmatprep.subr.mxu0 0.0
        %4020 = vmatpush1.xpose.msra.mxu0 0.0
        %4021 = vmatprep.subr.mxu0 0.0
        %4022 = vmatpush1.xpose.msra.mxu0 0.0
        %4023 = vmatprep.subr.mxu0 0.0
        %4024 = vmatpush1.xpose.msra.mxu0 0.0
        %4025 = vmatprep.subr.mxu0 0.0
        %4026 = vmatpush1.xpose.msra.mxu0 0.0
        %4027 = vmatprep.subr.mxu0 0.0
        %4028 = vmatpush1.xpose.msra.mxu0 0.0
        %4029 = vmatprep.subr.mxu0 0.0
        %4030 = vmatpush1.xpose.msra.mxu0 0.0
        %4031 = vmatprep.subr.mxu0 0.0
        %4032 = vmatpush1.xpose.msra.mxu0 0.0
        %4033 = vmatprep.subr.mxu0 0.0
        %4034 = vmatpush1.xpose.msra.mxu0 0.0
        %4035 = vmatprep.subr.mxu0 0.0
        %4036 = vmatpush1.xpose.msra.mxu0 0.0
        %4037 = vmatprep.mubr.f32.mxu0 0.0
        %4038 = vmatmul.mubr.f32.gmra.mrb[0].mxu0 %v3956
        %v4039 = vpop.f32.mrb[0].mxu0
        %v4040 = vadd.f32 0.0, %v4039
        %v4041 = vpop.f32.mrb[0].mxu0
        %4042 = vmatprep.mubr.f32.mxu0 0.0
        %4043 = vmatmul.mubr.f32.gmra.mrb[0].mxu0 %v3959
        %v4044 = vpop.f32.mrb[0].mxu0
        %v4045 = vadd.f32 0.0, %v4044
        %v4046 = vpop.f32.mrb[0].mxu0
        %4047 = vmatprep.mubr.f32.mxu0 0.0
        %4048 = vmatmul.mubr.f32.gmra.mrb[0].mxu0 %v3962
        %v4049 = vpop.f32.mrb[0].mxu0
        %v4050 = vadd.f32 0.0, %v4049
        %v4051 = vpop.f32.mrb[0].mxu0
        %4052 = vdwg.mxu0
        %v4053 = vmul.f32 %v3942, 0.35355338
        %v4054 = vmul.f32 %v3947, 0.35355338
        %v4055 = vmul.f32 %v3952, 0.35355338
        %v4056 = vmul.f32 %v4040, 0.35355338
        %v4057 = vmul.f32 %v4045, 0.35355338
        %v4058 = vmul.f32 %v4050, 0.35355338
        %v4059 = vadd.f32 %v4053, %v1262
        %v4060 = vadd.f32 %v4054, %v1263
        %v4061 = vadd.f32 %v4055, %v1264
        %v4062 = vadd.f32 %v4056, %v1262
        %v4063 = vadd.f32 %v4057, %v1263
        %v4064 = vadd.f32 %v4058, %v1264
        %v4065 = vsel %vm1724, %v4059, -inf
        %4066 = vmax.xlane.f32.xlu0 %v4065
        %v4067 = vpop.xlane.xlu0 %4066
        %v4068 = vsel %vm1724, %v4060, -inf
        %4069 = vmax.xlane.f32.xlu0 %v4068
        %v4070 = vpop.xlane.xlu0 %4069
        %v4071 = vsel %vm1724, %v4061, -inf
        %4072 = vmax.xlane.f32.xlu0 %v4071
        %v4073 = vpop.xlane.xlu0 %4072
        %v4074 = vsel %vm1724, %v4062, -inf
        %4075 = vmax.xlane.f32.xlu0 %v4074
        %v4076 = vpop.xlane.xlu0 %4075
        %v4077 = vsel %vm1724, %v4063, -inf
        %4078 = vmax.xlane.f32.xlu0 %v4077
        %v4079 = vpop.xlane.xlu0 %4078
        %v4080 = vsel %vm1724, %v4064, -inf
        %4081 = vmax.xlane.f32.xlu0 %v4080
        %v4082 = vpop.xlane.xlu0 %4081
        %v4083 = vsub.f32 %v4059, %v4067
        %v4084 = vsub.f32 %v4060, %v4070
        %v4085 = vsub.f32 %v4061, %v4073
        %v4086 = vsub.f32 %v4062, %v4076
        %v4087 = vsub.f32 %v4063, %v4079
        %v4088 = vsub.f32 %v4064, %v4082
        %v4089 = vmul.f32 %v4083, 1.442695
        %v4090 = vpow.pop %v4089
        %v4091 = vmul.f32 %v4084, 1.442695
        %v4092 = vpow.pop %v4091
        %v4093 = vmul.f32 %v4085, 1.442695
        %v4094 = vpow.pop %v4093
        %v4095 = vmul.f32 %v4086, 1.442695
        %v4096 = vpow.pop %v4095
        %v4097 = vmul.f32 %v4087, 1.442695
        %v4098 = vpow.pop %v4097
        %v4099 = vmul.f32 %v4088, 1.442695
        %v4100 = vpow.pop %v4099
        %v4101 = vsel %vm1724, %v4090, 0.0
        %4102 = vadd.xlane.f32.xlu0 %v4101
        %v4103 = vpop.xlane.xlu0 %4102
        %v4104 = vsel %vm1724, %v4092, 0.0
        %4105 = vadd.xlane.f32.xlu0 %v4104
        %v4106 = vpop.xlane.xlu0 %4105
        %v4107 = vsel %vm1724, %v4094, 0.0
        %4108 = vadd.xlane.f32.xlu0 %v4107
        %v4109 = vpop.xlane.xlu0 %4108
        %v4110 = vsel %vm1724, %v4096, 0.0
        %4111 = vadd.xlane.f32.xlu0 %v4110
        %v4112 = vpop.xlane.xlu0 %4111
        %v4113 = vsel %vm1724, %v4098, 0.0
        %4114 = vadd.xlane.f32.xlu0 %v4113
        %v4115 = vpop.xlane.xlu0 %4114
        %v4116 = vsel %vm1724, %v4100, 0.0
        %4117 = vadd.xlane.f32.xlu0 %v4116
        %v4118 = vpop.xlane.xlu0 %4117
        %v4119 = vrcp.pop %v4103
        %v4120 = vrcp.pop %v4106
        %v4121 = vrcp.pop %v4109
        %v4122 = vrcp.pop %v4112
        %v4123 = vrcp.pop %v4115
        %v4124 = vrcp.pop %v4118
        %v4125 = vmul.f32 %v4090, %v4119
        %v4126 = vmul.f32 %v4092, %v4120
        %v4127 = vmul.f32 %v4094, %v4121
        %v4128 = vmul.f32 %v4096, %v4122
        %v4129 = vmul.f32 %v4098, %v4123
        %v4130 = vmul.f32 %v4100, %v4124
        %v4132 = vsel %vm1724, %v4125, 0
        %v4135 = vsel %vm1724, %v4126, 0
        %v4138 = vsel %vm1724, %v4127, 0
        %4140 = vmatprep.subr.mxu0 0.0
        %4141 = vmatpush1.msra.mxu0 %v3835
        %4142 = vmatprep.subr.mxu0 0.0
        %4143 = vmatpush1.msra.mxu0 %v3838
        %4144 = vmatprep.subr.mxu0 0.0
        %4145 = vmatpush1.msra.mxu0 %v3843
        %4146 = vmatprep.subr.mxu0 0.0
        %4147 = vmatpush1.msra.mxu0 0.0
        %4148 = vmatprep.subr.mxu0 0.0
        %4149 = vmatpush1.msra.mxu0 0.0
        %4150 = vmatprep.subr.mxu0 0.0
        %4151 = vmatpush1.msra.mxu0 0.0
        %4152 = vmatprep.subr.mxu0 0.0
        %4153 = vmatpush1.msra.mxu0 0.0
        %4154 = vmatprep.subr.mxu0 0.0
        %4155 = vmatpush1.msra.mxu0 0.0
        %4156 = vmatprep.subr.mxu0 0.0
        %4157 = vmatpush1.msra.mxu0 0.0
        %4158 = vmatprep.subr.mxu0 0.0
        %4159 = vmatpush1.msra.mxu0 0.0
        %4160 = vmatprep.subr.mxu0 0.0
        %4161 = vmatpush1.msra.mxu0 0.0
        %4162 = vmatprep.subr.mxu0 0.0
        %4163 = vmatpush1.msra.mxu0 0.0
        %4164 = vmatprep.subr.mxu0 0.0
        %4165 = vmatpush1.msra.mxu0 0.0
        %4166 = vmatprep.subr.mxu0 0.0
        %4167 = vmatpush1.msra.mxu0 0.0
        %4168 = vmatprep.subr.mxu0 0.0
        %4169 = vmatpush1.msra.mxu0 0.0
        %4170 = vmatprep.subr.mxu0 0.0
        %4171 = vmatpush1.msra.mxu0 0.0
        %4172 = vmatprep.subr.mxu0 0.0
        %4173 = vmatpush1.msra.mxu0 0.0
        %4174 = vmatprep.subr.mxu0 0.0
        %4175 = vmatpush1.msra.mxu0 0.0
        %4176 = vmatprep.subr.mxu0 0.0
        %4177 = vmatpush1.msra.mxu0 0.0
        %4178 = vmatprep.subr.mxu0 0.0
        %4179 = vmatpush1.msra.mxu0 0.0
        %4180 = vmatprep.subr.mxu0 0.0
        %4181 = vmatpush1.msra.mxu0 0.0
        %4182 = vmatprep.subr.mxu0 0.0
        %4183 = vmatpush1.msra.mxu0 0.0
        %4184 = vmatprep.subr.mxu0 0.0
        %4185 = vmatpush1.msra.mxu0 0.0
        %4186 = vmatprep.subr.mxu0 0.0
        %4187 = vmatpush1.msra.mxu0 0.0
        %4188 = vmatprep.subr.mxu0 0.0
        %4189 = vmatpush1.msra.mxu0 0.0
        %4190 = vmatprep.subr.mxu0 0.0
        %4191 = vmatpush1.msra.mxu0 0.0
        %4192 = vmatprep.subr.mxu0 0.0
        %4193 = vmatpush1.msra.mxu0 0.0
        %4194 = vmatprep.subr.mxu0 0.0
        %4195 = vmatpush1.msra.mxu0 0.0
        %4196 = vmatprep.subr.mxu0 0.0
        %4197 = vmatpush1.msra.mxu0 0.0
        %4198 = vmatprep.subr.mxu0 0.0
        %4199 = vmatpush1.msra.mxu0 0.0
        %4200 = vmatprep.subr.mxu0 0.0
        %4201 = vmatpush1.msra.mxu0 0.0
        %4202 = vmatprep.subr.mxu0 0.0
        %4203 = vmatpush1.msra.mxu0 0.0
        %4204 = vmatprep.mubr.f32.mxu0 0.0
        %4205 = vmatmul.mubr.f32.gmra.mrb[0].mxu0 %v4132
        %v4206 = vpop.f32.mrb[0].mxu0
        %v4207 = vadd.f32 0.0, %v4206
        %v4208 = vpop.f32.mrb[0].mxu0
        %4209 = vmatprep.mubr.f32.mxu0 0.0
        %4210 = vmatmul.mubr.f32.gmra.mrb[0].mxu0 %v4135
        %v4211 = vpop.f32.mrb[0].mxu0
        %v4212 = vadd.f32 0.0, %v4211
        %v4213 = vpop.f32.mrb[0].mxu0
        %4214 = vmatprep.mubr.f32.mxu0 0.0
        %4215 = vmatmul.mubr.f32.gmra.mrb[0].mxu0 %v4138
        %v4216 = vpop.f32.mrb[0].mxu0
        %v4217 = vadd.f32 0.0, %v4216
        %v4218 = vpop.f32.mrb[0].mxu0
        %4219 = vdwg.mxu0
        %v4221 = vsel %vm1724, %v4128, 0
        %v4224 = vsel %vm1724, %v4129, 0
        %v4227 = vsel %vm1724, %v4130, 0
        %4229 = vmatprep.subr.mxu0 0.0
        %4230 = vmatpush1.msra.mxu0 %v3846
        %4231 = vmatprep.subr.mxu0 0.0
        %4232 = vmatpush1.msra.mxu0 %v3851
        %4233 = vmatprep.subr.mxu0 0.0
        %4234 = vmatpush1.msra.mxu0 %v3854
        %4235 = vmatprep.subr.mxu0 0.0
        %4236 = vmatpush1.msra.mxu0 0.0
        %4237 = vmatprep.subr.mxu0 0.0
        %4238 = vmatpush1.msra.mxu0 0.0
        %4239 = vmatprep.subr.mxu0 0.0
        %4240 = vmatpush1.msra.mxu0 0.0
        %4241 = vmatprep.subr.mxu0 0.0
        %4242 = vmatpush1.msra.mxu0 0.0
        %4243 = vmatprep.subr.mxu0 0.0
        %4244 = vmatpush1.msra.mxu0 0.0
        %4245 = vmatprep.subr.mxu0 0.0
        %4246 = vmatpush1.msra.mxu0 0.0
        %4247 = vmatprep.subr.mxu0 0.0
        %4248 = vmatpush1.msra.mxu0 0.0
        %4249 = vmatprep.subr.mxu0 0.0
        %4250 = vmatpush1.msra.mxu0 0.0
        %4251 = vmatprep.subr.mxu0 0.0
        %4252 = vmatpush1.msra.mxu0 0.0
        %4253 = vmatprep.subr.mxu0 0.0
        %4254 = vmatpush1.msra.mxu0 0.0
        %4255 = vmatprep.subr.mxu0 0.0
        %4256 = vmatpush1.msra.mxu0 0.0
        %4257 = vmatprep.subr.mxu0 0.0
        %4258 = vmatpush1.msra.mxu0 0.0
        %4259 = vmatprep.subr.mxu0 0.0
        %4260 = vmatpush1.msra.mxu0 0.0
        %4261 = vmatprep.subr.mxu0 0.0
        %4262 = vmatpush1.msra.mxu0 0.0
        %4263 = vmatprep.subr.mxu0 0.0
        %4264 = vmatpush1.msra.mxu0 0.0
        %4265 = vmatprep.subr.mxu0 0.0
        %4266 = vmatpush1.msra.mxu0 0.0
        %4267 = vmatprep.subr.mxu0 0.0
        %4268 = vmatpush1.msra.mxu0 0.0
        %4269 = vmatprep.subr.mxu0 0.0
        %4270 = vmatpush1.msra.mxu0 0.0
        %4271 = vmatprep.subr.mxu0 0.0
        %4272 = vmatpush1.msra.mxu0 0.0
        %4273 = vmatprep.subr.mxu0 0.0
        %4274 = vmatpush1.msra.mxu0 0.0
        %4275 = vmatprep.subr.mxu0 0.0
        %4276 = vmatpush1.msra.mxu0 0.0
        %4277 = vmatprep.subr.mxu0 0.0
        %4278 = vmatpush1.msra.mxu0 0.0
        %4279 = vmatprep.subr.mxu0 0.0
        %4280 = vmatpush1.msra.mxu0 0.0
        %4281 = vmatprep.subr.mxu0 0.0
        %4282 = vmatpush1.msra.mxu0 0.0
        %4283 = vmatprep.subr.mxu0 0.0
        %4284 = vmatpush1.msra.mxu0 0.0
        %4285 = vmatprep.subr.mxu0 0.0
        %4286 = vmatpush1.msra.mxu0 0.0
        %4287 = vmatprep.subr.mxu0 0.0
        %4288 = vmatpush1.msra.mxu0 0.0
        %4289 = vmatprep.subr.mxu0 0.0
        %4290 = vmatpush1.msra.mxu0 0.0
        %4291 = vmatprep.subr.mxu0 0.0
        %4292 = vmatpush1.msra.mxu0 0.0
        %4293 = vmatprep.mubr.f32.mxu0 0.0
        %4294 = vmatmul.mubr.f32.gmra.mrb[0].mxu0 %v4221
        %v4295 = vpop.f32.mrb[0].mxu0
        %v4296 = vadd.f32 0.0, %v4295
        %v4297 = vpop.f32.mrb[0].mxu0
        %4298 = vmatprep.mubr.f32.mxu0 0.0
        %4299 = vmatmul.mubr.f32.gmra.mrb[0].mxu0 %v4224
        %v4300 = vpop.f32.mrb[0].mxu0
        %v4301 = vadd.f32 0.0, %v4300
        %v4302 = vpop.f32.mrb[0].mxu0
        %4303 = vmatprep.mubr.f32.mxu0 0.0
        %4304 = vmatmul.mubr.f32.gmra.mrb[0].mxu0 %v4227
        %v4305 = vpop.f32.mrb[0].mxu0
        %v4306 = vadd.f32 0.0, %v4305
        %v4307 = vpop.f32.mrb[0].mxu0
        %4308 = vdwg.mxu0
        %v4309 = vpack.c.bf16 %v4212, %v4207
        %v4310 = vpack.c.bf16 %v4296, %v4217
        %v4311 = vpack.c.bf16 %v4306, %v4301
        %s4312 = scalar_lea.vmem %s976, 12
        %v4313 = vld [vmem:[%s4312] sm:$0xf]
        %v4315 = vsel %vm1515, %v4309, 0
        %v4318 = vsel %vm1515, %v4310, 0
        %v4321 = vsel %vm1515, %v4311, 0
        %v4324 = vsel %vm1982, %v4313, 0
        %4326 = vmatprep.subr.bf16.mxu0 0
        %4327 = vmatpush1.bf16.msra.mxu0 %v4324
        %4328 = vmatprep.subr.bf16.mxu0 0
        %4329 = vmatpush1.bf16.msra.mxu0 0
        %4330 = vmatprep.subr.bf16.mxu0 0
        %4331 = vmatpush1.bf16.msra.mxu0 0
        %4332 = vmatprep.subr.bf16.mxu0 0
        %4333 = vmatpush1.bf16.msra.mxu0 0
        %4334 = vmatprep.subr.bf16.mxu0 0
        %4335 = vmatpush1.bf16.msra.mxu0 0
        %4336 = vmatprep.subr.bf16.mxu0 0
        %4337 = vmatpush1.bf16.msra.mxu0 0
        %4338 = vmatprep.subr.bf16.mxu0 0
        %4339 = vmatpush1.bf16.msra.mxu0 0
        %4340 = vmatprep.subr.bf16.mxu0 0
        %4341 = vmatpush1.bf16.msra.mxu0 0
        %4342 = vmatprep.subr.bf16.mxu0 0
        %4343 = vmatpush1.bf16.msra.mxu0 0
        %4344 = vmatprep.subr.bf16.mxu0 0
        %4345 = vmatpush1.bf16.msra.mxu0 0
        %4346 = vmatprep.subr.bf16.mxu0 0
        %4347 = vmatpush1.bf16.msra.mxu0 0
        %4348 = vmatprep.subr.bf16.mxu0 0
        %4349 = vmatpush1.bf16.msra.mxu0 0
        %4350 = vmatprep.subr.bf16.mxu0 0
        %4351 = vmatpush1.bf16.msra.mxu0 0
        %4352 = vmatprep.subr.bf16.mxu0 0
        %4353 = vmatpush1.bf16.msra.mxu0 0
        %4354 = vmatprep.subr.bf16.mxu0 0
        %4355 = vmatpush1.bf16.msra.mxu0 0
        %4356 = vmatprep.subr.bf16.mxu0 0
        %4357 = vmatpush1.bf16.msra.mxu0 0
        %4358 = vmatprep.mubr.bf16.mxu0 0
        %4359 = vmatmul.mubr.bf16.gmra.mrb[0].mxu0 %v4315
        %v4360 = vpop.f32.mrb[0].mxu0
        %v4361 = vadd.f32 0.0, %v4360
        %v4362 = vpop.f32.mrb[0].mxu0
        %v4363 = vpop.f32.mrb[0].mxu0
        %v4364 = vadd.f32 0.0, %v4363
        %v4365 = vpop.f32.mrb[0].mxu0
        %4366 = vmatprep.mubr.bf16.mxu0 0
        %4367 = vmatmul.mubr.bf16.gmra.mrb[0].mxu0 %v4318
        %v4368 = vpop.f32.mrb[0].mxu0
        %v4369 = vadd.f32 0.0, %v4368
        %v4370 = vpop.f32.mrb[0].mxu0
        %v4371 = vpop.f32.mrb[0].mxu0
        %v4372 = vadd.f32 0.0, %v4371
        %v4373 = vpop.f32.mrb[0].mxu0
        %4374 = vmatprep.mubr.bf16.mxu0 0
        %4375 = vmatmul.mubr.bf16.gmra.mrb[0].mxu0 %v4321
        %v4376 = vpop.f32.mrb[0].mxu0
        %v4377 = vadd.f32 0.0, %v4376
        %v4378 = vpop.f32.mrb[0].mxu0
        %v4379 = vpop.f32.mrb[0].mxu0
        %v4380 = vadd.f32 0.0, %v4379
        %v4381 = vpop.f32.mrb[0].mxu0
        %4382 = vdwg.mxu0
        %v4383 = vadd.f32 %v3605, %v4361
        %v4384 = vadd.f32 %v3606, %v4364
        %v4385 = vadd.f32 %v3607, %v4369
        %v4386 = vadd.f32 %v3608, %v4372
        %v4387 = vadd.f32 %v3609, %v4377
        %v4388 = vadd.f32 %v3610, %v4380
        %v4389 = vadd.f32 %v1147, %v4383
        %v4390 = vadd.f32 %v1148, %v4384
        %v4391 = vadd.f32 %v1149, %v4385
        %v4392 = vadd.f32 %v1150, %v4386
        %v4393 = vadd.f32 %v1151, %v4387
        %v4394 = vadd.f32 %v1152, %v4388
        %v4395 = vld [vmem:[%s982] sm:$0x1]
        %v4396 = vld [vmem:[%s985] sm:$0x1]
        %v4397 = vsel %vm1155, %v4389, 0.0
        %4398 = vadd.xlane.f32.xlu0 %v4397
        %v4399 = vpop.xlane.xlu0 %4398
        %v4400 = vsel %vm1155, %v4390, 0.0
        %4401 = vadd.xlane.f32.xlu0 %v4400
        %v4402 = vpop.xlane.xlu0 %4401
        %v4403 = vsel %vm1155, %v4391, 0.0
        %4404 = vadd.xlane.f32.xlu0 %v4403
        %v4405 = vpop.xlane.xlu0 %4404
        %v4406 = vsel %vm1155, %v4392, 0.0
        %4407 = vadd.xlane.f32.xlu0 %v4406
        %v4408 = vpop.xlane.xlu0 %4407
        %v4409 = vsel %vm1155, %v4393, 0.0
        %4410 = vadd.xlane.f32.xlu0 %v4409
        %v4411 = vpop.xlane.xlu0 %4410
        %v4412 = vsel %vm1155, %v4394, 0.0
        %4413 = vadd.xlane.f32.xlu0 %v4412
        %v4414 = vpop.xlane.xlu0 %4413
        %v4415 = vmul.f32 %v4399, %v1174
        %v4416 = vmul.f32 %v4402, %v1174
        %v4417 = vmul.f32 %v4405, %v1174
        %v4418 = vmul.f32 %v4408, %v1174
        %v4419 = vmul.f32 %v4411, %v1174
        %v4420 = vmul.f32 %v4414, %v1174
        %v4421 = vsub.f32 %v4389, %v4415
        %v4422 = vsub.f32 %v4390, %v4416
        %v4423 = vsub.f32 %v4391, %v4417
        %v4424 = vsub.f32 %v4392, %v4418
        %v4425 = vsub.f32 %v4393, %v4419
        %v4426 = vsub.f32 %v4394, %v4420
        %v4427 = vmul.f32 %v4421, %v4421
        %v4428 = vmul.f32 %v4422, %v4422
        %v4429 = vmul.f32 %v4423, %v4423
        %v4430 = vmul.f32 %v4424, %v4424
        %v4431 = vmul.f32 %v4425, %v4425
        %v4432 = vmul.f32 %v4426, %v4426
        %v4433 = vsel %vm1155, %v4427, 0.0
        %4434 = vadd.xlane.f32.xlu0 %v4433
        %v4435 = vpop.xlane.xlu0 %4434
        %v4436 = vsel %vm1155, %v4428, 0.0
        %4437 = vadd.xlane.f32.xlu0 %v4436
        %v4438 = vpop.xlane.xlu0 %4437
        %v4439 = vsel %vm1155, %v4429, 0.0
        %4440 = vadd.xlane.f32.xlu0 %v4439
        %v4441 = vpop.xlane.xlu0 %4440
        %v4442 = vsel %vm1155, %v4430, 0.0
        %4443 = vadd.xlane.f32.xlu0 %v4442
        %v4444 = vpop.xlane.xlu0 %4443
        %v4445 = vsel %vm1155, %v4431, 0.0
        %4446 = vadd.xlane.f32.xlu0 %v4445
        %v4447 = vpop.xlane.xlu0 %4446
        %v4448 = vsel %vm1155, %v4432, 0.0
        %4449 = vadd.xlane.f32.xlu0 %v4448
        %v4450 = vpop.xlane.xlu0 %4449
        %v4451 = vmul.f32 %v4435, %v1174
        %v4452 = vmul.f32 %v4438, %v1174
        %v4453 = vmul.f32 %v4441, %v1174
        %v4454 = vmul.f32 %v4444, %v1174
        %v4455 = vmul.f32 %v4447, %v1174
        %v4456 = vmul.f32 %v4450, %v1174
        %v4457 = vadd.f32 %v4451, 1e-05
        %v4458 = vadd.f32 %v4452, 1e-05
        %v4459 = vadd.f32 %v4453, 1e-05
        %v4460 = vadd.f32 %v4454, 1e-05
        %v4461 = vadd.f32 %v4455, 1e-05
        %v4462 = vadd.f32 %v4456, 1e-05
        %v4463 = vrsqrt.pop %v4457
        %v4464 = vrsqrt.pop %v4458
        %v4465 = vrsqrt.pop %v4459
        %v4466 = vrsqrt.pop %v4460
        %v4467 = vrsqrt.pop %v4461
        %v4468 = vrsqrt.pop %v4462
        %v4469 = vmul.f32 %v4421, %v4463
        %v4470 = vmul.f32 %v4422, %v4464
        %v4471 = vmul.f32 %v4423, %v4465
        %v4472 = vmul.f32 %v4424, %v4466
        %v4473 = vmul.f32 %v4425, %v4467
        %v4474 = vmul.f32 %v4426, %v4468
        %v4476 = vlaneseq
        %v4477 = vshrl.u32 %v4476, 7
        %v4478 = vsub.s32 0, %v4477
        %v4479 = vrot.slane %v4395, %v4478
        %v4481 = vmul.f32 %v4469, %v4479
        %v4482 = vmul.f32 %v4470, %v4479
        %v4483 = vmul.f32 %v4471, %v4479
        %v4484 = vmul.f32 %v4472, %v4479
        %v4485 = vmul.f32 %v4473, %v4479
        %v4486 = vmul.f32 %v4474, %v4479
        %v4488 = vlaneseq
        %v4489 = vshrl.u32 %v4488, 7
        %v4490 = vsub.s32 0, %v4489
        %v4491 = vrot.slane %v4396, %v4490
        %v4493 = vadd.f32 %v4481, %v4491
        %v4494 = vadd.f32 %v4482, %v4491
        %v4495 = vadd.f32 %v4483, %v4491
        %v4496 = vadd.f32 %v4484, %v4491
        %v4497 = vadd.f32 %v4485, %v4491
        %v4498 = vadd.f32 %v4486, %v4491
        %v4499 = vpack.c.bf16 %v4494, %v4493
        %v4500 = vpack.c.bf16 %v4496, %v4495
        %v4501 = vpack.c.bf16 %v4498, %v4497
        %v4502 = vld [vmem:[%s990] sm:$0xff]
        %v4503 = vld [vmem:[%s990 + $0x8] sm:$0xff]
        %v4504 = vld [vmem:[%s990 + $0x10] sm:$0xff]
        %v4505 = vld [vmem:[%s990 + $0x18] sm:$0xff]
        %v4506 = vld [vmem:[%s990 + $0x20] sm:$0xff]
        %v4507 = vld [vmem:[%s990 + $0x28] sm:$0xff]
        %v4508 = vld [vmem:[%s990 + $0x30] sm:$0xff]
        %v4509 = vld [vmem:[%s990 + $0x38] sm:$0xff]
        %v4510 = vld [vmem:[%s990 + $0x40] sm:$0xff]
        %v4511 = vld [vmem:[%s990 + $0x48] sm:$0xff]
        %v4512 = vld [vmem:[%s990 + $0x50] sm:$0xff]
        %v4513 = vld [vmem:[%s990 + $0x58] sm:$0xff]
        %v4514 = vld [vmem:[%s990 + $0x60] sm:$0xff]
        %v4515 = vld [vmem:[%s990 + $0x68] sm:$0xff]
        %v4516 = vld [vmem:[%s990 + $0x70] sm:$0xff]
        %v4517 = vld [vmem:[%s990 + $0x78] sm:$0xff]
        %v4518 = vld [vmem:[%s990 + $0x80] sm:$0xff]
        %v4519 = vld [vmem:[%s990 + $0x88] sm:$0xff]
        %v4520 = vld [vmem:[%s990 + $0x90] sm:$0xff]
        %v4521 = vld [vmem:[%s990 + $0x98] sm:$0xff]
        %v4522 = vld [vmem:[%s990 + $0xa0] sm:$0xff]
        %v4523 = vld [vmem:[%s990 + $0xa8] sm:$0xff]
        %v4524 = vld [vmem:[%s990 + $0xb0] sm:$0xff]
        %v4525 = vld [vmem:[%s990 + $0xb8] sm:$0xff]
        %v4526 = vld [vmem:[%s990 + $0xc0] sm:$0xff]
        %v4527 = vld [vmem:[%s990 + $0xc8] sm:$0xff]
        %v4528 = vld [vmem:[%s990 + $0xd0] sm:$0xff]
        %v4529 = vld [vmem:[%s990 + $0xd8] sm:$0xff]
        %v4530 = vld [vmem:[%s990 + $0xe0] sm:$0xff]
        %v4531 = vld [vmem:[%s990 + $0xe8] sm:$0xff]
        %v4532 = vld [vmem:[%s990 + $0xf0] sm:$0xff]
        %v4533 = vld [vmem:[%s990 + $0xf8] sm:$0xff]
        %v4534 = vld [vmem:[%s994] sm:$0xff]
        %v4535 = vld [vmem:[%s994 + $0x8] sm:$0xff]
        %v4538 = vlaneseq
        %v4539 = vshrl.u32 %v4538, 7
        %v4540 = vsub.s32 0, %v4539
        %v4541 = vrot.slane %v4534, %v4540
        %v4542 = vlaneseq
        %v4543 = vshrl.u32 %v4542, 7
        %v4544 = vsub.s32 1, %v4543
        %v4545 = vrot.slane %v4534, %v4544
        %v4546 = vlaneseq
        %v4547 = vshrl.u32 %v4546, 7
        %v4548 = vsub.s32 2, %v4547
        %v4549 = vrot.slane %v4534, %v4548
        %v4550 = vlaneseq
        %v4551 = vshrl.u32 %v4550, 7
        %v4552 = vsub.s32 3, %v4551
        %v4553 = vrot.slane %v4534, %v4552
        %v4554 = vlaneseq
        %v4555 = vshrl.u32 %v4554, 7
        %v4556 = vsub.s32 4, %v4555
        %v4557 = vrot.slane %v4534, %v4556
        %v4558 = vlaneseq
        %v4559 = vshrl.u32 %v4558, 7
        %v4560 = vsub.s32 5, %v4559
        %v4561 = vrot.slane %v4534, %v4560
        %v4562 = vlaneseq
        %v4563 = vshrl.u32 %v4562, 7
        %v4564 = vsub.s32 6, %v4563
        %v4565 = vrot.slane %v4534, %v4564
        %v4566 = vlaneseq
        %v4567 = vshrl.u32 %v4566, 7
        %v4568 = vsub.s32 7, %v4567
        %v4569 = vrot.slane %v4534, %v4568
        %v4570 = vlaneseq
        %v4571 = vshrl.u32 %v4570, 7
        %v4572 = vsub.s32 0, %v4571
        %v4573 = vrot.slane %v4535, %v4572
        %v4574 = vlaneseq
        %v4575 = vshrl.u32 %v4574, 7
        %v4576 = vsub.s32 1, %v4575
        %v4577 = vrot.slane %v4535, %v4576
        %v4578 = vlaneseq
        %v4579 = vshrl.u32 %v4578, 7
        %v4580 = vsub.s32 2, %v4579
        %v4581 = vrot.slane %v4535, %v4580
        %v4582 = vlaneseq
        %v4583 = vshrl.u32 %v4582, 7
        %v4584 = vsub.s32 3, %v4583
        %v4585 = vrot.slane %v4535, %v4584
        %v4586 = vlaneseq
        %v4587 = vshrl.u32 %v4586, 7
        %v4588 = vsub.s32 4, %v4587
        %v4589 = vrot.slane %v4535, %v4588
        %v4590 = vlaneseq
        %v4591 = vshrl.u32 %v4590, 7
        %v4592 = vsub.s32 5, %v4591
        %v4593 = vrot.slane %v4535, %v4592
        %v4594 = vlaneseq
        %v4595 = vshrl.u32 %v4594, 7
        %v4596 = vsub.s32 6, %v4595
        %v4597 = vrot.slane %v4535, %v4596
        %v4598 = vlaneseq
        %v4599 = vshrl.u32 %v4598, 7
        %v4600 = vsub.s32 7, %v4599
        %v4601 = vrot.slane %v4535, %v4600
        %v4650 = vunpack.c.l.b16 %v4502
        %v4651 = vunpack.c.h.b16 %v4502
        %v4652 = vunpack.c.l.b16 %v4503
        %v4653 = vunpack.c.h.b16 %v4503
        %v4654 = vunpack.c.l.b16 %v4504
        %v4655 = vunpack.c.h.b16 %v4504
        %v4656 = vunpack.c.l.b16 %v4505
        %v4657 = vunpack.c.h.b16 %v4505
        %v4658 = vunpack.c.l.b16 %v4506
        %v4659 = vunpack.c.h.b16 %v4506
        %v4660 = vunpack.c.l.b16 %v4507
        %v4661 = vunpack.c.h.b16 %v4507
        %v4662 = vunpack.c.l.b16 %v4508
        %v4663 = vunpack.c.h.b16 %v4508
        %v4664 = vunpack.c.l.b16 %v4509
        %v4665 = vunpack.c.h.b16 %v4509
        %v4666 = vunpack.c.l.b16 %v4510
        %v4667 = vunpack.c.h.b16 %v4510
        %v4668 = vunpack.c.l.b16 %v4511
        %v4669 = vunpack.c.h.b16 %v4511
        %v4670 = vunpack.c.l.b16 %v4512
        %v4671 = vunpack.c.h.b16 %v4512
        %v4672 = vunpack.c.l.b16 %v4513
        %v4673 = vunpack.c.h.b16 %v4513
        %v4674 = vunpack.c.l.b16 %v4514
        %v4675 = vunpack.c.h.b16 %v4514
        %v4676 = vunpack.c.l.b16 %v4515
        %v4677 = vunpack.c.h.b16 %v4515
        %v4678 = vunpack.c.l.b16 %v4516
        %v4679 = vunpack.c.h.b16 %v4516
        %v4680 = vunpack.c.l.b16 %v4517
        %v4681 = vunpack.c.h.b16 %v4517
        %v4682 = vunpack.c.l.b16 %v4518
        %v4683 = vunpack.c.h.b16 %v4518
        %v4684 = vunpack.c.l.b16 %v4519
        %v4685 = vunpack.c.h.b16 %v4519
        %v4686 = vunpack.c.l.b16 %v4520
        %v4687 = vunpack.c.h.b16 %v4520
        %v4688 = vunpack.c.l.b16 %v4521
        %v4689 = vunpack.c.h.b16 %v4521
        %v4690 = vunpack.c.l.b16 %v4522
        %v4691 = vunpack.c.h.b16 %v4522
        %v4692 = vunpack.c.l.b16 %v4523
        %v4693 = vunpack.c.h.b16 %v4523
        %v4694 = vunpack.c.l.b16 %v4524
        %v4695 = vunpack.c.h.b16 %v4524
        %v4696 = vunpack.c.l.b16 %v4525
        %v4697 = vunpack.c.h.b16 %v4525
        %v4698 = vunpack.c.l.b16 %v4526
        %v4699 = vunpack.c.h.b16 %v4526
        %v4700 = vunpack.c.l.b16 %v4527
        %v4701 = vunpack.c.h.b16 %v4527
        %v4702 = vunpack.c.l.b16 %v4528
        %v4703 = vunpack.c.h.b16 %v4528
        %v4704 = vunpack.c.l.b16 %v4529
        %v4705 = vunpack.c.h.b16 %v4529
        %v4706 = vunpack.c.l.b16 %v4530
        %v4707 = vunpack.c.h.b16 %v4530
        %v4708 = vunpack.c.l.b16 %v4531
        %v4709 = vunpack.c.h.b16 %v4531
        %v4710 = vunpack.c.l.b16 %v4532
        %v4711 = vunpack.c.h.b16 %v4532
        %v4712 = vunpack.c.l.b16 %v4533
        %v4713 = vunpack.c.h.b16 %v4533
        %v4714 = vpack.c.b16 %v4666, %v4650
        %v4715 = vpack.c.b16 %v4667, %v4651
        %v4716 = vpack.c.b16 %v4668, %v4652
        %v4717 = vpack.c.b16 %v4669, %v4653
        %v4718 = vpack.c.b16 %v4670, %v4654
        %v4719 = vpack.c.b16 %v4671, %v4655
        %v4720 = vpack.c.b16 %v4672, %v4656
        %v4721 = vpack.c.b16 %v4673, %v4657
        %v4722 = vpack.c.b16 %v4674, %v4658
        %v4723 = vpack.c.b16 %v4675, %v4659
        %v4724 = vpack.c.b16 %v4676, %v4660
        %v4725 = vpack.c.b16 %v4677, %v4661
        %v4726 = vpack.c.b16 %v4678, %v4662
        %v4727 = vpack.c.b16 %v4679, %v4663
        %v4728 = vpack.c.b16 %v4680, %v4664
        %v4729 = vpack.c.b16 %v4681, %v4665
        %v4730 = vpack.c.b16 %v4698, %v4682
        %v4731 = vpack.c.b16 %v4699, %v4683
        %v4732 = vpack.c.b16 %v4700, %v4684
        %v4733 = vpack.c.b16 %v4701, %v4685
        %v4734 = vpack.c.b16 %v4702, %v4686
        %v4735 = vpack.c.b16 %v4703, %v4687
        %v4736 = vpack.c.b16 %v4704, %v4688
        %v4737 = vpack.c.b16 %v4705, %v4689
        %v4738 = vpack.c.b16 %v4706, %v4690
        %v4739 = vpack.c.b16 %v4707, %v4691
        %v4740 = vpack.c.b16 %v4708, %v4692
        %v4741 = vpack.c.b16 %v4709, %v4693
        %v4742 = vpack.c.b16 %v4710, %v4694
        %v4743 = vpack.c.b16 %v4711, %v4695
        %v4744 = vpack.c.b16 %v4712, %v4696
        %v4745 = vpack.c.b16 %v4713, %v4697
        %v4779 = vsel %vm1155, %v4499, 0
        %v4782 = vsel %vm1155, %v4500, 0
        %v4785 = vsel %vm1155, %v4501, 0
        %4787 = vmatprep.subr.bf16.mxu0 %v4715
        %4788 = vmatpush1.bf16.msra.mxu0 %v4714
        %4789 = vmatprep.subr.bf16.mxu0 %v4731
        %4790 = vmatpush1.bf16.msra.mxu0 %v4730
        %4791 = vmatprep.subr.bf16.mxu0 0
        %4792 = vmatpush1.bf16.msra.mxu0 0
        %4793 = vmatprep.subr.bf16.mxu0 0
        %4794 = vmatpush1.bf16.msra.mxu0 0
        %4795 = vmatprep.subr.bf16.mxu0 0
        %4796 = vmatpush1.bf16.msra.mxu0 0
        %4797 = vmatprep.subr.bf16.mxu0 0
        %4798 = vmatpush1.bf16.msra.mxu0 0
        %4799 = vmatprep.subr.bf16.mxu0 0
        %4800 = vmatpush1.bf16.msra.mxu0 0
        %4801 = vmatprep.subr.bf16.mxu0 0
        %4802 = vmatpush1.bf16.msra.mxu0 0
        %4803 = vmatprep.subr.bf16.mxu0 0
        %4804 = vmatpush1.bf16.msra.mxu0 0
        %4805 = vmatprep.subr.bf16.mxu0 0
        %4806 = vmatpush1.bf16.msra.mxu0 0
        %4807 = vmatprep.subr.bf16.mxu0 0
        %4808 = vmatpush1.bf16.msra.mxu0 0
        %4809 = vmatprep.subr.bf16.mxu0 0
        %4810 = vmatpush1.bf16.msra.mxu0 0
        %4811 = vmatprep.subr.bf16.mxu0 0
        %4812 = vmatpush1.bf16.msra.mxu0 0
        %4813 = vmatprep.subr.bf16.mxu0 0
        %4814 = vmatpush1.bf16.msra.mxu0 0
        %4815 = vmatprep.subr.bf16.mxu0 0
        %4816 = vmatpush1.bf16.msra.mxu0 0
        %4817 = vmatprep.subr.bf16.mxu0 0
        %4818 = vmatpush1.bf16.msra.mxu0 0
        %4819 = vmatprep.mubr.bf16.mxu0 0
        %4820 = vmatmul.mubr.bf16.gmra.mrb[0].mxu0 %v4779
        %v4821 = vpop.f32.mrb[0].mxu0
        %v4822 = vadd.f32 %v4541, %v4821
        %v4823 = vpop.f32.mrb[0].mxu0
        %v4824 = vadd.f32 %v4545, %v4823
        %v4825 = vpop.f32.mrb[0].mxu0
        %v4826 = vadd.f32 %v4541, %v4825
        %v4827 = vpop.f32.mrb[0].mxu0
        %v4828 = vadd.f32 %v4545, %v4827
        %4829 = vmatprep.mubr.bf16.mxu0 0
        %4830 = vmatmul.mubr.bf16.gmra.mrb[0].mxu0 %v4782
        %v4831 = vpop.f32.mrb[0].mxu0
        %v4832 = vadd.f32 %v4541, %v4831
        %v4833 = vpop.f32.mrb[0].mxu0
        %v4834 = vadd.f32 %v4545, %v4833
        %v4835 = vpop.f32.mrb[0].mxu0
        %v4836 = vadd.f32 %v4541, %v4835
        %v4837 = vpop.f32.mrb[0].mxu0
        %v4838 = vadd.f32 %v4545, %v4837
        %4839 = vmatprep.mubr.bf16.mxu0 0
        %4840 = vmatmul.mubr.bf16.gmra.mrb[0].mxu0 %v4785
        %v4841 = vpop.f32.mrb[0].mxu0
        %v4842 = vadd.f32 %v4541, %v4841
        %v4843 = vpop.f32.mrb[0].mxu0
        %v4844 = vadd.f32 %v4545, %v4843
        %v4845 = vpop.f32.mrb[0].mxu0
        %v4846 = vadd.f32 %v4541, %v4845
        %v4847 = vpop.f32.mrb[0].mxu0
        %v4848 = vadd.f32 %v4545, %v4847
        %4849 = vdwg.mxu0
        %4850 = vmatprep.subr.bf16.mxu0 %v4717
        %4851 = vmatpush1.bf16.msra.mxu0 %v4716
        %4852 = vmatprep.subr.bf16.mxu0 %v4733
        %4853 = vmatpush1.bf16.msra.mxu0 %v4732
        %4854 = vmatprep.subr.bf16.mxu0 0
        %4855 = vmatpush1.bf16.msra.mxu0 0
        %4856 = vmatprep.subr.bf16.mxu0 0
        %4857 = vmatpush1.bf16.msra.mxu0 0
        %4858 = vmatprep.subr.bf16.mxu0 0
        %4859 = vmatpush1.bf16.msra.mxu0 0
        %4860 = vmatprep.subr.bf16.mxu0 0
        %4861 = vmatpush1.bf16.msra.mxu0 0
        %4862 = vmatprep.subr.bf16.mxu0 0
        %4863 = vmatpush1.bf16.msra.mxu0 0
        %4864 = vmatprep.subr.bf16.mxu0 0
        %4865 = vmatpush1.bf16.msra.mxu0 0
        %4866 = vmatprep.subr.bf16.mxu0 0
        %4867 = vmatpush1.bf16.msra.mxu0 0
        %4868 = vmatprep.subr.bf16.mxu0 0
        %4869 = vmatpush1.bf16.msra.mxu0 0
        %4870 = vmatprep.subr.bf16.mxu0 0
        %4871 = vmatpush1.bf16.msra.mxu0 0
        %4872 = vmatprep.subr.bf16.mxu0 0
        %4873 = vmatpush1.bf16.msra.mxu0 0
        %4874 = vmatprep.subr.bf16.mxu0 0
        %4875 = vmatpush1.bf16.msra.mxu0 0
        %4876 = vmatprep.subr.bf16.mxu0 0
        %4877 = vmatpush1.bf16.msra.mxu0 0
        %4878 = vmatprep.subr.bf16.mxu0 0
        %4879 = vmatpush1.bf16.msra.mxu0 0
        %4880 = vmatprep.subr.bf16.mxu0 0
        %4881 = vmatpush1.bf16.msra.mxu0 0
        %4882 = vmatprep.mubr.bf16.mxu0 0
        %4883 = vmatmul.mubr.bf16.gmra.mrb[0].mxu0 %v4779
        %v4884 = vpop.f32.mrb[0].mxu0
        %v4885 = vadd.f32 %v4549, %v4884
        %v4886 = vpop.f32.mrb[0].mxu0
        %v4887 = vadd.f32 %v4553, %v4886
        %v4888 = vpop.f32.mrb[0].mxu0
        %v4889 = vadd.f32 %v4549, %v4888
        %v4890 = vpop.f32.mrb[0].mxu0
        %v4891 = vadd.f32 %v4553, %v4890
        %4892 = vmatprep.mubr.bf16.mxu0 0
        %4893 = vmatmul.mubr.bf16.gmra.mrb[0].mxu0 %v4782
        %v4894 = vpop.f32.mrb[0].mxu0
        %v4895 = vadd.f32 %v4549, %v4894
        %v4896 = vpop.f32.mrb[0].mxu0
        %v4897 = vadd.f32 %v4553, %v4896
        %v4898 = vpop.f32.mrb[0].mxu0
        %v4899 = vadd.f32 %v4549, %v4898
        %v4900 = vpop.f32.mrb[0].mxu0
        %v4901 = vadd.f32 %v4553, %v4900
        %4902 = vmatprep.mubr.bf16.mxu0 0
        %4903 = vmatmul.mubr.bf16.gmra.mrb[0].mxu0 %v4785
        %v4904 = vpop.f32.mrb[0].mxu0
        %v4905 = vadd.f32 %v4549, %v4904
        %v4906 = vpop.f32.mrb[0].mxu0
        %v4907 = vadd.f32 %v4553, %v4906
        %v4908 = vpop.f32.mrb[0].mxu0
        %v4909 = vadd.f32 %v4549, %v4908
        %v4910 = vpop.f32.mrb[0].mxu0
        %v4911 = vadd.f32 %v4553, %v4910
        %4912 = vdwg.mxu0
        %4913 = vmatprep.subr.bf16.mxu0 %v4719
        %4914 = vmatpush1.bf16.msra.mxu0 %v4718
        %4915 = vmatprep.subr.bf16.mxu0 %v4735
        %4916 = vmatpush1.bf16.msra.mxu0 %v4734
        %4917 = vmatprep.subr.bf16.mxu0 0
        %4918 = vmatpush1.bf16.msra.mxu0 0
        %4919 = vmatprep.subr.bf16.mxu0 0
        %4920 = vmatpush1.bf16.msra.mxu0 0
        %4921 = vmatprep.subr.bf16.mxu0 0
        %4922 = vmatpush1.bf16.msra.mxu0 0
        %4923 = vmatprep.subr.bf16.mxu0 0
        %4924 = vmatpush1.bf16.msra.mxu0 0
        %4925 = vmatprep.subr.bf16.mxu0 0
        %4926 = vmatpush1.bf16.msra.mxu0 0
        %4927 = vmatprep.subr.bf16.mxu0 0
        %4928 = vmatpush1.bf16.msra.mxu0 0
        %4929 = vmatprep.subr.bf16.mxu0 0
        %4930 = vmatpush1.bf16.msra.mxu0 0
        %4931 = vmatprep.subr.bf16.mxu0 0
        %4932 = vmatpush1.bf16.msra.mxu0 0
        %4933 = vmatprep.subr.bf16.mxu0 0
        %4934 = vmatpush1.bf16.msra.mxu0 0
        %4935 = vmatprep.subr.bf16.mxu0 0
        %4936 = vmatpush1.bf16.msra.mxu0 0
        %4937 = vmatprep.subr.bf16.mxu0 0
        %4938 = vmatpush1.bf16.msra.mxu0 0
        %4939 = vmatprep.subr.bf16.mxu0 0
        %4940 = vmatpush1.bf16.msra.mxu0 0
        %4941 = vmatprep.subr.bf16.mxu0 0
        %4942 = vmatpush1.bf16.msra.mxu0 0
        %4943 = vmatprep.subr.bf16.mxu0 0
        %4944 = vmatpush1.bf16.msra.mxu0 0
        %4945 = vmatprep.mubr.bf16.mxu0 0
        %4946 = vmatmul.mubr.bf16.gmra.mrb[0].mxu0 %v4779
        %v4947 = vpop.f32.mrb[0].mxu0
        %v4948 = vadd.f32 %v4557, %v4947
        %v4949 = vpop.f32.mrb[0].mxu0
        %v4950 = vadd.f32 %v4561, %v4949
        %v4951 = vpop.f32.mrb[0].mxu0
        %v4952 = vadd.f32 %v4557, %v4951
        %v4953 = vpop.f32.mrb[0].mxu0
        %v4954 = vadd.f32 %v4561, %v4953
        %4955 = vmatprep.mubr.bf16.mxu0 0
        %4956 = vmatmul.mubr.bf16.gmra.mrb[0].mxu0 %v4782
        %v4957 = vpop.f32.mrb[0].mxu0
        %v4958 = vadd.f32 %v4557, %v4957
        %v4959 = vpop.f32.mrb[0].mxu0
        %v4960 = vadd.f32 %v4561, %v4959
        %v4961 = vpop.f32.mrb[0].mxu0
        %v4962 = vadd.f32 %v4557, %v4961
        %v4963 = vpop.f32.mrb[0].mxu0
        %v4964 = vadd.f32 %v4561, %v4963
        %4965 = vmatprep.mubr.bf16.mxu0 0
        %4966 = vmatmul.mubr.bf16.gmra.mrb[0].mxu0 %v4785
        %v4967 = vpop.f32.mrb[0].mxu0
        %v4968 = vadd.f32 %v4557, %v4967
        %v4969 = vpop.f32.mrb[0].mxu0
        %v4970 = vadd.f32 %v4561, %v4969
        %v4971 = vpop.f32.mrb[0].mxu0
        %v4972 = vadd.f32 %v4557, %v4971
        %v4973 = vpop.f32.mrb[0].mxu0
        %v4974 = vadd.f32 %v4561, %v4973
        %4975 = vdwg.mxu0
        %4976 = vmatprep.subr.bf16.mxu0 %v4721
        %4977 = vmatpush1.bf16.msra.mxu0 %v4720
        %4978 = vmatprep.subr.bf16.mxu0 %v4737
        %4979 = vmatpush1.bf16.msra.mxu0 %v4736
        %4980 = vmatprep.subr.bf16.mxu0 0
        %4981 = vmatpush1.bf16.msra.mxu0 0
        %4982 = vmatprep.subr.bf16.mxu0 0
        %4983 = vmatpush1.bf16.msra.mxu0 0
        %4984 = vmatprep.subr.bf16.mxu0 0
        %4985 = vmatpush1.bf16.msra.mxu0 0
        %4986 = vmatprep.subr.bf16.mxu0 0
        %4987 = vmatpush1.bf16.msra.mxu0 0
        %4988 = vmatprep.subr.bf16.mxu0 0
        %4989 = vmatpush1.bf16.msra.mxu0 0
        %4990 = vmatprep.subr.bf16.mxu0 0
        %4991 = vmatpush1.bf16.msra.mxu0 0
        %4992 = vmatprep.subr.bf16.mxu0 0
        %4993 = vmatpush1.bf16.msra.mxu0 0
        %4994 = vmatprep.subr.bf16.mxu0 0
        %4995 = vmatpush1.bf16.msra.mxu0 0
        %4996 = vmatprep.subr.bf16.mxu0 0
        %4997 = vmatpush1.bf16.msra.mxu0 0
        %4998 = vmatprep.subr.bf16.mxu0 0
        %4999 = vmatpush1.bf16.msra.mxu0 0
        %5000 = vmatprep.subr.bf16.mxu0 0
        %5001 = vmatpush1.bf16.msra.mxu0 0
        %5002 = vmatprep.subr.bf16.mxu0 0
        %5003 = vmatpush1.bf16.msra.mxu0 0
        %5004 = vmatprep.subr.bf16.mxu0 0
        %5005 = vmatpush1.bf16.msra.mxu0 0
        %5006 = vmatprep.subr.bf16.mxu0 0
        %5007 = vmatpush1.bf16.msra.mxu0 0
        %5008 = vmatprep.mubr.bf16.mxu0 0
        %5009 = vmatmul.mubr.bf16.gmra.mrb[0].mxu0 %v4779
        %v5010 = vpop.f32.mrb[0].mxu0
        %v5011 = vadd.f32 %v4565, %v5010
        %v5012 = vpop.f32.mrb[0].mxu0
        %v5013 = vadd.f32 %v4569, %v5012
        %v5014 = vpop.f32.mrb[0].mxu0
        %v5015 = vadd.f32 %v4565, %v5014
        %v5016 = vpop.f32.mrb[0].mxu0
        %v5017 = vadd.f32 %v4569, %v5016
        %5018 = vmatprep.mubr.bf16.mxu0 0
        %5019 = vmatmul.mubr.bf16.gmra.mrb[0].mxu0 %v4782
        %v5020 = vpop.f32.mrb[0].mxu0
        %v5021 = vadd.f32 %v4565, %v5020
        %v5022 = vpop.f32.mrb[0].mxu0
        %v5023 = vadd.f32 %v4569, %v5022
        %v5024 = vpop.f32.mrb[0].mxu0
        %v5025 = vadd.f32 %v4565, %v5024
        %v5026 = vpop.f32.mrb[0].mxu0
        %v5027 = vadd.f32 %v4569, %v5026
        %5028 = vmatprep.mubr.bf16.mxu0 0
        %5029 = vmatmul.mubr.bf16.gmra.mrb[0].mxu0 %v4785
        %v5030 = vpop.f32.mrb[0].mxu0
        %v5031 = vadd.f32 %v4565, %v5030
        %v5032 = vpop.f32.mrb[0].mxu0
        %v5033 = vadd.f32 %v4569, %v5032
        %v5034 = vpop.f32.mrb[0].mxu0
        %v5035 = vadd.f32 %v4565, %v5034
        %v5036 = vpop.f32.mrb[0].mxu0
        %v5037 = vadd.f32 %v4569, %v5036
        %5038 = vdwg.mxu0
        %5039 = vmatprep.subr.bf16.mxu0 %v4723
        %5040 = vmatpush1.bf16.msra.mxu0 %v4722
        %5041 = vmatprep.subr.bf16.mxu0 %v4739
        %5042 = vmatpush1.bf16.msra.mxu0 %v4738
        %5043 = vmatprep.subr.bf16.mxu0 0
        %5044 = vmatpush1.bf16.msra.mxu0 0
        %5045 = vmatprep.subr.bf16.mxu0 0
        %5046 = vmatpush1.bf16.msra.mxu0 0
        %5047 = vmatprep.subr.bf16.mxu0 0
        %5048 = vmatpush1.bf16.msra.mxu0 0
        %5049 = vmatprep.subr.bf16.mxu0 0
        %5050 = vmatpush1.bf16.msra.mxu0 0
        %5051 = vmatprep.subr.bf16.mxu0 0
        %5052 = vmatpush1.bf16.msra.mxu0 0
        %5053 = vmatprep.subr.bf16.mxu0 0
        %5054 = vmatpush1.bf16.msra.mxu0 0
        %5055 = vmatprep.subr.bf16.mxu0 0
        %5056 = vmatpush1.bf16.msra.mxu0 0
        %5057 = vmatprep.subr.bf16.mxu0 0
        %5058 = vmatpush1.bf16.msra.mxu0 0
        %5059 = vmatprep.subr.bf16.mxu0 0
        %5060 = vmatpush1.bf16.msra.mxu0 0
        %5061 = vmatprep.subr.bf16.mxu0 0
        %5062 = vmatpush1.bf16.msra.mxu0 0
        %5063 = vmatprep.subr.bf16.mxu0 0
        %5064 = vmatpush1.bf16.msra.mxu0 0
        %5065 = vmatprep.subr.bf16.mxu0 0
        %5066 = vmatpush1.bf16.msra.mxu0 0
        %5067 = vmatprep.subr.bf16.mxu0 0
        %5068 = vmatpush1.bf16.msra.mxu0 0
        %5069 = vmatprep.subr.bf16.mxu0 0
        %5070 = vmatpush1.bf16.msra.mxu0 0
        %5071 = vmatprep.mubr.bf16.mxu0 0
        %5072 = vmatmul.mubr.bf16.gmra.mrb[0].mxu0 %v4779
        %v5073 = vpop.f32.mrb[0].mxu0
        %v5074 = vadd.f32 %v4573, %v5073
        %v5075 = vpop.f32.mrb[0].mxu0
        %v5076 = vadd.f32 %v4577, %v5075
        %v5077 = vpop.f32.mrb[0].mxu0
        %v5078 = vadd.f32 %v4573, %v5077
        %v5079 = vpop.f32.mrb[0].mxu0
        %v5080 = vadd.f32 %v4577, %v5079
        %5081 = vmatprep.mubr.bf16.mxu0 0
        %5082 = vmatmul.mubr.bf16.gmra.mrb[0].mxu0 %v4782
        %v5083 = vpop.f32.mrb[0].mxu0
        %v5084 = vadd.f32 %v4573, %v5083
        %v5085 = vpop.f32.mrb[0].mxu0
        %v5086 = vadd.f32 %v4577, %v5085
        %v5087 = vpop.f32.mrb[0].mxu0
        %v5088 = vadd.f32 %v4573, %v5087
        %v5089 = vpop.f32.mrb[0].mxu0
        %v5090 = vadd.f32 %v4577, %v5089
        %5091 = vmatprep.mubr.bf16.mxu0 0
        %5092 = vmatmul.mubr.bf16.gmra.mrb[0].mxu0 %v4785
        %v5093 = vpop.f32.mrb[0].mxu0
        %v5094 = vadd.f32 %v4573, %v5093
        %v5095 = vpop.f32.mrb[0].mxu0
        %v5096 = vadd.f32 %v4577, %v5095
        %v5097 = vpop.f32.mrb[0].mxu0
        %v5098 = vadd.f32 %v4573, %v5097
        %v5099 = vpop.f32.mrb[0].mxu0
        %v5100 = vadd.f32 %v4577, %v5099
        %5101 = vdwg.mxu0
        %5102 = vmatprep.subr.bf16.mxu0 %v4725
        %5103 = vmatpush1.bf16.msra.mxu0 %v4724
        %5104 = vmatprep.subr.bf16.mxu0 %v4741
        %5105 = vmatpush1.bf16.msra.mxu0 %v4740
        %5106 = vmatprep.subr.bf16.mxu0 0
        %5107 = vmatpush1.bf16.msra.mxu0 0
        %5108 = vmatprep.subr.bf16.mxu0 0
        %5109 = vmatpush1.bf16.msra.mxu0 0
        %5110 = vmatprep.subr.bf16.mxu0 0
        %5111 = vmatpush1.bf16.msra.mxu0 0
        %5112 = vmatprep.subr.bf16.mxu0 0
        %5113 = vmatpush1.bf16.msra.mxu0 0
        %5114 = vmatprep.subr.bf16.mxu0 0
        %5115 = vmatpush1.bf16.msra.mxu0 0
        %5116 = vmatprep.subr.bf16.mxu0 0
        %5117 = vmatpush1.bf16.msra.mxu0 0
        %5118 = vmatprep.subr.bf16.mxu0 0
        %5119 = vmatpush1.bf16.msra.mxu0 0
        %5120 = vmatprep.subr.bf16.mxu0 0
        %5121 = vmatpush1.bf16.msra.mxu0 0
        %5122 = vmatprep.subr.bf16.mxu0 0
        %5123 = vmatpush1.bf16.msra.mxu0 0
        %5124 = vmatprep.subr.bf16.mxu0 0
        %5125 = vmatpush1.bf16.msra.mxu0 0
        %5126 = vmatprep.subr.bf16.mxu0 0
        %5127 = vmatpush1.bf16.msra.mxu0 0
        %5128 = vmatprep.subr.bf16.mxu0 0
        %5129 = vmatpush1.bf16.msra.mxu0 0
        %5130 = vmatprep.subr.bf16.mxu0 0
        %5131 = vmatpush1.bf16.msra.mxu0 0
        %5132 = vmatprep.subr.bf16.mxu0 0
        %5133 = vmatpush1.bf16.msra.mxu0 0
        %5134 = vmatprep.mubr.bf16.mxu0 0
        %5135 = vmatmul.mubr.bf16.gmra.mrb[0].mxu0 %v4779
        %v5136 = vpop.f32.mrb[0].mxu0
        %v5137 = vadd.f32 %v4581, %v5136
        %v5138 = vpop.f32.mrb[0].mxu0
        %v5139 = vadd.f32 %v4585, %v5138
        %v5140 = vpop.f32.mrb[0].mxu0
        %v5141 = vadd.f32 %v4581, %v5140
        %v5142 = vpop.f32.mrb[0].mxu0
        %v5143 = vadd.f32 %v4585, %v5142
        %5144 = vmatprep.mubr.bf16.mxu0 0
        %5145 = vmatmul.mubr.bf16.gmra.mrb[0].mxu0 %v4782
        %v5146 = vpop.f32.mrb[0].mxu0
        %v5147 = vadd.f32 %v4581, %v5146
        %v5148 = vpop.f32.mrb[0].mxu0
        %v5149 = vadd.f32 %v4585, %v5148
        %v5150 = vpop.f32.mrb[0].mxu0
        %v5151 = vadd.f32 %v4581, %v5150
        %v5152 = vpop.f32.mrb[0].mxu0
        %v5153 = vadd.f32 %v4585, %v5152
        %5154 = vmatprep.mubr.bf16.mxu0 0
        %5155 = vmatmul.mubr.bf16.gmra.mrb[0].mxu0 %v4785
        %v5156 = vpop.f32.mrb[0].mxu0
        %v5157 = vadd.f32 %v4581, %v5156
        %v5158 = vpop.f32.mrb[0].mxu0
        %v5159 = vadd.f32 %v4585, %v5158
        %v5160 = vpop.f32.mrb[0].mxu0
        %v5161 = vadd.f32 %v4581, %v5160
        %v5162 = vpop.f32.mrb[0].mxu0
        %v5163 = vadd.f32 %v4585, %v5162
        %5164 = vdwg.mxu0
        %5165 = vmatprep.subr.bf16.mxu0 %v4727
        %5166 = vmatpush1.bf16.msra.mxu0 %v4726
        %5167 = vmatprep.subr.bf16.mxu0 %v4743
        %5168 = vmatpush1.bf16.msra.mxu0 %v4742
        %5169 = vmatprep.subr.bf16.mxu0 0
        %5170 = vmatpush1.bf16.msra.mxu0 0
        %5171 = vmatprep.subr.bf16.mxu0 0
        %5172 = vmatpush1.bf16.msra.mxu0 0
        %5173 = vmatprep.subr.bf16.mxu0 0
        %5174 = vmatpush1.bf16.msra.mxu0 0
        %5175 = vmatprep.subr.bf16.mxu0 0
        %5176 = vmatpush1.bf16.msra.mxu0 0
        %5177 = vmatprep.subr.bf16.mxu0 0
        %5178 = vmatpush1.bf16.msra.mxu0 0
        %5179 = vmatprep.subr.bf16.mxu0 0
        %5180 = vmatpush1.bf16.msra.mxu0 0
        %5181 = vmatprep.subr.bf16.mxu0 0
        %5182 = vmatpush1.bf16.msra.mxu0 0
        %5183 = vmatprep.subr.bf16.mxu0 0
        %5184 = vmatpush1.bf16.msra.mxu0 0
        %5185 = vmatprep.subr.bf16.mxu0 0
        %5186 = vmatpush1.bf16.msra.mxu0 0
        %5187 = vmatprep.subr.bf16.mxu0 0
        %5188 = vmatpush1.bf16.msra.mxu0 0
        %5189 = vmatprep.subr.bf16.mxu0 0
        %5190 = vmatpush1.bf16.msra.mxu0 0
        %5191 = vmatprep.subr.bf16.mxu0 0
        %5192 = vmatpush1.bf16.msra.mxu0 0
        %5193 = vmatprep.subr.bf16.mxu0 0
        %5194 = vmatpush1.bf16.msra.mxu0 0
        %5195 = vmatprep.subr.bf16.mxu0 0
        %5196 = vmatpush1.bf16.msra.mxu0 0
        %5197 = vmatprep.mubr.bf16.mxu0 0
        %5198 = vmatmul.mubr.bf16.gmra.mrb[0].mxu0 %v4779
        %v5199 = vpop.f32.mrb[0].mxu0
        %v5200 = vadd.f32 %v4589, %v5199
        %v5201 = vpop.f32.mrb[0].mxu0
        %v5202 = vadd.f32 %v4593, %v5201
        %v5203 = vpop.f32.mrb[0].mxu0
        %v5204 = vadd.f32 %v4589, %v5203
        %v5205 = vpop.f32.mrb[0].mxu0
        %v5206 = vadd.f32 %v4593, %v5205
        %5207 = vmatprep.mubr.bf16.mxu0 0
        %5208 = vmatmul.mubr.bf16.gmra.mrb[0].mxu0 %v4782
        %v5209 = vpop.f32.mrb[0].mxu0
        %v5210 = vadd.f32 %v4589, %v5209
        %v5211 = vpop.f32.mrb[0].mxu0
        %v5212 = vadd.f32 %v4593, %v5211
        %v5213 = vpop.f32.mrb[0].mxu0
        %v5214 = vadd.f32 %v4589, %v5213
        %v5215 = vpop.f32.mrb[0].mxu0
        %v5216 = vadd.f32 %v4593, %v5215
        %5217 = vmatprep.mubr.bf16.mxu0 0
        %5218 = vmatmul.mubr.bf16.gmra.mrb[0].mxu0 %v4785
        %v5219 = vpop.f32.mrb[0].mxu0
        %v5220 = vadd.f32 %v4589, %v5219
        %v5221 = vpop.f32.mrb[0].mxu0
        %v5222 = vadd.f32 %v4593, %v5221
        %v5223 = vpop.f32.mrb[0].mxu0
        %v5224 = vadd.f32 %v4589, %v5223
        %v5225 = vpop.f32.mrb[0].mxu0
        %v5226 = vadd.f32 %v4593, %v5225
        %5227 = vdwg.mxu0
        %5228 = vmatprep.subr.bf16.mxu0 %v4729
        %5229 = vmatpush1.bf16.msra.mxu0 %v4728
        %5230 = vmatprep.subr.bf16.mxu0 %v4745
        %5231 = vmatpush1.bf16.msra.mxu0 %v4744
        %5232 = vmatprep.subr.bf16.mxu0 0
        %5233 = vmatpush1.bf16.msra.mxu0 0
        %5234 = vmatprep.subr.bf16.mxu0 0
        %5235 = vmatpush1.bf16.msra.mxu0 0
        %5236 = vmatprep.subr.bf16.mxu0 0
        %5237 = vmatpush1.bf16.msra.mxu0 0
        %5238 = vmatprep.subr.bf16.mxu0 0
        %5239 = vmatpush1.bf16.msra.mxu0 0
        %5240 = vmatprep.subr.bf16.mxu0 0
        %5241 = vmatpush1.bf16.msra.mxu0 0
        %5242 = vmatprep.subr.bf16.mxu0 0
        %5243 = vmatpush1.bf16.msra.mxu0 0
        %5244 = vmatprep.subr.bf16.mxu0 0
        %5245 = vmatpush1.bf16.msra.mxu0 0
        %5246 = vmatprep.subr.bf16.mxu0 0
        %5247 = vmatpush1.bf16.msra.mxu0 0
        %5248 = vmatprep.subr.bf16.mxu0 0
        %5249 = vmatpush1.bf16.msra.mxu0 0
        %5250 = vmatprep.subr.bf16.mxu0 0
        %5251 = vmatpush1.bf16.msra.mxu0 0
        %5252 = vmatprep.subr.bf16.mxu0 0
        %5253 = vmatpush1.bf16.msra.mxu0 0
        %5254 = vmatprep.subr.bf16.mxu0 0
        %5255 = vmatpush1.bf16.msra.mxu0 0
        %5256 = vmatprep.subr.bf16.mxu0 0
        %5257 = vmatpush1.bf16.msra.mxu0 0
        %5258 = vmatprep.subr.bf16.mxu0 0
        %5259 = vmatpush1.bf16.msra.mxu0 0
        %5260 = vmatprep.mubr.bf16.mxu0 0
        %5261 = vmatmul.mubr.bf16.gmra.mrb[0].mxu0 %v4779
        %v5262 = vpop.f32.mrb[0].mxu0
        %v5263 = vadd.f32 %v4597, %v5262
        %v5264 = vpop.f32.mrb[0].mxu0
        %v5265 = vadd.f32 %v4601, %v5264
        %v5266 = vpop.f32.mrb[0].mxu0
        %v5267 = vadd.f32 %v4597, %v5266
        %v5268 = vpop.f32.mrb[0].mxu0
        %v5269 = vadd.f32 %v4601, %v5268
        %5270 = vmatprep.mubr.bf16.mxu0 0
        %5271 = vmatmul.mubr.bf16.gmra.mrb[0].mxu0 %v4782
        %v5272 = vpop.f32.mrb[0].mxu0
        %v5273 = vadd.f32 %v4597, %v5272
        %v5274 = vpop.f32.mrb[0].mxu0
        %v5275 = vadd.f32 %v4601, %v5274
        %v5276 = vpop.f32.mrb[0].mxu0
        %v5277 = vadd.f32 %v4597, %v5276
        %v5278 = vpop.f32.mrb[0].mxu0
        %v5279 = vadd.f32 %v4601, %v5278
        %5280 = vmatprep.mubr.bf16.mxu0 0
        %5281 = vmatmul.mubr.bf16.gmra.mrb[0].mxu0 %v4785
        %v5282 = vpop.f32.mrb[0].mxu0
        %v5283 = vadd.f32 %v4597, %v5282
        %v5284 = vpop.f32.mrb[0].mxu0
        %v5285 = vadd.f32 %v4601, %v5284
        %v5286 = vpop.f32.mrb[0].mxu0
        %v5287 = vadd.f32 %v4597, %v5286
        %v5288 = vpop.f32.mrb[0].mxu0
        %v5289 = vadd.f32 %v4601, %v5288
        %5290 = vdwg.mxu0
        %v5291 = vmax.f32 %v4822, 0.0
        %v5292 = vmax.f32 %v4824, 0.0
        %v5293 = vmax.f32 %v4885, 0.0
        %v5294 = vmax.f32 %v4887, 0.0
        %v5295 = vmax.f32 %v4948, 0.0
        %v5296 = vmax.f32 %v4950, 0.0
        %v5297 = vmax.f32 %v5011, 0.0
        %v5298 = vmax.f32 %v5013, 0.0
        %v5299 = vmax.f32 %v5074, 0.0
        %v5300 = vmax.f32 %v5076, 0.0
        %v5301 = vmax.f32 %v5137, 0.0
        %v5302 = vmax.f32 %v5139, 0.0
        %v5303 = vmax.f32 %v5200, 0.0
        %v5304 = vmax.f32 %v5202, 0.0
        %v5305 = vmax.f32 %v5263, 0.0
        %v5306 = vmax.f32 %v5265, 0.0
        %v5307 = vmax.f32 %v4826, 0.0
        %v5308 = vmax.f32 %v4828, 0.0
        %v5309 = vmax.f32 %v4889, 0.0
        %v5310 = vmax.f32 %v4891, 0.0
        %v5311 = vmax.f32 %v4952, 0.0
        %v5312 = vmax.f32 %v4954, 0.0
        %v5313 = vmax.f32 %v5015, 0.0
        %v5314 = vmax.f32 %v5017, 0.0
        %v5315 = vmax.f32 %v5078, 0.0
        %v5316 = vmax.f32 %v5080, 0.0
        %v5317 = vmax.f32 %v5141, 0.0
        %v5318 = vmax.f32 %v5143, 0.0
        %v5319 = vmax.f32 %v5204, 0.0
        %v5320 = vmax.f32 %v5206, 0.0
        %v5321 = vmax.f32 %v5267, 0.0
        %v5322 = vmax.f32 %v5269, 0.0
        %v5323 = vmax.f32 %v4832, 0.0
        %v5324 = vmax.f32 %v4834, 0.0
        %v5325 = vmax.f32 %v4895, 0.0
        %v5326 = vmax.f32 %v4897, 0.0
        %v5327 = vmax.f32 %v4958, 0.0
        %v5328 = vmax.f32 %v4960, 0.0
        %v5329 = vmax.f32 %v5021, 0.0
        %v5330 = vmax.f32 %v5023, 0.0
        %v5331 = vmax.f32 %v5084, 0.0
        %v5332 = vmax.f32 %v5086, 0.0
        %v5333 = vmax.f32 %v5147, 0.0
        %v5334 = vmax.f32 %v5149, 0.0
        %v5335 = vmax.f32 %v5210, 0.0
        %v5336 = vmax.f32 %v5212, 0.0
        %v5337 = vmax.f32 %v5273, 0.0
        %v5338 = vmax.f32 %v5275, 0.0
        %v5339 = vmax.f32 %v4836, 0.0
        %v5340 = vmax.f32 %v4838, 0.0
        %v5341 = vmax.f32 %v4899, 0.0
        %v5342 = vmax.f32 %v4901, 0.0
        %v5343 = vmax.f32 %v4962, 0.0
        %v5344 = vmax.f32 %v4964, 0.0
        %v5345 = vmax.f32 %v5025, 0.0
        %v5346 = vmax.f32 %v5027, 0.0
        %v5347 = vmax.f32 %v5088, 0.0
        %v5348 = vmax.f32 %v5090, 0.0
        %v5349 = vmax.f32 %v5151, 0.0
        %v5350 = vmax.f32 %v5153, 0.0
        %v5351 = vmax.f32 %v5214, 0.0
        %v5352 = vmax.f32 %v5216, 0.0
        %v5353 = vmax.f32 %v5277, 0.0
        %v5354 = vmax.f32 %v5279, 0.0
        %v5355 = vmax.f32 %v4842, 0.0
        %v5356 = vmax.f32 %v4844, 0.0
        %v5357 = vmax.f32 %v4905, 0.0
        %v5358 = vmax.f32 %v4907, 0.0
        %v5359 = vmax.f32 %v4968, 0.0
        %v5360 = vmax.f32 %v4970, 0.0
        %v5361 = vmax.f32 %v5031, 0.0
        %v5362 = vmax.f32 %v5033, 0.0
        %v5363 = vmax.f32 %v5094, 0.0
        %v5364 = vmax.f32 %v5096, 0.0
        %v5365 = vmax.f32 %v5157, 0.0
        %v5366 = vmax.f32 %v5159, 0.0
        %v5367 = vmax.f32 %v5220, 0.0
        %v5368 = vmax.f32 %v5222, 0.0
        %v5369 = vmax.f32 %v5283, 0.0
        %v5370 = vmax.f32 %v5285, 0.0
        %v5371 = vmax.f32 %v4846, 0.0
        %v5372 = vmax.f32 %v4848, 0.0
        %v5373 = vmax.f32 %v4909, 0.0
        %v5374 = vmax.f32 %v4911, 0.0
        %v5375 = vmax.f32 %v4972, 0.0
        %v5376 = vmax.f32 %v4974, 0.0
        %v5377 = vmax.f32 %v5035, 0.0
        %v5378 = vmax.f32 %v5037, 0.0
        %v5379 = vmax.f32 %v5098, 0.0
        %v5380 = vmax.f32 %v5100, 0.0
        %v5381 = vmax.f32 %v5161, 0.0
        %v5382 = vmax.f32 %v5163, 0.0
        %v5383 = vmax.f32 %v5224, 0.0
        %v5384 = vmax.f32 %v5226, 0.0
        %v5385 = vmax.f32 %v5287, 0.0
        %v5386 = vmax.f32 %v5289, 0.0
        %v5387 = vpack.c.bf16 %v5307, %v5291
        %v5388 = vpack.c.bf16 %v5308, %v5292
        %v5389 = vpack.c.bf16 %v5309, %v5293
        %v5390 = vpack.c.bf16 %v5310, %v5294
        %v5391 = vpack.c.bf16 %v5311, %v5295
        %v5392 = vpack.c.bf16 %v5312, %v5296
        %v5393 = vpack.c.bf16 %v5313, %v5297
        %v5394 = vpack.c.bf16 %v5314, %v5298
        %v5395 = vpack.c.bf16 %v5315, %v5299
        %v5396 = vpack.c.bf16 %v5316, %v5300
        %v5397 = vpack.c.bf16 %v5317, %v5301
        %v5398 = vpack.c.bf16 %v5318, %v5302
        %v5399 = vpack.c.bf16 %v5319, %v5303
        %v5400 = vpack.c.bf16 %v5320, %v5304
        %v5401 = vpack.c.bf16 %v5321, %v5305
        %v5402 = vpack.c.bf16 %v5322, %v5306
        %v5403 = vpack.c.bf16 %v5339, %v5323
        %v5404 = vpack.c.bf16 %v5340, %v5324
        %v5405 = vpack.c.bf16 %v5341, %v5325
        %v5406 = vpack.c.bf16 %v5342, %v5326
        %v5407 = vpack.c.bf16 %v5343, %v5327
        %v5408 = vpack.c.bf16 %v5344, %v5328
        %v5409 = vpack.c.bf16 %v5345, %v5329
        %v5410 = vpack.c.bf16 %v5346, %v5330
        %v5411 = vpack.c.bf16 %v5347, %v5331
        %v5412 = vpack.c.bf16 %v5348, %v5332
        %v5413 = vpack.c.bf16 %v5349, %v5333
        %v5414 = vpack.c.bf16 %v5350, %v5334
        %v5415 = vpack.c.bf16 %v5351, %v5335
        %v5416 = vpack.c.bf16 %v5352, %v5336
        %v5417 = vpack.c.bf16 %v5353, %v5337
        %v5418 = vpack.c.bf16 %v5354, %v5338
        %v5419 = vpack.c.bf16 %v5371, %v5355
        %v5420 = vpack.c.bf16 %v5372, %v5356
        %v5421 = vpack.c.bf16 %v5373, %v5357
        %v5422 = vpack.c.bf16 %v5374, %v5358
        %v5423 = vpack.c.bf16 %v5375, %v5359
        %v5424 = vpack.c.bf16 %v5376, %v5360
        %v5425 = vpack.c.bf16 %v5377, %v5361
        %v5426 = vpack.c.bf16 %v5378, %v5362
        %v5427 = vpack.c.bf16 %v5379, %v5363
        %v5428 = vpack.c.bf16 %v5380, %v5364
        %v5429 = vpack.c.bf16 %v5381, %v5365
        %v5430 = vpack.c.bf16 %v5382, %v5366
        %v5431 = vpack.c.bf16 %v5383, %v5367
        %v5432 = vpack.c.bf16 %v5384, %v5368
        %v5433 = vpack.c.bf16 %v5385, %v5369
        %v5434 = vpack.c.bf16 %v5386, %v5370
        %v5435 = vld [vmem:[%s999] sm:$0xf]
        %v5436 = vld [vmem:[%s999 + $0x4] sm:$0xf]
        %v5437 = vld [vmem:[%s999 + $0x8] sm:$0xf]
        %v5438 = vld [vmem:[%s999 + $0xc] sm:$0xf]
        %v5439 = vld [vmem:[%s999 + $0x10] sm:$0xf]
        %v5440 = vld [vmem:[%s999 + $0x14] sm:$0xf]
        %v5441 = vld [vmem:[%s999 + $0x18] sm:$0xf]
        %v5442 = vld [vmem:[%s999 + $0x1c] sm:$0xf]
        %v5443 = vld [vmem:[%s999 + $0x20] sm:$0xf]
        %v5444 = vld [vmem:[%s999 + $0x24] sm:$0xf]
        %v5445 = vld [vmem:[%s999 + $0x28] sm:$0xf]
        %v5446 = vld [vmem:[%s999 + $0x2c] sm:$0xf]
        %v5447 = vld [vmem:[%s999 + $0x30] sm:$0xf]
        %v5448 = vld [vmem:[%s999 + $0x34] sm:$0xf]
        %v5449 = vld [vmem:[%s999 + $0x38] sm:$0xf]
        %v5450 = vld [vmem:[%s999 + $0x3c] sm:$0xf]
        %v5451 = vld [vmem:[%s999 + $0x40] sm:$0xf]
        %v5452 = vld [vmem:[%s999 + $0x44] sm:$0xf]
        %v5453 = vld [vmem:[%s999 + $0x48] sm:$0xf]
        %v5454 = vld [vmem:[%s999 + $0x4c] sm:$0xf]
        %v5455 = vld [vmem:[%s999 + $0x50] sm:$0xf]
        %v5456 = vld [vmem:[%s999 + $0x54] sm:$0xf]
        %v5457 = vld [vmem:[%s999 + $0x58] sm:$0xf]
        %v5458 = vld [vmem:[%s999 + $0x5c] sm:$0xf]
        %v5459 = vld [vmem:[%s999 + $0x60] sm:$0xf]
        %v5460 = vld [vmem:[%s999 + $0x64] sm:$0xf]
        %v5461 = vld [vmem:[%s999 + $0x68] sm:$0xf]
        %v5462 = vld [vmem:[%s999 + $0x6c] sm:$0xf]
        %v5463 = vld [vmem:[%s999 + $0x70] sm:$0xf]
        %v5464 = vld [vmem:[%s999 + $0x74] sm:$0xf]
        %v5465 = vld [vmem:[%s999 + $0x78] sm:$0xf]
        %v5466 = vld [vmem:[%s999 + $0x7c] sm:$0xf]
        %v5467 = vld [vmem:[%s999 + $0x80] sm:$0xf]
        %v5468 = vld [vmem:[%s999 + $0x84] sm:$0xf]
        %v5469 = vld [vmem:[%s999 + $0x88] sm:$0xf]
        %v5470 = vld [vmem:[%s999 + $0x8c] sm:$0xf]
        %v5471 = vld [vmem:[%s999 + $0x90] sm:$0xf]
        %v5472 = vld [vmem:[%s999 + $0x94] sm:$0xf]
        %v5473 = vld [vmem:[%s999 + $0x98] sm:$0xf]
        %v5474 = vld [vmem:[%s999 + $0x9c] sm:$0xf]
        %v5475 = vld [vmem:[%s999 + $0xa0] sm:$0xf]
        %v5476 = vld [vmem:[%s999 + $0xa4] sm:$0xf]
        %v5477 = vld [vmem:[%s999 + $0xa8] sm:$0xf]
        %v5478 = vld [vmem:[%s999 + $0xac] sm:$0xf]
        %v5479 = vld [vmem:[%s999 + $0xb0] sm:$0xf]
        %v5480 = vld [vmem:[%s999 + $0xb4] sm:$0xf]
        %v5481 = vld [vmem:[%s999 + $0xb8] sm:$0xf]
        %v5482 = vld [vmem:[%s999 + $0xbc] sm:$0xf]
        %v5483 = vld [vmem:[%s999 + $0xc0] sm:$0xf]
        %v5484 = vld [vmem:[%s999 + $0xc4] sm:$0xf]
        %v5485 = vld [vmem:[%s999 + $0xc8] sm:$0xf]
        %v5486 = vld [vmem:[%s999 + $0xcc] sm:$0xf]
        %v5487 = vld [vmem:[%s999 + $0xd0] sm:$0xf]
        %v5488 = vld [vmem:[%s999 + $0xd4] sm:$0xf]
        %v5489 = vld [vmem:[%s999 + $0xd8] sm:$0xf]
        %v5490 = vld [vmem:[%s999 + $0xdc] sm:$0xf]
        %v5491 = vld [vmem:[%s999 + $0xe0] sm:$0xf]
        %v5492 = vld [vmem:[%s999 + $0xe4] sm:$0xf]
        %v5493 = vld [vmem:[%s999 + $0xe8] sm:$0xf]
        %v5494 = vld [vmem:[%s999 + $0xec] sm:$0xf]
        %v5495 = vld [vmem:[%s999 + $0xf0] sm:$0xf]
        %v5496 = vld [vmem:[%s999 + $0xf4] sm:$0xf]
        %v5497 = vld [vmem:[%s999 + $0xf8] sm:$0xf]
        %v5498 = vld [vmem:[%s999 + $0xfc] sm:$0xf]
        %v5499 = vld [vmem:[%s999 + $0x100] sm:$0xf]
        %v5500 = vld [vmem:[%s999 + $0x104] sm:$0xf]
        %v5501 = vld [vmem:[%s999 + $0x108] sm:$0xf]
        %v5502 = vld [vmem:[%s999 + $0x10c] sm:$0xf]
        %v5503 = vld [vmem:[%s999 + $0x110] sm:$0xf]
        %v5504 = vld [vmem:[%s999 + $0x114] sm:$0xf]
        %v5505 = vld [vmem:[%s999 + $0x118] sm:$0xf]
        %v5506 = vld [vmem:[%s999 + $0x11c] sm:$0xf]
        %v5507 = vld [vmem:[%s999 + $0x120] sm:$0xf]
        %v5508 = vld [vmem:[%s999 + $0x124] sm:$0xf]
        %v5509 = vld [vmem:[%s999 + $0x128] sm:$0xf]
        %v5510 = vld [vmem:[%s999 + $0x12c] sm:$0xf]
        %v5511 = vld [vmem:[%s999 + $0x130] sm:$0xf]
        %v5512 = vld [vmem:[%s999 + $0x134] sm:$0xf]
        %v5513 = vld [vmem:[%s999 + $0x138] sm:$0xf]
        %v5514 = vld [vmem:[%s999 + $0x13c] sm:$0xf]
        %v5515 = vld [vmem:[%s999 + $0x140] sm:$0xf]
        %v5516 = vld [vmem:[%s999 + $0x144] sm:$0xf]
        %v5517 = vld [vmem:[%s999 + $0x148] sm:$0xf]
        %v5518 = vld [vmem:[%s999 + $0x14c] sm:$0xf]
        %v5519 = vld [vmem:[%s999 + $0x150] sm:$0xf]
        %v5520 = vld [vmem:[%s999 + $0x154] sm:$0xf]
        %v5521 = vld [vmem:[%s999 + $0x158] sm:$0xf]
        %v5522 = vld [vmem:[%s999 + $0x15c] sm:$0xf]
        %v5523 = vld [vmem:[%s999 + $0x160] sm:$0xf]
        %v5524 = vld [vmem:[%s999 + $0x164] sm:$0xf]
        %v5525 = vld [vmem:[%s999 + $0x168] sm:$0xf]
        %v5526 = vld [vmem:[%s999 + $0x16c] sm:$0xf]
        %v5527 = vld [vmem:[%s999 + $0x170] sm:$0xf]
        %v5528 = vld [vmem:[%s999 + $0x174] sm:$0xf]
        %v5529 = vld [vmem:[%s999 + $0x178] sm:$0xf]
        %v5530 = vld [vmem:[%s999 + $0x17c] sm:$0xf]
        %v5531 = vld [vmem:[%s999 + $0x180] sm:$0xf]
        %v5532 = vld [vmem:[%s999 + $0x184] sm:$0xf]
        %v5533 = vld [vmem:[%s999 + $0x188] sm:$0xf]
        %v5534 = vld [vmem:[%s999 + $0x18c] sm:$0xf]
        %v5535 = vld [vmem:[%s999 + $0x190] sm:$0xf]
        %v5536 = vld [vmem:[%s999 + $0x194] sm:$0xf]
        %v5537 = vld [vmem:[%s999 + $0x198] sm:$0xf]
        %v5538 = vld [vmem:[%s999 + $0x19c] sm:$0xf]
        %v5539 = vld [vmem:[%s999 + $0x1a0] sm:$0xf]
        %v5540 = vld [vmem:[%s999 + $0x1a4] sm:$0xf]
        %v5541 = vld [vmem:[%s999 + $0x1a8] sm:$0xf]
        %v5542 = vld [vmem:[%s999 + $0x1ac] sm:$0xf]
        %v5543 = vld [vmem:[%s999 + $0x1b0] sm:$0xf]
        %v5544 = vld [vmem:[%s999 + $0x1b4] sm:$0xf]
        %v5545 = vld [vmem:[%s999 + $0x1b8] sm:$0xf]
        %v5546 = vld [vmem:[%s999 + $0x1bc] sm:$0xf]
        %v5547 = vld [vmem:[%s999 + $0x1c0] sm:$0xf]
        %v5548 = vld [vmem:[%s999 + $0x1c4] sm:$0xf]
        %v5549 = vld [vmem:[%s999 + $0x1c8] sm:$0xf]
        %v5550 = vld [vmem:[%s999 + $0x1cc] sm:$0xf]
        %v5551 = vld [vmem:[%s999 + $0x1d0] sm:$0xf]
        %v5552 = vld [vmem:[%s999 + $0x1d4] sm:$0xf]
        %v5553 = vld [vmem:[%s999 + $0x1d8] sm:$0xf]
        %v5554 = vld [vmem:[%s999 + $0x1dc] sm:$0xf]
        %v5555 = vld [vmem:[%s999 + $0x1e0] sm:$0xf]
        %v5556 = vld [vmem:[%s999 + $0x1e4] sm:$0xf]
        %v5557 = vld [vmem:[%s999 + $0x1e8] sm:$0xf]
        %v5558 = vld [vmem:[%s999 + $0x1ec] sm:$0xf]
        %v5559 = vld [vmem:[%s999 + $0x1f0] sm:$0xf]
        %v5560 = vld [vmem:[%s999 + $0x1f4] sm:$0xf]
        %v5561 = vld [vmem:[%s999 + $0x1f8] sm:$0xf]
        %v5562 = vld [vmem:[%s999 + $0x1fc] sm:$0xf]
        %v5563 = vld [vmem:[%s999 + $0x200] sm:$0xf]
        %v5564 = vld [vmem:[%s999 + $0x204] sm:$0xf]
        %v5565 = vld [vmem:[%s999 + $0x208] sm:$0xf]
        %v5566 = vld [vmem:[%s999 + $0x20c] sm:$0xf]
        %v5567 = vld [vmem:[%s999 + $0x210] sm:$0xf]
        %v5568 = vld [vmem:[%s999 + $0x214] sm:$0xf]
        %v5569 = vld [vmem:[%s999 + $0x218] sm:$0xf]
        %v5570 = vld [vmem:[%s999 + $0x21c] sm:$0xf]
        %v5571 = vld [vmem:[%s999 + $0x220] sm:$0xf]
        %v5572 = vld [vmem:[%s999 + $0x224] sm:$0xf]
        %v5573 = vld [vmem:[%s999 + $0x228] sm:$0xf]
        %v5574 = vld [vmem:[%s999 + $0x22c] sm:$0xf]
        %v5575 = vld [vmem:[%s999 + $0x230] sm:$0xf]
        %v5576 = vld [vmem:[%s999 + $0x234] sm:$0xf]
        %v5577 = vld [vmem:[%s999 + $0x238] sm:$0xf]
        %v5578 = vld [vmem:[%s999 + $0x23c] sm:$0xf]
        %v5579 = vld [vmem:[%s999 + $0x240] sm:$0xf]
        %v5580 = vld [vmem:[%s999 + $0x244] sm:$0xf]
        %v5581 = vld [vmem:[%s999 + $0x248] sm:$0xf]
        %v5582 = vld [vmem:[%s999 + $0x24c] sm:$0xf]
        %v5583 = vld [vmem:[%s999 + $0x250] sm:$0xf]
        %v5584 = vld [vmem:[%s999 + $0x254] sm:$0xf]
        %v5585 = vld [vmem:[%s999 + $0x258] sm:$0xf]
        %v5586 = vld [vmem:[%s999 + $0x25c] sm:$0xf]
        %v5587 = vld [vmem:[%s999 + $0x260] sm:$0xf]
        %v5588 = vld [vmem:[%s999 + $0x264] sm:$0xf]
        %v5589 = vld [vmem:[%s999 + $0x268] sm:$0xf]
        %v5590 = vld [vmem:[%s999 + $0x26c] sm:$0xf]
        %v5591 = vld [vmem:[%s999 + $0x270] sm:$0xf]
        %v5592 = vld [vmem:[%s999 + $0x274] sm:$0xf]
        %v5593 = vld [vmem:[%s999 + $0x278] sm:$0xf]
        %v5594 = vld [vmem:[%s999 + $0x27c] sm:$0xf]
        %v5595 = vld [vmem:[%s999 + $0x280] sm:$0xf]
        %v5596 = vld [vmem:[%s999 + $0x284] sm:$0xf]
        %v5597 = vld [vmem:[%s999 + $0x288] sm:$0xf]
        %v5598 = vld [vmem:[%s999 + $0x28c] sm:$0xf]
        %v5599 = vld [vmem:[%s999 + $0x290] sm:$0xf]
        %v5600 = vld [vmem:[%s999 + $0x294] sm:$0xf]
        %v5601 = vld [vmem:[%s999 + $0x298] sm:$0xf]
        %v5602 = vld [vmem:[%s999 + $0x29c] sm:$0xf]
        %v5603 = vld [vmem:[%s999 + $0x2a0] sm:$0xf]
        %v5604 = vld [vmem:[%s999 + $0x2a4] sm:$0xf]
        %v5605 = vld [vmem:[%s999 + $0x2a8] sm:$0xf]
        %v5606 = vld [vmem:[%s999 + $0x2ac] sm:$0xf]
        %v5607 = vld [vmem:[%s999 + $0x2b0] sm:$0xf]
        %v5608 = vld [vmem:[%s999 + $0x2b4] sm:$0xf]
        %v5609 = vld [vmem:[%s999 + $0x2b8] sm:$0xf]
        %v5610 = vld [vmem:[%s999 + $0x2bc] sm:$0xf]
        %v5611 = vld [vmem:[%s999 + $0x2c0] sm:$0xf]
        %v5612 = vld [vmem:[%s999 + $0x2c4] sm:$0xf]
        %v5613 = vld [vmem:[%s999 + $0x2c8] sm:$0xf]
        %v5614 = vld [vmem:[%s999 + $0x2cc] sm:$0xf]
        %v5615 = vld [vmem:[%s999 + $0x2d0] sm:$0xf]
        %v5616 = vld [vmem:[%s999 + $0x2d4] sm:$0xf]
        %v5617 = vld [vmem:[%s999 + $0x2d8] sm:$0xf]
        %v5618 = vld [vmem:[%s999 + $0x2dc] sm:$0xf]
        %v5619 = vld [vmem:[%s999 + $0x2e0] sm:$0xf]
        %v5620 = vld [vmem:[%s999 + $0x2e4] sm:$0xf]
        %v5621 = vld [vmem:[%s999 + $0x2e8] sm:$0xf]
        %v5622 = vld [vmem:[%s999 + $0x2ec] sm:$0xf]
        %v5623 = vld [vmem:[%s999 + $0x2f0] sm:$0xf]
        %v5624 = vld [vmem:[%s999 + $0x2f4] sm:$0xf]
        %v5625 = vld [vmem:[%s999 + $0x2f8] sm:$0xf]
        %v5626 = vld [vmem:[%s999 + $0x2fc] sm:$0xf]
        %v5627 = vld [vmem:[%s999 + $0x300] sm:$0xf]
        %v5628 = vld [vmem:[%s999 + $0x304] sm:$0xf]
        %v5629 = vld [vmem:[%s999 + $0x308] sm:$0xf]
        %v5630 = vld [vmem:[%s999 + $0x30c] sm:$0xf]
        %v5631 = vld [vmem:[%s999 + $0x310] sm:$0xf]
        %v5632 = vld [vmem:[%s999 + $0x314] sm:$0xf]
        %v5633 = vld [vmem:[%s999 + $0x318] sm:$0xf]
        %v5634 = vld [vmem:[%s999 + $0x31c] sm:$0xf]
        %v5635 = vld [vmem:[%s999 + $0x320] sm:$0xf]
        %v5636 = vld [vmem:[%s999 + $0x324] sm:$0xf]
        %v5637 = vld [vmem:[%s999 + $0x328] sm:$0xf]
        %v5638 = vld [vmem:[%s999 + $0x32c] sm:$0xf]
        %v5639 = vld [vmem:[%s999 + $0x330] sm:$0xf]
        %v5640 = vld [vmem:[%s999 + $0x334] sm:$0xf]
        %v5641 = vld [vmem:[%s999 + $0x338] sm:$0xf]
        %v5642 = vld [vmem:[%s999 + $0x33c] sm:$0xf]
        %v5643 = vld [vmem:[%s999 + $0x340] sm:$0xf]
        %v5644 = vld [vmem:[%s999 + $0x344] sm:$0xf]
        %v5645 = vld [vmem:[%s999 + $0x348] sm:$0xf]
        %v5646 = vld [vmem:[%s999 + $0x34c] sm:$0xf]
        %v5647 = vld [vmem:[%s999 + $0x350] sm:$0xf]
        %v5648 = vld [vmem:[%s999 + $0x354] sm:$0xf]
        %v5649 = vld [vmem:[%s999 + $0x358] sm:$0xf]
        %v5650 = vld [vmem:[%s999 + $0x35c] sm:$0xf]
        %v5651 = vld [vmem:[%s999 + $0x360] sm:$0xf]
        %v5652 = vld [vmem:[%s999 + $0x364] sm:$0xf]
        %v5653 = vld [vmem:[%s999 + $0x368] sm:$0xf]
        %v5654 = vld [vmem:[%s999 + $0x36c] sm:$0xf]
        %v5655 = vld [vmem:[%s999 + $0x370] sm:$0xf]
        %v5656 = vld [vmem:[%s999 + $0x374] sm:$0xf]
        %v5657 = vld [vmem:[%s999 + $0x378] sm:$0xf]
        %v5658 = vld [vmem:[%s999 + $0x37c] sm:$0xf]
        %v5659 = vld [vmem:[%s999 + $0x380] sm:$0xf]
        %v5660 = vld [vmem:[%s999 + $0x384] sm:$0xf]
        %v5661 = vld [vmem:[%s999 + $0x388] sm:$0xf]
        %v5662 = vld [vmem:[%s999 + $0x38c] sm:$0xf]
        %v5663 = vld [vmem:[%s999 + $0x390] sm:$0xf]
        %v5664 = vld [vmem:[%s999 + $0x394] sm:$0xf]
        %v5665 = vld [vmem:[%s999 + $0x398] sm:$0xf]
        %v5666 = vld [vmem:[%s999 + $0x39c] sm:$0xf]
        %v5667 = vld [vmem:[%s999 + $0x3a0] sm:$0xf]
        %v5668 = vld [vmem:[%s999 + $0x3a4] sm:$0xf]
        %v5669 = vld [vmem:[%s999 + $0x3a8] sm:$0xf]
        %v5670 = vld [vmem:[%s999 + $0x3ac] sm:$0xf]
        %v5671 = vld [vmem:[%s999 + $0x3b0] sm:$0xf]
        %v5672 = vld [vmem:[%s999 + $0x3b4] sm:$0xf]
        %v5673 = vld [vmem:[%s999 + $0x3b8] sm:$0xf]
        %v5674 = vld [vmem:[%s999 + $0x3bc] sm:$0xf]
        %v5675 = vld [vmem:[%s999 + $0x3c0] sm:$0xf]
        %v5676 = vld [vmem:[%s999 + $0x3c4] sm:$0xf]
        %v5677 = vld [vmem:[%s999 + $0x3c8] sm:$0xf]
        %v5678 = vld [vmem:[%s999 + $0x3cc] sm:$0xf]
        %v5679 = vld [vmem:[%s999 + $0x3d0] sm:$0xf]
        %v5680 = vld [vmem:[%s999 + $0x3d4] sm:$0xf]
        %v5681 = vld [vmem:[%s999 + $0x3d8] sm:$0xf]
        %v5682 = vld [vmem:[%s999 + $0x3dc] sm:$0xf]
        %v5683 = vld [vmem:[%s999 + $0x3e0] sm:$0xf]
        %v5684 = vld [vmem:[%s999 + $0x3e4] sm:$0xf]
        %v5685 = vld [vmem:[%s999 + $0x3e8] sm:$0xf]
        %v5686 = vld [vmem:[%s999 + $0x3ec] sm:$0xf]
        %v5687 = vld [vmem:[%s999 + $0x3f0] sm:$0xf]
        %v5688 = vld [vmem:[%s999 + $0x3f4] sm:$0xf]
        %v5689 = vld [vmem:[%s999 + $0x3f8] sm:$0xf]
        %v5690 = vld [vmem:[%s999 + $0x3fc] sm:$0xf]
        %v5691 = vld [vmem:[%s1002] sm:$0x1]
        %v5693 = vlaneseq
        %v5694 = vshrl.u32 %v5693, 7
        %v5695 = vsub.s32 0, %v5694
        %v5696 = vrot.slane %v5691, %v5695
        %v5954 = vunpack.c.l.b16 %v5435
        %v5955 = vunpack.c.l.b16 %v5436
        %v5956 = vunpack.c.l.b16 %v5437
        %v5957 = vunpack.c.l.b16 %v5438
        %v5958 = vunpack.c.l.b16 %v5439
        %v5959 = vunpack.c.l.b16 %v5440
        %v5960 = vunpack.c.l.b16 %v5441
        %v5961 = vunpack.c.l.b16 %v5442
        %v5962 = vunpack.c.l.b16 %v5443
        %v5963 = vunpack.c.l.b16 %v5444
        %v5964 = vunpack.c.l.b16 %v5445
        %v5965 = vunpack.c.l.b16 %v5446
        %v5966 = vunpack.c.l.b16 %v5447
        %v5967 = vunpack.c.l.b16 %v5448
        %v5968 = vunpack.c.l.b16 %v5449
        %v5969 = vunpack.c.l.b16 %v5450
        %v5970 = vunpack.c.l.b16 %v5451
        %v5971 = vunpack.c.l.b16 %v5452
        %v5972 = vunpack.c.l.b16 %v5453
        %v5973 = vunpack.c.l.b16 %v5454
        %v5974 = vunpack.c.l.b16 %v5455
        %v5975 = vunpack.c.l.b16 %v5456
        %v5976 = vunpack.c.l.b16 %v5457
        %v5977 = vunpack.c.l.b16 %v5458
        %v5978 = vunpack.c.l.b16 %v5459
        %v5979 = vunpack.c.l.b16 %v5460
        %v5980 = vunpack.c.l.b16 %v5461
        %v5981 = vunpack.c.l.b16 %v5462
        %v5982 = vunpack.c.l.b16 %v5463
        %v5983 = vunpack.c.l.b16 %v5464
        %v5984 = vunpack.c.l.b16 %v5465
        %v5985 = vunpack.c.l.b16 %v5466
        %v5986 = vunpack.c.l.b16 %v5467
        %v5987 = vunpack.c.l.b16 %v5468
        %v5988 = vunpack.c.l.b16 %v5469
        %v5989 = vunpack.c.l.b16 %v5470
        %v5990 = vunpack.c.l.b16 %v5471
        %v5991 = vunpack.c.l.b16 %v5472
        %v5992 = vunpack.c.l.b16 %v5473
        %v5993 = vunpack.c.l.b16 %v5474
        %v5994 = vunpack.c.l.b16 %v5475
        %v5995 = vunpack.c.l.b16 %v5476
        %v5996 = vunpack.c.l.b16 %v5477
        %v5997 = vunpack.c.l.b16 %v5478
        %v5998 = vunpack.c.l.b16 %v5479
        %v5999 = vunpack.c.l.b16 %v5480
        %v6000 = vunpack.c.l.b16 %v5481
        %v6001 = vunpack.c.l.b16 %v5482
        %v6002 = vunpack.c.l.b16 %v5483
        %v6003 = vunpack.c.l.b16 %v5484
        %v6004 = vunpack.c.l.b16 %v5485
        %v6005 = vunpack.c.l.b16 %v5486
        %v6006 = vunpack.c.l.b16 %v5487
        %v6007 = vunpack.c.l.b16 %v5488
        %v6008 = vunpack.c.l.b16 %v5489
        %v6009 = vunpack.c.l.b16 %v5490
        %v6010 = vunpack.c.l.b16 %v5491
        %v6011 = vunpack.c.l.b16 %v5492
        %v6012 = vunpack.c.l.b16 %v5493
        %v6013 = vunpack.c.l.b16 %v5494
        %v6014 = vunpack.c.l.b16 %v5495
        %v6015 = vunpack.c.l.b16 %v5496
        %v6016 = vunpack.c.l.b16 %v5497
        %v6017 = vunpack.c.l.b16 %v5498
        %v6018 = vunpack.c.l.b16 %v5499
        %v6019 = vunpack.c.l.b16 %v5500
        %v6020 = vunpack.c.l.b16 %v5501
        %v6021 = vunpack.c.l.b16 %v5502
        %v6022 = vunpack.c.l.b16 %v5503
        %v6023 = vunpack.c.l.b16 %v5504
        %v6024 = vunpack.c.l.b16 %v5505
        %v6025 = vunpack.c.l.b16 %v5506
        %v6026 = vunpack.c.l.b16 %v5507
        %v6027 = vunpack.c.l.b16 %v5508
        %v6028 = vunpack.c.l.b16 %v5509
        %v6029 = vunpack.c.l.b16 %v5510
        %v6030 = vunpack.c.l.b16 %v5511
        %v6031 = vunpack.c.l.b16 %v5512
        %v6032 = vunpack.c.l.b16 %v5513
        %v6033 = vunpack.c.l.b16 %v5514
        %v6034 = vunpack.c.l.b16 %v5515
        %v6035 = vunpack.c.l.b16 %v5516
        %v6036 = vunpack.c.l.b16 %v5517
        %v6037 = vunpack.c.l.b16 %v5518
        %v6038 = vunpack.c.l.b16 %v5519
        %v6039 = vunpack.c.l.b16 %v5520
        %v6040 = vunpack.c.l.b16 %v5521
        %v6041 = vunpack.c.l.b16 %v5522
        %v6042 = vunpack.c.l.b16 %v5523
        %v6043 = vunpack.c.l.b16 %v5524
        %v6044 = vunpack.c.l.b16 %v5525
        %v6045 = vunpack.c.l.b16 %v5526
        %v6046 = vunpack.c.l.b16 %v5527
        %v6047 = vunpack.c.l.b16 %v5528
        %v6048 = vunpack.c.l.b16 %v5529
        %v6049 = vunpack.c.l.b16 %v5530
        %v6050 = vunpack.c.l.b16 %v5531
        %v6051 = vunpack.c.l.b16 %v5532
        %v6052 = vunpack.c.l.b16 %v5533
        %v6053 = vunpack.c.l.b16 %v5534
        %v6054 = vunpack.c.l.b16 %v5535
        %v6055 = vunpack.c.l.b16 %v5536
        %v6056 = vunpack.c.l.b16 %v5537
        %v6057 = vunpack.c.l.b16 %v5538
        %v6058 = vunpack.c.l.b16 %v5539
        %v6059 = vunpack.c.l.b16 %v5540
        %v6060 = vunpack.c.l.b16 %v5541
        %v6061 = vunpack.c.l.b16 %v5542
        %v6062 = vunpack.c.l.b16 %v5543
        %v6063 = vunpack.c.l.b16 %v5544
        %v6064 = vunpack.c.l.b16 %v5545
        %v6065 = vunpack.c.l.b16 %v5546
        %v6066 = vunpack.c.l.b16 %v5547
        %v6067 = vunpack.c.l.b16 %v5548
        %v6068 = vunpack.c.l.b16 %v5549
        %v6069 = vunpack.c.l.b16 %v5550
        %v6070 = vunpack.c.l.b16 %v5551
        %v6071 = vunpack.c.l.b16 %v5552
        %v6072 = vunpack.c.l.b16 %v5553
        %v6073 = vunpack.c.l.b16 %v5554
        %v6074 = vunpack.c.l.b16 %v5555
        %v6075 = vunpack.c.l.b16 %v5556
        %v6076 = vunpack.c.l.b16 %v5557
        %v6077 = vunpack.c.l.b16 %v5558
        %v6078 = vunpack.c.l.b16 %v5559
        %v6079 = vunpack.c.l.b16 %v5560
        %v6080 = vunpack.c.l.b16 %v5561
        %v6081 = vunpack.c.l.b16 %v5562
        %v6082 = vunpack.c.l.b16 %v5563
        %v6083 = vunpack.c.l.b16 %v5564
        %v6084 = vunpack.c.l.b16 %v5565
        %v6085 = vunpack.c.l.b16 %v5566
        %v6086 = vunpack.c.l.b16 %v5567
        %v6087 = vunpack.c.l.b16 %v5568
        %v6088 = vunpack.c.l.b16 %v5569
        %v6089 = vunpack.c.l.b16 %v5570
        %v6090 = vunpack.c.l.b16 %v5571
        %v6091 = vunpack.c.l.b16 %v5572
        %v6092 = vunpack.c.l.b16 %v5573
        %v6093 = vunpack.c.l.b16 %v5574
        %v6094 = vunpack.c.l.b16 %v5575
        %v6095 = vunpack.c.l.b16 %v5576
        %v6096 = vunpack.c.l.b16 %v5577
        %v6097 = vunpack.c.l.b16 %v5578
        %v6098 = vunpack.c.l.b16 %v5579
        %v6099 = vunpack.c.l.b16 %v5580
        %v6100 = vunpack.c.l.b16 %v5581
        %v6101 = vunpack.c.l.b16 %v5582
        %v6102 = vunpack.c.l.b16 %v5583
        %v6103 = vunpack.c.l.b16 %v5584
        %v6104 = vunpack.c.l.b16 %v5585
        %v6105 = vunpack.c.l.b16 %v5586
        %v6106 = vunpack.c.l.b16 %v5587
        %v6107 = vunpack.c.l.b16 %v5588
        %v6108 = vunpack.c.l.b16 %v5589
        %v6109 = vunpack.c.l.b16 %v5590
        %v6110 = vunpack.c.l.b16 %v5591
        %v6111 = vunpack.c.l.b16 %v5592
        %v6112 = vunpack.c.l.b16 %v5593
        %v6113 = vunpack.c.l.b16 %v5594
        %v6114 = vunpack.c.l.b16 %v5595
        %v6115 = vunpack.c.l.b16 %v5596
        %v6116 = vunpack.c.l.b16 %v5597
        %v6117 = vunpack.c.l.b16 %v5598
        %v6118 = vunpack.c.l.b16 %v5599
        %v6119 = vunpack.c.l.b16 %v5600
        %v6120 = vunpack.c.l.b16 %v5601
        %v6121 = vunpack.c.l.b16 %v5602
        %v6122 = vunpack.c.l.b16 %v5603
        %v6123 = vunpack.c.l.b16 %v5604
        %v6124 = vunpack.c.l.b16 %v5605
        %v6125 = vunpack.c.l.b16 %v5606
        %v6126 = vunpack.c.l.b16 %v5607
        %v6127 = vunpack.c.l.b16 %v5608
        %v6128 = vunpack.c.l.b16 %v5609
        %v6129 = vunpack.c.l.b16 %v5610
        %v6130 = vunpack.c.l.b16 %v5611
        %v6131 = vunpack.c.l.b16 %v5612
        %v6132 = vunpack.c.l.b16 %v5613
        %v6133 = vunpack.c.l.b16 %v5614
        %v6134 = vunpack.c.l.b16 %v5615
        %v6135 = vunpack.c.l.b16 %v5616
        %v6136 = vunpack.c.l.b16 %v5617
        %v6137 = vunpack.c.l.b16 %v5618
        %v6138 = vunpack.c.l.b16 %v5619
        %v6139 = vunpack.c.l.b16 %v5620
        %v6140 = vunpack.c.l.b16 %v5621
        %v6141 = vunpack.c.l.b16 %v5622
        %v6142 = vunpack.c.l.b16 %v5623
        %v6143 = vunpack.c.l.b16 %v5624
        %v6144 = vunpack.c.l.b16 %v5625
        %v6145 = vunpack.c.l.b16 %v5626
        %v6146 = vunpack.c.l.b16 %v5627
        %v6147 = vunpack.c.l.b16 %v5628
        %v6148 = vunpack.c.l.b16 %v5629
        %v6149 = vunpack.c.l.b16 %v5630
        %v6150 = vunpack.c.l.b16 %v5631
        %v6151 = vunpack.c.l.b16 %v5632
        %v6152 = vunpack.c.l.b16 %v5633
        %v6153 = vunpack.c.l.b16 %v5634
        %v6154 = vunpack.c.l.b16 %v5635
        %v6155 = vunpack.c.l.b16 %v5636
        %v6156 = vunpack.c.l.b16 %v5637
        %v6157 = vunpack.c.l.b16 %v5638
        %v6158 = vunpack.c.l.b16 %v5639
        %v6159 = vunpack.c.l.b16 %v5640
        %v6160 = vunpack.c.l.b16 %v5641
        %v6161 = vunpack.c.l.b16 %v5642
        %v6162 = vunpack.c.l.b16 %v5643
        %v6163 = vunpack.c.l.b16 %v5644
        %v6164 = vunpack.c.l.b16 %v5645
        %v6165 = vunpack.c.l.b16 %v5646
        %v6166 = vunpack.c.l.b16 %v5647
        %v6167 = vunpack.c.l.b16 %v5648
        %v6168 = vunpack.c.l.b16 %v5649
        %v6169 = vunpack.c.l.b16 %v5650
        %v6170 = vunpack.c.l.b16 %v5651
        %v6171 = vunpack.c.l.b16 %v5652
        %v6172 = vunpack.c.l.b16 %v5653
        %v6173 = vunpack.c.l.b16 %v5654
        %v6174 = vunpack.c.l.b16 %v5655
        %v6175 = vunpack.c.l.b16 %v5656
        %v6176 = vunpack.c.l.b16 %v5657
        %v6177 = vunpack.c.l.b16 %v5658
        %v6178 = vunpack.c.l.b16 %v5659
        %v6179 = vunpack.c.l.b16 %v5660
        %v6180 = vunpack.c.l.b16 %v5661
        %v6181 = vunpack.c.l.b16 %v5662
        %v6182 = vunpack.c.l.b16 %v5663
        %v6183 = vunpack.c.l.b16 %v5664
        %v6184 = vunpack.c.l.b16 %v5665
        %v6185 = vunpack.c.l.b16 %v5666
        %v6186 = vunpack.c.l.b16 %v5667
        %v6187 = vunpack.c.l.b16 %v5668
        %v6188 = vunpack.c.l.b16 %v5669
        %v6189 = vunpack.c.l.b16 %v5670
        %v6190 = vunpack.c.l.b16 %v5671
        %v6191 = vunpack.c.l.b16 %v5672
        %v6192 = vunpack.c.l.b16 %v5673
        %v6193 = vunpack.c.l.b16 %v5674
        %v6194 = vunpack.c.l.b16 %v5675
        %v6195 = vunpack.c.l.b16 %v5676
        %v6196 = vunpack.c.l.b16 %v5677
        %v6197 = vunpack.c.l.b16 %v5678
        %v6198 = vunpack.c.l.b16 %v5679
        %v6199 = vunpack.c.l.b16 %v5680
        %v6200 = vunpack.c.l.b16 %v5681
        %v6201 = vunpack.c.l.b16 %v5682
        %v6202 = vunpack.c.l.b16 %v5683
        %v6203 = vunpack.c.l.b16 %v5684
        %v6204 = vunpack.c.l.b16 %v5685
        %v6205 = vunpack.c.l.b16 %v5686
        %v6206 = vunpack.c.l.b16 %v5687
        %v6207 = vunpack.c.l.b16 %v5688
        %v6208 = vunpack.c.l.b16 %v5689
        %v6209 = vunpack.c.l.b16 %v5690
        %v6210 = vpack.c.b16 %v5955, %v5954
        %v6211 = vpack.c.b16 %v5957, %v5956
        %v6212 = vpack.c.b16 %v5959, %v5958
        %v6213 = vpack.c.b16 %v5961, %v5960
        %v6214 = vpack.c.b16 %v5963, %v5962
        %v6215 = vpack.c.b16 %v5965, %v5964
        %v6216 = vpack.c.b16 %v5967, %v5966
        %v6217 = vpack.c.b16 %v5969, %v5968
        %v6218 = vpack.c.b16 %v5971, %v5970
        %v6219 = vpack.c.b16 %v5973, %v5972
        %v6220 = vpack.c.b16 %v5975, %v5974
        %v6221 = vpack.c.b16 %v5977, %v5976
        %v6222 = vpack.c.b16 %v5979, %v5978
        %v6223 = vpack.c.b16 %v5981, %v5980
        %v6224 = vpack.c.b16 %v5983, %v5982
        %v6225 = vpack.c.b16 %v5985, %v5984
        %v6226 = vpack.c.b16 %v5987, %v5986
        %v6227 = vpack.c.b16 %v5989, %v5988
        %v6228 = vpack.c.b16 %v5991, %v5990
        %v6229 = vpack.c.b16 %v5993, %v5992
        %v6230 = vpack.c.b16 %v5995, %v5994
        %v6231 = vpack.c.b16 %v5997, %v5996
        %v6232 = vpack.c.b16 %v5999, %v5998
        %v6233 = vpack.c.b16 %v6001, %v6000
        %v6234 = vpack.c.b16 %v6003, %v6002
        %v6235 = vpack.c.b16 %v6005, %v6004
        %v6236 = vpack.c.b16 %v6007, %v6006
        %v6237 = vpack.c.b16 %v6009, %v6008
        %v6238 = vpack.c.b16 %v6011, %v6010
        %v6239 = vpack.c.b16 %v6013, %v6012
        %v6240 = vpack.c.b16 %v6015, %v6014
        %v6241 = vpack.c.b16 %v6017, %v6016
        %v6242 = vpack.c.b16 %v6019, %v6018
        %v6243 = vpack.c.b16 %v6021, %v6020
        %v6244 = vpack.c.b16 %v6023, %v6022
        %v6245 = vpack.c.b16 %v6025, %v6024
        %v6246 = vpack.c.b16 %v6027, %v6026
        %v6247 = vpack.c.b16 %v6029, %v6028
        %v6248 = vpack.c.b16 %v6031, %v6030
        %v6249 = vpack.c.b16 %v6033, %v6032
        %v6250 = vpack.c.b16 %v6035, %v6034
        %v6251 = vpack.c.b16 %v6037, %v6036
        %v6252 = vpack.c.b16 %v6039, %v6038
        %v6253 = vpack.c.b16 %v6041, %v6040
        %v6254 = vpack.c.b16 %v6043, %v6042
        %v6255 = vpack.c.b16 %v6045, %v6044
        %v6256 = vpack.c.b16 %v6047, %v6046
        %v6257 = vpack.c.b16 %v6049, %v6048
        %v6258 = vpack.c.b16 %v6051, %v6050
        %v6259 = vpack.c.b16 %v6053, %v6052
        %v6260 = vpack.c.b16 %v6055, %v6054
        %v6261 = vpack.c.b16 %v6057, %v6056
        %v6262 = vpack.c.b16 %v6059, %v6058
        %v6263 = vpack.c.b16 %v6061, %v6060
        %v6264 = vpack.c.b16 %v6063, %v6062
        %v6265 = vpack.c.b16 %v6065, %v6064
        %v6266 = vpack.c.b16 %v6067, %v6066
        %v6267 = vpack.c.b16 %v6069, %v6068
        %v6268 = vpack.c.b16 %v6071, %v6070
        %v6269 = vpack.c.b16 %v6073, %v6072
        %v6270 = vpack.c.b16 %v6075, %v6074
        %v6271 = vpack.c.b16 %v6077, %v6076
        %v6272 = vpack.c.b16 %v6079, %v6078
        %v6273 = vpack.c.b16 %v6081, %v6080
        %v6274 = vpack.c.b16 %v6083, %v6082
        %v6275 = vpack.c.b16 %v6085, %v6084
        %v6276 = vpack.c.b16 %v6087, %v6086
        %v6277 = vpack.c.b16 %v6089, %v6088
        %v6278 = vpack.c.b16 %v6091, %v6090
        %v6279 = vpack.c.b16 %v6093, %v6092
        %v6280 = vpack.c.b16 %v6095, %v6094
        %v6281 = vpack.c.b16 %v6097, %v6096
        %v6282 = vpack.c.b16 %v6099, %v6098
        %v6283 = vpack.c.b16 %v6101, %v6100
        %v6284 = vpack.c.b16 %v6103, %v6102
        %v6285 = vpack.c.b16 %v6105, %v6104
        %v6286 = vpack.c.b16 %v6107, %v6106
        %v6287 = vpack.c.b16 %v6109, %v6108
        %v6288 = vpack.c.b16 %v6111, %v6110
        %v6289 = vpack.c.b16 %v6113, %v6112
        %v6290 = vpack.c.b16 %v6115, %v6114
        %v6291 = vpack.c.b16 %v6117, %v6116
        %v6292 = vpack.c.b16 %v6119, %v6118
        %v6293 = vpack.c.b16 %v6121, %v6120
        %v6294 = vpack.c.b16 %v6123, %v6122
        %v6295 = vpack.c.b16 %v6125, %v6124
        %v6296 = vpack.c.b16 %v6127, %v6126
        %v6297 = vpack.c.b16 %v6129, %v6128
        %v6298 = vpack.c.b16 %v6131, %v6130
        %v6299 = vpack.c.b16 %v6133, %v6132
        %v6300 = vpack.c.b16 %v6135, %v6134
        %v6301 = vpack.c.b16 %v6137, %v6136
        %v6302 = vpack.c.b16 %v6139, %v6138
        %v6303 = vpack.c.b16 %v6141, %v6140
        %v6304 = vpack.c.b16 %v6143, %v6142
        %v6305 = vpack.c.b16 %v6145, %v6144
        %v6306 = vpack.c.b16 %v6147, %v6146
        %v6307 = vpack.c.b16 %v6149, %v6148
        %v6308 = vpack.c.b16 %v6151, %v6150
        %v6309 = vpack.c.b16 %v6153, %v6152
        %v6310 = vpack.c.b16 %v6155, %v6154
        %v6311 = vpack.c.b16 %v6157, %v6156
        %v6312 = vpack.c.b16 %v6159, %v6158
        %v6313 = vpack.c.b16 %v6161, %v6160
        %v6314 = vpack.c.b16 %v6163, %v6162
        %v6315 = vpack.c.b16 %v6165, %v6164
        %v6316 = vpack.c.b16 %v6167, %v6166
        %v6317 = vpack.c.b16 %v6169, %v6168
        %v6318 = vpack.c.b16 %v6171, %v6170
        %v6319 = vpack.c.b16 %v6173, %v6172
        %v6320 = vpack.c.b16 %v6175, %v6174
        %v6321 = vpack.c.b16 %v6177, %v6176
        %v6322 = vpack.c.b16 %v6179, %v6178
        %v6323 = vpack.c.b16 %v6181, %v6180
        %v6324 = vpack.c.b16 %v6183, %v6182
        %v6325 = vpack.c.b16 %v6185, %v6184
        %v6326 = vpack.c.b16 %v6187, %v6186
        %v6327 = vpack.c.b16 %v6189, %v6188
        %v6328 = vpack.c.b16 %v6191, %v6190
        %v6329 = vpack.c.b16 %v6193, %v6192
        %v6330 = vpack.c.b16 %v6195, %v6194
        %v6331 = vpack.c.b16 %v6197, %v6196
        %v6332 = vpack.c.b16 %v6199, %v6198
        %v6333 = vpack.c.b16 %v6201, %v6200
        %v6334 = vpack.c.b16 %v6203, %v6202
        %v6335 = vpack.c.b16 %v6205, %v6204
        %v6336 = vpack.c.b16 %v6207, %v6206
        %v6337 = vpack.c.b16 %v6209, %v6208
        %6466 = vmatprep.subr.bf16.mxu0 0
        %6467 = vmatpush1.bf16.msra.mxu0 %v6210
        %6468 = vmatprep.subr.bf16.mxu0 0
        %6469 = vmatpush1.bf16.msra.mxu0 %v6211
        %6470 = vmatprep.subr.bf16.mxu0 0
        %6471 = vmatpush1.bf16.msra.mxu0 %v6212
        %6472 = vmatprep.subr.bf16.mxu0 0
        %6473 = vmatpush1.bf16.msra.mxu0 %v6213
        %6474 = vmatprep.subr.bf16.mxu0 0
        %6475 = vmatpush1.bf16.msra.mxu0 %v6214
        %6476 = vmatprep.subr.bf16.mxu0 0
        %6477 = vmatpush1.bf16.msra.mxu0 %v6215
        %6478 = vmatprep.subr.bf16.mxu0 0
        %6479 = vmatpush1.bf16.msra.mxu0 %v6216
        %6480 = vmatprep.subr.bf16.mxu0 0
        %6481 = vmatpush1.bf16.msra.mxu0 %v6217
        %6482 = vmatprep.subr.bf16.mxu0 0
        %6483 = vmatpush1.bf16.msra.mxu0 %v6218
        %6484 = vmatprep.subr.bf16.mxu0 0
        %6485 = vmatpush1.bf16.msra.mxu0 %v6219
        %6486 = vmatprep.subr.bf16.mxu0 0
        %6487 = vmatpush1.bf16.msra.mxu0 %v6220
        %6488 = vmatprep.subr.bf16.mxu0 0
        %6489 = vmatpush1.bf16.msra.mxu0 %v6221
        %6490 = vmatprep.subr.bf16.mxu0 0
        %6491 = vmatpush1.bf16.msra.mxu0 %v6222
        %6492 = vmatprep.subr.bf16.mxu0 0
        %6493 = vmatpush1.bf16.msra.mxu0 %v6223
        %6494 = vmatprep.subr.bf16.mxu0 0
        %6495 = vmatpush1.bf16.msra.mxu0 %v6224
        %6496 = vmatprep.subr.bf16.mxu0 0
        %6497 = vmatpush1.bf16.msra.mxu0 %v6225
        %6498 = vmatprep.mubr.bf16.mxu0 %v5388
        %6499 = vmatmul.mubr.bf16.gmra.mrb[0].mxu0 %v5387
        %v6500 = vpop.f32.mrb[0].mxu0
        %v6501 = vadd.f32 %v5696, %v6500
        %v6502 = vpop.f32.mrb[0].mxu0
        %v6503 = vpop.f32.mrb[0].mxu0
        %v6504 = vadd.f32 %v5696, %v6503
        %v6505 = vpop.f32.mrb[0].mxu0
        %6506 = vmatprep.mubr.bf16.mxu0 %v5404
        %6507 = vmatmul.mubr.bf16.gmra.mrb[0].mxu0 %v5403
        %v6508 = vpop.f32.mrb[0].mxu0
        %v6509 = vadd.f32 %v5696, %v6508
        %v6510 = vpop.f32.mrb[0].mxu0
        %v6511 = vpop.f32.mrb[0].mxu0
        %v6512 = vadd.f32 %v5696, %v6511
        %v6513 = vpop.f32.mrb[0].mxu0
        %6514 = vmatprep.mubr.bf16.mxu0 %v5420
        %6515 = vmatmul.mubr.bf16.gmra.mrb[0].mxu0 %v5419
        %v6516 = vpop.f32.mrb[0].mxu0
        %v6517 = vadd.f32 %v5696, %v6516
        %v6518 = vpop.f32.mrb[0].mxu0
        %v6519 = vpop.f32.mrb[0].mxu0
        %v6520 = vadd.f32 %v5696, %v6519
        %v6521 = vpop.f32.mrb[0].mxu0
        %6522 = vdwg.mxu0
        %6523 = vmatprep.subr.bf16.mxu0 0
        %6524 = vmatpush1.bf16.msra.mxu0 %v6226
        %6525 = vmatprep.subr.bf16.mxu0 0
        %6526 = vmatpush1.bf16.msra.mxu0 %v6227
        %6527 = vmatprep.subr.bf16.mxu0 0
        %6528 = vmatpush1.bf16.msra.mxu0 %v6228
        %6529 = vmatprep.subr.bf16.mxu0 0
        %6530 = vmatpush1.bf16.msra.mxu0 %v6229
        %6531 = vmatprep.subr.bf16.mxu0 0
        %6532 = vmatpush1.bf16.msra.mxu0 %v6230
        %6533 = vmatprep.subr.bf16.mxu0 0
        %6534 = vmatpush1.bf16.msra.mxu0 %v6231
        %6535 = vmatprep.subr.bf16.mxu0 0
        %6536 = vmatpush1.bf16.msra.mxu0 %v6232
        %6537 = vmatprep.subr.bf16.mxu0 0
        %6538 = vmatpush1.bf16.msra.mxu0 %v6233
        %6539 = vmatprep.subr.bf16.mxu0 0
        %6540 = vmatpush1.bf16.msra.mxu0 %v6234
        %6541 = vmatprep.subr.bf16.mxu0 0
        %6542 = vmatpush1.bf16.msra.mxu0 %v6235
        %6543 = vmatprep.subr.bf16.mxu0 0
        %6544 = vmatpush1.bf16.msra.mxu0 %v6236
        %6545 = vmatprep.subr.bf16.mxu0 0
        %6546 = vmatpush1.bf16.msra.mxu0 %v6237
        %6547 = vmatprep.subr.bf16.mxu0 0
        %6548 = vmatpush1.bf16.msra.mxu0 %v6238
        %6549 = vmatprep.subr.bf16.mxu0 0
        %6550 = vmatpush1.bf16.msra.mxu0 %v6239
        %6551 = vmatprep.subr.bf16.mxu0 0
        %6552 = vmatpush1.bf16.msra.mxu0 %v6240
        %6553 = vmatprep.subr.bf16.mxu0 0
        %6554 = vmatpush1.bf16.msra.mxu0 %v6241
        %6555 = vmatprep.mubr.bf16.mxu0 %v5390
        %6556 = vmatmul.mubr.bf16.gmra.mrb[0].mxu0 %v5389
        %v6557 = vpop.f32.mrb[0].mxu0
        %v6558 = vadd.f32 %v6501, %v6557
        %v6559 = vpop.f32.mrb[0].mxu0
        %v6560 = vpop.f32.mrb[0].mxu0
        %v6561 = vadd.f32 %v6504, %v6560
        %v6562 = vpop.f32.mrb[0].mxu0
        %6563 = vmatprep.mubr.bf16.mxu0 %v5406
        %6564 = vmatmul.mubr.bf16.gmra.mrb[0].mxu0 %v5405
        %v6565 = vpop.f32.mrb[0].mxu0
        %v6566 = vadd.f32 %v6509, %v6565
        %v6567 = vpop.f32.mrb[0].mxu0
        %v6568 = vpop.f32.mrb[0].mxu0
        %v6569 = vadd.f32 %v6512, %v6568
        %v6570 = vpop.f32.mrb[0].mxu0
        %6571 = vmatprep.mubr.bf16.mxu0 %v5422
        %6572 = vmatmul.mubr.bf16.gmra.mrb[0].mxu0 %v5421
        %v6573 = vpop.f32.mrb[0].mxu0
        %v6574 = vadd.f32 %v6517, %v6573
        %v6575 = vpop.f32.mrb[0].mxu0
        %v6576 = vpop.f32.mrb[0].mxu0
        %v6577 = vadd.f32 %v6520, %v6576
        %v6578 = vpop.f32.mrb[0].mxu0
        %6579 = vdwg.mxu0
        %6580 = vmatprep.subr.bf16.mxu0 0
        %6581 = vmatpush1.bf16.msra.mxu0 %v6242
        %6582 = vmatprep.subr.bf16.mxu0 0
        %6583 = vmatpush1.bf16.msra.mxu0 %v6243
        %6584 = vmatprep.subr.bf16.mxu0 0
        %6585 = vmatpush1.bf16.msra.mxu0 %v6244
        %6586 = vmatprep.subr.bf16.mxu0 0
        %6587 = vmatpush1.bf16.msra.mxu0 %v6245
        %6588 = vmatprep.subr.bf16.mxu0 0
        %6589 = vmatpush1.bf16.msra.mxu0 %v6246
        %6590 = vmatprep.subr.bf16.mxu0 0
        %6591 = vmatpush1.bf16.msra.mxu0 %v6247
        %6592 = vmatprep.subr.bf16.mxu0 0
        %6593 = vmatpush1.bf16.msra.mxu0 %v6248
        %6594 = vmatprep.subr.bf16.mxu0 0
        %6595 = vmatpush1.bf16.msra.mxu0 %v6249
        %6596 = vmatprep.subr.bf16.mxu0 0
        %6597 = vmatpush1.bf16.msra.mxu0 %v6250
        %6598 = vmatprep.subr.bf16.mxu0 0
        %6599 = vmatpush1.bf16.msra.mxu0 %v6251
        %6600 = vmatprep.subr.bf16.mxu0 0
        %6601 = vmatpush1.bf16.msra.mxu0 %v6252
        %6602 = vmatprep.subr.bf16.mxu0 0
        %6603 = vmatpush1.bf16.msra.mxu0 %v6253
        %6604 = vmatprep.subr.bf16.mxu0 0
        %6605 = vmatpush1.bf16.msra.mxu0 %v6254
        %6606 = vmatprep.subr.bf16.mxu0 0
        %6607 = vmatpush1.bf16.msra.mxu0 %v6255
        %6608 = vmatprep.subr.bf16.mxu0 0
        %6609 = vmatpush1.bf16.msra.mxu0 %v6256
        %6610 = vmatprep.subr.bf16.mxu0 0
        %6611 = vmatpush1.bf16.msra.mxu0 %v6257
        %6612 = vmatprep.mubr.bf16.mxu0 %v5392
        %6613 = vmatmul.mubr.bf16.gmra.mrb[0].mxu0 %v5391
        %v6614 = vpop.f32.mrb[0].mxu0
        %v6615 = vadd.f32 %v6558, %v6614
        %v6616 = vpop.f32.mrb[0].mxu0
        %v6617 = vpop.f32.mrb[0].mxu0
        %v6618 = vadd.f32 %v6561, %v6617
        %v6619 = vpop.f32.mrb[0].mxu0
        %6620 = vmatprep.mubr.bf16.mxu0 %v5408
        %6621 = vmatmul.mubr.bf16.gmra.mrb[0].mxu0 %v5407
        %v6622 = vpop.f32.mrb[0].mxu0
        %v6623 = vadd.f32 %v6566, %v6622
        %v6624 = vpop.f32.mrb[0].mxu0
        %v6625 = vpop.f32.mrb[0].mxu0
        %v6626 = vadd.f32 %v6569, %v6625
        %v6627 = vpop.f32.mrb[0].mxu0
        %6628 = vmatprep.mubr.bf16.mxu0 %v5424
        %6629 = vmatmul.mubr.bf16.gmra.mrb[0].mxu0 %v5423
        %v6630 = vpop.f32.mrb[0].mxu0
        %v6631 = vadd.f32 %v6574, %v6630
        %v6632 = vpop.f32.mrb[0].mxu0
        %v6633 = vpop.f32.mrb[0].mxu0
        %v6634 = vadd.f32 %v6577, %v6633
        %v6635 = vpop.f32.mrb[0].mxu0
        %6636 = vdwg.mxu0
        %6637 = vmatprep.subr.bf16.mxu0 0
        %6638 = vmatpush1.bf16.msra.mxu0 %v6258
        %6639 = vmatprep.subr.bf16.mxu0 0
        %6640 = vmatpush1.bf16.msra.mxu0 %v6259
        %6641 = vmatprep.subr.bf16.mxu0 0
        %6642 = vmatpush1.bf16.msra.mxu0 %v6260
        %6643 = vmatprep.subr.bf16.mxu0 0
        %6644 = vmatpush1.bf16.msra.mxu0 %v6261
        %6645 = vmatprep.subr.bf16.mxu0 0
        %6646 = vmatpush1.bf16.msra.mxu0 %v6262
        %6647 = vmatprep.subr.bf16.mxu0 0
        %6648 = vmatpush1.bf16.msra.mxu0 %v6263
        %6649 = vmatprep.subr.bf16.mxu0 0
        %6650 = vmatpush1.bf16.msra.mxu0 %v6264
        %6651 = vmatprep.subr.bf16.mxu0 0
        %6652 = vmatpush1.bf16.msra.mxu0 %v6265
        %6653 = vmatprep.subr.bf16.mxu0 0
        %6654 = vmatpush1.bf16.msra.mxu0 %v6266
        %6655 = vmatprep.subr.bf16.mxu0 0
        %6656 = vmatpush1.bf16.msra.mxu0 %v6267
        %6657 = vmatprep.subr.bf16.mxu0 0
        %6658 = vmatpush1.bf16.msra.mxu0 %v6268
        %6659 = vmatprep.subr.bf16.mxu0 0
        %6660 = vmatpush1.bf16.msra.mxu0 %v6269
        %6661 = vmatprep.subr.bf16.mxu0 0
        %6662 = vmatpush1.bf16.msra.mxu0 %v6270
        %6663 = vmatprep.subr.bf16.mxu0 0
        %6664 = vmatpush1.bf16.msra.mxu0 %v6271
        %6665 = vmatprep.subr.bf16.mxu0 0
        %6666 = vmatpush1.bf16.msra.mxu0 %v6272
        %6667 = vmatprep.subr.bf16.mxu0 0
        %6668 = vmatpush1.bf16.msra.mxu0 %v6273
        %6669 = vmatprep.mubr.bf16.mxu0 %v5394
        %6670 = vmatmul.mubr.bf16.gmra.mrb[0].mxu0 %v5393
        %v6671 = vpop.f32.mrb[0].mxu0
        %v6672 = vadd.f32 %v6615, %v6671
        %v6673 = vpop.f32.mrb[0].mxu0
        %v6674 = vpop.f32.mrb[0].mxu0
        %v6675 = vadd.f32 %v6618, %v6674
        %v6676 = vpop.f32.mrb[0].mxu0
        %6677 = vmatprep.mubr.bf16.mxu0 %v5410
        %6678 = vmatmul.mubr.bf16.gmra.mrb[0].mxu0 %v5409
        %v6679 = vpop.f32.mrb[0].mxu0
        %v6680 = vadd.f32 %v6623, %v6679
        %v6681 = vpop.f32.mrb[0].mxu0
        %v6682 = vpop.f32.mrb[0].mxu0
        %v6683 = vadd.f32 %v6626, %v6682
        %v6684 = vpop.f32.mrb[0].mxu0
        %6685 = vmatprep.mubr.bf16.mxu0 %v5426
        %6686 = vmatmul.mubr.bf16.gmra.mrb[0].mxu0 %v5425
        %v6687 = vpop.f32.mrb[0].mxu0
        %v6688 = vadd.f32 %v6631, %v6687
        %v6689 = vpop.f32.mrb[0].mxu0
        %v6690 = vpop.f32.mrb[0].mxu0
        %v6691 = vadd.f32 %v6634, %v6690
        %v6692 = vpop.f32.mrb[0].mxu0
        %6693 = vdwg.mxu0
        %6694 = vmatprep.subr.bf16.mxu0 0
        %6695 = vmatpush1.bf16.msra.mxu0 %v6274
        %6696 = vmatprep.subr.bf16.mxu0 0
        %6697 = vmatpush1.bf16.msra.mxu0 %v6275
        %6698 = vmatprep.subr.bf16.mxu0 0
        %6699 = vmatpush1.bf16.msra.mxu0 %v6276
        %6700 = vmatprep.subr.bf16.mxu0 0
        %6701 = vmatpush1.bf16.msra.mxu0 %v6277
        %6702 = vmatprep.subr.bf16.mxu0 0
        %6703 = vmatpush1.bf16.msra.mxu0 %v6278
        %6704 = vmatprep.subr.bf16.mxu0 0
        %6705 = vmatpush1.bf16.msra.mxu0 %v6279
        %6706 = vmatprep.subr.bf16.mxu0 0
        %6707 = vmatpush1.bf16.msra.mxu0 %v6280
        %6708 = vmatprep.subr.bf16.mxu0 0
        %6709 = vmatpush1.bf16.msra.mxu0 %v6281
        %6710 = vmatprep.subr.bf16.mxu0 0
        %6711 = vmatpush1.bf16.msra.mxu0 %v6282
        %6712 = vmatprep.subr.bf16.mxu0 0
        %6713 = vmatpush1.bf16.msra.mxu0 %v6283
        %6714 = vmatprep.subr.bf16.mxu0 0
        %6715 = vmatpush1.bf16.msra.mxu0 %v6284
        %6716 = vmatprep.subr.bf16.mxu0 0
        %6717 = vmatpush1.bf16.msra.mxu0 %v6285
        %6718 = vmatprep.subr.bf16.mxu0 0
        %6719 = vmatpush1.bf16.msra.mxu0 %v6286
        %6720 = vmatprep.subr.bf16.mxu0 0
        %6721 = vmatpush1.bf16.msra.mxu0 %v6287
        %6722 = vmatprep.subr.bf16.mxu0 0
        %6723 = vmatpush1.bf16.msra.mxu0 %v6288
        %6724 = vmatprep.subr.bf16.mxu0 0
        %6725 = vmatpush1.bf16.msra.mxu0 %v6289
        %6726 = vmatprep.mubr.bf16.mxu0 %v5396
        %6727 = vmatmul.mubr.bf16.gmra.mrb[0].mxu0 %v5395
        %v6728 = vpop.f32.mrb[0].mxu0
        %v6729 = vadd.f32 %v6672, %v6728
        %v6730 = vpop.f32.mrb[0].mxu0
        %v6731 = vpop.f32.mrb[0].mxu0
        %v6732 = vadd.f32 %v6675, %v6731
        %v6733 = vpop.f32.mrb[0].mxu0
        %6734 = vmatprep.mubr.bf16.mxu0 %v5412
        %6735 = vmatmul.mubr.bf16.gmra.mrb[0].mxu0 %v5411
        %v6736 = vpop.f32.mrb[0].mxu0
        %v6737 = vadd.f32 %v6680, %v6736
        %v6738 = vpop.f32.mrb[0].mxu0
        %v6739 = vpop.f32.mrb[0].mxu0
        %v6740 = vadd.f32 %v6683, %v6739
        %v6741 = vpop.f32.mrb[0].mxu0
        %6742 = vmatprep.mubr.bf16.mxu0 %v5428
        %6743 = vmatmul.mubr.bf16.gmra.mrb[0].mxu0 %v5427
        %v6744 = vpop.f32.mrb[0].mxu0
        %v6745 = vadd.f32 %v6688, %v6744
        %v6746 = vpop.f32.mrb[0].mxu0
        %v6747 = vpop.f32.mrb[0].mxu0
        %v6748 = vadd.f32 %v6691, %v6747
        %v6749 = vpop.f32.mrb[0].mxu0
        %6750 = vdwg.mxu0
        %6751 = vmatprep.subr.bf16.mxu0 0
        %6752 = vmatpush1.bf16.msra.mxu0 %v6290
        %6753 = vmatprep.subr.bf16.mxu0 0
        %6754 = vmatpush1.bf16.msra.mxu0 %v6291
        %6755 = vmatprep.subr.bf16.mxu0 0
        %6756 = vmatpush1.bf16.msra.mxu0 %v6292
        %6757 = vmatprep.subr.bf16.mxu0 0
        %6758 = vmatpush1.bf16.msra.mxu0 %v6293
        %6759 = vmatprep.subr.bf16.mxu0 0
        %6760 = vmatpush1.bf16.msra.mxu0 %v6294
        %6761 = vmatprep.subr.bf16.mxu0 0
        %6762 = vmatpush1.bf16.msra.mxu0 %v6295
        %6763 = vmatprep.subr.bf16.mxu0 0
        %6764 = vmatpush1.bf16.msra.mxu0 %v6296
        %6765 = vmatprep.subr.bf16.mxu0 0
        %6766 = vmatpush1.bf16.msra.mxu0 %v6297
        %6767 = vmatprep.subr.bf16.mxu0 0
        %6768 = vmatpush1.bf16.msra.mxu0 %v6298
        %6769 = vmatprep.subr.bf16.mxu0 0
        %6770 = vmatpush1.bf16.msra.mxu0 %v6299
        %6771 = vmatprep.subr.bf16.mxu0 0
        %6772 = vmatpush1.bf16.msra.mxu0 %v6300
        %6773 = vmatprep.subr.bf16.mxu0 0
        %6774 = vmatpush1.bf16.msra.mxu0 %v6301
        %6775 = vmatprep.subr.bf16.mxu0 0
        %6776 = vmatpush1.bf16.msra.mxu0 %v6302
        %6777 = vmatprep.subr.bf16.mxu0 0
        %6778 = vmatpush1.bf16.msra.mxu0 %v6303
        %6779 = vmatprep.subr.bf16.mxu0 0
        %6780 = vmatpush1.bf16.msra.mxu0 %v6304
        %6781 = vmatprep.subr.bf16.mxu0 0
        %6782 = vmatpush1.bf16.msra.mxu0 %v6305
        %6783 = vmatprep.mubr.bf16.mxu0 %v5398
        %6784 = vmatmul.mubr.bf16.gmra.mrb[0].mxu0 %v5397
        %v6785 = vpop.f32.mrb[0].mxu0
        %v6786 = vadd.f32 %v6729, %v6785
        %v6787 = vpop.f32.mrb[0].mxu0
        %v6788 = vpop.f32.mrb[0].mxu0
        %v6789 = vadd.f32 %v6732, %v6788
        %v6790 = vpop.f32.mrb[0].mxu0
        %6791 = vmatprep.mubr.bf16.mxu0 %v5414
        %6792 = vmatmul.mubr.bf16.gmra.mrb[0].mxu0 %v5413
        %v6793 = vpop.f32.mrb[0].mxu0
        %v6794 = vadd.f32 %v6737, %v6793
        %v6795 = vpop.f32.mrb[0].mxu0
        %v6796 = vpop.f32.mrb[0].mxu0
        %v6797 = vadd.f32 %v6740, %v6796
        %v6798 = vpop.f32.mrb[0].mxu0
        %6799 = vmatprep.mubr.bf16.mxu0 %v5430
        %6800 = vmatmul.mubr.bf16.gmra.mrb[0].mxu0 %v5429
        %v6801 = vpop.f32.mrb[0].mxu0
        %v6802 = vadd.f32 %v6745, %v6801
        %v6803 = vpop.f32.mrb[0].mxu0
        %v6804 = vpop.f32.mrb[0].mxu0
        %v6805 = vadd.f32 %v6748, %v6804
        %v6806 = vpop.f32.mrb[0].mxu0
        %6807 = vdwg.mxu0
        %6808 = vmatprep.subr.bf16.mxu0 0
        %6809 = vmatpush1.bf16.msra.mxu0 %v6306
        %6810 = vmatprep.subr.bf16.mxu0 0
        %6811 = vmatpush1.bf16.msra.mxu0 %v6307
        %6812 = vmatprep.subr.bf16.mxu0 0
        %6813 = vmatpush1.bf16.msra.mxu0 %v6308
        %6814 = vmatprep.subr.bf16.mxu0 0
        %6815 = vmatpush1.bf16.msra.mxu0 %v6309
        %6816 = vmatprep.subr.bf16.mxu0 0
        %6817 = vmatpush1.bf16.msra.mxu0 %v6310
        %6818 = vmatprep.subr.bf16.mxu0 0
        %6819 = vmatpush1.bf16.msra.mxu0 %v6311
        %6820 = vmatprep.subr.bf16.mxu0 0
        %6821 = vmatpush1.bf16.msra.mxu0 %v6312
        %6822 = vmatprep.subr.bf16.mxu0 0
        %6823 = vmatpush1.bf16.msra.mxu0 %v6313
        %6824 = vmatprep.subr.bf16.mxu0 0
        %6825 = vmatpush1.bf16.msra.mxu0 %v6314
        %6826 = vmatprep.subr.bf16.mxu0 0
        %6827 = vmatpush1.bf16.msra.mxu0 %v6315
        %6828 = vmatprep.subr.bf16.mxu0 0
        %6829 = vmatpush1.bf16.msra.mxu0 %v6316
        %6830 = vmatprep.subr.bf16.mxu0 0
        %6831 = vmatpush1.bf16.msra.mxu0 %v6317
        %6832 = vmatprep.subr.bf16.mxu0 0
        %6833 = vmatpush1.bf16.msra.mxu0 %v6318
        %6834 = vmatprep.subr.bf16.mxu0 0
        %6835 = vmatpush1.bf16.msra.mxu0 %v6319
        %6836 = vmatprep.subr.bf16.mxu0 0
        %6837 = vmatpush1.bf16.msra.mxu0 %v6320
        %6838 = vmatprep.subr.bf16.mxu0 0
        %6839 = vmatpush1.bf16.msra.mxu0 %v6321
        %6840 = vmatprep.mubr.bf16.mxu0 %v5400
        %6841 = vmatmul.mubr.bf16.gmra.mrb[0].mxu0 %v5399
        %v6842 = vpop.f32.mrb[0].mxu0
        %v6843 = vadd.f32 %v6786, %v6842
        %v6844 = vpop.f32.mrb[0].mxu0
        %v6845 = vpop.f32.mrb[0].mxu0
        %v6846 = vadd.f32 %v6789, %v6845
        %v6847 = vpop.f32.mrb[0].mxu0
        %6848 = vmatprep.mubr.bf16.mxu0 %v5416
        %6849 = vmatmul.mubr.bf16.gmra.mrb[0].mxu0 %v5415
        %v6850 = vpop.f32.mrb[0].mxu0
        %v6851 = vadd.f32 %v6794, %v6850
        %v6852 = vpop.f32.mrb[0].mxu0
        %v6853 = vpop.f32.mrb[0].mxu0
        %v6854 = vadd.f32 %v6797, %v6853
        %v6855 = vpop.f32.mrb[0].mxu0
        %6856 = vmatprep.mubr.bf16.mxu0 %v5432
        %6857 = vmatmul.mubr.bf16.gmra.mrb[0].mxu0 %v5431
        %v6858 = vpop.f32.mrb[0].mxu0
        %v6859 = vadd.f32 %v6802, %v6858
        %v6860 = vpop.f32.mrb[0].mxu0
        %v6861 = vpop.f32.mrb[0].mxu0
        %v6862 = vadd.f32 %v6805, %v6861
        %v6863 = vpop.f32.mrb[0].mxu0
        %6864 = vdwg.mxu0
        %6865 = vmatprep.subr.bf16.mxu0 0
        %6866 = vmatpush1.bf16.msra.mxu0 %v6322
        %6867 = vmatprep.subr.bf16.mxu0 0
        %6868 = vmatpush1.bf16.msra.mxu0 %v6323
        %6869 = vmatprep.subr.bf16.mxu0 0
        %6870 = vmatpush1.bf16.msra.mxu0 %v6324
        %6871 = vmatprep.subr.bf16.mxu0 0
        %6872 = vmatpush1.bf16.msra.mxu0 %v6325
        %6873 = vmatprep.subr.bf16.mxu0 0
        %6874 = vmatpush1.bf16.msra.mxu0 %v6326
        %6875 = vmatprep.subr.bf16.mxu0 0
        %6876 = vmatpush1.bf16.msra.mxu0 %v6327
        %6877 = vmatprep.subr.bf16.mxu0 0
        %6878 = vmatpush1.bf16.msra.mxu0 %v6328
        %6879 = vmatprep.subr.bf16.mxu0 0
        %6880 = vmatpush1.bf16.msra.mxu0 %v6329
        %6881 = vmatprep.subr.bf16.mxu0 0
        %6882 = vmatpush1.bf16.msra.mxu0 %v6330
        %6883 = vmatprep.subr.bf16.mxu0 0
        %6884 = vmatpush1.bf16.msra.mxu0 %v6331
        %6885 = vmatprep.subr.bf16.mxu0 0
        %6886 = vmatpush1.bf16.msra.mxu0 %v6332
        %6887 = vmatprep.subr.bf16.mxu0 0
        %6888 = vmatpush1.bf16.msra.mxu0 %v6333
        %6889 = vmatprep.subr.bf16.mxu0 0
        %6890 = vmatpush1.bf16.msra.mxu0 %v6334
        %6891 = vmatprep.subr.bf16.mxu0 0
        %6892 = vmatpush1.bf16.msra.mxu0 %v6335
        %6893 = vmatprep.subr.bf16.mxu0 0
        %6894 = vmatpush1.bf16.msra.mxu0 %v6336
        %6895 = vmatprep.subr.bf16.mxu0 0
        %6896 = vmatpush1.bf16.msra.mxu0 %v6337
        %6897 = vmatprep.mubr.bf16.mxu0 %v5402
        %6898 = vmatmul.mubr.bf16.gmra.mrb[0].mxu0 %v5401
        %v6899 = vpop.f32.mrb[0].mxu0
        %v6900 = vadd.f32 %v6843, %v6899
        %v6901 = vpop.f32.mrb[0].mxu0
        %v6902 = vpop.f32.mrb[0].mxu0
        %v6903 = vadd.f32 %v6846, %v6902
        %v6904 = vpop.f32.mrb[0].mxu0
        %6905 = vmatprep.mubr.bf16.mxu0 %v5418
        %6906 = vmatmul.mubr.bf16.gmra.mrb[0].mxu0 %v5417
        %v6907 = vpop.f32.mrb[0].mxu0
        %v6908 = vadd.f32 %v6851, %v6907
        %v6909 = vpop.f32.mrb[0].mxu0
        %v6910 = vpop.f32.mrb[0].mxu0
        %v6911 = vadd.f32 %v6854, %v6910
        %v6912 = vpop.f32.mrb[0].mxu0
        %6913 = vmatprep.mubr.bf16.mxu0 %v5434
        %6914 = vmatmul.mubr.bf16.gmra.mrb[0].mxu0 %v5433
        %v6915 = vpop.f32.mrb[0].mxu0
        %v6916 = vadd.f32 %v6859, %v6915
        %v6917 = vpop.f32.mrb[0].mxu0
        %v6918 = vpop.f32.mrb[0].mxu0
        %v6919 = vadd.f32 %v6862, %v6918
        %v6920 = vpop.f32.mrb[0].mxu0
        %6921 = vdwg.mxu0
        %v6922 = vadd.f32 %v4389, %v6900
        %v6923 = vadd.f32 %v4390, %v6903
        %v6924 = vadd.f32 %v4391, %v6908
        %v6925 = vadd.f32 %v4392, %v6911
        %v6926 = vadd.f32 %v4393, %v6916
        %v6927 = vadd.f32 %v4394, %v6919
        %v6928 = vld [vmem:[%s4] sm:$0xff]
        %v6929 = vld [vmem:[%s4 + $0x8] sm:$0xff]
        %v6930 = vld [vmem:[%s4 + $0x10] sm:$0xff]
        %v6931 = vld [vmem:[%s4 + $0x18] sm:$0xff]
        %v6932 = vld [vmem:[%s4 + $0x20] sm:$0xff]
        %v6933 = vld [vmem:[%s4 + $0x28] sm:$0xff]
        %6935 = vset.pattern.permute.xlu0 0
        %6936 = vperm.xlu0 %6935, %v6928
        %v6937 = vpop.permute.xlu0 %6936
        %6940 = vset.pattern.permute.xlu0 0
        %6941 = vperm.xlu0 %6940, %v6929
        %v6942 = vpop.permute.xlu0 %6941
        %6945 = vset.pattern.permute.xlu0 0
        %6946 = vperm.xlu0 %6945, %v6930
        %v6947 = vpop.permute.xlu0 %6946
        %6950 = vset.pattern.permute.xlu0 0
        %6951 = vperm.xlu0 %6950, %v6931
        %v6952 = vpop.permute.xlu0 %6951
        %6955 = vset.pattern.permute.xlu0 0
        %6956 = vperm.xlu0 %6955, %v6932
        %v6957 = vpop.permute.xlu0 %6956
        %6960 = vset.pattern.permute.xlu0 0
        %6961 = vperm.xlu0 %6960, %v6933
        %v6962 = vpop.permute.xlu0 %6961
        %v6964 = vmul.f32 %v6922, %v6937
        %v6965 = vmul.f32 %v6923, %v6942
        %v6966 = vmul.f32 %v6924, %v6947
        %v6967 = vmul.f32 %v6925, %v6952
        %v6968 = vmul.f32 %v6926, %v6957
        %v6969 = vmul.f32 %v6927, %v6962
        %6970 = vst.msk [vmem:[#allocation2] sm:$0xff] %vm1155, %v6964
        %6971 = vst.msk [vmem:[#allocation2 + $0x8] sm:$0xff] %vm1155, %v6965
        %6972 = vst.msk [vmem:[#allocation2 + $0x10] sm:$0xff] %vm1155, %v6966
        %6973 = vst.msk [vmem:[#allocation2 + $0x18] sm:$0xff] %vm1155, %v6967
        %6974 = vst.msk [vmem:[#allocation2 + $0x20] sm:$0xff] %vm1155, %v6968
        %6975 = vst.msk [vmem:[#allocation2 + $0x28] sm:$0xff] %vm1155, %v6969
        %p6976 = scmp.eq.s32.totalorder %s37, 1
        // Predicated region
        $region125: #{tpu_custom_call.1} parent=119 // pred_check
          %p6977 = pneg %p6976
        $region126: #{tpu_custom_call.1} parent=119 // pred_check_branch
          %6979 = sbr.rel (%p6977) target = $region128
        $region127: #{tpu_custom_call.1} parent=119 // pred_region
          %v6981 = vrot.slane %v6967, 7
          %vm6983 = vcmask 1040384
          %v6984 = vsel %vm6983, %v6964, %v6981
          %v6985 = vld [vmem:[%s21] sm:$0x1]
          %v6986 = vld [vmem:[%s22] sm:$0x1]
          %vm6987 = vcmask 254976
          %v6988 = vsel %vm6987, %v6984, 0.0
          %6989 = vadd.xlane.f32.xlu0 %v6988
          %v6990 = vpop.xlane.xlu0 %6989
          %v6991 = vmul.f32 %v6990, %v1174
          %v6992 = vsub.f32 %v6984, %v6991
          %v6993 = vmul.f32 %v6992, %v6992
          %v6994 = vsel %vm6987, %v6993, 0.0
          %6995 = vadd.xlane.f32.xlu0 %v6994
          %v6996 = vpop.xlane.xlu0 %6995
          %v6997 = vmul.f32 %v6996, %v1174
          %v6998 = vadd.f32 %v6997, 1e-05
          %v6999 = vrsqrt.pop %v6998
          %v7000 = vmul.f32 %v6992, %v6999
          %v7002 = vlaneseq
          %v7003 = vshrl.u32 %v7002, 7
          %v7004 = vsub.s32 0, %v7003
          %v7005 = vrot.slane %v6985, %v7004
          %v7007 = vmul.f32 %v7000, %v7005
          %v7009 = vlaneseq
          %v7010 = vshrl.u32 %v7009, 7
          %v7011 = vsub.s32 0, %v7010
          %v7012 = vrot.slane %v6986, %v7011
          %v7014 = vadd.f32 %v7007, %v7012
          %v7015 = vld [vmem:[%s23] sm:$0xff]
          %v7016 = vld [vmem:[%s23 + $0x8] sm:$0xff]
          %v7017 = vld [vmem:[%s23 + $0x10] sm:$0xff]
          %v7018 = vld [vmem:[%s23 + $0x18] sm:$0xff]
          %v7019 = vld [vmem:[%s24] sm:$0x1]
          %v7021 = vlaneseq
          %v7022 = vshrl.u32 %v7021, 7
          %v7023 = vsub.s32 0, %v7022
          %v7024 = vrot.slane %v7019, %v7023
          %v7027 = vsel %vm1155, %v7014, 0
          %7029 = vmatprep.subr.mxu0 0.0
          %7030 = vmatpush1.msra.mxu0 %v7015
          %7031 = vmatprep.subr.mxu0 0.0
          %7032 = vmatpush1.msra.mxu0 %v7016
          %7033 = vmatprep.subr.mxu0 0.0
          %7034 = vmatpush1.msra.mxu0 %v7017
          %7035 = vmatprep.subr.mxu0 0.0
          %7036 = vmatpush1.msra.mxu0 %v7018
          %7037 = vmatprep.subr.mxu0 0.0
          %7038 = vmatpush1.msra.mxu0 0.0
          %7039 = vmatprep.subr.mxu0 0.0
          %7040 = vmatpush1.msra.mxu0 0.0
          %7041 = vmatprep.subr.mxu0 0.0
          %7042 = vmatpush1.msra.mxu0 0.0
          %7043 = vmatprep.subr.mxu0 0.0
          %7044 = vmatpush1.msra.mxu0 0.0
          %7045 = vmatprep.subr.mxu0 0.0
          %7046 = vmatpush1.msra.mxu0 0.0
          %7047 = vmatprep.subr.mxu0 0.0
          %7048 = vmatpush1.msra.mxu0 0.0
          %7049 = vmatprep.subr.mxu0 0.0
          %7050 = vmatpush1.msra.mxu0 0.0
          %7051 = vmatprep.subr.mxu0 0.0
          %7052 = vmatpush1.msra.mxu0 0.0
          %7053 = vmatprep.subr.mxu0 0.0
          %7054 = vmatpush1.msra.mxu0 0.0
          %7055 = vmatprep.subr.mxu0 0.0
          %7056 = vmatpush1.msra.mxu0 0.0
          %7057 = vmatprep.subr.mxu0 0.0
          %7058 = vmatpush1.msra.mxu0 0.0
          %7059 = vmatprep.subr.mxu0 0.0
          %7060 = vmatpush1.msra.mxu0 0.0
          %7061 = vmatprep.subr.mxu0 0.0
          %7062 = vmatpush1.msra.mxu0 0.0
          %7063 = vmatprep.subr.mxu0 0.0
          %7064 = vmatpush1.msra.mxu0 0.0
          %7065 = vmatprep.subr.mxu0 0.0
          %7066 = vmatpush1.msra.mxu0 0.0
          %7067 = vmatprep.subr.mxu0 0.0
          %7068 = vmatpush1.msra.mxu0 0.0
          %7069 = vmatprep.subr.mxu0 0.0
          %7070 = vmatpush1.msra.mxu0 0.0
          %7071 = vmatprep.subr.mxu0 0.0
          %7072 = vmatpush1.msra.mxu0 0.0
          %7073 = vmatprep.subr.mxu0 0.0
          %7074 = vmatpush1.msra.mxu0 0.0
          %7075 = vmatprep.subr.mxu0 0.0
          %7076 = vmatpush1.msra.mxu0 0.0
          %7077 = vmatprep.subr.mxu0 0.0
          %7078 = vmatpush1.msra.mxu0 0.0
          %7079 = vmatprep.subr.mxu0 0.0
          %7080 = vmatpush1.msra.mxu0 0.0
          %7081 = vmatprep.subr.mxu0 0.0
          %7082 = vmatpush1.msra.mxu0 0.0
          %7083 = vmatprep.subr.mxu0 0.0
          %7084 = vmatpush1.msra.mxu0 0.0
          %7085 = vmatprep.subr.mxu0 0.0
          %7086 = vmatpush1.msra.mxu0 0.0
          %7087 = vmatprep.subr.mxu0 0.0
          %7088 = vmatpush1.msra.mxu0 0.0
          %7089 = vmatprep.subr.mxu0 0.0
          %7090 = vmatpush1.msra.mxu0 0.0
          %7091 = vmatprep.subr.mxu0 0.0
          %7092 = vmatpush1.msra.mxu0 0.0
          %7093 = vmatprep.mubr.f32.mxu0 0.0
          %7094 = vmatmul.mubr.f32.gmra.mrb[0].mxu0 %v7027
          %v7095 = vpop.f32.mrb[0].mxu0
          %v7096 = vadd.f32 %v7024, %v7095
          %v7097 = vpop.f32.mrb[0].mxu0
          %7098 = vdwg.mxu0
          %vm7099 = vcmask 74752
          %7100 = vst.msk [vmem:[#allocation3] sm:$0x3] %vm7099, %v7096
        $region128: #{tpu_custom_call.1} parent=119 // pred_fallthru
          _
        // Predicated region
        $region129: #{tpu_custom_call.1} parent=119 // pred_check
          %p7101 = pneg %p655
        $region130: #{tpu_custom_call.1} parent=119 // pred_check_branch
          %7103 = sbr.rel (%p7101) target = $region132
        $region131: #{tpu_custom_call.1} parent=119 // pred_region
          %s7105 = ssub.s32 32, 32
          %7106 = vsyncadd [#allocation4], %s7105
          %s7108 = sshll.u32 [#allocation3], 4
          %s7109 = int_to_ptr.vmem [resolvable:$true] %s7108
          %7111 = dma.vmem_to_hbm [thread:$0]  %s7109, 32, %s25, [#allocation4]
        $region132: #{tpu_custom_call.1} parent=119 // pred_fallthru
          _
        // Predicated region
        $region133: #{tpu_custom_call.1} parent=119 // pred_check
          %p7112 = pneg %p655
        $region134: #{tpu_custom_call.1} parent=119 // pred_check_branch
          %7114 = sbr.rel (%p7112) target = $region136
        $region135: #{tpu_custom_call.1} parent=119 // pred_region
          %7115 = dma.done [#allocation4], 32
        $region136: #{tpu_custom_call.1} parent=119 // pred_fallthru
          _
      $region120: #{tpu_custom_call.1} parent=5 // pred_fallthru
        _
      %p7116 = scmp.le.s32.totalorder 2, %s32
      // Predicated region
      $region137: #{tpu_custom_call.1} parent=5 // pred_check
        %p7117 = pneg %p7116
      $region138: #{tpu_custom_call.1} parent=5 // pred_check_branch
        %7119 = sbr.rel (%p7117) target = $region140
      $region139: #{tpu_custom_call.1} parent=5 // pred_region
        %s7120 = ssub.s32 %s32, 2
      $region140: #{tpu_custom_call.1} parent=5 // pred_fallthru
        _
    $region6: #{tpu_custom_call.1} parent=1 // loop_footer
      %s36 = sadd.s32 1, %s32
    $region7: #{tpu_custom_call.1} parent=1 // loop_footer_branch
      %31 = sbr.rel target = $region3
    $region8: #{tpu_custom_call.1} parent=1 // loop_exit
      _
    %7121 = vsyncpa [#allocation4], 1
    %s7122 = scalar_lea.sflag [#allocation4], 1
    %7123 = vsyncpa %s7122, 1

</llo_original>
